<compile_context>
chip_gen: v6e
topology: v6e:2x2x1
jax: 0.10.0
libtpu: 0.0.40
codegen_flags: <defaults>
</compile_context>

<pallas_src>
import jax
import jax.numpy as jnp
from jax.experimental import pallas as pl
from jax.experimental.pallas import tpu as pltpu

H, W = 8, 208
S = H * W            # 1664 = 13 * 128  (per-sample lane-dense spatial axis)
C1, C2 = 16, 32
NCLS = 4
K1 = 16              # conv1 im2col depth: 9 taps zero-padded to 16
K2 = 9 * C1          # conv2 im2col depth: 144


def _fused_forward_kernel(x_ref, masks_ref, w1_ref, b1_ref, w2_ref, b2_ref,
                          wfc_hbm, bfc_ref, o_ref,
                          p1_ref, p2_ref, wfc_vmem, wfc_sem):
    L = x_ref.shape[1]          # B * S, batch fused along lanes
    B = L // S

    # Overlap the big FC-weight DMA (HBM -> VMEM, ~420 KiB bf16) with convs.
    wfc_copy = pltpu.make_async_copy(wfc_hbm, wfc_vmem, wfc_sem)
    wfc_copy.start()

    def emit_patches(act, patch_ref):
        """act: (C, L) f32 NCHW-flattened (batch lane-fused) activation.

        Writes 9 shifted+masked tap bands of C rows each into patch_ref,
        reproducing zero padding=1 (all wrapped / cross-batch reads of the
        flattened roll are zeroed by the row*col validity masks)."""
        c = act.shape[0]
        for dh in range(3):
            for dw in range(3):
                t = dh * 3 + dw
                delta = (dh - 1) * W + (dw - 1)
                shift = (-delta) % L
                tap = act if shift == 0 else pltpu.roll(act, shift, axis=1)
                if t != 4:                       # center-tap mask is all ones
                    tap = tap * masks_ref[t:t + 1, :]
                patch_ref[t * c:(t + 1) * c, :] = tap.astype(patch_ref.dtype)

    # conv1(1->16) + folded BN + tanh: one bf16 MXU matmul (16,16)x(16,L).
    emit_patches(x_ref[...], p1_ref)                            # rows 0..8
    p1_ref[9:K1, :] = jnp.zeros((K1 - 9, L), jnp.float32)       # zero pad rows
    y1 = jnp.tanh(
        jnp.dot(w1_ref[...], p1_ref[...].astype(jnp.bfloat16),
                preferred_element_type=jnp.float32)
        + b1_ref[...])                                          # (16, L) f32

    # conv2(16->32) + folded BN + tanh: one bf16 MXU matmul (32,144)x(144,L).
    emit_patches(y1, p2_ref)                                    # all 144 rows
    y2 = jnp.tanh(
        jnp.dot(w2_ref[...], p2_ref[...],
                preferred_element_type=jnp.float32)
        + b2_ref[...])                                          # (32, L) f32

    # fc(32*8*208 -> 4): y2 is already in NCHW flatten order per batch, so
    # contract directly against the (4, 32, S) bf16 weight (f32 accumulate).
    wfc_copy.wait()
    rows = []
    for b in range(B):
        y2_b = y2[:, b * S:(b + 1) * S]                         # (32, S)
        per_class = [
            jnp.sum(wfc_vmem[o].astype(jnp.float32) * y2_b,
                    axis=1, keepdims=True)                      # lane reduce
            for o in range(NCLS)]                               # 4 x (32, 1)
        rows.append(jnp.sum(jnp.concatenate(per_class, axis=1),
                            axis=0, keepdims=True))             # (1, NCLS)

    logits = jnp.concatenate(rows, axis=0) + bfc_ref[...]       # (B, NCLS)
    m = jnp.max(logits, axis=-1, keepdims=True)
    e = jnp.exp(logits - m)
    o_ref[...] = e / jnp.sum(e, axis=-1, keepdims=True)


def _fold_bn(conv_bias, gamma, beta, mean, var, eps=1e-5):
    scale = gamma / jnp.sqrt(var + eps)
    bias = (conv_bias - mean) * scale + beta
    return scale, bias


@jax.jit
def test_model_forward(x, params):
    """x: (B, 8, 208) -- the PyTorch input before .unsqueeze(1)."""
    B = x.shape[0]
    L = B * S
    x_flat = x.reshape(1, L).astype(jnp.float32)   # (b,h,w) row-major flatten

    scale1, bias1 = _fold_bn(params["b1"], params["g1"], params["be1"],
                             params["m1"], params["v1"])
    scale2, bias2 = _fold_bn(params["b2"], params["g2"], params["be2"],
                             params["m2"], params["v2"])

    # conv1 taps -> (16, 9), BN-scaled, zero padded to K=16, bf16 for the MXU.
    w1m = params["w1"].reshape(C1, 9) * scale1[:, None]
    w1m = jnp.concatenate(
        [w1m, jnp.zeros((C1, K1 - 9), jnp.float32)], axis=1).astype(jnp.bfloat16)

    # conv2 taps -> (32, dh, dw, ci) -> (32, 144), BN-scaled, bf16.  Column
    # index (dh*3 + dw)*16 + ci matches the im2col band order in the kernel.
    w2m = (jnp.transpose(params["w2"], (0, 2, 3, 1)).reshape(C2, K2)
           * scale2[:, None]).astype(jnp.bfloat16)

    # fc weight (4, 53248) in PyTorch flatten order (c, h, w) -> (4, 32, S),
    # bf16 (halves the largest VMEM stream); DMA'd in-kernel from HBM.
    wfc = params["w_fc"].reshape(NCLS, C2, S).astype(jnp.bfloat16)

    # Per-tap validity masks (row ⊗ column) over the lane-fused position axis.
    pos = jnp.arange(L, dtype=jnp.int32)
    s_in = pos % S
    hh = s_in // W
    ww = s_in % W
    ones = jnp.ones((L,), jnp.bool_)
    row_ok = (hh >= 1, ones, hh <= H - 2)
    col_ok = (ww >= 1, ones, ww <= W - 2)
    masks = jnp.stack([(row_ok[dh] & col_ok[dw]).astype(jnp.float32)
                       for dh in range(3) for dw in range(3)], axis=0)  # (9, L)

    vmem = pl.BlockSpec(memory_space=pltpu.MemorySpace.VMEM)
    hbm = pl.BlockSpec(memory_space=pl.ANY)

    return pl.pallas_call(
        _fused_forward_kernel,
        out_shape=jax.ShapeDtypeStruct((B, NCLS), jnp.float32),
        in_specs=[vmem, vmem, vmem, vmem, vmem, vmem, hbm, vmem],
        out_specs=vmem,
        scratch_shapes=[
            pltpu.VMEM((K1, L), jnp.float32),          # conv1 im2col patches
            pltpu.VMEM((K2, L), jnp.bfloat16),         # conv2 im2col patches
            pltpu.VMEM((NCLS, C2, S), jnp.bfloat16),   # fc weight landing buf
            pltpu.SemaphoreType.DMA,                   # fc weight DMA sem
        ],
    )(x_flat, masks, w1m, bias1.reshape(C1, 1), w2m, bias2.reshape(C2, 1),
      wfc, params["b_fc"].reshape(1, NCLS))


def reference_forward(x, params, eps=1e-5):
    """Pure-XLA reference (inference-mode BN), for numerical validation."""
    hp = jax.lax.Precision.HIGHEST

    def block(inp, w, b, g, be, m, v):
        out = jax.lax.conv_general_dilated(
            inp, w, window_strides=(1, 1), padding=((1, 1), (1, 1)),
            dimension_numbers=("NCHW", "OIHW", "NCHW"), precision=hp)
        out = out + b[None, :, None, None]
        scale = (g / jnp.sqrt(v + eps))[None, :, None, None]
        out = (out - m[None, :, None, None]) * scale + be[None, :, None, None]
        return jnp.tanh(out)

    y1 = block(x[:, None, :, :], params["w1"], params["b1"], params["g1"],
               params["be1"], params["m1"], params["v1"])
    y2 = block(y1, params["w2"], params["b2"], params["g2"],
               params["be2"], params["m2"], params["v2"])
    flat = y2.reshape(x.shape[0], -1)
    logits = jnp.dot(flat, params["w_fc"].T, precision=hp) + params["b_fc"]
    return jax.nn.softmax(logits, axis=-1)


def make_params(key):
    ks = jax.random.split(key, 14)
    p = {}
    # conv1: Conv2d(1, 16, 3, padding=1) + BatchNorm2d(16)
    p["w1"] = 0.1 * jax.random.normal(ks[0], (C1, 1, 3, 3), jnp.float32)
    p["b1"] = 0.1 * jax.random.normal(ks[1], (C1,), jnp.float32)
    p["g1"] = 1.0 + 0.1 * jax.random.normal(ks[2], (C1,), jnp.float32)
    p["be1"] = 0.1 * jax.random.normal(ks[3], (C1,), jnp.float32)
    p["m1"] = 0.1 * jax.random.normal(ks[4], (C1,), jnp.float32)
    p["v1"] = 0.5 + jnp.abs(jax.random.normal(ks[5], (C1,), jnp.float32))
    # conv2: Conv2d(16, 32, 3, padding=1) + BatchNorm2d(32)
    p["w2"] = 0.05 * jax.random.normal(ks[6], (C2, C1, 3, 3), jnp.float32)
    p["b2"] = 0.1 * jax.random.normal(ks[7], (C2,), jnp.float32)
    p["g2"] = 1.0 + 0.1 * jax.random.normal(ks[8], (C2,), jnp.float32)
    p["be2"] = 0.1 * jax.random.normal(ks[9], (C2,), jnp.float32)
    p["m2"] = 0.1 * jax.random.normal(ks[10], (C2,), jnp.float32)
    p["v2"] = 0.5 + jnp.abs(jax.random.normal(ks[11], (C2,), jnp.float32))
    # fc: Linear(32*8*208, 4) -- PyTorch weight layout (out, in)
    p["w_fc"] = 0.01 * jax.random.normal(ks[12], (NCLS, C2 * H * W), jnp.float32)
    p["b_fc"] = 0.1 * jax.random.normal(ks[13], (NCLS,), jnp.float32)
    return p


if __name__ == "__main__":
    key = jax.random.PRNGKey(0)
    k_x, k_p = jax.random.split(key)

    # fc expects 32 * 8 * 208 features, so spatial dims are fixed at (8, 208).
    B = 2
    x = jax.random.normal(k_x, (B, H, W), dtype=jnp.float32)
    params = make_params(k_p)

    out = jax.block_until_ready(test_model_forward(x, params))

    assert out.shape == (B, NCLS)
    assert bool(jnp.all(jnp.isfinite(out)))
    # softmax rows sum to 1
    assert bool(jnp.allclose(jnp.sum(out, axis=-1), 1.0, atol=1e-5))

    # Numerical check against a pure-XLA reference.  Tolerance covers the
    # bf16 weight/MXU path vs. the HIGHEST-precision f32 reference; the
    # tanh-bounded activations and f32 accumulation keep the error ~1e-3.
    ref = jax.block_until_ready(reference_forward(x, params))
    assert bool(jnp.allclose(out, ref, atol=1e-2, rtol=0.0))

    print("KERNEL_OK")
</pallas_src>

<mosaic_0001>
module attributes {stable_mosaic.version = 11 : i64} {
  func.func @_fused_forward_kernel(%arg0: memref<1x3328xf32, #tpu.memory_space<vmem>>, %arg1: memref<9x3328xf32, #tpu.memory_space<vmem>>, %arg2: memref<16x16xbf16, #tpu.memory_space<vmem>>, %arg3: memref<16x1xf32, #tpu.memory_space<vmem>>, %arg4: memref<32x144xbf16, #tpu.memory_space<vmem>>, %arg5: memref<32x1xf32, #tpu.memory_space<vmem>>, %arg6: memref<4x32x1664xbf16, #tpu.memory_space<any>>, %arg7: memref<1x4xf32, #tpu.memory_space<vmem>>, %arg8: memref<2x4xf32, #tpu.memory_space<vmem>>, %arg9: memref<16x3328xf32, #tpu.memory_space<vmem>>, %arg10: memref<144x3328xbf16, #tpu.memory_space<vmem>>, %arg11: memref<4x32x1664xbf16, #tpu.memory_space<vmem>>, %arg12: memref<!tpu.dma_semaphore, #tpu.memory_space<semaphore_mem>>) attributes {dimension_semantics = [], scalar_prefetch = 0 : i64, scratch_operands = 4 : i64, tpu.core_type = #tpu.core_type<tc>} {
    tpu.enqueue_dma source(%arg6 : memref<4x32x1664xbf16, #tpu.memory_space<any>>) target(%arg11 : memref<4x32x1664xbf16, #tpu.memory_space<vmem>>) target_semaphore(%arg12 : memref<!tpu.dma_semaphore, #tpu.memory_space<semaphore_mem>>)
    %c0 = arith.constant 0 : index
    %c0_0 = arith.constant 0 : index
    %0 = vector.load %arg0[%c0, %c0_0] : memref<1x3328xf32, #tpu.memory_space<vmem>>, vector<1x3328xf32>
    %c209_i32 = arith.constant 209 : i32
    %1 = tpu.dynamic_rotate %0 by %c209_i32 dim 1 : vector<1x3328xf32>, i32 -> vector<1x3328xf32>
    %c0_1 = arith.constant 0 : index
    %c0_2 = arith.constant 0 : index
    %2 = vector.load %arg1[%c0_1, %c0_2] : memref<9x3328xf32, #tpu.memory_space<vmem>>, vector<1x3328xf32>
    %3 = arith.mulf %1, %2 : vector<1x3328xf32>
    %c0_3 = arith.constant 0 : index
    %c0_4 = arith.constant 0 : index
    %4 = vector.load %arg9[%c0_3, %c0_4] : memref<16x3328xf32, #tpu.memory_space<vmem>>, vector<1x3328xf32>
    tpu.vector_store %arg9[%c0_3, %c0_4], %3 {strides = array<i32>} : memref<16x3328xf32, #tpu.memory_space<vmem>>, vector<1x3328xf32>,
    %c208_i32 = arith.constant 208 : i32
    %5 = tpu.dynamic_rotate %0 by %c208_i32 dim 1 : vector<1x3328xf32>, i32 -> vector<1x3328xf32>
    %c1 = arith.constant 1 : index
    %c0_5 = arith.constant 0 : index
    %6 = vector.load %arg1[%c1, %c0_5] : memref<9x3328xf32, #tpu.memory_space<vmem>>, vector<1x3328xf32>
    %7 = arith.mulf %5, %6 : vector<1x3328xf32>
    %c1_6 = arith.constant 1 : index
    %c0_7 = arith.constant 0 : index
    %8 = vector.load %arg9[%c1_6, %c0_7] : memref<16x3328xf32, #tpu.memory_space<vmem>>, vector<1x3328xf32>
    tpu.vector_store %arg9[%c1_6, %c0_7], %7 {strides = array<i32>} : memref<16x3328xf32, #tpu.memory_space<vmem>>, vector<1x3328xf32>,
    %c207_i32 = arith.constant 207 : i32
    %9 = tpu.dynamic_rotate %0 by %c207_i32 dim 1 : vector<1x3328xf32>, i32 -> vector<1x3328xf32>
    %c2 = arith.constant 2 : index
    %c0_8 = arith.constant 0 : index
    %10 = vector.load %arg1[%c2, %c0_8] : memref<9x3328xf32, #tpu.memory_space<vmem>>, vector<1x3328xf32>
    %11 = arith.mulf %9, %10 : vector<1x3328xf32>
    %c2_9 = arith.constant 2 : index
    %c0_10 = arith.constant 0 : index
    %12 = vector.load %arg9[%c2_9, %c0_10] : memref<16x3328xf32, #tpu.memory_space<vmem>>, vector<1x3328xf32>
    tpu.vector_store %arg9[%c2_9, %c0_10], %11 {strides = array<i32>} : memref<16x3328xf32, #tpu.memory_space<vmem>>, vector<1x3328xf32>,
    %c1_i32 = arith.constant 1 : i32
    %13 = tpu.dynamic_rotate %0 by %c1_i32 dim 1 : vector<1x3328xf32>, i32 -> vector<1x3328xf32>
    %c3 = arith.constant 3 : index
    %c0_11 = arith.constant 0 : index
    %14 = vector.load %arg1[%c3, %c0_11] : memref<9x3328xf32, #tpu.memory_space<vmem>>, vector<1x3328xf32>
    %15 = arith.mulf %13, %14 : vector<1x3328xf32>
    %c3_12 = arith.constant 3 : index
    %c0_13 = arith.constant 0 : index
    %16 = vector.load %arg9[%c3_12, %c0_13] : memref<16x3328xf32, #tpu.memory_space<vmem>>, vector<1x3328xf32>
    tpu.vector_store %arg9[%c3_12, %c0_13], %15 {strides = array<i32>} : memref<16x3328xf32, #tpu.memory_space<vmem>>, vector<1x3328xf32>,
    %c4 = arith.constant 4 : index
    %c0_14 = arith.constant 0 : index
    %17 = vector.load %arg9[%c4, %c0_14] : memref<16x3328xf32, #tpu.memory_space<vmem>>, vector<1x3328xf32>
    tpu.vector_store %arg9[%c4, %c0_14], %0 {strides = array<i32>} : memref<16x3328xf32, #tpu.memory_space<vmem>>, vector<1x3328xf32>,
    %c3327_i32 = arith.constant 3327 : i32
    %18 = tpu.dynamic_rotate %0 by %c3327_i32 dim 1 : vector<1x3328xf32>, i32 -> vector<1x3328xf32>
    %c5 = arith.constant 5 : index
    %c0_15 = arith.constant 0 : index
    %19 = vector.load %arg1[%c5, %c0_15] : memref<9x3328xf32, #tpu.memory_space<vmem>>, vector<1x3328xf32>
    %20 = arith.mulf %18, %19 : vector<1x3328xf32>
    %c5_16 = arith.constant 5 : index
    %c0_17 = arith.constant 0 : index
    %21 = vector.load %arg9[%c5_16, %c0_17] : memref<16x3328xf32, #tpu.memory_space<vmem>>, vector<1x3328xf32>
    tpu.vector_store %arg9[%c5_16, %c0_17], %20 {strides = array<i32>} : memref<16x3328xf32, #tpu.memory_space<vmem>>, vector<1x3328xf32>,
    %c3121_i32 = arith.constant 3121 : i32
    %22 = tpu.dynamic_rotate %0 by %c3121_i32 dim 1 : vector<1x3328xf32>, i32 -> vector<1x3328xf32>
    %c6 = arith.constant 6 : index
    %c0_18 = arith.constant 0 : index
    %23 = vector.load %arg1[%c6, %c0_18] : memref<9x3328xf32, #tpu.memory_space<vmem>>, vector<1x3328xf32>
    %24 = arith.mulf %22, %23 : vector<1x3328xf32>
    %c6_19 = arith.constant 6 : index
    %c0_20 = arith.constant 0 : index
    %25 = vector.load %arg9[%c6_19, %c0_20] : memref<16x3328xf32, #tpu.memory_space<vmem>>, vector<1x3328xf32>
    tpu.vector_store %arg9[%c6_19, %c0_20], %24 {strides = array<i32>} : memref<16x3328xf32, #tpu.memory_space<vmem>>, vector<1x3328xf32>,
    %c3120_i32 = arith.constant 3120 : i32
    %26 = tpu.dynamic_rotate %0 by %c3120_i32 dim 1 : vector<1x3328xf32>, i32 -> vector<1x3328xf32>
    %c7 = arith.constant 7 : index
    %c0_21 = arith.constant 0 : index
    %27 = vector.load %arg1[%c7, %c0_21] : memref<9x3328xf32, #tpu.memory_space<vmem>>, vector<1x3328xf32>
    %28 = arith.mulf %26, %27 : vector<1x3328xf32>
    %c7_22 = arith.constant 7 : index
    %c0_23 = arith.constant 0 : index
    %29 = vector.load %arg9[%c7_22, %c0_23] : memref<16x3328xf32, #tpu.memory_space<vmem>>, vector<1x3328xf32>
    tpu.vector_store %arg9[%c7_22, %c0_23], %28 {strides = array<i32>} : memref<16x3328xf32, #tpu.memory_space<vmem>>, vector<1x3328xf32>,
    %c3119_i32 = arith.constant 3119 : i32
    %30 = tpu.dynamic_rotate %0 by %c3119_i32 dim 1 : vector<1x3328xf32>, i32 -> vector<1x3328xf32>
    %c8 = arith.constant 8 : index
    %c0_24 = arith.constant 0 : index
    %31 = vector.load %arg1[%c8, %c0_24] : memref<9x3328xf32, #tpu.memory_space<vmem>>, vector<1x3328xf32>
    %32 = arith.mulf %30, %31 : vector<1x3328xf32>
    %c8_25 = arith.constant 8 : index
    %c0_26 = arith.constant 0 : index
    %33 = vector.load %arg9[%c8_25, %c0_26] : memref<16x3328xf32, #tpu.memory_space<vmem>>, vector<1x3328xf32>
    tpu.vector_store %arg9[%c8_25, %c0_26], %32 {strides = array<i32>} : memref<16x3328xf32, #tpu.memory_space<vmem>>, vector<1x3328xf32>,
    %cst = arith.constant 0.000000e+00 : f32
    %34 = vector.broadcast %cst : f32 to vector<7x3328xf32>
    %c9 = arith.constant 9 : index
    %c0_27 = arith.constant 0 : index
    %35 = vector.load %arg9[%c9, %c0_27] : memref<16x3328xf32, #tpu.memory_space<vmem>>, vector<7x3328xf32>
    tpu.vector_store %arg9[%c9, %c0_27], %34 {strides = array<i32>} : memref<16x3328xf32, #tpu.memory_space<vmem>>, vector<7x3328xf32>,
    %c0_28 = arith.constant 0 : index
    %c0_29 = arith.constant 0 : index
    %36 = vector.load %arg2[%c0_28, %c0_29] : memref<16x16xbf16, #tpu.memory_space<vmem>>, vector<16x16xbf16>
    %c0_30 = arith.constant 0 : index
    %c0_31 = arith.constant 0 : index
    %37 = vector.load %arg9[%c0_30, %c0_31] : memref<16x3328xf32, #tpu.memory_space<vmem>>, vector<16x3328xf32>
    %38 = arith.truncf %37 : vector<16x3328xf32> to vector<16x3328xbf16>
    %cst_32 = arith.constant dense<0.000000e+00> : vector<16x3328xf32>
    %39 = tpu.matmul %36, %38, %cst_32 {dimension_numbers = #tpu.dot_dimension_numbers<[1], [0], [0], [1], [0, 0, 1, 1], [], []>} : vector<16x16xbf16>, vector<16x3328xbf16>, vector<16x3328xf32> -> vector<16x3328xf32>
    %c0_33 = arith.constant 0 : index
    %c0_34 = arith.constant 0 : index
    %40 = vector.load %arg3[%c0_33, %c0_34] : memref<16x1xf32, #tpu.memory_space<vmem>>, vector<16x1xf32>
    %41 = vector.broadcast %40 : vector<16x1xf32> to vector<16x3328xf32>
    %42 = arith.addf %39, %41 : vector<16x3328xf32>
    %43 = math.tanh %42 : vector<16x3328xf32>
    %c209_i32_35 = arith.constant 209 : i32
    %44 = tpu.dynamic_rotate %43 by %c209_i32_35 dim 1 : vector<16x3328xf32>, i32 -> vector<16x3328xf32>
    %c0_36 = arith.constant 0 : index
    %c0_37 = arith.constant 0 : index
    %45 = vector.load %arg1[%c0_36, %c0_37] : memref<9x3328xf32, #tpu.memory_space<vmem>>, vector<1x3328xf32>
    %46 = vector.broadcast %45 : vector<1x3328xf32> to vector<16x3328xf32>
    %47 = arith.mulf %44, %46 : vector<16x3328xf32>
    %48 = arith.truncf %47 : vector<16x3328xf32> to vector<16x3328xbf16>
    %c0_38 = arith.constant 0 : index
    %c0_39 = arith.constant 0 : index
    %49 = vector.load %arg10[%c0_38, %c0_39] : memref<144x3328xbf16, #tpu.memory_space<vmem>>, vector<16x3328xbf16>
    tpu.vector_store %arg10[%c0_38, %c0_39], %48 {strides = array<i32>} : memref<144x3328xbf16, #tpu.memory_space<vmem>>, vector<16x3328xbf16>,
    %c208_i32_40 = arith.constant 208 : i32
    %50 = tpu.dynamic_rotate %43 by %c208_i32_40 dim 1 : vector<16x3328xf32>, i32 -> vector<16x3328xf32>
    %c1_41 = arith.constant 1 : index
    %c0_42 = arith.constant 0 : index
    %51 = vector.load %arg1[%c1_41, %c0_42] : memref<9x3328xf32, #tpu.memory_space<vmem>>, vector<1x3328xf32>
    %52 = vector.broadcast %51 : vector<1x3328xf32> to vector<16x3328xf32>
    %53 = arith.mulf %50, %52 : vector<16x3328xf32>
    %54 = arith.truncf %53 : vector<16x3328xf32> to vector<16x3328xbf16>
    %c16 = arith.constant 16 : index
    %c0_43 = arith.constant 0 : index
    %55 = vector.load %arg10[%c16, %c0_43] : memref<144x3328xbf16, #tpu.memory_space<vmem>>, vector<16x3328xbf16>
    tpu.vector_store %arg10[%c16, %c0_43], %54 {strides = array<i32>} : memref<144x3328xbf16, #tpu.memory_space<vmem>>, vector<16x3328xbf16>,
    %c207_i32_44 = arith.constant 207 : i32
    %56 = tpu.dynamic_rotate %43 by %c207_i32_44 dim 1 : vector<16x3328xf32>, i32 -> vector<16x3328xf32>
    %c2_45 = arith.constant 2 : index
    %c0_46 = arith.constant 0 : index
    %57 = vector.load %arg1[%c2_45, %c0_46] : memref<9x3328xf32, #tpu.memory_space<vmem>>, vector<1x3328xf32>
    %58 = vector.broadcast %57 : vector<1x3328xf32> to vector<16x3328xf32>
    %59 = arith.mulf %56, %58 : vector<16x3328xf32>
    %60 = arith.truncf %59 : vector<16x3328xf32> to vector<16x3328xbf16>
    %c32 = arith.constant 32 : index
    %c0_47 = arith.constant 0 : index
    %61 = vector.load %arg10[%c32, %c0_47] : memref<144x3328xbf16, #tpu.memory_space<vmem>>, vector<16x3328xbf16>
    tpu.vector_store %arg10[%c32, %c0_47], %60 {strides = array<i32>} : memref<144x3328xbf16, #tpu.memory_space<vmem>>, vector<16x3328xbf16>,
    %c1_i32_48 = arith.constant 1 : i32
    %62 = tpu.dynamic_rotate %43 by %c1_i32_48 dim 1 : vector<16x3328xf32>, i32 -> vector<16x3328xf32>
    %c3_49 = arith.constant 3 : index
    %c0_50 = arith.constant 0 : index
    %63 = vector.load %arg1[%c3_49, %c0_50] : memref<9x3328xf32, #tpu.memory_space<vmem>>, vector<1x3328xf32>
    %64 = vector.broadcast %63 : vector<1x3328xf32> to vector<16x3328xf32>
    %65 = arith.mulf %62, %64 : vector<16x3328xf32>
    %66 = arith.truncf %65 : vector<16x3328xf32> to vector<16x3328xbf16>
    %c48 = arith.constant 48 : index
    %c0_51 = arith.constant 0 : index
    %67 = vector.load %arg10[%c48, %c0_51] : memref<144x3328xbf16, #tpu.memory_space<vmem>>, vector<16x3328xbf16>
    tpu.vector_store %arg10[%c48, %c0_51], %66 {strides = array<i32>} : memref<144x3328xbf16, #tpu.memory_space<vmem>>, vector<16x3328xbf16>,
    %68 = arith.truncf %43 : vector<16x3328xf32> to vector<16x3328xbf16>
    %c64 = arith.constant 64 : index
    %c0_52 = arith.constant 0 : index
    %69 = vector.load %arg10[%c64, %c0_52] : memref<144x3328xbf16, #tpu.memory_space<vmem>>, vector<16x3328xbf16>
    tpu.vector_store %arg10[%c64, %c0_52], %68 {strides = array<i32>} : memref<144x3328xbf16, #tpu.memory_space<vmem>>, vector<16x3328xbf16>,
    %c3327_i32_53 = arith.constant 3327 : i32
    %70 = tpu.dynamic_rotate %43 by %c3327_i32_53 dim 1 : vector<16x3328xf32>, i32 -> vector<16x3328xf32>
    %c5_54 = arith.constant 5 : index
    %c0_55 = arith.constant 0 : index
    %71 = vector.load %arg1[%c5_54, %c0_55] : memref<9x3328xf32, #tpu.memory_space<vmem>>, vector<1x3328xf32>
    %72 = vector.broadcast %71 : vector<1x3328xf32> to vector<16x3328xf32>
    %73 = arith.mulf %70, %72 : vector<16x3328xf32>
    %74 = arith.truncf %73 : vector<16x3328xf32> to vector<16x3328xbf16>
    %c80 = arith.constant 80 : index
    %c0_56 = arith.constant 0 : index
    %75 = vector.load %arg10[%c80, %c0_56] : memref<144x3328xbf16, #tpu.memory_space<vmem>>, vector<16x3328xbf16>
    tpu.vector_store %arg10[%c80, %c0_56], %74 {strides = array<i32>} : memref<144x3328xbf16, #tpu.memory_space<vmem>>, vector<16x3328xbf16>,
    %c3121_i32_57 = arith.constant 3121 : i32
    %76 = tpu.dynamic_rotate %43 by %c3121_i32_57 dim 1 : vector<16x3328xf32>, i32 -> vector<16x3328xf32>
    %c6_58 = arith.constant 6 : index
    %c0_59 = arith.constant 0 : index
    %77 = vector.load %arg1[%c6_58, %c0_59] : memref<9x3328xf32, #tpu.memory_space<vmem>>, vector<1x3328xf32>
    %78 = vector.broadcast %77 : vector<1x3328xf32> to vector<16x3328xf32>
    %79 = arith.mulf %76, %78 : vector<16x3328xf32>
    %80 = arith.truncf %79 : vector<16x3328xf32> to vector<16x3328xbf16>
    %c96 = arith.constant 96 : index
    %c0_60 = arith.constant 0 : index
    %81 = vector.load %arg10[%c96, %c0_60] : memref<144x3328xbf16, #tpu.memory_space<vmem>>, vector<16x3328xbf16>
    tpu.vector_store %arg10[%c96, %c0_60], %80 {strides = array<i32>} : memref<144x3328xbf16, #tpu.memory_space<vmem>>, vector<16x3328xbf16>,
    %c3120_i32_61 = arith.constant 3120 : i32
    %82 = tpu.dynamic_rotate %43 by %c3120_i32_61 dim 1 : vector<16x3328xf32>, i32 -> vector<16x3328xf32>
    %c7_62 = arith.constant 7 : index
    %c0_63 = arith.constant 0 : index
    %83 = vector.load %arg1[%c7_62, %c0_63] : memref<9x3328xf32, #tpu.memory_space<vmem>>, vector<1x3328xf32>
    %84 = vector.broadcast %83 : vector<1x3328xf32> to vector<16x3328xf32>
    %85 = arith.mulf %82, %84 : vector<16x3328xf32>
    %86 = arith.truncf %85 : vector<16x3328xf32> to vector<16x3328xbf16>
    %c112 = arith.constant 112 : index
    %c0_64 = arith.constant 0 : index
    %87 = vector.load %arg10[%c112, %c0_64] : memref<144x3328xbf16, #tpu.memory_space<vmem>>, vector<16x3328xbf16>
    tpu.vector_store %arg10[%c112, %c0_64], %86 {strides = array<i32>} : memref<144x3328xbf16, #tpu.memory_space<vmem>>, vector<16x3328xbf16>,
    %c3119_i32_65 = arith.constant 3119 : i32
    %88 = tpu.dynamic_rotate %43 by %c3119_i32_65 dim 1 : vector<16x3328xf32>, i32 -> vector<16x3328xf32>
    %c8_66 = arith.constant 8 : index
    %c0_67 = arith.constant 0 : index
    %89 = vector.load %arg1[%c8_66, %c0_67] : memref<9x3328xf32, #tpu.memory_space<vmem>>, vector<1x3328xf32>
    %90 = vector.broadcast %89 : vector<1x3328xf32> to vector<16x3328xf32>
    %91 = arith.mulf %88, %90 : vector<16x3328xf32>
    %92 = arith.truncf %91 : vector<16x3328xf32> to vector<16x3328xbf16>
    %c128 = arith.constant 128 : index
    %c0_68 = arith.constant 0 : index
    %93 = vector.load %arg10[%c128, %c0_68] : memref<144x3328xbf16, #tpu.memory_space<vmem>>, vector<16x3328xbf16>
    tpu.vector_store %arg10[%c128, %c0_68], %92 {strides = array<i32>} : memref<144x3328xbf16, #tpu.memory_space<vmem>>, vector<16x3328xbf16>,
    %c0_69 = arith.constant 0 : index
    %c0_70 = arith.constant 0 : index
    %94 = vector.load %arg4[%c0_69, %c0_70] : memref<32x144xbf16, #tpu.memory_space<vmem>>, vector<32x144xbf16>
    %c0_71 = arith.constant 0 : index
    %c0_72 = arith.constant 0 : index
    %95 = vector.load %arg10[%c0_71, %c0_72] : memref<144x3328xbf16, #tpu.memory_space<vmem>>, vector<144x3328xbf16>
    %cst_73 = arith.constant dense<0.000000e+00> : vector<32x3328xf32>
    %96 = tpu.matmul %94, %95, %cst_73 {dimension_numbers = #tpu.dot_dimension_numbers<[1], [0], [0], [1], [0, 0, 1, 1], [], []>} : vector<32x144xbf16>, vector<144x3328xbf16>, vector<32x3328xf32> -> vector<32x3328xf32>
    %c0_74 = arith.constant 0 : index
    %c0_75 = arith.constant 0 : index
    %97 = vector.load %arg5[%c0_74, %c0_75] : memref<32x1xf32, #tpu.memory_space<vmem>>, vector<32x1xf32>
    %98 = vector.broadcast %97 : vector<32x1xf32> to vector<32x3328xf32>
    %99 = arith.addf %96, %98 : vector<32x3328xf32>
    %100 = math.tanh %99 : vector<32x3328xf32>
    tpu.wait_dma2 semaphore(%arg12 : memref<!tpu.dma_semaphore, #tpu.memory_space<semaphore_mem>>) src(%arg6 : memref<4x32x1664xbf16, #tpu.memory_space<any>>) dst(%arg11 : memref<4x32x1664xbf16, #tpu.memory_space<vmem>>)
    %101 = vector.extract_strided_slice %100 {offsets = [0, 0], sizes = [32, 1664], strides = [1, 1]} : vector<32x3328xf32> to vector<32x1664xf32>
    %c0_76 = arith.constant 0 : index
    %c0_77 = arith.constant 0 : index
    %c0_78 = arith.constant 0 : index
    %102 = vector.load %arg11[%c0_76, %c0_77, %c0_78] : memref<4x32x1664xbf16, #tpu.memory_space<vmem>>, vector<1x32x1664xbf16>
    %103 = vector.shape_cast %102 : vector<1x32x1664xbf16> to vector<32x1664xbf16>
    %104 = arith.extf %103 : vector<32x1664xbf16> to vector<32x1664xf32>
    %105 = arith.mulf %104, %101 : vector<32x1664xf32>
    %cst_79 = arith.constant dense<0.000000e+00> : vector<32xf32>
    %106 = vector.multi_reduction <add>, %105, %cst_79 [1] : vector<32x1664xf32> to vector<32xf32>
    %107 = vector.shape_cast %106 : vector<32xf32> to vector<32x1xf32>
    %c1_80 = arith.constant 1 : index
    %c0_81 = arith.constant 0 : index
    %c0_82 = arith.constant 0 : index
    %108 = vector.load %arg11[%c1_80, %c0_81, %c0_82] : memref<4x32x1664xbf16, #tpu.memory_space<vmem>>, vector<1x32x1664xbf16>
    %109 = vector.shape_cast %108 : vector<1x32x1664xbf16> to vector<32x1664xbf16>
    %110 = arith.extf %109 : vector<32x1664xbf16> to vector<32x1664xf32>
    %111 = arith.mulf %110, %101 : vector<32x1664xf32>
    %cst_83 = arith.constant dense<0.000000e+00> : vector<32xf32>
    %112 = vector.multi_reduction <add>, %111, %cst_83 [1] : vector<32x1664xf32> to vector<32xf32>
    %113 = vector.shape_cast %112 : vector<32xf32> to vector<32x1xf32>
    %c2_84 = arith.constant 2 : index
    %c0_85 = arith.constant 0 : index
    %c0_86 = arith.constant 0 : index
    %114 = vector.load %arg11[%c2_84, %c0_85, %c0_86] : memref<4x32x1664xbf16, #tpu.memory_space<vmem>>, vector<1x32x1664xbf16>
    %115 = vector.shape_cast %114 : vector<1x32x1664xbf16> to vector<32x1664xbf16>
    %116 = arith.extf %115 : vector<32x1664xbf16> to vector<32x1664xf32>
    %117 = arith.mulf %116, %101 : vector<32x1664xf32>
    %cst_87 = arith.constant dense<0.000000e+00> : vector<32xf32>
    %118 = vector.multi_reduction <add>, %117, %cst_87 [1] : vector<32x1664xf32> to vector<32xf32>
    %119 = vector.shape_cast %118 : vector<32xf32> to vector<32x1xf32>
    %c3_88 = arith.constant 3 : index
    %c0_89 = arith.constant 0 : index
    %c0_90 = arith.constant 0 : index
    %120 = vector.load %arg11[%c3_88, %c0_89, %c0_90] : memref<4x32x1664xbf16, #tpu.memory_space<vmem>>, vector<1x32x1664xbf16>
    %121 = vector.shape_cast %120 : vector<1x32x1664xbf16> to vector<32x1664xbf16>
    %122 = arith.extf %121 : vector<32x1664xbf16> to vector<32x1664xf32>
    %123 = arith.mulf %122, %101 : vector<32x1664xf32>
    %cst_91 = arith.constant dense<0.000000e+00> : vector<32xf32>
    %124 = vector.multi_reduction <add>, %123, %cst_91 [1] : vector<32x1664xf32> to vector<32xf32>
    %125 = vector.shape_cast %124 : vector<32xf32> to vector<32x1xf32>
    %126 = tpu.concatenate %107, %113, %119, %125 in 1 : vector<32x1xf32>, vector<32x1xf32>, vector<32x1xf32>, vector<32x1xf32> -> vector<32x4xf32>
    %cst_92 = arith.constant dense<0.000000e+00> : vector<4xf32>
    %127 = vector.multi_reduction <add>, %126, %cst_92 [0] : vector<32x4xf32> to vector<4xf32>
    %128 = vector.shape_cast %127 : vector<4xf32> to vector<1x4xf32>
    %129 = vector.extract_strided_slice %100 {offsets = [0, 1664], sizes = [32, 1664], strides = [1, 1]} : vector<32x3328xf32> to vector<32x1664xf32>
    %c0_93 = arith.constant 0 : index
    %c0_94 = arith.constant 0 : index
    %c0_95 = arith.constant 0 : index
    %130 = vector.load %arg11[%c0_93, %c0_94, %c0_95] : memref<4x32x1664xbf16, #tpu.memory_space<vmem>>, vector<1x32x1664xbf16>
    %131 = vector.shape_cast %130 : vector<1x32x1664xbf16> to vector<32x1664xbf16>
    %132 = arith.extf %131 : vector<32x1664xbf16> to vector<32x1664xf32>
    %133 = arith.mulf %132, %129 : vector<32x1664xf32>
    %cst_96 = arith.constant dense<0.000000e+00> : vector<32xf32>
    %134 = vector.multi_reduction <add>, %133, %cst_96 [1] : vector<32x1664xf32> to vector<32xf32>
    %135 = vector.shape_cast %134 : vector<32xf32> to vector<32x1xf32>
    %c1_97 = arith.constant 1 : index
    %c0_98 = arith.constant 0 : index
    %c0_99 = arith.constant 0 : index
    %136 = vector.load %arg11[%c1_97, %c0_98, %c0_99] : memref<4x32x1664xbf16, #tpu.memory_space<vmem>>, vector<1x32x1664xbf16>
    %137 = vector.shape_cast %136 : vector<1x32x1664xbf16> to vector<32x1664xbf16>
    %138 = arith.extf %137 : vector<32x1664xbf16> to vector<32x1664xf32>
    %139 = arith.mulf %138, %129 : vector<32x1664xf32>
    %cst_100 = arith.constant dense<0.000000e+00> : vector<32xf32>
    %140 = vector.multi_reduction <add>, %139, %cst_100 [1] : vector<32x1664xf32> to vector<32xf32>
    %141 = vector.shape_cast %140 : vector<32xf32> to vector<32x1xf32>
    %c2_101 = arith.constant 2 : index
    %c0_102 = arith.constant 0 : index
    %c0_103 = arith.constant 0 : index
    %142 = vector.load %arg11[%c2_101, %c0_102, %c0_103] : memref<4x32x1664xbf16, #tpu.memory_space<vmem>>, vector<1x32x1664xbf16>
    %143 = vector.shape_cast %142 : vector<1x32x1664xbf16> to vector<32x1664xbf16>
    %144 = arith.extf %143 : vector<32x1664xbf16> to vector<32x1664xf32>
    %145 = arith.mulf %144, %129 : vector<32x1664xf32>
    %cst_104 = arith.constant dense<0.000000e+00> : vector<32xf32>
    %146 = vector.multi_reduction <add>, %145, %cst_104 [1] : vector<32x1664xf32> to vector<32xf32>
    %147 = vector.shape_cast %146 : vector<32xf32> to vector<32x1xf32>
    %c3_105 = arith.constant 3 : index
    %c0_106 = arith.constant 0 : index
    %c0_107 = arith.constant 0 : index
    %148 = vector.load %arg11[%c3_105, %c0_106, %c0_107] : memref<4x32x1664xbf16, #tpu.memory_space<vmem>>, vector<1x32x1664xbf16>
    %149 = vector.shape_cast %148 : vector<1x32x1664xbf16> to vector<32x1664xbf16>
    %150 = arith.extf %149 : vector<32x1664xbf16> to vector<32x1664xf32>
    %151 = arith.mulf %150, %129 : vector<32x1664xf32>
    %cst_108 = arith.constant dense<0.000000e+00> : vector<32xf32>
    %152 = vector.multi_reduction <add>, %151, %cst_108 [1] : vector<32x1664xf32> to vector<32xf32>
    %153 = vector.shape_cast %152 : vector<32xf32> to vector<32x1xf32>
    %154 = tpu.concatenate %135, %141, %147, %153 in 1 : vector<32x1xf32>, vector<32x1xf32>, vector<32x1xf32>, vector<32x1xf32> -> vector<32x4xf32>
    %cst_109 = arith.constant dense<0.000000e+00> : vector<4xf32>
    %155 = vector.multi_reduction <add>, %154, %cst_109 [0] : vector<32x4xf32> to vector<4xf32>
    %156 = vector.shape_cast %155 : vector<4xf32> to vector<1x4xf32>
    %157 = tpu.concatenate %128, %156 in 0 : vector<1x4xf32>, vector<1x4xf32> -> vector<2x4xf32>
    %c0_110 = arith.constant 0 : index
    %c0_111 = arith.constant 0 : index
    %158 = vector.load %arg7[%c0_110, %c0_111] : memref<1x4xf32, #tpu.memory_space<vmem>>, vector<1x4xf32>
    %159 = vector.broadcast %158 : vector<1x4xf32> to vector<2x4xf32>
    %160 = arith.addf %157, %159 : vector<2x4xf32>
    %cst_112 = arith.constant dense<0xFF800000> : vector<2xf32>
    %161 = vector.multi_reduction <maximumf>, %160, %cst_112 [1] : vector<2x4xf32> to vector<2xf32>
    %162 = vector.shape_cast %161 : vector<2xf32> to vector<2x1xf32>
    %163 = vector.broadcast %162 : vector<2x1xf32> to vector<2x4xf32>
    %164 = arith.subf %160, %163 : vector<2x4xf32>
    %165 = math.exp %164 : vector<2x4xf32>
    %cst_113 = arith.constant dense<0.000000e+00> : vector<2xf32>
    %166 = vector.multi_reduction <add>, %165, %cst_113 [1] : vector<2x4xf32> to vector<2xf32>
    %167 = vector.shape_cast %166 : vector<2xf32> to vector<2x1xf32>
    %168 = vector.broadcast %167 : vector<2x1xf32> to vector<2x4xf32>
    %169 = arith.divf %165, %168 : vector<2x4xf32>
    %c0_114 = arith.constant 0 : index
    %c0_115 = arith.constant 0 : index
    %170 = vector.load %arg8[%c0_114, %c0_115] : memref<2x4xf32, #tpu.memory_space<vmem>>, vector<2x4xf32>
    tpu.vector_store %arg8[%c0_114, %c0_115], %169 {strides = array<i32>} : memref<2x4xf32, #tpu.memory_space<vmem>>, vector<2x4xf32>,
    return
  }
}

</mosaic_0001>

<llo_original>
// kernel: test_model_forward.1
$region0: #{test_model_forward.1}
  #allocation0 [shape = 'u32[]', space=smem, size = 0x4, offset = 0x4, fixed_abs, tag = 'smem constant byte address 0x4 - core index']
  #allocation1 [shape = 'u32[144,128]{1,0:T(1,128)}', space=vmem, size = 0x12000, scoped, tag = 'internal scratch']
  #allocation2 [shape = 'f32[16,3328]{1,0:T(8,128)}', space=vmem, size = 0x34000, scoped, tag = 'scratch operand']
  #allocation3 [shape = 'bf16[144,3328]{1,0:T(8,128)(2,1)}', space=vmem, size = 0xea000, scoped, tag = 'scratch operand']
  #allocation4 [shape = 'bf16[4,32,1664]{2,1,0:T(8,128)(2,1)}', space=vmem, size = 0x68000, scoped, tag = 'scratch operand']
  #allocation5 [shape = 's32[1]{0}', space=sflag, size = 0x4, scoped, tag = 'scratch operand']
  #allocation8 [shape = 's32[]', space=sflag, size = 0x4, offset = 0, fixed_abs, tag = 'sflag constant byte address 0x0 - dummy sync flag']
  %s0 = inlined_call_operand.vmem [shape: f32[1,3328], index: 0, kind: input, shape index: {}]
  %s1 = inlined_call_operand.vmem [shape: f32[9,3328], index: 1, kind: input, shape index: {}]
  %s2 = inlined_call_operand.vmem [shape: bf16[16,16], index: 2, kind: input, shape index: {}]
  %s3 = inlined_call_operand.vmem [shape: f32[16,1], index: 3, kind: input, shape index: {}]
  %s4 = inlined_call_operand.vmem [shape: bf16[32,144], index: 4, kind: input, shape index: {}]
  %s5 = inlined_call_operand.vmem [shape: f32[32,1], index: 5, kind: input, shape index: {}]
  %s6 = inlined_call_operand.vmem [shape: bf16[4,32,1664], index: 6, kind: input, shape index: {}]
  %s7 = inlined_call_operand.vmem [shape: f32[1,4], index: 7, kind: input, shape index: {}]
  %s8 = inlined_call_operand.hbm [shape: f32[2,4], index: 8, kind: output, shape index: {}]
  %s9 = sld [smem:[#allocation0]]
  $region72: #{test_model_forward.1} parent=0
    _
  %s11 = ssub.s32 1, %s9
  %s12 = scalar_select 0, %s11, %s9
  $region1: #{test_model_forward.1} parent=0
    #allocation6 [shape = 'u8[1024]{0}', space=vmem, size = 0x400, scoped, tag = 'output window, operand 0, single buffered']
    #allocation7 [shape = 's32[1]{0}', space=sflag, size = 0x4, scoped, tag = 'scoped memory for test_model_forward.1']
    %13 = vsyncpa [#allocation7], 0
    // Predicated region
    $region2: #{test_model_forward.1} parent=1 // pred_check
      _
    $region3: #{test_model_forward.1} parent=1 // pred_check_branch
      %15 = sbr.rel (0) target = $region5
    $region4: #{test_model_forward.1} parent=1 // pred_region
      _
    $region5: #{test_model_forward.1} parent=1 // pred_fallthru
      _
    // Predicated region
    $region6: #{test_model_forward.1} parent=1 // pred_check
      _
    $region7: #{test_model_forward.1} parent=1 // pred_check_branch
      %17 = sbr.rel (0) target = $region9
    $region8: #{test_model_forward.1} parent=1 // pred_region
      _
    $region9: #{test_model_forward.1} parent=1 // pred_fallthru
      _
    // Predicated region
    $region10: #{test_model_forward.1} parent=1 // pred_check
      _
    $region11: #{test_model_forward.1} parent=1 // pred_check_branch
      %19 = sbr.rel (0) target = $region13
    $region12: #{test_model_forward.1} parent=1 // pred_region
      _
    $region13: #{test_model_forward.1} parent=1 // pred_fallthru
      _
    // Predicated region
    $region14: #{test_model_forward.1} parent=1 // pred_check
      _
    $region15: #{test_model_forward.1} parent=1 // pred_check_branch
      %21 = sbr.rel (0) target = $region17
    $region16: #{test_model_forward.1} parent=1 // pred_region
      _
    $region17: #{test_model_forward.1} parent=1 // pred_fallthru
      _
    // Predicated region
    $region18: #{test_model_forward.1} parent=1 // pred_check
      _
    $region19: #{test_model_forward.1} parent=1 // pred_check_branch
      %23 = sbr.rel (0) target = $region21
    $region20: #{test_model_forward.1} parent=1 // pred_region
      _
    $region21: #{test_model_forward.1} parent=1 // pred_fallthru
      _
    // Predicated region
    $region22: #{test_model_forward.1} parent=1 // pred_check
      _
    $region23: #{test_model_forward.1} parent=1 // pred_check_branch
      %25 = sbr.rel (0) target = $region25
    $region24: #{test_model_forward.1} parent=1 // pred_region
      _
    $region25: #{test_model_forward.1} parent=1 // pred_fallthru
      _
    // Predicated region
    $region26: #{test_model_forward.1} parent=1 // pred_check
      _
    $region27: #{test_model_forward.1} parent=1 // pred_check_branch
      %27 = sbr.rel (0) target = $region29
    $region28: #{test_model_forward.1} parent=1 // pred_region
      _
    $region29: #{test_model_forward.1} parent=1 // pred_fallthru
      _
    %p30 = scmp.lt.u32.totalorder 832, 8
    %p31 = pneg %p30
    // Predicated region
    $region30: #{test_model_forward.1} parent=1 // pred_check
      _
    $region31: #{test_model_forward.1} parent=1 // pred_check_branch
      %33 = sbr.rel (%p30) target = $region33
    $region32: #{test_model_forward.1} parent=1 // pred_region
      %s49 = sand.u32 832, 7
      %p50 = scmp.eq.s32.totalorder %s49, 0
      // Predicated region
      $region45: #{test_model_forward.1} parent=32 // pred_check
        %p51 = pneg %p50
      $region46: #{test_model_forward.1} parent=32 // pred_check_branch
        %53 = sbr.rel (%p51) target = $region48
      $region47: #{test_model_forward.1} parent=32 // pred_region
        loop: start=0, step=1, limit=1
        $region49: #{test_model_forward.1} parent=47 // loop_pre_header
          _
        $region50: #{test_model_forward.1} parent=47 // loop_header
          %s55 = sphi 0, %s59
          %p56 = scmp.ge.s32.totalorder %s55, 1
          %s60 = sphi %s6, %s6
          %s61 = sphi [#allocation4], [#allocation4]
        $region51: #{test_model_forward.1} parent=47 // loop_header_branch
          %58 = sbr.rel (%p56) target = $region55
        $region52: #{test_model_forward.1} parent=47 // loop_body
          %v62 = vld [vmem:[%s60] sm:$0xff]
          %63 = vst [vmem:[%s61] sm:$0xff] %v62
          %v64 = vld [vmem:[%s60 + $0x8] sm:$0xff]
          %65 = vst [vmem:[%s61 + $0x8] sm:$0xff] %v64
          %v66 = vld [vmem:[%s60 + $0x10] sm:$0xff]
          %67 = vst [vmem:[%s61 + $0x10] sm:$0xff] %v66
          %v68 = vld [vmem:[%s60 + $0x18] sm:$0xff]
          %69 = vst [vmem:[%s61 + $0x18] sm:$0xff] %v68
          %v70 = vld [vmem:[%s60 + $0x20] sm:$0xff]
          %71 = vst [vmem:[%s61 + $0x20] sm:$0xff] %v70
          %v72 = vld [vmem:[%s60 + $0x28] sm:$0xff]
          %73 = vst [vmem:[%s61 + $0x28] sm:$0xff] %v72
          %v74 = vld [vmem:[%s60 + $0x30] sm:$0xff]
          %75 = vst [vmem:[%s61 + $0x30] sm:$0xff] %v74
          %v76 = vld [vmem:[%s60 + $0x38] sm:$0xff]
          %77 = vst [vmem:[%s61 + $0x38] sm:$0xff] %v76
          %v78 = vld [vmem:[%s60 + $0x40] sm:$0xff]
          %79 = vst [vmem:[%s61 + $0x40] sm:$0xff] %v78
          %v80 = vld [vmem:[%s60 + $0x48] sm:$0xff]
          %81 = vst [vmem:[%s61 + $0x48] sm:$0xff] %v80
          %v82 = vld [vmem:[%s60 + $0x50] sm:$0xff]
          %83 = vst [vmem:[%s61 + $0x50] sm:$0xff] %v82
          %v84 = vld [vmem:[%s60 + $0x58] sm:$0xff]
          %85 = vst [vmem:[%s61 + $0x58] sm:$0xff] %v84
          %v86 = vld [vmem:[%s60 + $0x60] sm:$0xff]
          %87 = vst [vmem:[%s61 + $0x60] sm:$0xff] %v86
          %v88 = vld [vmem:[%s60 + $0x68] sm:$0xff]
          %89 = vst [vmem:[%s61 + $0x68] sm:$0xff] %v88
          %v90 = vld [vmem:[%s60 + $0x70] sm:$0xff]
          %91 = vst [vmem:[%s61 + $0x70] sm:$0xff] %v90
          %v92 = vld [vmem:[%s60 + $0x78] sm:$0xff]
          %93 = vst [vmem:[%s61 + $0x78] sm:$0xff] %v92
          %v94 = vld [vmem:[%s60 + $0x80] sm:$0xff]
          %95 = vst [vmem:[%s61 + $0x80] sm:$0xff] %v94
          %v96 = vld [vmem:[%s60 + $0x88] sm:$0xff]
          %97 = vst [vmem:[%s61 + $0x88] sm:$0xff] %v96
          %v98 = vld [vmem:[%s60 + $0x90] sm:$0xff]
          %99 = vst [vmem:[%s61 + $0x90] sm:$0xff] %v98
          %v100 = vld [vmem:[%s60 + $0x98] sm:$0xff]
          %101 = vst [vmem:[%s61 + $0x98] sm:$0xff] %v100
          %v102 = vld [vmem:[%s60 + $0xa0] sm:$0xff]
          %103 = vst [vmem:[%s61 + $0xa0] sm:$0xff] %v102
          %v104 = vld [vmem:[%s60 + $0xa8] sm:$0xff]
          %105 = vst [vmem:[%s61 + $0xa8] sm:$0xff] %v104
          %v106 = vld [vmem:[%s60 + $0xb0] sm:$0xff]
          %107 = vst [vmem:[%s61 + $0xb0] sm:$0xff] %v106
          %v108 = vld [vmem:[%s60 + $0xb8] sm:$0xff]
          %109 = vst [vmem:[%s61 + $0xb8] sm:$0xff] %v108
          %v110 = vld [vmem:[%s60 + $0xc0] sm:$0xff]
          %111 = vst [vmem:[%s61 + $0xc0] sm:$0xff] %v110
          %v112 = vld [vmem:[%s60 + $0xc8] sm:$0xff]
          %113 = vst [vmem:[%s61 + $0xc8] sm:$0xff] %v112
          %v114 = vld [vmem:[%s60 + $0xd0] sm:$0xff]
          %115 = vst [vmem:[%s61 + $0xd0] sm:$0xff] %v114
          %v116 = vld [vmem:[%s60 + $0xd8] sm:$0xff]
          %117 = vst [vmem:[%s61 + $0xd8] sm:$0xff] %v116
          %v118 = vld [vmem:[%s60 + $0xe0] sm:$0xff]
          %119 = vst [vmem:[%s61 + $0xe0] sm:$0xff] %v118
          %v120 = vld [vmem:[%s60 + $0xe8] sm:$0xff]
          %121 = vst [vmem:[%s61 + $0xe8] sm:$0xff] %v120
          %v122 = vld [vmem:[%s60 + $0xf0] sm:$0xff]
          %123 = vst [vmem:[%s61 + $0xf0] sm:$0xff] %v122
          %v124 = vld [vmem:[%s60 + $0xf8] sm:$0xff]
          %125 = vst [vmem:[%s61 + $0xf8] sm:$0xff] %v124
          %v126 = vld [vmem:[%s60 + $0x100] sm:$0xff]
          %127 = vst [vmem:[%s61 + $0x100] sm:$0xff] %v126
          %v128 = vld [vmem:[%s60 + $0x108] sm:$0xff]
          %129 = vst [vmem:[%s61 + $0x108] sm:$0xff] %v128
          %v130 = vld [vmem:[%s60 + $0x110] sm:$0xff]
          %131 = vst [vmem:[%s61 + $0x110] sm:$0xff] %v130
          %v132 = vld [vmem:[%s60 + $0x118] sm:$0xff]
          %133 = vst [vmem:[%s61 + $0x118] sm:$0xff] %v132
          %v134 = vld [vmem:[%s60 + $0x120] sm:$0xff]
          %135 = vst [vmem:[%s61 + $0x120] sm:$0xff] %v134
          %v136 = vld [vmem:[%s60 + $0x128] sm:$0xff]
          %137 = vst [vmem:[%s61 + $0x128] sm:$0xff] %v136
          %v138 = vld [vmem:[%s60 + $0x130] sm:$0xff]
          %139 = vst [vmem:[%s61 + $0x130] sm:$0xff] %v138
          %v140 = vld [vmem:[%s60 + $0x138] sm:$0xff]
          %141 = vst [vmem:[%s61 + $0x138] sm:$0xff] %v140
          %v142 = vld [vmem:[%s60 + $0x140] sm:$0xff]
          %143 = vst [vmem:[%s61 + $0x140] sm:$0xff] %v142
          %v144 = vld [vmem:[%s60 + $0x148] sm:$0xff]
          %145 = vst [vmem:[%s61 + $0x148] sm:$0xff] %v144
          %v146 = vld [vmem:[%s60 + $0x150] sm:$0xff]
          %147 = vst [vmem:[%s61 + $0x150] sm:$0xff] %v146
          %v148 = vld [vmem:[%s60 + $0x158] sm:$0xff]
          %149 = vst [vmem:[%s61 + $0x158] sm:$0xff] %v148
          %v150 = vld [vmem:[%s60 + $0x160] sm:$0xff]
          %151 = vst [vmem:[%s61 + $0x160] sm:$0xff] %v150
          %v152 = vld [vmem:[%s60 + $0x168] sm:$0xff]
          %153 = vst [vmem:[%s61 + $0x168] sm:$0xff] %v152
          %v154 = vld [vmem:[%s60 + $0x170] sm:$0xff]
          %155 = vst [vmem:[%s61 + $0x170] sm:$0xff] %v154
          %v156 = vld [vmem:[%s60 + $0x178] sm:$0xff]
          %157 = vst [vmem:[%s61 + $0x178] sm:$0xff] %v156
          %v158 = vld [vmem:[%s60 + $0x180] sm:$0xff]
          %159 = vst [vmem:[%s61 + $0x180] sm:$0xff] %v158
          %v160 = vld [vmem:[%s60 + $0x188] sm:$0xff]
          %161 = vst [vmem:[%s61 + $0x188] sm:$0xff] %v160
          %v162 = vld [vmem:[%s60 + $0x190] sm:$0xff]
          %163 = vst [vmem:[%s61 + $0x190] sm:$0xff] %v162
          %v164 = vld [vmem:[%s60 + $0x198] sm:$0xff]
          %165 = vst [vmem:[%s61 + $0x198] sm:$0xff] %v164
          %v166 = vld [vmem:[%s60 + $0x1a0] sm:$0xff]
          %167 = vst [vmem:[%s61 + $0x1a0] sm:$0xff] %v166
          %v168 = vld [vmem:[%s60 + $0x1a8] sm:$0xff]
          %169 = vst [vmem:[%s61 + $0x1a8] sm:$0xff] %v168
          %v170 = vld [vmem:[%s60 + $0x1b0] sm:$0xff]
          %171 = vst [vmem:[%s61 + $0x1b0] sm:$0xff] %v170
          %v172 = vld [vmem:[%s60 + $0x1b8] sm:$0xff]
          %173 = vst [vmem:[%s61 + $0x1b8] sm:$0xff] %v172
          %v174 = vld [vmem:[%s60 + $0x1c0] sm:$0xff]
          %175 = vst [vmem:[%s61 + $0x1c0] sm:$0xff] %v174
          %v176 = vld [vmem:[%s60 + $0x1c8] sm:$0xff]
          %177 = vst [vmem:[%s61 + $0x1c8] sm:$0xff] %v176
          %v178 = vld [vmem:[%s60 + $0x1d0] sm:$0xff]
          %179 = vst [vmem:[%s61 + $0x1d0] sm:$0xff] %v178
          %v180 = vld [vmem:[%s60 + $0x1d8] sm:$0xff]
          %181 = vst [vmem:[%s61 + $0x1d8] sm:$0xff] %v180
          %v182 = vld [vmem:[%s60 + $0x1e0] sm:$0xff]
          %183 = vst [vmem:[%s61 + $0x1e0] sm:$0xff] %v182
          %v184 = vld [vmem:[%s60 + $0x1e8] sm:$0xff]
          %185 = vst [vmem:[%s61 + $0x1e8] sm:$0xff] %v184
          %v186 = vld [vmem:[%s60 + $0x1f0] sm:$0xff]
          %187 = vst [vmem:[%s61 + $0x1f0] sm:$0xff] %v186
          %v188 = vld [vmem:[%s60 + $0x1f8] sm:$0xff]
          %189 = vst [vmem:[%s61 + $0x1f8] sm:$0xff] %v188
          %v190 = vld [vmem:[%s60 + $0x200] sm:$0xff]
          %191 = vst [vmem:[%s61 + $0x200] sm:$0xff] %v190
          %v192 = vld [vmem:[%s60 + $0x208] sm:$0xff]
          %193 = vst [vmem:[%s61 + $0x208] sm:$0xff] %v192
          %v194 = vld [vmem:[%s60 + $0x210] sm:$0xff]
          %195 = vst [vmem:[%s61 + $0x210] sm:$0xff] %v194
          %v196 = vld [vmem:[%s60 + $0x218] sm:$0xff]
          %197 = vst [vmem:[%s61 + $0x218] sm:$0xff] %v196
          %v198 = vld [vmem:[%s60 + $0x220] sm:$0xff]
          %199 = vst [vmem:[%s61 + $0x220] sm:$0xff] %v198
          %v200 = vld [vmem:[%s60 + $0x228] sm:$0xff]
          %201 = vst [vmem:[%s61 + $0x228] sm:$0xff] %v200
          %v202 = vld [vmem:[%s60 + $0x230] sm:$0xff]
          %203 = vst [vmem:[%s61 + $0x230] sm:$0xff] %v202
          %v204 = vld [vmem:[%s60 + $0x238] sm:$0xff]
          %205 = vst [vmem:[%s61 + $0x238] sm:$0xff] %v204
          %v206 = vld [vmem:[%s60 + $0x240] sm:$0xff]
          %207 = vst [vmem:[%s61 + $0x240] sm:$0xff] %v206
          %v208 = vld [vmem:[%s60 + $0x248] sm:$0xff]
          %209 = vst [vmem:[%s61 + $0x248] sm:$0xff] %v208
          %v210 = vld [vmem:[%s60 + $0x250] sm:$0xff]
          %211 = vst [vmem:[%s61 + $0x250] sm:$0xff] %v210
          %v212 = vld [vmem:[%s60 + $0x258] sm:$0xff]
          %213 = vst [vmem:[%s61 + $0x258] sm:$0xff] %v212
          %v214 = vld [vmem:[%s60 + $0x260] sm:$0xff]
          %215 = vst [vmem:[%s61 + $0x260] sm:$0xff] %v214
          %v216 = vld [vmem:[%s60 + $0x268] sm:$0xff]
          %217 = vst [vmem:[%s61 + $0x268] sm:$0xff] %v216
          %v218 = vld [vmem:[%s60 + $0x270] sm:$0xff]
          %219 = vst [vmem:[%s61 + $0x270] sm:$0xff] %v218
          %v220 = vld [vmem:[%s60 + $0x278] sm:$0xff]
          %221 = vst [vmem:[%s61 + $0x278] sm:$0xff] %v220
          %v222 = vld [vmem:[%s60 + $0x280] sm:$0xff]
          %223 = vst [vmem:[%s61 + $0x280] sm:$0xff] %v222
          %v224 = vld [vmem:[%s60 + $0x288] sm:$0xff]
          %225 = vst [vmem:[%s61 + $0x288] sm:$0xff] %v224
          %v226 = vld [vmem:[%s60 + $0x290] sm:$0xff]
          %227 = vst [vmem:[%s61 + $0x290] sm:$0xff] %v226
          %v228 = vld [vmem:[%s60 + $0x298] sm:$0xff]
          %229 = vst [vmem:[%s61 + $0x298] sm:$0xff] %v228
          %v230 = vld [vmem:[%s60 + $0x2a0] sm:$0xff]
          %231 = vst [vmem:[%s61 + $0x2a0] sm:$0xff] %v230
          %v232 = vld [vmem:[%s60 + $0x2a8] sm:$0xff]
          %233 = vst [vmem:[%s61 + $0x2a8] sm:$0xff] %v232
          %v234 = vld [vmem:[%s60 + $0x2b0] sm:$0xff]
          %235 = vst [vmem:[%s61 + $0x2b0] sm:$0xff] %v234
          %v236 = vld [vmem:[%s60 + $0x2b8] sm:$0xff]
          %237 = vst [vmem:[%s61 + $0x2b8] sm:$0xff] %v236
          %v238 = vld [vmem:[%s60 + $0x2c0] sm:$0xff]
          %239 = vst [vmem:[%s61 + $0x2c0] sm:$0xff] %v238
          %v240 = vld [vmem:[%s60 + $0x2c8] sm:$0xff]
          %241 = vst [vmem:[%s61 + $0x2c8] sm:$0xff] %v240
          %v242 = vld [vmem:[%s60 + $0x2d0] sm:$0xff]
          %243 = vst [vmem:[%s61 + $0x2d0] sm:$0xff] %v242
          %v244 = vld [vmem:[%s60 + $0x2d8] sm:$0xff]
          %245 = vst [vmem:[%s61 + $0x2d8] sm:$0xff] %v244
          %v246 = vld [vmem:[%s60 + $0x2e0] sm:$0xff]
          %247 = vst [vmem:[%s61 + $0x2e0] sm:$0xff] %v246
          %v248 = vld [vmem:[%s60 + $0x2e8] sm:$0xff]
          %249 = vst [vmem:[%s61 + $0x2e8] sm:$0xff] %v248
          %v250 = vld [vmem:[%s60 + $0x2f0] sm:$0xff]
          %251 = vst [vmem:[%s61 + $0x2f0] sm:$0xff] %v250
          %v252 = vld [vmem:[%s60 + $0x2f8] sm:$0xff]
          %253 = vst [vmem:[%s61 + $0x2f8] sm:$0xff] %v252
          %v254 = vld [vmem:[%s60 + $0x300] sm:$0xff]
          %255 = vst [vmem:[%s61 + $0x300] sm:$0xff] %v254
          %v256 = vld [vmem:[%s60 + $0x308] sm:$0xff]
          %257 = vst [vmem:[%s61 + $0x308] sm:$0xff] %v256
          %v258 = vld [vmem:[%s60 + $0x310] sm:$0xff]
          %259 = vst [vmem:[%s61 + $0x310] sm:$0xff] %v258
          %v260 = vld [vmem:[%s60 + $0x318] sm:$0xff]
          %261 = vst [vmem:[%s61 + $0x318] sm:$0xff] %v260
          %v262 = vld [vmem:[%s60 + $0x320] sm:$0xff]
          %263 = vst [vmem:[%s61 + $0x320] sm:$0xff] %v262
          %v264 = vld [vmem:[%s60 + $0x328] sm:$0xff]
          %265 = vst [vmem:[%s61 + $0x328] sm:$0xff] %v264
          %v266 = vld [vmem:[%s60 + $0x330] sm:$0xff]
          %267 = vst [vmem:[%s61 + $0x330] sm:$0xff] %v266
          %v268 = vld [vmem:[%s60 + $0x338] sm:$0xff]
          %269 = vst [vmem:[%s61 + $0x338] sm:$0xff] %v268
        $region53: #{test_model_forward.1} parent=47 // loop_footer
          %s59 = sadd.s32 1, %s55
        $region54: #{test_model_forward.1} parent=47 // loop_footer_branch
          %54 = sbr.rel target = $region50
        $region55: #{test_model_forward.1} parent=47 // loop_exit
          _
      $region48: #{test_model_forward.1} parent=32 // pred_fallthru
        _
      %p270 = pneg %p50
      // Predicated region
      $region56: #{test_model_forward.1} parent=32 // pred_check
        _
      $region57: #{test_model_forward.1} parent=32 // pred_check_branch
        %272 = sbr.rel (%p50) target = $region59
      $region58: #{test_model_forward.1} parent=32 // pred_region
        %s273 = sand.u32 832, 7
      $region59: #{test_model_forward.1} parent=32 // pred_fallthru
        _
    $region33: #{test_model_forward.1} parent=1 // pred_fallthru
      _
    // Predicated region
    $region34: #{test_model_forward.1} parent=1 // pred_check
      %p34 = pneg %p30
    $region35: #{test_model_forward.1} parent=1 // pred_check_branch
      %36 = sbr.rel (%p34) target = $region37
    $region36: #{test_model_forward.1} parent=1 // pred_region
      %s37 = sshll.u32 1, 832
      %s38 = ssub.s32 %s37, 1
      loop: start=0, step=1, limit=1
      $region38: #{test_model_forward.1} parent=36 // loop_pre_header
        _
      $region39: #{test_model_forward.1} parent=36 // loop_header
        %s40 = sphi 0, %s44
        %p41 = scmp.ge.s32.totalorder %s40, 1
        %s45 = sphi %s6, %s6
        %s46 = sphi [#allocation4], [#allocation4]
      $region40: #{test_model_forward.1} parent=36 // loop_header_branch
        %43 = sbr.rel (%p41) target = $region44
      $region41: #{test_model_forward.1} parent=36 // loop_body
        %v47 = vld [vmem:[%s45] sm:%s38]
        %48 = vst [vmem:[%s46] sm:%s38] %v47
      $region42: #{test_model_forward.1} parent=36 // loop_footer
        %s44 = sadd.s32 1, %s40
      $region43: #{test_model_forward.1} parent=36 // loop_footer_branch
        %39 = sbr.rel target = $region39
      $region44: #{test_model_forward.1} parent=36 // loop_exit
        _
    $region37: #{test_model_forward.1} parent=1 // pred_fallthru
      _
    // Predicated region
    $region60: #{test_model_forward.1} parent=1 // pred_check
      _
    $region61: #{test_model_forward.1} parent=1 // pred_check_branch
      %276 = sbr.rel (0) target = $region63
    $region62: #{test_model_forward.1} parent=1 // pred_region
      %277 = vsyncadd [#allocation5], 13312
    $region63: #{test_model_forward.1} parent=1 // pred_fallthru
      _
    %v278 = vld [vmem:[%s0] sm:$0xff]
    %v279 = vld [vmem:[%s0 + $0x8] sm:$0xff]
    %v280 = vld [vmem:[%s0 + $0x10] sm:$0xff]
    %v281 = vld [vmem:[%s0 + $0x18] sm:$0x3]
    %v286 = vlaneseq
    %v287 = vshrl.u32 %v286, 7
    %v288 = vsub.s32 0, %v287
    %v289 = vrot.slane %v278, %v288
    %v290 = vlaneseq
    %v291 = vshrl.u32 %v290, 7
    %v292 = vsub.s32 1, %v291
    %v293 = vrot.slane %v278, %v292
    %v294 = vlaneseq
    %v295 = vshrl.u32 %v294, 7
    %v296 = vsub.s32 2, %v295
    %v297 = vrot.slane %v278, %v296
    %v298 = vlaneseq
    %v299 = vshrl.u32 %v298, 7
    %v300 = vsub.s32 3, %v299
    %v301 = vrot.slane %v278, %v300
    %v302 = vlaneseq
    %v303 = vshrl.u32 %v302, 7
    %v304 = vsub.s32 4, %v303
    %v305 = vrot.slane %v278, %v304
    %v306 = vlaneseq
    %v307 = vshrl.u32 %v306, 7
    %v308 = vsub.s32 5, %v307
    %v309 = vrot.slane %v278, %v308
    %v310 = vlaneseq
    %v311 = vshrl.u32 %v310, 7
    %v312 = vsub.s32 6, %v311
    %v313 = vrot.slane %v278, %v312
    %v314 = vlaneseq
    %v315 = vshrl.u32 %v314, 7
    %v316 = vsub.s32 7, %v315
    %v317 = vrot.slane %v278, %v316
    %v318 = vlaneseq
    %v319 = vshrl.u32 %v318, 7
    %v320 = vsub.s32 0, %v319
    %v321 = vrot.slane %v279, %v320
    %v322 = vlaneseq
    %v323 = vshrl.u32 %v322, 7
    %v324 = vsub.s32 1, %v323
    %v325 = vrot.slane %v279, %v324
    %v326 = vlaneseq
    %v327 = vshrl.u32 %v326, 7
    %v328 = vsub.s32 2, %v327
    %v329 = vrot.slane %v279, %v328
    %v330 = vlaneseq
    %v331 = vshrl.u32 %v330, 7
    %v332 = vsub.s32 3, %v331
    %v333 = vrot.slane %v279, %v332
    %v334 = vlaneseq
    %v335 = vshrl.u32 %v334, 7
    %v336 = vsub.s32 4, %v335
    %v337 = vrot.slane %v279, %v336
    %v338 = vlaneseq
    %v339 = vshrl.u32 %v338, 7
    %v340 = vsub.s32 5, %v339
    %v341 = vrot.slane %v279, %v340
    %v342 = vlaneseq
    %v343 = vshrl.u32 %v342, 7
    %v344 = vsub.s32 6, %v343
    %v345 = vrot.slane %v279, %v344
    %v346 = vlaneseq
    %v347 = vshrl.u32 %v346, 7
    %v348 = vsub.s32 7, %v347
    %v349 = vrot.slane %v279, %v348
    %v350 = vlaneseq
    %v351 = vshrl.u32 %v350, 7
    %v352 = vsub.s32 0, %v351
    %v353 = vrot.slane %v280, %v352
    %v354 = vlaneseq
    %v355 = vshrl.u32 %v354, 7
    %v356 = vsub.s32 1, %v355
    %v357 = vrot.slane %v280, %v356
    %v358 = vlaneseq
    %v359 = vshrl.u32 %v358, 7
    %v360 = vsub.s32 2, %v359
    %v361 = vrot.slane %v280, %v360
    %v362 = vlaneseq
    %v363 = vshrl.u32 %v362, 7
    %v364 = vsub.s32 3, %v363
    %v365 = vrot.slane %v280, %v364
    %v366 = vlaneseq
    %v367 = vshrl.u32 %v366, 7
    %v368 = vsub.s32 4, %v367
    %v369 = vrot.slane %v280, %v368
    %v370 = vlaneseq
    %v371 = vshrl.u32 %v370, 7
    %v372 = vsub.s32 5, %v371
    %v373 = vrot.slane %v280, %v372
    %v374 = vlaneseq
    %v375 = vshrl.u32 %v374, 7
    %v376 = vsub.s32 6, %v375
    %v377 = vrot.slane %v280, %v376
    %v378 = vlaneseq
    %v379 = vshrl.u32 %v378, 7
    %v380 = vsub.s32 7, %v379
    %v381 = vrot.slane %v280, %v380
    %v382 = vlaneseq
    %v383 = vshrl.u32 %v382, 7
    %v384 = vsub.s32 0, %v383
    %v385 = vrot.slane %v281, %v384
    %v386 = vlaneseq
    %v387 = vshrl.u32 %v386, 7
    %v388 = vsub.s32 1, %v387
    %v389 = vrot.slane %v281, %v388
    %416 = vrot.lane.b32.xlu0 %v289, 81
    %v417 = vpop.permute.xlu0 %416
    %418 = vrot.lane.b32.xlu0 %v293, 81
    %v419 = vpop.permute.xlu0 %418
    %420 = vrot.lane.b32.xlu0 %v297, 81
    %v421 = vpop.permute.xlu0 %420
    %422 = vrot.lane.b32.xlu0 %v301, 81
    %v423 = vpop.permute.xlu0 %422
    %424 = vrot.lane.b32.xlu0 %v305, 81
    %v425 = vpop.permute.xlu0 %424
    %426 = vrot.lane.b32.xlu0 %v309, 81
    %v427 = vpop.permute.xlu0 %426
    %428 = vrot.lane.b32.xlu0 %v313, 81
    %v429 = vpop.permute.xlu0 %428
    %430 = vrot.lane.b32.xlu0 %v317, 81
    %v431 = vpop.permute.xlu0 %430
    %432 = vrot.lane.b32.xlu0 %v321, 81
    %v433 = vpop.permute.xlu0 %432
    %434 = vrot.lane.b32.xlu0 %v325, 81
    %v435 = vpop.permute.xlu0 %434
    %436 = vrot.lane.b32.xlu0 %v329, 81
    %v437 = vpop.permute.xlu0 %436
    %438 = vrot.lane.b32.xlu0 %v333, 81
    %v439 = vpop.permute.xlu0 %438
    %440 = vrot.lane.b32.xlu0 %v337, 81
    %v441 = vpop.permute.xlu0 %440
    %442 = vrot.lane.b32.xlu0 %v341, 81
    %v443 = vpop.permute.xlu0 %442
    %444 = vrot.lane.b32.xlu0 %v345, 81
    %v445 = vpop.permute.xlu0 %444
    %446 = vrot.lane.b32.xlu0 %v349, 81
    %v447 = vpop.permute.xlu0 %446
    %448 = vrot.lane.b32.xlu0 %v353, 81
    %v449 = vpop.permute.xlu0 %448
    %450 = vrot.lane.b32.xlu0 %v357, 81
    %v451 = vpop.permute.xlu0 %450
    %452 = vrot.lane.b32.xlu0 %v361, 81
    %v453 = vpop.permute.xlu0 %452
    %454 = vrot.lane.b32.xlu0 %v365, 81
    %v455 = vpop.permute.xlu0 %454
    %456 = vrot.lane.b32.xlu0 %v369, 81
    %v457 = vpop.permute.xlu0 %456
    %458 = vrot.lane.b32.xlu0 %v373, 81
    %v459 = vpop.permute.xlu0 %458
    %460 = vrot.lane.b32.xlu0 %v377, 81
    %v461 = vpop.permute.xlu0 %460
    %462 = vrot.lane.b32.xlu0 %v381, 81
    %v463 = vpop.permute.xlu0 %462
    %464 = vrot.lane.b32.xlu0 %v385, 81
    %v465 = vpop.permute.xlu0 %464
    %466 = vrot.lane.b32.xlu0 %v389, 81
    %v467 = vpop.permute.xlu0 %466
    %v468 = vlaneseq
    %v469 = vand.u32 %v468, 127
    %vm470 = vcmp.lt.s32.totalorder %v469, 81
    %v471 = vsel %vm470, %v465, %v467
    %v472 = vsel %vm470, %v463, %v465
    %v473 = vsel %vm470, %v461, %v463
    %v474 = vsel %vm470, %v459, %v461
    %v475 = vsel %vm470, %v457, %v459
    %v476 = vsel %vm470, %v455, %v457
    %v477 = vsel %vm470, %v453, %v455
    %v478 = vsel %vm470, %v451, %v453
    %v479 = vsel %vm470, %v449, %v451
    %v480 = vsel %vm470, %v447, %v449
    %v481 = vsel %vm470, %v445, %v447
    %v482 = vsel %vm470, %v443, %v445
    %v483 = vsel %vm470, %v441, %v443
    %v484 = vsel %vm470, %v439, %v441
    %v485 = vsel %vm470, %v437, %v439
    %v486 = vsel %vm470, %v435, %v437
    %v487 = vsel %vm470, %v433, %v435
    %v488 = vsel %vm470, %v431, %v433
    %v489 = vsel %vm470, %v429, %v431
    %v490 = vsel %vm470, %v427, %v429
    %v491 = vsel %vm470, %v425, %v427
    %v492 = vsel %vm470, %v423, %v425
    %v493 = vsel %vm470, %v421, %v423
    %v494 = vsel %vm470, %v419, %v421
    %v495 = vsel %vm470, %v417, %v419
    %v496 = vsel %vm470, %v467, %v417
    %v497 = vld [vmem:[%s1] ss:$8 sm:$0xf]
    %v498 = vld [vmem:[%s1] ss:$8 sm:$0xf0]
    %v499 = vor.u32 %v497, %v498
    %s500 = scalar_lea.vmem %s1, 64
    %v501 = vld [vmem:[%s500] ss:$8 sm:$0xf]
    %v502 = vld [vmem:[%s500] ss:$8 sm:$0xf0]
    %v503 = vor.u32 %v501, %v502
    %s504 = scalar_lea.vmem %s1, 128
    %v505 = vld [vmem:[%s504] ss:$8 sm:$0xf]
    %v506 = vld [vmem:[%s504] ss:$8 sm:$0xf0]
    %v507 = vor.u32 %v505, %v506
    %s508 = scalar_lea.vmem %s1, 192
    %v509 = vld [vmem:[%s508] ss:$8 sm:$0x3]
    %v514 = vlaneseq
    %v515 = vshrl.u32 %v514, 7
    %v516 = vsub.s32 0, %v515
    %v517 = vrot.slane %v499, %v516
    %v518 = vlaneseq
    %v519 = vshrl.u32 %v518, 7
    %v520 = vsub.s32 1, %v519
    %v521 = vrot.slane %v499, %v520
    %v522 = vlaneseq
    %v523 = vshrl.u32 %v522, 7
    %v524 = vsub.s32 2, %v523
    %v525 = vrot.slane %v499, %v524
    %v526 = vlaneseq
    %v527 = vshrl.u32 %v526, 7
    %v528 = vsub.s32 3, %v527
    %v529 = vrot.slane %v499, %v528
    %v530 = vlaneseq
    %v531 = vshrl.u32 %v530, 7
    %v532 = vsub.s32 4, %v531
    %v533 = vrot.slane %v499, %v532
    %v534 = vlaneseq
    %v535 = vshrl.u32 %v534, 7
    %v536 = vsub.s32 5, %v535
    %v537 = vrot.slane %v499, %v536
    %v538 = vlaneseq
    %v539 = vshrl.u32 %v538, 7
    %v540 = vsub.s32 6, %v539
    %v541 = vrot.slane %v499, %v540
    %v542 = vlaneseq
    %v543 = vshrl.u32 %v542, 7
    %v544 = vsub.s32 7, %v543
    %v545 = vrot.slane %v499, %v544
    %v546 = vlaneseq
    %v547 = vshrl.u32 %v546, 7
    %v548 = vsub.s32 0, %v547
    %v549 = vrot.slane %v503, %v548
    %v550 = vlaneseq
    %v551 = vshrl.u32 %v550, 7
    %v552 = vsub.s32 1, %v551
    %v553 = vrot.slane %v503, %v552
    %v554 = vlaneseq
    %v555 = vshrl.u32 %v554, 7
    %v556 = vsub.s32 2, %v555
    %v557 = vrot.slane %v503, %v556
    %v558 = vlaneseq
    %v559 = vshrl.u32 %v558, 7
    %v560 = vsub.s32 3, %v559
    %v561 = vrot.slane %v503, %v560
    %v562 = vlaneseq
    %v563 = vshrl.u32 %v562, 7
    %v564 = vsub.s32 4, %v563
    %v565 = vrot.slane %v503, %v564
    %v566 = vlaneseq
    %v567 = vshrl.u32 %v566, 7
    %v568 = vsub.s32 5, %v567
    %v569 = vrot.slane %v503, %v568
    %v570 = vlaneseq
    %v571 = vshrl.u32 %v570, 7
    %v572 = vsub.s32 6, %v571
    %v573 = vrot.slane %v503, %v572
    %v574 = vlaneseq
    %v575 = vshrl.u32 %v574, 7
    %v576 = vsub.s32 7, %v575
    %v577 = vrot.slane %v503, %v576
    %v578 = vlaneseq
    %v579 = vshrl.u32 %v578, 7
    %v580 = vsub.s32 0, %v579
    %v581 = vrot.slane %v507, %v580
    %v582 = vlaneseq
    %v583 = vshrl.u32 %v582, 7
    %v584 = vsub.s32 1, %v583
    %v585 = vrot.slane %v507, %v584
    %v586 = vlaneseq
    %v587 = vshrl.u32 %v586, 7
    %v588 = vsub.s32 2, %v587
    %v589 = vrot.slane %v507, %v588
    %v590 = vlaneseq
    %v591 = vshrl.u32 %v590, 7
    %v592 = vsub.s32 3, %v591
    %v593 = vrot.slane %v507, %v592
    %v594 = vlaneseq
    %v595 = vshrl.u32 %v594, 7
    %v596 = vsub.s32 4, %v595
    %v597 = vrot.slane %v507, %v596
    %v598 = vlaneseq
    %v599 = vshrl.u32 %v598, 7
    %v600 = vsub.s32 5, %v599
    %v601 = vrot.slane %v507, %v600
    %v602 = vlaneseq
    %v603 = vshrl.u32 %v602, 7
    %v604 = vsub.s32 6, %v603
    %v605 = vrot.slane %v507, %v604
    %v606 = vlaneseq
    %v607 = vshrl.u32 %v606, 7
    %v608 = vsub.s32 7, %v607
    %v609 = vrot.slane %v507, %v608
    %v610 = vlaneseq
    %v611 = vshrl.u32 %v610, 7
    %v612 = vsub.s32 0, %v611
    %v613 = vrot.slane %v509, %v612
    %v614 = vlaneseq
    %v615 = vshrl.u32 %v614, 7
    %v616 = vsub.s32 1, %v615
    %v617 = vrot.slane %v509, %v616
    %v644 = vmul.f32 %v471, %v517
    %v645 = vmul.f32 %v496, %v521
    %v646 = vmul.f32 %v495, %v525
    %v647 = vmul.f32 %v494, %v529
    %v648 = vmul.f32 %v493, %v533
    %v649 = vmul.f32 %v492, %v537
    %v650 = vmul.f32 %v491, %v541
    %v651 = vmul.f32 %v490, %v545
    %v652 = vmul.f32 %v489, %v549
    %v653 = vmul.f32 %v488, %v553
    %v654 = vmul.f32 %v487, %v557
    %v655 = vmul.f32 %v486, %v561
    %v656 = vmul.f32 %v485, %v565
    %v657 = vmul.f32 %v484, %v569
    %v658 = vmul.f32 %v483, %v573
    %v659 = vmul.f32 %v482, %v577
    %v660 = vmul.f32 %v481, %v581
    %v661 = vmul.f32 %v480, %v585
    %v662 = vmul.f32 %v479, %v589
    %v663 = vmul.f32 %v478, %v593
    %v664 = vmul.f32 %v477, %v597
    %v665 = vmul.f32 %v476, %v601
    %v666 = vmul.f32 %v475, %v605
    %v667 = vmul.f32 %v474, %v609
    %v668 = vmul.f32 %v473, %v613
    %v669 = vmul.f32 %v472, %v617
    %v696 = vcombine.low %v644, %v645
    %v697 = vcombine.low %v646, %v647
    %v698 = vcombine.low %v648, %v649
    %v699 = vcombine.low %v650, %v651
    %v701 = vunpack.c.l.s4 1966171168
    %v702 = vunpack.c.0.s8 %v701
    %v703 = vlaneseq
    %v704 = vshrl.u32 %v703, 7
    %v705 = vsub.s32 %v702, %v704
    %v706 = vrot.slane %v696, %v705
    %v708 = vunpack.c.l.s4 1966171168
    %v709 = vunpack.c.0.s8 %v708
    %v710 = vlaneseq
    %v711 = vshrl.u32 %v710, 7
    %v712 = vsub.s32 %v709, %v711
    %v713 = vrot.slane %v697, %v712
    %v715 = vunpack.c.l.s4 1966171168
    %v716 = vunpack.c.0.s8 %v715
    %v717 = vlaneseq
    %v718 = vshrl.u32 %v717, 7
    %v719 = vsub.s32 %v716, %v718
    %v720 = vrot.slane %v698, %v719
    %v722 = vunpack.c.l.s4 1966171168
    %v723 = vunpack.c.0.s8 %v722
    %v724 = vlaneseq
    %v725 = vshrl.u32 %v724, 7
    %v726 = vsub.s32 %v723, %v725
    %v727 = vrot.slane %v699, %v726
    %v728 = vcombine.low %v706, %v713
    %v729 = vcombine.low %v720, %v727
    %v731 = vunpack.c.l.s4 1966171168
    %v732 = vunpack.c.0.s8 %v731
    %v733 = vlaneseq
    %v734 = vshrl.u32 %v733, 7
    %v735 = vsub.s32 %v732, %v734
    %v736 = vrot.slane %v728, %v735
    %v738 = vunpack.c.l.s4 1966171168
    %v739 = vunpack.c.0.s8 %v738
    %v740 = vlaneseq
    %v741 = vshrl.u32 %v740, 7
    %v742 = vsub.s32 %v739, %v741
    %v743 = vrot.slane %v729, %v742
    %v744 = vcombine.low %v736, %v743
    %v745 = vcombine.low %v652, %v653
    %v746 = vcombine.low %v654, %v655
    %v747 = vcombine.low %v656, %v657
    %v748 = vcombine.low %v658, %v659
    %v750 = vunpack.c.l.s4 1966171168
    %v751 = vunpack.c.0.s8 %v750
    %v752 = vlaneseq
    %v753 = vshrl.u32 %v752, 7
    %v754 = vsub.s32 %v751, %v753
    %v755 = vrot.slane %v745, %v754
    %v757 = vunpack.c.l.s4 1966171168
    %v758 = vunpack.c.0.s8 %v757
    %v759 = vlaneseq
    %v760 = vshrl.u32 %v759, 7
    %v761 = vsub.s32 %v758, %v760
    %v762 = vrot.slane %v746, %v761
    %v764 = vunpack.c.l.s4 1966171168
    %v765 = vunpack.c.0.s8 %v764
    %v766 = vlaneseq
    %v767 = vshrl.u32 %v766, 7
    %v768 = vsub.s32 %v765, %v767
    %v769 = vrot.slane %v747, %v768
    %v771 = vunpack.c.l.s4 1966171168
    %v772 = vunpack.c.0.s8 %v771
    %v773 = vlaneseq
    %v774 = vshrl.u32 %v773, 7
    %v775 = vsub.s32 %v772, %v774
    %v776 = vrot.slane %v748, %v775
    %v777 = vcombine.low %v755, %v762
    %v778 = vcombine.low %v769, %v776
    %v780 = vunpack.c.l.s4 1966171168
    %v781 = vunpack.c.0.s8 %v780
    %v782 = vlaneseq
    %v783 = vshrl.u32 %v782, 7
    %v784 = vsub.s32 %v781, %v783
    %v785 = vrot.slane %v777, %v784
    %v787 = vunpack.c.l.s4 1966171168
    %v788 = vunpack.c.0.s8 %v787
    %v789 = vlaneseq
    %v790 = vshrl.u32 %v789, 7
    %v791 = vsub.s32 %v788, %v790
    %v792 = vrot.slane %v778, %v791
    %v793 = vcombine.low %v785, %v792
    %v794 = vcombine.low %v660, %v661
    %v795 = vcombine.low %v662, %v663
    %v796 = vcombine.low %v664, %v665
    %v797 = vcombine.low %v666, %v667
    %v799 = vunpack.c.l.s4 1966171168
    %v800 = vunpack.c.0.s8 %v799
    %v801 = vlaneseq
    %v802 = vshrl.u32 %v801, 7
    %v803 = vsub.s32 %v800, %v802
    %v804 = vrot.slane %v794, %v803
    %v806 = vunpack.c.l.s4 1966171168
    %v807 = vunpack.c.0.s8 %v806
    %v808 = vlaneseq
    %v809 = vshrl.u32 %v808, 7
    %v810 = vsub.s32 %v807, %v809
    %v811 = vrot.slane %v795, %v810
    %v813 = vunpack.c.l.s4 1966171168
    %v814 = vunpack.c.0.s8 %v813
    %v815 = vlaneseq
    %v816 = vshrl.u32 %v815, 7
    %v817 = vsub.s32 %v814, %v816
    %v818 = vrot.slane %v796, %v817
    %v820 = vunpack.c.l.s4 1966171168
    %v821 = vunpack.c.0.s8 %v820
    %v822 = vlaneseq
    %v823 = vshrl.u32 %v822, 7
    %v824 = vsub.s32 %v821, %v823
    %v825 = vrot.slane %v797, %v824
    %v826 = vcombine.low %v804, %v811
    %v827 = vcombine.low %v818, %v825
    %v829 = vunpack.c.l.s4 1966171168
    %v830 = vunpack.c.0.s8 %v829
    %v831 = vlaneseq
    %v832 = vshrl.u32 %v831, 7
    %v833 = vsub.s32 %v830, %v832
    %v834 = vrot.slane %v826, %v833
    %v836 = vunpack.c.l.s4 1966171168
    %v837 = vunpack.c.0.s8 %v836
    %v838 = vlaneseq
    %v839 = vshrl.u32 %v838, 7
    %v840 = vsub.s32 %v837, %v839
    %v841 = vrot.slane %v827, %v840
    %v842 = vcombine.low %v834, %v841
    %v843 = vcombine.low %v668, %v669
    %v845 = vunpack.c.l.s4 1966171168
    %v846 = vunpack.c.0.s8 %v845
    %v847 = vlaneseq
    %v848 = vshrl.u32 %v847, 7
    %v849 = vsub.s32 %v846, %v848
    %v850 = vrot.slane %v843, %v849
    %v852 = vunpack.c.l.s4 1966171168
    %v853 = vunpack.c.0.s8 %v852
    %v854 = vlaneseq
    %v855 = vshrl.u32 %v854, 7
    %v856 = vsub.s32 %v853, %v855
    %v857 = vrot.slane %v850, %v856
    %862 = vst [vmem:[#allocation2] ss:$8 sm:$0xf] %v744
    %863 = vst [vmem:[#allocation2] ss:$8 sm:$0xf0] %v744
    %s864 = scalar_lea.vmem [#allocation2], 64
    %865 = vst [vmem:[%s864] ss:$8 sm:$0xf] %v793
    %866 = vst [vmem:[%s864] ss:$8 sm:$0xf0] %v793
    %s867 = scalar_lea.vmem [#allocation2], 128
    %868 = vst [vmem:[%s867] ss:$8 sm:$0xf] %v842
    %869 = vst [vmem:[%s867] ss:$8 sm:$0xf0] %v842
    %v870 = vlaneseq
    %vm871 = vcmp.ge.s32.totalorder %v870, 0
    %vm872 = vcmp.lt.s32.totalorder %v870, 256
    %vm873 = vmand %vm871, %vm872
    %s874 = scalar_lea.vmem [#allocation2], 192
    %875 = vst.msk [vmem:[%s874] ss:$8 sm:$0x3] %vm873, %v857
    %876 = vst.msk [vmem:[%s874] ss:$8 sm:$0x0] %vm873, %v857
    %877 = vrot.lane.b32.xlu0 %v289, 80
    %v878 = vpop.permute.xlu0 %877
    %879 = vrot.lane.b32.xlu0 %v293, 80
    %v880 = vpop.permute.xlu0 %879
    %881 = vrot.lane.b32.xlu0 %v297, 80
    %v882 = vpop.permute.xlu0 %881
    %883 = vrot.lane.b32.xlu0 %v301, 80
    %v884 = vpop.permute.xlu0 %883
    %885 = vrot.lane.b32.xlu0 %v305, 80
    %v886 = vpop.permute.xlu0 %885
    %887 = vrot.lane.b32.xlu0 %v309, 80
    %v888 = vpop.permute.xlu0 %887
    %889 = vrot.lane.b32.xlu0 %v313, 80
    %v890 = vpop.permute.xlu0 %889
    %891 = vrot.lane.b32.xlu0 %v317, 80
    %v892 = vpop.permute.xlu0 %891
    %893 = vrot.lane.b32.xlu0 %v321, 80
    %v894 = vpop.permute.xlu0 %893
    %895 = vrot.lane.b32.xlu0 %v325, 80
    %v896 = vpop.permute.xlu0 %895
    %897 = vrot.lane.b32.xlu0 %v329, 80
    %v898 = vpop.permute.xlu0 %897
    %899 = vrot.lane.b32.xlu0 %v333, 80
    %v900 = vpop.permute.xlu0 %899
    %901 = vrot.lane.b32.xlu0 %v337, 80
    %v902 = vpop.permute.xlu0 %901
    %903 = vrot.lane.b32.xlu0 %v341, 80
    %v904 = vpop.permute.xlu0 %903
    %905 = vrot.lane.b32.xlu0 %v345, 80
    %v906 = vpop.permute.xlu0 %905
    %907 = vrot.lane.b32.xlu0 %v349, 80
    %v908 = vpop.permute.xlu0 %907
    %909 = vrot.lane.b32.xlu0 %v353, 80
    %v910 = vpop.permute.xlu0 %909
    %911 = vrot.lane.b32.xlu0 %v357, 80
    %v912 = vpop.permute.xlu0 %911
    %913 = vrot.lane.b32.xlu0 %v361, 80
    %v914 = vpop.permute.xlu0 %913
    %915 = vrot.lane.b32.xlu0 %v365, 80
    %v916 = vpop.permute.xlu0 %915
    %917 = vrot.lane.b32.xlu0 %v369, 80
    %v918 = vpop.permute.xlu0 %917
    %919 = vrot.lane.b32.xlu0 %v373, 80
    %v920 = vpop.permute.xlu0 %919
    %921 = vrot.lane.b32.xlu0 %v377, 80
    %v922 = vpop.permute.xlu0 %921
    %923 = vrot.lane.b32.xlu0 %v381, 80
    %v924 = vpop.permute.xlu0 %923
    %925 = vrot.lane.b32.xlu0 %v385, 80
    %v926 = vpop.permute.xlu0 %925
    %927 = vrot.lane.b32.xlu0 %v389, 80
    %v928 = vpop.permute.xlu0 %927
    %vm929 = vcmp.lt.s32.totalorder %v469, 80
    %v930 = vsel %vm929, %v926, %v928
    %v931 = vsel %vm929, %v924, %v926
    %v932 = vsel %vm929, %v922, %v924
    %v933 = vsel %vm929, %v920, %v922
    %v934 = vsel %vm929, %v918, %v920
    %v935 = vsel %vm929, %v916, %v918
    %v936 = vsel %vm929, %v914, %v916
    %v937 = vsel %vm929, %v912, %v914
    %v938 = vsel %vm929, %v910, %v912
    %v939 = vsel %vm929, %v908, %v910
    %v940 = vsel %vm929, %v906, %v908
    %v941 = vsel %vm929, %v904, %v906
    %v942 = vsel %vm929, %v902, %v904
    %v943 = vsel %vm929, %v900, %v902
    %v944 = vsel %vm929, %v898, %v900
    %v945 = vsel %vm929, %v896, %v898
    %v946 = vsel %vm929, %v894, %v896
    %v947 = vsel %vm929, %v892, %v894
    %v948 = vsel %vm929, %v890, %v892
    %v949 = vsel %vm929, %v888, %v890
    %v950 = vsel %vm929, %v886, %v888
    %v951 = vsel %vm929, %v884, %v886
    %v952 = vsel %vm929, %v882, %v884
    %v953 = vsel %vm929, %v880, %v882
    %v954 = vsel %vm929, %v878, %v880
    %v955 = vsel %vm929, %v928, %v878
    %s956 = scalar_lea.vmem %s1, 1
    %v957 = vld [vmem:[%s956] ss:$8 sm:$0xf]
    %v958 = vld [vmem:[%s956] ss:$8 sm:$0xf0]
    %v959 = vor.u32 %v957, %v958
    %s960 = scalar_lea.vmem %s1, 65
    %v961 = vld [vmem:[%s960] ss:$8 sm:$0xf]
    %v962 = vld [vmem:[%s960] ss:$8 sm:$0xf0]
    %v963 = vor.u32 %v961, %v962
    %s964 = scalar_lea.vmem %s1, 129
    %v965 = vld [vmem:[%s964] ss:$8 sm:$0xf]
    %v966 = vld [vmem:[%s964] ss:$8 sm:$0xf0]
    %v967 = vor.u32 %v965, %v966
    %s968 = scalar_lea.vmem %s1, 193
    %v969 = vld [vmem:[%s968] ss:$8 sm:$0x3]
    %v974 = vlaneseq
    %v975 = vshrl.u32 %v974, 7
    %v976 = vsub.s32 0, %v975
    %v977 = vrot.slane %v959, %v976
    %v978 = vlaneseq
    %v979 = vshrl.u32 %v978, 7
    %v980 = vsub.s32 1, %v979
    %v981 = vrot.slane %v959, %v980
    %v982 = vlaneseq
    %v983 = vshrl.u32 %v982, 7
    %v984 = vsub.s32 2, %v983
    %v985 = vrot.slane %v959, %v984
    %v986 = vlaneseq
    %v987 = vshrl.u32 %v986, 7
    %v988 = vsub.s32 3, %v987
    %v989 = vrot.slane %v959, %v988
    %v990 = vlaneseq
    %v991 = vshrl.u32 %v990, 7
    %v992 = vsub.s32 4, %v991
    %v993 = vrot.slane %v959, %v992
    %v994 = vlaneseq
    %v995 = vshrl.u32 %v994, 7
    %v996 = vsub.s32 5, %v995
    %v997 = vrot.slane %v959, %v996
    %v998 = vlaneseq
    %v999 = vshrl.u32 %v998, 7
    %v1000 = vsub.s32 6, %v999
    %v1001 = vrot.slane %v959, %v1000
    %v1002 = vlaneseq
    %v1003 = vshrl.u32 %v1002, 7
    %v1004 = vsub.s32 7, %v1003
    %v1005 = vrot.slane %v959, %v1004
    %v1006 = vlaneseq
    %v1007 = vshrl.u32 %v1006, 7
    %v1008 = vsub.s32 0, %v1007
    %v1009 = vrot.slane %v963, %v1008
    %v1010 = vlaneseq
    %v1011 = vshrl.u32 %v1010, 7
    %v1012 = vsub.s32 1, %v1011
    %v1013 = vrot.slane %v963, %v1012
    %v1014 = vlaneseq
    %v1015 = vshrl.u32 %v1014, 7
    %v1016 = vsub.s32 2, %v1015
    %v1017 = vrot.slane %v963, %v1016
    %v1018 = vlaneseq
    %v1019 = vshrl.u32 %v1018, 7
    %v1020 = vsub.s32 3, %v1019
    %v1021 = vrot.slane %v963, %v1020
    %v1022 = vlaneseq
    %v1023 = vshrl.u32 %v1022, 7
    %v1024 = vsub.s32 4, %v1023
    %v1025 = vrot.slane %v963, %v1024
    %v1026 = vlaneseq
    %v1027 = vshrl.u32 %v1026, 7
    %v1028 = vsub.s32 5, %v1027
    %v1029 = vrot.slane %v963, %v1028
    %v1030 = vlaneseq
    %v1031 = vshrl.u32 %v1030, 7
    %v1032 = vsub.s32 6, %v1031
    %v1033 = vrot.slane %v963, %v1032
    %v1034 = vlaneseq
    %v1035 = vshrl.u32 %v1034, 7
    %v1036 = vsub.s32 7, %v1035
    %v1037 = vrot.slane %v963, %v1036
    %v1038 = vlaneseq
    %v1039 = vshrl.u32 %v1038, 7
    %v1040 = vsub.s32 0, %v1039
    %v1041 = vrot.slane %v967, %v1040
    %v1042 = vlaneseq
    %v1043 = vshrl.u32 %v1042, 7
    %v1044 = vsub.s32 1, %v1043
    %v1045 = vrot.slane %v967, %v1044
    %v1046 = vlaneseq
    %v1047 = vshrl.u32 %v1046, 7
    %v1048 = vsub.s32 2, %v1047
    %v1049 = vrot.slane %v967, %v1048
    %v1050 = vlaneseq
    %v1051 = vshrl.u32 %v1050, 7
    %v1052 = vsub.s32 3, %v1051
    %v1053 = vrot.slane %v967, %v1052
    %v1054 = vlaneseq
    %v1055 = vshrl.u32 %v1054, 7
    %v1056 = vsub.s32 4, %v1055
    %v1057 = vrot.slane %v967, %v1056
    %v1058 = vlaneseq
    %v1059 = vshrl.u32 %v1058, 7
    %v1060 = vsub.s32 5, %v1059
    %v1061 = vrot.slane %v967, %v1060
    %v1062 = vlaneseq
    %v1063 = vshrl.u32 %v1062, 7
    %v1064 = vsub.s32 6, %v1063
    %v1065 = vrot.slane %v967, %v1064
    %v1066 = vlaneseq
    %v1067 = vshrl.u32 %v1066, 7
    %v1068 = vsub.s32 7, %v1067
    %v1069 = vrot.slane %v967, %v1068
    %v1070 = vlaneseq
    %v1071 = vshrl.u32 %v1070, 7
    %v1072 = vsub.s32 0, %v1071
    %v1073 = vrot.slane %v969, %v1072
    %v1074 = vlaneseq
    %v1075 = vshrl.u32 %v1074, 7
    %v1076 = vsub.s32 1, %v1075
    %v1077 = vrot.slane %v969, %v1076
    %v1104 = vmul.f32 %v930, %v977
    %v1105 = vmul.f32 %v955, %v981
    %v1106 = vmul.f32 %v954, %v985
    %v1107 = vmul.f32 %v953, %v989
    %v1108 = vmul.f32 %v952, %v993
    %v1109 = vmul.f32 %v951, %v997
    %v1110 = vmul.f32 %v950, %v1001
    %v1111 = vmul.f32 %v949, %v1005
    %v1112 = vmul.f32 %v948, %v1009
    %v1113 = vmul.f32 %v947, %v1013
    %v1114 = vmul.f32 %v946, %v1017
    %v1115 = vmul.f32 %v945, %v1021
    %v1116 = vmul.f32 %v944, %v1025
    %v1117 = vmul.f32 %v943, %v1029
    %v1118 = vmul.f32 %v942, %v1033
    %v1119 = vmul.f32 %v941, %v1037
    %v1120 = vmul.f32 %v940, %v1041
    %v1121 = vmul.f32 %v939, %v1045
    %v1122 = vmul.f32 %v938, %v1049
    %v1123 = vmul.f32 %v937, %v1053
    %v1124 = vmul.f32 %v936, %v1057
    %v1125 = vmul.f32 %v935, %v1061
    %v1126 = vmul.f32 %v934, %v1065
    %v1127 = vmul.f32 %v933, %v1069
    %v1128 = vmul.f32 %v932, %v1073
    %v1129 = vmul.f32 %v931, %v1077
    %v1156 = vcombine.low %v1104, %v1105
    %v1157 = vcombine.low %v1106, %v1107
    %v1158 = vcombine.low %v1108, %v1109
    %v1159 = vcombine.low %v1110, %v1111
    %v1161 = vunpack.c.l.s4 1966171168
    %v1162 = vunpack.c.0.s8 %v1161
    %v1163 = vlaneseq
    %v1164 = vshrl.u32 %v1163, 7
    %v1165 = vsub.s32 %v1162, %v1164
    %v1166 = vrot.slane %v1156, %v1165
    %v1168 = vunpack.c.l.s4 1966171168
    %v1169 = vunpack.c.0.s8 %v1168
    %v1170 = vlaneseq
    %v1171 = vshrl.u32 %v1170, 7
    %v1172 = vsub.s32 %v1169, %v1171
    %v1173 = vrot.slane %v1157, %v1172
    %v1175 = vunpack.c.l.s4 1966171168
    %v1176 = vunpack.c.0.s8 %v1175
    %v1177 = vlaneseq
    %v1178 = vshrl.u32 %v1177, 7
    %v1179 = vsub.s32 %v1176, %v1178
    %v1180 = vrot.slane %v1158, %v1179
    %v1182 = vunpack.c.l.s4 1966171168
    %v1183 = vunpack.c.0.s8 %v1182
    %v1184 = vlaneseq
    %v1185 = vshrl.u32 %v1184, 7
    %v1186 = vsub.s32 %v1183, %v1185
    %v1187 = vrot.slane %v1159, %v1186
    %v1188 = vcombine.low %v1166, %v1173
    %v1189 = vcombine.low %v1180, %v1187
    %v1191 = vunpack.c.l.s4 1966171168
    %v1192 = vunpack.c.0.s8 %v1191
    %v1193 = vlaneseq
    %v1194 = vshrl.u32 %v1193, 7
    %v1195 = vsub.s32 %v1192, %v1194
    %v1196 = vrot.slane %v1188, %v1195
    %v1198 = vunpack.c.l.s4 1966171168
    %v1199 = vunpack.c.0.s8 %v1198
    %v1200 = vlaneseq
    %v1201 = vshrl.u32 %v1200, 7
    %v1202 = vsub.s32 %v1199, %v1201
    %v1203 = vrot.slane %v1189, %v1202
    %v1204 = vcombine.low %v1196, %v1203
    %v1205 = vcombine.low %v1112, %v1113
    %v1206 = vcombine.low %v1114, %v1115
    %v1207 = vcombine.low %v1116, %v1117
    %v1208 = vcombine.low %v1118, %v1119
    %v1210 = vunpack.c.l.s4 1966171168
    %v1211 = vunpack.c.0.s8 %v1210
    %v1212 = vlaneseq
    %v1213 = vshrl.u32 %v1212, 7
    %v1214 = vsub.s32 %v1211, %v1213
    %v1215 = vrot.slane %v1205, %v1214
    %v1217 = vunpack.c.l.s4 1966171168
    %v1218 = vunpack.c.0.s8 %v1217
    %v1219 = vlaneseq
    %v1220 = vshrl.u32 %v1219, 7
    %v1221 = vsub.s32 %v1218, %v1220
    %v1222 = vrot.slane %v1206, %v1221
    %v1224 = vunpack.c.l.s4 1966171168
    %v1225 = vunpack.c.0.s8 %v1224
    %v1226 = vlaneseq
    %v1227 = vshrl.u32 %v1226, 7
    %v1228 = vsub.s32 %v1225, %v1227
    %v1229 = vrot.slane %v1207, %v1228
    %v1231 = vunpack.c.l.s4 1966171168
    %v1232 = vunpack.c.0.s8 %v1231
    %v1233 = vlaneseq
    %v1234 = vshrl.u32 %v1233, 7
    %v1235 = vsub.s32 %v1232, %v1234
    %v1236 = vrot.slane %v1208, %v1235
    %v1237 = vcombine.low %v1215, %v1222
    %v1238 = vcombine.low %v1229, %v1236
    %v1240 = vunpack.c.l.s4 1966171168
    %v1241 = vunpack.c.0.s8 %v1240
    %v1242 = vlaneseq
    %v1243 = vshrl.u32 %v1242, 7
    %v1244 = vsub.s32 %v1241, %v1243
    %v1245 = vrot.slane %v1237, %v1244
    %v1247 = vunpack.c.l.s4 1966171168
    %v1248 = vunpack.c.0.s8 %v1247
    %v1249 = vlaneseq
    %v1250 = vshrl.u32 %v1249, 7
    %v1251 = vsub.s32 %v1248, %v1250
    %v1252 = vrot.slane %v1238, %v1251
    %v1253 = vcombine.low %v1245, %v1252
    %v1254 = vcombine.low %v1120, %v1121
    %v1255 = vcombine.low %v1122, %v1123
    %v1256 = vcombine.low %v1124, %v1125
    %v1257 = vcombine.low %v1126, %v1127
    %v1259 = vunpack.c.l.s4 1966171168
    %v1260 = vunpack.c.0.s8 %v1259
    %v1261 = vlaneseq
    %v1262 = vshrl.u32 %v1261, 7
    %v1263 = vsub.s32 %v1260, %v1262
    %v1264 = vrot.slane %v1254, %v1263
    %v1266 = vunpack.c.l.s4 1966171168
    %v1267 = vunpack.c.0.s8 %v1266
    %v1268 = vlaneseq
    %v1269 = vshrl.u32 %v1268, 7
    %v1270 = vsub.s32 %v1267, %v1269
    %v1271 = vrot.slane %v1255, %v1270
    %v1273 = vunpack.c.l.s4 1966171168
    %v1274 = vunpack.c.0.s8 %v1273
    %v1275 = vlaneseq
    %v1276 = vshrl.u32 %v1275, 7
    %v1277 = vsub.s32 %v1274, %v1276
    %v1278 = vrot.slane %v1256, %v1277
    %v1280 = vunpack.c.l.s4 1966171168
    %v1281 = vunpack.c.0.s8 %v1280
    %v1282 = vlaneseq
    %v1283 = vshrl.u32 %v1282, 7
    %v1284 = vsub.s32 %v1281, %v1283
    %v1285 = vrot.slane %v1257, %v1284
    %v1286 = vcombine.low %v1264, %v1271
    %v1287 = vcombine.low %v1278, %v1285
    %v1289 = vunpack.c.l.s4 1966171168
    %v1290 = vunpack.c.0.s8 %v1289
    %v1291 = vlaneseq
    %v1292 = vshrl.u32 %v1291, 7
    %v1293 = vsub.s32 %v1290, %v1292
    %v1294 = vrot.slane %v1286, %v1293
    %v1296 = vunpack.c.l.s4 1966171168
    %v1297 = vunpack.c.0.s8 %v1296
    %v1298 = vlaneseq
    %v1299 = vshrl.u32 %v1298, 7
    %v1300 = vsub.s32 %v1297, %v1299
    %v1301 = vrot.slane %v1287, %v1300
    %v1302 = vcombine.low %v1294, %v1301
    %v1303 = vcombine.low %v1128, %v1129
    %v1305 = vunpack.c.l.s4 1966171168
    %v1306 = vunpack.c.0.s8 %v1305
    %v1307 = vlaneseq
    %v1308 = vshrl.u32 %v1307, 7
    %v1309 = vsub.s32 %v1306, %v1308
    %v1310 = vrot.slane %v1303, %v1309
    %v1312 = vunpack.c.l.s4 1966171168
    %v1313 = vunpack.c.0.s8 %v1312
    %v1314 = vlaneseq
    %v1315 = vshrl.u32 %v1314, 7
    %v1316 = vsub.s32 %v1313, %v1315
    %v1317 = vrot.slane %v1310, %v1316
    %s1322 = scalar_lea.vmem [#allocation2], 1
    %1323 = vst [vmem:[%s1322] ss:$8 sm:$0xf] %v1204
    %1324 = vst [vmem:[%s1322] ss:$8 sm:$0xf0] %v1204
    %s1325 = scalar_lea.vmem [#allocation2], 65
    %1326 = vst [vmem:[%s1325] ss:$8 sm:$0xf] %v1253
    %1327 = vst [vmem:[%s1325] ss:$8 sm:$0xf0] %v1253
    %s1328 = scalar_lea.vmem [#allocation2], 129
    %1329 = vst [vmem:[%s1328] ss:$8 sm:$0xf] %v1302
    %1330 = vst [vmem:[%s1328] ss:$8 sm:$0xf0] %v1302
    %s1331 = scalar_lea.vmem [#allocation2], 193
    %1332 = vst.msk [vmem:[%s1331] ss:$8 sm:$0x3] %vm873, %v1317
    %1333 = vst.msk [vmem:[%s1331] ss:$8 sm:$0x0] %vm873, %v1317
    %1334 = vrot.lane.b32.xlu0 %v289, 79
    %v1335 = vpop.permute.xlu0 %1334
    %1336 = vrot.lane.b32.xlu0 %v293, 79
    %v1337 = vpop.permute.xlu0 %1336
    %1338 = vrot.lane.b32.xlu0 %v297, 79
    %v1339 = vpop.permute.xlu0 %1338
    %1340 = vrot.lane.b32.xlu0 %v301, 79
    %v1341 = vpop.permute.xlu0 %1340
    %1342 = vrot.lane.b32.xlu0 %v305, 79
    %v1343 = vpop.permute.xlu0 %1342
    %1344 = vrot.lane.b32.xlu0 %v309, 79
    %v1345 = vpop.permute.xlu0 %1344
    %1346 = vrot.lane.b32.xlu0 %v313, 79
    %v1347 = vpop.permute.xlu0 %1346
    %1348 = vrot.lane.b32.xlu0 %v317, 79
    %v1349 = vpop.permute.xlu0 %1348
    %1350 = vrot.lane.b32.xlu0 %v321, 79
    %v1351 = vpop.permute.xlu0 %1350
    %1352 = vrot.lane.b32.xlu0 %v325, 79
    %v1353 = vpop.permute.xlu0 %1352
    %1354 = vrot.lane.b32.xlu0 %v329, 79
    %v1355 = vpop.permute.xlu0 %1354
    %1356 = vrot.lane.b32.xlu0 %v333, 79
    %v1357 = vpop.permute.xlu0 %1356
    %1358 = vrot.lane.b32.xlu0 %v337, 79
    %v1359 = vpop.permute.xlu0 %1358
    %1360 = vrot.lane.b32.xlu0 %v341, 79
    %v1361 = vpop.permute.xlu0 %1360
    %1362 = vrot.lane.b32.xlu0 %v345, 79
    %v1363 = vpop.permute.xlu0 %1362
    %1364 = vrot.lane.b32.xlu0 %v349, 79
    %v1365 = vpop.permute.xlu0 %1364
    %1366 = vrot.lane.b32.xlu0 %v353, 79
    %v1367 = vpop.permute.xlu0 %1366
    %1368 = vrot.lane.b32.xlu0 %v357, 79
    %v1369 = vpop.permute.xlu0 %1368
    %1370 = vrot.lane.b32.xlu0 %v361, 79
    %v1371 = vpop.permute.xlu0 %1370
    %1372 = vrot.lane.b32.xlu0 %v365, 79
    %v1373 = vpop.permute.xlu0 %1372
    %1374 = vrot.lane.b32.xlu0 %v369, 79
    %v1375 = vpop.permute.xlu0 %1374
    %1376 = vrot.lane.b32.xlu0 %v373, 79
    %v1377 = vpop.permute.xlu0 %1376
    %1378 = vrot.lane.b32.xlu0 %v377, 79
    %v1379 = vpop.permute.xlu0 %1378
    %1380 = vrot.lane.b32.xlu0 %v381, 79
    %v1381 = vpop.permute.xlu0 %1380
    %1382 = vrot.lane.b32.xlu0 %v385, 79
    %v1383 = vpop.permute.xlu0 %1382
    %1384 = vrot.lane.b32.xlu0 %v389, 79
    %v1385 = vpop.permute.xlu0 %1384
    %vm1386 = vcmp.lt.s32.totalorder %v469, 79
    %v1387 = vsel %vm1386, %v1383, %v1385
    %v1388 = vsel %vm1386, %v1381, %v1383
    %v1389 = vsel %vm1386, %v1379, %v1381
    %v1390 = vsel %vm1386, %v1377, %v1379
    %v1391 = vsel %vm1386, %v1375, %v1377
    %v1392 = vsel %vm1386, %v1373, %v1375
    %v1393 = vsel %vm1386, %v1371, %v1373
    %v1394 = vsel %vm1386, %v1369, %v1371
    %v1395 = vsel %vm1386, %v1367, %v1369
    %v1396 = vsel %vm1386, %v1365, %v1367
    %v1397 = vsel %vm1386, %v1363, %v1365
    %v1398 = vsel %vm1386, %v1361, %v1363
    %v1399 = vsel %vm1386, %v1359, %v1361
    %v1400 = vsel %vm1386, %v1357, %v1359
    %v1401 = vsel %vm1386, %v1355, %v1357
    %v1402 = vsel %vm1386, %v1353, %v1355
    %v1403 = vsel %vm1386, %v1351, %v1353
    %v1404 = vsel %vm1386, %v1349, %v1351
    %v1405 = vsel %vm1386, %v1347, %v1349
    %v1406 = vsel %vm1386, %v1345, %v1347
    %v1407 = vsel %vm1386, %v1343, %v1345
    %v1408 = vsel %vm1386, %v1341, %v1343
    %v1409 = vsel %vm1386, %v1339, %v1341
    %v1410 = vsel %vm1386, %v1337, %v1339
    %v1411 = vsel %vm1386, %v1335, %v1337
    %v1412 = vsel %vm1386, %v1385, %v1335
    %s1413 = scalar_lea.vmem %s1, 2
    %v1414 = vld [vmem:[%s1413] ss:$8 sm:$0xf]
    %v1415 = vld [vmem:[%s1413] ss:$8 sm:$0xf0]
    %v1416 = vor.u32 %v1414, %v1415
    %s1417 = scalar_lea.vmem %s1, 66
    %v1418 = vld [vmem:[%s1417] ss:$8 sm:$0xf]
    %v1419 = vld [vmem:[%s1417] ss:$8 sm:$0xf0]
    %v1420 = vor.u32 %v1418, %v1419
    %s1421 = scalar_lea.vmem %s1, 130
    %v1422 = vld [vmem:[%s1421] ss:$8 sm:$0xf]
    %v1423 = vld [vmem:[%s1421] ss:$8 sm:$0xf0]
    %v1424 = vor.u32 %v1422, %v1423
    %s1425 = scalar_lea.vmem %s1, 194
    %v1426 = vld [vmem:[%s1425] ss:$8 sm:$0x3]
    %v1431 = vlaneseq
    %v1432 = vshrl.u32 %v1431, 7
    %v1433 = vsub.s32 0, %v1432
    %v1434 = vrot.slane %v1416, %v1433
    %v1435 = vlaneseq
    %v1436 = vshrl.u32 %v1435, 7
    %v1437 = vsub.s32 1, %v1436
    %v1438 = vrot.slane %v1416, %v1437
    %v1439 = vlaneseq
    %v1440 = vshrl.u32 %v1439, 7
    %v1441 = vsub.s32 2, %v1440
    %v1442 = vrot.slane %v1416, %v1441
    %v1443 = vlaneseq
    %v1444 = vshrl.u32 %v1443, 7
    %v1445 = vsub.s32 3, %v1444
    %v1446 = vrot.slane %v1416, %v1445
    %v1447 = vlaneseq
    %v1448 = vshrl.u32 %v1447, 7
    %v1449 = vsub.s32 4, %v1448
    %v1450 = vrot.slane %v1416, %v1449
    %v1451 = vlaneseq
    %v1452 = vshrl.u32 %v1451, 7
    %v1453 = vsub.s32 5, %v1452
    %v1454 = vrot.slane %v1416, %v1453
    %v1455 = vlaneseq
    %v1456 = vshrl.u32 %v1455, 7
    %v1457 = vsub.s32 6, %v1456
    %v1458 = vrot.slane %v1416, %v1457
    %v1459 = vlaneseq
    %v1460 = vshrl.u32 %v1459, 7
    %v1461 = vsub.s32 7, %v1460
    %v1462 = vrot.slane %v1416, %v1461
    %v1463 = vlaneseq
    %v1464 = vshrl.u32 %v1463, 7
    %v1465 = vsub.s32 0, %v1464
    %v1466 = vrot.slane %v1420, %v1465
    %v1467 = vlaneseq
    %v1468 = vshrl.u32 %v1467, 7
    %v1469 = vsub.s32 1, %v1468
    %v1470 = vrot.slane %v1420, %v1469
    %v1471 = vlaneseq
    %v1472 = vshrl.u32 %v1471, 7
    %v1473 = vsub.s32 2, %v1472
    %v1474 = vrot.slane %v1420, %v1473
    %v1475 = vlaneseq
    %v1476 = vshrl.u32 %v1475, 7
    %v1477 = vsub.s32 3, %v1476
    %v1478 = vrot.slane %v1420, %v1477
    %v1479 = vlaneseq
    %v1480 = vshrl.u32 %v1479, 7
    %v1481 = vsub.s32 4, %v1480
    %v1482 = vrot.slane %v1420, %v1481
    %v1483 = vlaneseq
    %v1484 = vshrl.u32 %v1483, 7
    %v1485 = vsub.s32 5, %v1484
    %v1486 = vrot.slane %v1420, %v1485
    %v1487 = vlaneseq
    %v1488 = vshrl.u32 %v1487, 7
    %v1489 = vsub.s32 6, %v1488
    %v1490 = vrot.slane %v1420, %v1489
    %v1491 = vlaneseq
    %v1492 = vshrl.u32 %v1491, 7
    %v1493 = vsub.s32 7, %v1492
    %v1494 = vrot.slane %v1420, %v1493
    %v1495 = vlaneseq
    %v1496 = vshrl.u32 %v1495, 7
    %v1497 = vsub.s32 0, %v1496
    %v1498 = vrot.slane %v1424, %v1497
    %v1499 = vlaneseq
    %v1500 = vshrl.u32 %v1499, 7
    %v1501 = vsub.s32 1, %v1500
    %v1502 = vrot.slane %v1424, %v1501
    %v1503 = vlaneseq
    %v1504 = vshrl.u32 %v1503, 7
    %v1505 = vsub.s32 2, %v1504
    %v1506 = vrot.slane %v1424, %v1505
    %v1507 = vlaneseq
    %v1508 = vshrl.u32 %v1507, 7
    %v1509 = vsub.s32 3, %v1508
    %v1510 = vrot.slane %v1424, %v1509
    %v1511 = vlaneseq
    %v1512 = vshrl.u32 %v1511, 7
    %v1513 = vsub.s32 4, %v1512
    %v1514 = vrot.slane %v1424, %v1513
    %v1515 = vlaneseq
    %v1516 = vshrl.u32 %v1515, 7
    %v1517 = vsub.s32 5, %v1516
    %v1518 = vrot.slane %v1424, %v1517
    %v1519 = vlaneseq
    %v1520 = vshrl.u32 %v1519, 7
    %v1521 = vsub.s32 6, %v1520
    %v1522 = vrot.slane %v1424, %v1521
    %v1523 = vlaneseq
    %v1524 = vshrl.u32 %v1523, 7
    %v1525 = vsub.s32 7, %v1524
    %v1526 = vrot.slane %v1424, %v1525
    %v1527 = vlaneseq
    %v1528 = vshrl.u32 %v1527, 7
    %v1529 = vsub.s32 0, %v1528
    %v1530 = vrot.slane %v1426, %v1529
    %v1531 = vlaneseq
    %v1532 = vshrl.u32 %v1531, 7
    %v1533 = vsub.s32 1, %v1532
    %v1534 = vrot.slane %v1426, %v1533
    %v1561 = vmul.f32 %v1387, %v1434
    %v1562 = vmul.f32 %v1412, %v1438
    %v1563 = vmul.f32 %v1411, %v1442
    %v1564 = vmul.f32 %v1410, %v1446
    %v1565 = vmul.f32 %v1409, %v1450
    %v1566 = vmul.f32 %v1408, %v1454
    %v1567 = vmul.f32 %v1407, %v1458
    %v1568 = vmul.f32 %v1406, %v1462
    %v1569 = vmul.f32 %v1405, %v1466
    %v1570 = vmul.f32 %v1404, %v1470
    %v1571 = vmul.f32 %v1403, %v1474
    %v1572 = vmul.f32 %v1402, %v1478
    %v1573 = vmul.f32 %v1401, %v1482
    %v1574 = vmul.f32 %v1400, %v1486
    %v1575 = vmul.f32 %v1399, %v1490
    %v1576 = vmul.f32 %v1398, %v1494
    %v1577 = vmul.f32 %v1397, %v1498
    %v1578 = vmul.f32 %v1396, %v1502
    %v1579 = vmul.f32 %v1395, %v1506
    %v1580 = vmul.f32 %v1394, %v1510
    %v1581 = vmul.f32 %v1393, %v1514
    %v1582 = vmul.f32 %v1392, %v1518
    %v1583 = vmul.f32 %v1391, %v1522
    %v1584 = vmul.f32 %v1390, %v1526
    %v1585 = vmul.f32 %v1389, %v1530
    %v1586 = vmul.f32 %v1388, %v1534
    %v1613 = vcombine.low %v1561, %v1562
    %v1614 = vcombine.low %v1563, %v1564
    %v1615 = vcombine.low %v1565, %v1566
    %v1616 = vcombine.low %v1567, %v1568
    %v1618 = vunpack.c.l.s4 1966171168
    %v1619 = vunpack.c.0.s8 %v1618
    %v1620 = vlaneseq
    %v1621 = vshrl.u32 %v1620, 7
    %v1622 = vsub.s32 %v1619, %v1621
    %v1623 = vrot.slane %v1613, %v1622
    %v1625 = vunpack.c.l.s4 1966171168
    %v1626 = vunpack.c.0.s8 %v1625
    %v1627 = vlaneseq
    %v1628 = vshrl.u32 %v1627, 7
    %v1629 = vsub.s32 %v1626, %v1628
    %v1630 = vrot.slane %v1614, %v1629
    %v1632 = vunpack.c.l.s4 1966171168
    %v1633 = vunpack.c.0.s8 %v1632
    %v1634 = vlaneseq
    %v1635 = vshrl.u32 %v1634, 7
    %v1636 = vsub.s32 %v1633, %v1635
    %v1637 = vrot.slane %v1615, %v1636
    %v1639 = vunpack.c.l.s4 1966171168
    %v1640 = vunpack.c.0.s8 %v1639
    %v1641 = vlaneseq
    %v1642 = vshrl.u32 %v1641, 7
    %v1643 = vsub.s32 %v1640, %v1642
    %v1644 = vrot.slane %v1616, %v1643
    %v1645 = vcombine.low %v1623, %v1630
    %v1646 = vcombine.low %v1637, %v1644
    %v1648 = vunpack.c.l.s4 1966171168
    %v1649 = vunpack.c.0.s8 %v1648
    %v1650 = vlaneseq
    %v1651 = vshrl.u32 %v1650, 7
    %v1652 = vsub.s32 %v1649, %v1651
    %v1653 = vrot.slane %v1645, %v1652
    %v1655 = vunpack.c.l.s4 1966171168
    %v1656 = vunpack.c.0.s8 %v1655
    %v1657 = vlaneseq
    %v1658 = vshrl.u32 %v1657, 7
    %v1659 = vsub.s32 %v1656, %v1658
    %v1660 = vrot.slane %v1646, %v1659
    %v1661 = vcombine.low %v1653, %v1660
    %v1662 = vcombine.low %v1569, %v1570
    %v1663 = vcombine.low %v1571, %v1572
    %v1664 = vcombine.low %v1573, %v1574
    %v1665 = vcombine.low %v1575, %v1576
    %v1667 = vunpack.c.l.s4 1966171168
    %v1668 = vunpack.c.0.s8 %v1667
    %v1669 = vlaneseq
    %v1670 = vshrl.u32 %v1669, 7
    %v1671 = vsub.s32 %v1668, %v1670
    %v1672 = vrot.slane %v1662, %v1671
    %v1674 = vunpack.c.l.s4 1966171168
    %v1675 = vunpack.c.0.s8 %v1674
    %v1676 = vlaneseq
    %v1677 = vshrl.u32 %v1676, 7
    %v1678 = vsub.s32 %v1675, %v1677
    %v1679 = vrot.slane %v1663, %v1678
    %v1681 = vunpack.c.l.s4 1966171168
    %v1682 = vunpack.c.0.s8 %v1681
    %v1683 = vlaneseq
    %v1684 = vshrl.u32 %v1683, 7
    %v1685 = vsub.s32 %v1682, %v1684
    %v1686 = vrot.slane %v1664, %v1685
    %v1688 = vunpack.c.l.s4 1966171168
    %v1689 = vunpack.c.0.s8 %v1688
    %v1690 = vlaneseq
    %v1691 = vshrl.u32 %v1690, 7
    %v1692 = vsub.s32 %v1689, %v1691
    %v1693 = vrot.slane %v1665, %v1692
    %v1694 = vcombine.low %v1672, %v1679
    %v1695 = vcombine.low %v1686, %v1693
    %v1697 = vunpack.c.l.s4 1966171168
    %v1698 = vunpack.c.0.s8 %v1697
    %v1699 = vlaneseq
    %v1700 = vshrl.u32 %v1699, 7
    %v1701 = vsub.s32 %v1698, %v1700
    %v1702 = vrot.slane %v1694, %v1701
    %v1704 = vunpack.c.l.s4 1966171168
    %v1705 = vunpack.c.0.s8 %v1704
    %v1706 = vlaneseq
    %v1707 = vshrl.u32 %v1706, 7
    %v1708 = vsub.s32 %v1705, %v1707
    %v1709 = vrot.slane %v1695, %v1708
    %v1710 = vcombine.low %v1702, %v1709
    %v1711 = vcombine.low %v1577, %v1578
    %v1712 = vcombine.low %v1579, %v1580
    %v1713 = vcombine.low %v1581, %v1582
    %v1714 = vcombine.low %v1583, %v1584
    %v1716 = vunpack.c.l.s4 1966171168
    %v1717 = vunpack.c.0.s8 %v1716
    %v1718 = vlaneseq
    %v1719 = vshrl.u32 %v1718, 7
    %v1720 = vsub.s32 %v1717, %v1719
    %v1721 = vrot.slane %v1711, %v1720
    %v1723 = vunpack.c.l.s4 1966171168
    %v1724 = vunpack.c.0.s8 %v1723
    %v1725 = vlaneseq
    %v1726 = vshrl.u32 %v1725, 7
    %v1727 = vsub.s32 %v1724, %v1726
    %v1728 = vrot.slane %v1712, %v1727
    %v1730 = vunpack.c.l.s4 1966171168
    %v1731 = vunpack.c.0.s8 %v1730
    %v1732 = vlaneseq
    %v1733 = vshrl.u32 %v1732, 7
    %v1734 = vsub.s32 %v1731, %v1733
    %v1735 = vrot.slane %v1713, %v1734
    %v1737 = vunpack.c.l.s4 1966171168
    %v1738 = vunpack.c.0.s8 %v1737
    %v1739 = vlaneseq
    %v1740 = vshrl.u32 %v1739, 7
    %v1741 = vsub.s32 %v1738, %v1740
    %v1742 = vrot.slane %v1714, %v1741
    %v1743 = vcombine.low %v1721, %v1728
    %v1744 = vcombine.low %v1735, %v1742
    %v1746 = vunpack.c.l.s4 1966171168
    %v1747 = vunpack.c.0.s8 %v1746
    %v1748 = vlaneseq
    %v1749 = vshrl.u32 %v1748, 7
    %v1750 = vsub.s32 %v1747, %v1749
    %v1751 = vrot.slane %v1743, %v1750
    %v1753 = vunpack.c.l.s4 1966171168
    %v1754 = vunpack.c.0.s8 %v1753
    %v1755 = vlaneseq
    %v1756 = vshrl.u32 %v1755, 7
    %v1757 = vsub.s32 %v1754, %v1756
    %v1758 = vrot.slane %v1744, %v1757
    %v1759 = vcombine.low %v1751, %v1758
    %v1760 = vcombine.low %v1585, %v1586
    %v1762 = vunpack.c.l.s4 1966171168
    %v1763 = vunpack.c.0.s8 %v1762
    %v1764 = vlaneseq
    %v1765 = vshrl.u32 %v1764, 7
    %v1766 = vsub.s32 %v1763, %v1765
    %v1767 = vrot.slane %v1760, %v1766
    %v1769 = vunpack.c.l.s4 1966171168
    %v1770 = vunpack.c.0.s8 %v1769
    %v1771 = vlaneseq
    %v1772 = vshrl.u32 %v1771, 7
    %v1773 = vsub.s32 %v1770, %v1772
    %v1774 = vrot.slane %v1767, %v1773
    %s1779 = scalar_lea.vmem [#allocation2], 2
    %1780 = vst [vmem:[%s1779] ss:$8 sm:$0xf] %v1661
    %1781 = vst [vmem:[%s1779] ss:$8 sm:$0xf0] %v1661
    %s1782 = scalar_lea.vmem [#allocation2], 66
    %1783 = vst [vmem:[%s1782] ss:$8 sm:$0xf] %v1710
    %1784 = vst [vmem:[%s1782] ss:$8 sm:$0xf0] %v1710
    %s1785 = scalar_lea.vmem [#allocation2], 130
    %1786 = vst [vmem:[%s1785] ss:$8 sm:$0xf] %v1759
    %1787 = vst [vmem:[%s1785] ss:$8 sm:$0xf0] %v1759
    %s1788 = scalar_lea.vmem [#allocation2], 194
    %1789 = vst.msk [vmem:[%s1788] ss:$8 sm:$0x3] %vm873, %v1774
    %1790 = vst.msk [vmem:[%s1788] ss:$8 sm:$0x0] %vm873, %v1774
    %1791 = vrot.lane.b32.xlu0 %v289, 1
    %v1792 = vpop.permute.xlu0 %1791
    %1793 = vrot.lane.b32.xlu0 %v293, 1
    %v1794 = vpop.permute.xlu0 %1793
    %1795 = vrot.lane.b32.xlu0 %v297, 1
    %v1796 = vpop.permute.xlu0 %1795
    %1797 = vrot.lane.b32.xlu0 %v301, 1
    %v1798 = vpop.permute.xlu0 %1797
    %1799 = vrot.lane.b32.xlu0 %v305, 1
    %v1800 = vpop.permute.xlu0 %1799
    %1801 = vrot.lane.b32.xlu0 %v309, 1
    %v1802 = vpop.permute.xlu0 %1801
    %1803 = vrot.lane.b32.xlu0 %v313, 1
    %v1804 = vpop.permute.xlu0 %1803
    %1805 = vrot.lane.b32.xlu0 %v317, 1
    %v1806 = vpop.permute.xlu0 %1805
    %1807 = vrot.lane.b32.xlu0 %v321, 1
    %v1808 = vpop.permute.xlu0 %1807
    %1809 = vrot.lane.b32.xlu0 %v325, 1
    %v1810 = vpop.permute.xlu0 %1809
    %1811 = vrot.lane.b32.xlu0 %v329, 1
    %v1812 = vpop.permute.xlu0 %1811
    %1813 = vrot.lane.b32.xlu0 %v333, 1
    %v1814 = vpop.permute.xlu0 %1813
    %1815 = vrot.lane.b32.xlu0 %v337, 1
    %v1816 = vpop.permute.xlu0 %1815
    %1817 = vrot.lane.b32.xlu0 %v341, 1
    %v1818 = vpop.permute.xlu0 %1817
    %1819 = vrot.lane.b32.xlu0 %v345, 1
    %v1820 = vpop.permute.xlu0 %1819
    %1821 = vrot.lane.b32.xlu0 %v349, 1
    %v1822 = vpop.permute.xlu0 %1821
    %1823 = vrot.lane.b32.xlu0 %v353, 1
    %v1824 = vpop.permute.xlu0 %1823
    %1825 = vrot.lane.b32.xlu0 %v357, 1
    %v1826 = vpop.permute.xlu0 %1825
    %1827 = vrot.lane.b32.xlu0 %v361, 1
    %v1828 = vpop.permute.xlu0 %1827
    %1829 = vrot.lane.b32.xlu0 %v365, 1
    %v1830 = vpop.permute.xlu0 %1829
    %1831 = vrot.lane.b32.xlu0 %v369, 1
    %v1832 = vpop.permute.xlu0 %1831
    %1833 = vrot.lane.b32.xlu0 %v373, 1
    %v1834 = vpop.permute.xlu0 %1833
    %1835 = vrot.lane.b32.xlu0 %v377, 1
    %v1836 = vpop.permute.xlu0 %1835
    %1837 = vrot.lane.b32.xlu0 %v381, 1
    %v1838 = vpop.permute.xlu0 %1837
    %1839 = vrot.lane.b32.xlu0 %v385, 1
    %v1840 = vpop.permute.xlu0 %1839
    %1841 = vrot.lane.b32.xlu0 %v389, 1
    %v1842 = vpop.permute.xlu0 %1841
    %vm1843 = vcmp.lt.s32.totalorder %v469, 1
    %v1844 = vsel %vm1843, %v1840, %v1842
    %v1845 = vsel %vm1843, %v1838, %v1840
    %v1846 = vsel %vm1843, %v1836, %v1838
    %v1847 = vsel %vm1843, %v1834, %v1836
    %v1848 = vsel %vm1843, %v1832, %v1834
    %v1849 = vsel %vm1843, %v1830, %v1832
    %v1850 = vsel %vm1843, %v1828, %v1830
    %v1851 = vsel %vm1843, %v1826, %v1828
    %v1852 = vsel %vm1843, %v1824, %v1826
    %v1853 = vsel %vm1843, %v1822, %v1824
    %v1854 = vsel %vm1843, %v1820, %v1822
    %v1855 = vsel %vm1843, %v1818, %v1820
    %v1856 = vsel %vm1843, %v1816, %v1818
    %v1857 = vsel %vm1843, %v1814, %v1816
    %v1858 = vsel %vm1843, %v1812, %v1814
    %v1859 = vsel %vm1843, %v1810, %v1812
    %v1860 = vsel %vm1843, %v1808, %v1810
    %v1861 = vsel %vm1843, %v1806, %v1808
    %v1862 = vsel %vm1843, %v1804, %v1806
    %v1863 = vsel %vm1843, %v1802, %v1804
    %v1864 = vsel %vm1843, %v1800, %v1802
    %v1865 = vsel %vm1843, %v1798, %v1800
    %v1866 = vsel %vm1843, %v1796, %v1798
    %v1867 = vsel %vm1843, %v1794, %v1796
    %v1868 = vsel %vm1843, %v1792, %v1794
    %v1869 = vsel %vm1843, %v1842, %v1792
    %s1870 = scalar_lea.vmem %s1, 3
    %v1871 = vld [vmem:[%s1870] ss:$8 sm:$0xf]
    %v1872 = vld [vmem:[%s1870] ss:$8 sm:$0xf0]
    %v1873 = vor.u32 %v1871, %v1872
    %s1874 = scalar_lea.vmem %s1, 67
    %v1875 = vld [vmem:[%s1874] ss:$8 sm:$0xf]
    %v1876 = vld [vmem:[%s1874] ss:$8 sm:$0xf0]
    %v1877 = vor.u32 %v1875, %v1876
    %s1878 = scalar_lea.vmem %s1, 131
    %v1879 = vld [vmem:[%s1878] ss:$8 sm:$0xf]
    %v1880 = vld [vmem:[%s1878] ss:$8 sm:$0xf0]
    %v1881 = vor.u32 %v1879, %v1880
    %s1882 = scalar_lea.vmem %s1, 195
    %v1883 = vld [vmem:[%s1882] ss:$8 sm:$0x3]
    %v1888 = vlaneseq
    %v1889 = vshrl.u32 %v1888, 7
    %v1890 = vsub.s32 0, %v1889
    %v1891 = vrot.slane %v1873, %v1890
    %v1892 = vlaneseq
    %v1893 = vshrl.u32 %v1892, 7
    %v1894 = vsub.s32 1, %v1893
    %v1895 = vrot.slane %v1873, %v1894
    %v1896 = vlaneseq
    %v1897 = vshrl.u32 %v1896, 7
    %v1898 = vsub.s32 2, %v1897
    %v1899 = vrot.slane %v1873, %v1898
    %v1900 = vlaneseq
    %v1901 = vshrl.u32 %v1900, 7
    %v1902 = vsub.s32 3, %v1901
    %v1903 = vrot.slane %v1873, %v1902
    %v1904 = vlaneseq
    %v1905 = vshrl.u32 %v1904, 7
    %v1906 = vsub.s32 4, %v1905
    %v1907 = vrot.slane %v1873, %v1906
    %v1908 = vlaneseq
    %v1909 = vshrl.u32 %v1908, 7
    %v1910 = vsub.s32 5, %v1909
    %v1911 = vrot.slane %v1873, %v1910
    %v1912 = vlaneseq
    %v1913 = vshrl.u32 %v1912, 7
    %v1914 = vsub.s32 6, %v1913
    %v1915 = vrot.slane %v1873, %v1914
    %v1916 = vlaneseq
    %v1917 = vshrl.u32 %v1916, 7
    %v1918 = vsub.s32 7, %v1917
    %v1919 = vrot.slane %v1873, %v1918
    %v1920 = vlaneseq
    %v1921 = vshrl.u32 %v1920, 7
    %v1922 = vsub.s32 0, %v1921
    %v1923 = vrot.slane %v1877, %v1922
    %v1924 = vlaneseq
    %v1925 = vshrl.u32 %v1924, 7
    %v1926 = vsub.s32 1, %v1925
    %v1927 = vrot.slane %v1877, %v1926
    %v1928 = vlaneseq
    %v1929 = vshrl.u32 %v1928, 7
    %v1930 = vsub.s32 2, %v1929
    %v1931 = vrot.slane %v1877, %v1930
    %v1932 = vlaneseq
    %v1933 = vshrl.u32 %v1932, 7
    %v1934 = vsub.s32 3, %v1933
    %v1935 = vrot.slane %v1877, %v1934
    %v1936 = vlaneseq
    %v1937 = vshrl.u32 %v1936, 7
    %v1938 = vsub.s32 4, %v1937
    %v1939 = vrot.slane %v1877, %v1938
    %v1940 = vlaneseq
    %v1941 = vshrl.u32 %v1940, 7
    %v1942 = vsub.s32 5, %v1941
    %v1943 = vrot.slane %v1877, %v1942
    %v1944 = vlaneseq
    %v1945 = vshrl.u32 %v1944, 7
    %v1946 = vsub.s32 6, %v1945
    %v1947 = vrot.slane %v1877, %v1946
    %v1948 = vlaneseq
    %v1949 = vshrl.u32 %v1948, 7
    %v1950 = vsub.s32 7, %v1949
    %v1951 = vrot.slane %v1877, %v1950
    %v1952 = vlaneseq
    %v1953 = vshrl.u32 %v1952, 7
    %v1954 = vsub.s32 0, %v1953
    %v1955 = vrot.slane %v1881, %v1954
    %v1956 = vlaneseq
    %v1957 = vshrl.u32 %v1956, 7
    %v1958 = vsub.s32 1, %v1957
    %v1959 = vrot.slane %v1881, %v1958
    %v1960 = vlaneseq
    %v1961 = vshrl.u32 %v1960, 7
    %v1962 = vsub.s32 2, %v1961
    %v1963 = vrot.slane %v1881, %v1962
    %v1964 = vlaneseq
    %v1965 = vshrl.u32 %v1964, 7
    %v1966 = vsub.s32 3, %v1965
    %v1967 = vrot.slane %v1881, %v1966
    %v1968 = vlaneseq
    %v1969 = vshrl.u32 %v1968, 7
    %v1970 = vsub.s32 4, %v1969
    %v1971 = vrot.slane %v1881, %v1970
    %v1972 = vlaneseq
    %v1973 = vshrl.u32 %v1972, 7
    %v1974 = vsub.s32 5, %v1973
    %v1975 = vrot.slane %v1881, %v1974
    %v1976 = vlaneseq
    %v1977 = vshrl.u32 %v1976, 7
    %v1978 = vsub.s32 6, %v1977
    %v1979 = vrot.slane %v1881, %v1978
    %v1980 = vlaneseq
    %v1981 = vshrl.u32 %v1980, 7
    %v1982 = vsub.s32 7, %v1981
    %v1983 = vrot.slane %v1881, %v1982
    %v1984 = vlaneseq
    %v1985 = vshrl.u32 %v1984, 7
    %v1986 = vsub.s32 0, %v1985
    %v1987 = vrot.slane %v1883, %v1986
    %v1988 = vlaneseq
    %v1989 = vshrl.u32 %v1988, 7
    %v1990 = vsub.s32 1, %v1989
    %v1991 = vrot.slane %v1883, %v1990
    %v2018 = vmul.f32 %v1869, %v1891
    %v2019 = vmul.f32 %v1868, %v1895
    %v2020 = vmul.f32 %v1867, %v1899
    %v2021 = vmul.f32 %v1866, %v1903
    %v2022 = vmul.f32 %v1865, %v1907
    %v2023 = vmul.f32 %v1864, %v1911
    %v2024 = vmul.f32 %v1863, %v1915
    %v2025 = vmul.f32 %v1862, %v1919
    %v2026 = vmul.f32 %v1861, %v1923
    %v2027 = vmul.f32 %v1860, %v1927
    %v2028 = vmul.f32 %v1859, %v1931
    %v2029 = vmul.f32 %v1858, %v1935
    %v2030 = vmul.f32 %v1857, %v1939
    %v2031 = vmul.f32 %v1856, %v1943
    %v2032 = vmul.f32 %v1855, %v1947
    %v2033 = vmul.f32 %v1854, %v1951
    %v2034 = vmul.f32 %v1853, %v1955
    %v2035 = vmul.f32 %v1852, %v1959
    %v2036 = vmul.f32 %v1851, %v1963
    %v2037 = vmul.f32 %v1850, %v1967
    %v2038 = vmul.f32 %v1849, %v1971
    %v2039 = vmul.f32 %v1848, %v1975
    %v2040 = vmul.f32 %v1847, %v1979
    %v2041 = vmul.f32 %v1846, %v1983
    %v2042 = vmul.f32 %v1845, %v1987
    %v2043 = vmul.f32 %v1844, %v1991
    %v2070 = vcombine.low %v2018, %v2019
    %v2071 = vcombine.low %v2020, %v2021
    %v2072 = vcombine.low %v2022, %v2023
    %v2073 = vcombine.low %v2024, %v2025
    %v2075 = vunpack.c.l.s4 1966171168
    %v2076 = vunpack.c.0.s8 %v2075
    %v2077 = vlaneseq
    %v2078 = vshrl.u32 %v2077, 7
    %v2079 = vsub.s32 %v2076, %v2078
    %v2080 = vrot.slane %v2070, %v2079
    %v2082 = vunpack.c.l.s4 1966171168
    %v2083 = vunpack.c.0.s8 %v2082
    %v2084 = vlaneseq
    %v2085 = vshrl.u32 %v2084, 7
    %v2086 = vsub.s32 %v2083, %v2085
    %v2087 = vrot.slane %v2071, %v2086
    %v2089 = vunpack.c.l.s4 1966171168
    %v2090 = vunpack.c.0.s8 %v2089
    %v2091 = vlaneseq
    %v2092 = vshrl.u32 %v2091, 7
    %v2093 = vsub.s32 %v2090, %v2092
    %v2094 = vrot.slane %v2072, %v2093
    %v2096 = vunpack.c.l.s4 1966171168
    %v2097 = vunpack.c.0.s8 %v2096
    %v2098 = vlaneseq
    %v2099 = vshrl.u32 %v2098, 7
    %v2100 = vsub.s32 %v2097, %v2099
    %v2101 = vrot.slane %v2073, %v2100
    %v2102 = vcombine.low %v2080, %v2087
    %v2103 = vcombine.low %v2094, %v2101
    %v2105 = vunpack.c.l.s4 1966171168
    %v2106 = vunpack.c.0.s8 %v2105
    %v2107 = vlaneseq
    %v2108 = vshrl.u32 %v2107, 7
    %v2109 = vsub.s32 %v2106, %v2108
    %v2110 = vrot.slane %v2102, %v2109
    %v2112 = vunpack.c.l.s4 1966171168
    %v2113 = vunpack.c.0.s8 %v2112
    %v2114 = vlaneseq
    %v2115 = vshrl.u32 %v2114, 7
    %v2116 = vsub.s32 %v2113, %v2115
    %v2117 = vrot.slane %v2103, %v2116
    %v2118 = vcombine.low %v2110, %v2117
    %v2119 = vcombine.low %v2026, %v2027
    %v2120 = vcombine.low %v2028, %v2029
    %v2121 = vcombine.low %v2030, %v2031
    %v2122 = vcombine.low %v2032, %v2033
    %v2124 = vunpack.c.l.s4 1966171168
    %v2125 = vunpack.c.0.s8 %v2124
    %v2126 = vlaneseq
    %v2127 = vshrl.u32 %v2126, 7
    %v2128 = vsub.s32 %v2125, %v2127
    %v2129 = vrot.slane %v2119, %v2128
    %v2131 = vunpack.c.l.s4 1966171168
    %v2132 = vunpack.c.0.s8 %v2131
    %v2133 = vlaneseq
    %v2134 = vshrl.u32 %v2133, 7
    %v2135 = vsub.s32 %v2132, %v2134
    %v2136 = vrot.slane %v2120, %v2135
    %v2138 = vunpack.c.l.s4 1966171168
    %v2139 = vunpack.c.0.s8 %v2138
    %v2140 = vlaneseq
    %v2141 = vshrl.u32 %v2140, 7
    %v2142 = vsub.s32 %v2139, %v2141
    %v2143 = vrot.slane %v2121, %v2142
    %v2145 = vunpack.c.l.s4 1966171168
    %v2146 = vunpack.c.0.s8 %v2145
    %v2147 = vlaneseq
    %v2148 = vshrl.u32 %v2147, 7
    %v2149 = vsub.s32 %v2146, %v2148
    %v2150 = vrot.slane %v2122, %v2149
    %v2151 = vcombine.low %v2129, %v2136
    %v2152 = vcombine.low %v2143, %v2150
    %v2154 = vunpack.c.l.s4 1966171168
    %v2155 = vunpack.c.0.s8 %v2154
    %v2156 = vlaneseq
    %v2157 = vshrl.u32 %v2156, 7
    %v2158 = vsub.s32 %v2155, %v2157
    %v2159 = vrot.slane %v2151, %v2158
    %v2161 = vunpack.c.l.s4 1966171168
    %v2162 = vunpack.c.0.s8 %v2161
    %v2163 = vlaneseq
    %v2164 = vshrl.u32 %v2163, 7
    %v2165 = vsub.s32 %v2162, %v2164
    %v2166 = vrot.slane %v2152, %v2165
    %v2167 = vcombine.low %v2159, %v2166
    %v2168 = vcombine.low %v2034, %v2035
    %v2169 = vcombine.low %v2036, %v2037
    %v2170 = vcombine.low %v2038, %v2039
    %v2171 = vcombine.low %v2040, %v2041
    %v2173 = vunpack.c.l.s4 1966171168
    %v2174 = vunpack.c.0.s8 %v2173
    %v2175 = vlaneseq
    %v2176 = vshrl.u32 %v2175, 7
    %v2177 = vsub.s32 %v2174, %v2176
    %v2178 = vrot.slane %v2168, %v2177
    %v2180 = vunpack.c.l.s4 1966171168
    %v2181 = vunpack.c.0.s8 %v2180
    %v2182 = vlaneseq
    %v2183 = vshrl.u32 %v2182, 7
    %v2184 = vsub.s32 %v2181, %v2183
    %v2185 = vrot.slane %v2169, %v2184
    %v2187 = vunpack.c.l.s4 1966171168
    %v2188 = vunpack.c.0.s8 %v2187
    %v2189 = vlaneseq
    %v2190 = vshrl.u32 %v2189, 7
    %v2191 = vsub.s32 %v2188, %v2190
    %v2192 = vrot.slane %v2170, %v2191
    %v2194 = vunpack.c.l.s4 1966171168
    %v2195 = vunpack.c.0.s8 %v2194
    %v2196 = vlaneseq
    %v2197 = vshrl.u32 %v2196, 7
    %v2198 = vsub.s32 %v2195, %v2197
    %v2199 = vrot.slane %v2171, %v2198
    %v2200 = vcombine.low %v2178, %v2185
    %v2201 = vcombine.low %v2192, %v2199
    %v2203 = vunpack.c.l.s4 1966171168
    %v2204 = vunpack.c.0.s8 %v2203
    %v2205 = vlaneseq
    %v2206 = vshrl.u32 %v2205, 7
    %v2207 = vsub.s32 %v2204, %v2206
    %v2208 = vrot.slane %v2200, %v2207
    %v2210 = vunpack.c.l.s4 1966171168
    %v2211 = vunpack.c.0.s8 %v2210
    %v2212 = vlaneseq
    %v2213 = vshrl.u32 %v2212, 7
    %v2214 = vsub.s32 %v2211, %v2213
    %v2215 = vrot.slane %v2201, %v2214
    %v2216 = vcombine.low %v2208, %v2215
    %v2217 = vcombine.low %v2042, %v2043
    %v2219 = vunpack.c.l.s4 1966171168
    %v2220 = vunpack.c.0.s8 %v2219
    %v2221 = vlaneseq
    %v2222 = vshrl.u32 %v2221, 7
    %v2223 = vsub.s32 %v2220, %v2222
    %v2224 = vrot.slane %v2217, %v2223
    %v2226 = vunpack.c.l.s4 1966171168
    %v2227 = vunpack.c.0.s8 %v2226
    %v2228 = vlaneseq
    %v2229 = vshrl.u32 %v2228, 7
    %v2230 = vsub.s32 %v2227, %v2229
    %v2231 = vrot.slane %v2224, %v2230
    %s2236 = scalar_lea.vmem [#allocation2], 3
    %2237 = vst [vmem:[%s2236] ss:$8 sm:$0xf] %v2118
    %2238 = vst [vmem:[%s2236] ss:$8 sm:$0xf0] %v2118
    %s2239 = scalar_lea.vmem [#allocation2], 67
    %2240 = vst [vmem:[%s2239] ss:$8 sm:$0xf] %v2167
    %2241 = vst [vmem:[%s2239] ss:$8 sm:$0xf0] %v2167
    %s2242 = scalar_lea.vmem [#allocation2], 131
    %2243 = vst [vmem:[%s2242] ss:$8 sm:$0xf] %v2216
    %2244 = vst [vmem:[%s2242] ss:$8 sm:$0xf0] %v2216
    %s2245 = scalar_lea.vmem [#allocation2], 195
    %2246 = vst.msk [vmem:[%s2245] ss:$8 sm:$0x3] %vm873, %v2231
    %2247 = vst.msk [vmem:[%s2245] ss:$8 sm:$0x0] %vm873, %v2231
    %s2248 = scalar_lea.vmem [#allocation2], 4
    %2249 = vst [vmem:[%s2248] ss:$8 sm:$0xf] %v278
    %2250 = vst [vmem:[%s2248] ss:$8 sm:$0xf0] %v278
    %s2251 = scalar_lea.vmem [#allocation2], 68
    %2252 = vst [vmem:[%s2251] ss:$8 sm:$0xf] %v279
    %2253 = vst [vmem:[%s2251] ss:$8 sm:$0xf0] %v279
    %s2254 = scalar_lea.vmem [#allocation2], 132
    %2255 = vst [vmem:[%s2254] ss:$8 sm:$0xf] %v280
    %2256 = vst [vmem:[%s2254] ss:$8 sm:$0xf0] %v280
    %s2257 = scalar_lea.vmem [#allocation2], 196
    %2258 = vst.msk [vmem:[%s2257] ss:$8 sm:$0x3] %vm873, %v281
    %2259 = vst.msk [vmem:[%s2257] ss:$8 sm:$0x0] %vm873, %v281
    %2260 = vrot.lane.b32.xlu0 %v289, 127
    %v2261 = vpop.permute.xlu0 %2260
    %2262 = vrot.lane.b32.xlu0 %v293, 127
    %v2263 = vpop.permute.xlu0 %2262
    %2264 = vrot.lane.b32.xlu0 %v297, 127
    %v2265 = vpop.permute.xlu0 %2264
    %2266 = vrot.lane.b32.xlu0 %v301, 127
    %v2267 = vpop.permute.xlu0 %2266
    %2268 = vrot.lane.b32.xlu0 %v305, 127
    %v2269 = vpop.permute.xlu0 %2268
    %2270 = vrot.lane.b32.xlu0 %v309, 127
    %v2271 = vpop.permute.xlu0 %2270
    %2272 = vrot.lane.b32.xlu0 %v313, 127
    %v2273 = vpop.permute.xlu0 %2272
    %2274 = vrot.lane.b32.xlu0 %v317, 127
    %v2275 = vpop.permute.xlu0 %2274
    %2276 = vrot.lane.b32.xlu0 %v321, 127
    %v2277 = vpop.permute.xlu0 %2276
    %2278 = vrot.lane.b32.xlu0 %v325, 127
    %v2279 = vpop.permute.xlu0 %2278
    %2280 = vrot.lane.b32.xlu0 %v329, 127
    %v2281 = vpop.permute.xlu0 %2280
    %2282 = vrot.lane.b32.xlu0 %v333, 127
    %v2283 = vpop.permute.xlu0 %2282
    %2284 = vrot.lane.b32.xlu0 %v337, 127
    %v2285 = vpop.permute.xlu0 %2284
    %2286 = vrot.lane.b32.xlu0 %v341, 127
    %v2287 = vpop.permute.xlu0 %2286
    %2288 = vrot.lane.b32.xlu0 %v345, 127
    %v2289 = vpop.permute.xlu0 %2288
    %2290 = vrot.lane.b32.xlu0 %v349, 127
    %v2291 = vpop.permute.xlu0 %2290
    %2292 = vrot.lane.b32.xlu0 %v353, 127
    %v2293 = vpop.permute.xlu0 %2292
    %2294 = vrot.lane.b32.xlu0 %v357, 127
    %v2295 = vpop.permute.xlu0 %2294
    %2296 = vrot.lane.b32.xlu0 %v361, 127
    %v2297 = vpop.permute.xlu0 %2296
    %2298 = vrot.lane.b32.xlu0 %v365, 127
    %v2299 = vpop.permute.xlu0 %2298
    %2300 = vrot.lane.b32.xlu0 %v369, 127
    %v2301 = vpop.permute.xlu0 %2300
    %2302 = vrot.lane.b32.xlu0 %v373, 127
    %v2303 = vpop.permute.xlu0 %2302
    %2304 = vrot.lane.b32.xlu0 %v377, 127
    %v2305 = vpop.permute.xlu0 %2304
    %2306 = vrot.lane.b32.xlu0 %v381, 127
    %v2307 = vpop.permute.xlu0 %2306
    %2308 = vrot.lane.b32.xlu0 %v385, 127
    %v2309 = vpop.permute.xlu0 %2308
    %2310 = vrot.lane.b32.xlu0 %v389, 127
    %v2311 = vpop.permute.xlu0 %2310
    %vm2312 = vcmp.lt.s32.totalorder %v469, 127
    %v2313 = vsel %vm2312, %v2309, %v2311
    %v2314 = vsel %vm2312, %v2307, %v2309
    %v2315 = vsel %vm2312, %v2305, %v2307
    %v2316 = vsel %vm2312, %v2303, %v2305
    %v2317 = vsel %vm2312, %v2301, %v2303
    %v2318 = vsel %vm2312, %v2299, %v2301
    %v2319 = vsel %vm2312, %v2297, %v2299
    %v2320 = vsel %vm2312, %v2295, %v2297
    %v2321 = vsel %vm2312, %v2293, %v2295
    %v2322 = vsel %vm2312, %v2291, %v2293
    %v2323 = vsel %vm2312, %v2289, %v2291
    %v2324 = vsel %vm2312, %v2287, %v2289
    %v2325 = vsel %vm2312, %v2285, %v2287
    %v2326 = vsel %vm2312, %v2283, %v2285
    %v2327 = vsel %vm2312, %v2281, %v2283
    %v2328 = vsel %vm2312, %v2279, %v2281
    %v2329 = vsel %vm2312, %v2277, %v2279
    %v2330 = vsel %vm2312, %v2275, %v2277
    %v2331 = vsel %vm2312, %v2273, %v2275
    %v2332 = vsel %vm2312, %v2271, %v2273
    %v2333 = vsel %vm2312, %v2269, %v2271
    %v2334 = vsel %vm2312, %v2267, %v2269
    %v2335 = vsel %vm2312, %v2265, %v2267
    %v2336 = vsel %vm2312, %v2263, %v2265
    %v2337 = vsel %vm2312, %v2261, %v2263
    %v2338 = vsel %vm2312, %v2311, %v2261
    %s2339 = scalar_lea.vmem %s1, 5
    %v2340 = vld [vmem:[%s2339] ss:$8 sm:$0xf]
    %v2341 = vld [vmem:[%s2339] ss:$8 sm:$0xf0]
    %v2342 = vor.u32 %v2340, %v2341
    %s2343 = scalar_lea.vmem %s1, 69
    %v2344 = vld [vmem:[%s2343] ss:$8 sm:$0xf]
    %v2345 = vld [vmem:[%s2343] ss:$8 sm:$0xf0]
    %v2346 = vor.u32 %v2344, %v2345
    %s2347 = scalar_lea.vmem %s1, 133
    %v2348 = vld [vmem:[%s2347] ss:$8 sm:$0xf]
    %v2349 = vld [vmem:[%s2347] ss:$8 sm:$0xf0]
    %v2350 = vor.u32 %v2348, %v2349
    %s2351 = scalar_lea.vmem %s1, 197
    %v2352 = vld [vmem:[%s2351] ss:$8 sm:$0x3]
    %v2357 = vlaneseq
    %v2358 = vshrl.u32 %v2357, 7
    %v2359 = vsub.s32 0, %v2358
    %v2360 = vrot.slane %v2342, %v2359
    %v2361 = vlaneseq
    %v2362 = vshrl.u32 %v2361, 7
    %v2363 = vsub.s32 1, %v2362
    %v2364 = vrot.slane %v2342, %v2363
    %v2365 = vlaneseq
    %v2366 = vshrl.u32 %v2365, 7
    %v2367 = vsub.s32 2, %v2366
    %v2368 = vrot.slane %v2342, %v2367
    %v2369 = vlaneseq
    %v2370 = vshrl.u32 %v2369, 7
    %v2371 = vsub.s32 3, %v2370
    %v2372 = vrot.slane %v2342, %v2371
    %v2373 = vlaneseq
    %v2374 = vshrl.u32 %v2373, 7
    %v2375 = vsub.s32 4, %v2374
    %v2376 = vrot.slane %v2342, %v2375
    %v2377 = vlaneseq
    %v2378 = vshrl.u32 %v2377, 7
    %v2379 = vsub.s32 5, %v2378
    %v2380 = vrot.slane %v2342, %v2379
    %v2381 = vlaneseq
    %v2382 = vshrl.u32 %v2381, 7
    %v2383 = vsub.s32 6, %v2382
    %v2384 = vrot.slane %v2342, %v2383
    %v2385 = vlaneseq
    %v2386 = vshrl.u32 %v2385, 7
    %v2387 = vsub.s32 7, %v2386
    %v2388 = vrot.slane %v2342, %v2387
    %v2389 = vlaneseq
    %v2390 = vshrl.u32 %v2389, 7
    %v2391 = vsub.s32 0, %v2390
    %v2392 = vrot.slane %v2346, %v2391
    %v2393 = vlaneseq
    %v2394 = vshrl.u32 %v2393, 7
    %v2395 = vsub.s32 1, %v2394
    %v2396 = vrot.slane %v2346, %v2395
    %v2397 = vlaneseq
    %v2398 = vshrl.u32 %v2397, 7
    %v2399 = vsub.s32 2, %v2398
    %v2400 = vrot.slane %v2346, %v2399
    %v2401 = vlaneseq
    %v2402 = vshrl.u32 %v2401, 7
    %v2403 = vsub.s32 3, %v2402
    %v2404 = vrot.slane %v2346, %v2403
    %v2405 = vlaneseq
    %v2406 = vshrl.u32 %v2405, 7
    %v2407 = vsub.s32 4, %v2406
    %v2408 = vrot.slane %v2346, %v2407
    %v2409 = vlaneseq
    %v2410 = vshrl.u32 %v2409, 7
    %v2411 = vsub.s32 5, %v2410
    %v2412 = vrot.slane %v2346, %v2411
    %v2413 = vlaneseq
    %v2414 = vshrl.u32 %v2413, 7
    %v2415 = vsub.s32 6, %v2414
    %v2416 = vrot.slane %v2346, %v2415
    %v2417 = vlaneseq
    %v2418 = vshrl.u32 %v2417, 7
    %v2419 = vsub.s32 7, %v2418
    %v2420 = vrot.slane %v2346, %v2419
    %v2421 = vlaneseq
    %v2422 = vshrl.u32 %v2421, 7
    %v2423 = vsub.s32 0, %v2422
    %v2424 = vrot.slane %v2350, %v2423
    %v2425 = vlaneseq
    %v2426 = vshrl.u32 %v2425, 7
    %v2427 = vsub.s32 1, %v2426
    %v2428 = vrot.slane %v2350, %v2427
    %v2429 = vlaneseq
    %v2430 = vshrl.u32 %v2429, 7
    %v2431 = vsub.s32 2, %v2430
    %v2432 = vrot.slane %v2350, %v2431
    %v2433 = vlaneseq
    %v2434 = vshrl.u32 %v2433, 7
    %v2435 = vsub.s32 3, %v2434
    %v2436 = vrot.slane %v2350, %v2435
    %v2437 = vlaneseq
    %v2438 = vshrl.u32 %v2437, 7
    %v2439 = vsub.s32 4, %v2438
    %v2440 = vrot.slane %v2350, %v2439
    %v2441 = vlaneseq
    %v2442 = vshrl.u32 %v2441, 7
    %v2443 = vsub.s32 5, %v2442
    %v2444 = vrot.slane %v2350, %v2443
    %v2445 = vlaneseq
    %v2446 = vshrl.u32 %v2445, 7
    %v2447 = vsub.s32 6, %v2446
    %v2448 = vrot.slane %v2350, %v2447
    %v2449 = vlaneseq
    %v2450 = vshrl.u32 %v2449, 7
    %v2451 = vsub.s32 7, %v2450
    %v2452 = vrot.slane %v2350, %v2451
    %v2453 = vlaneseq
    %v2454 = vshrl.u32 %v2453, 7
    %v2455 = vsub.s32 0, %v2454
    %v2456 = vrot.slane %v2352, %v2455
    %v2457 = vlaneseq
    %v2458 = vshrl.u32 %v2457, 7
    %v2459 = vsub.s32 1, %v2458
    %v2460 = vrot.slane %v2352, %v2459
    %v2487 = vmul.f32 %v2337, %v2360
    %v2488 = vmul.f32 %v2336, %v2364
    %v2489 = vmul.f32 %v2335, %v2368
    %v2490 = vmul.f32 %v2334, %v2372
    %v2491 = vmul.f32 %v2333, %v2376
    %v2492 = vmul.f32 %v2332, %v2380
    %v2493 = vmul.f32 %v2331, %v2384
    %v2494 = vmul.f32 %v2330, %v2388
    %v2495 = vmul.f32 %v2329, %v2392
    %v2496 = vmul.f32 %v2328, %v2396
    %v2497 = vmul.f32 %v2327, %v2400
    %v2498 = vmul.f32 %v2326, %v2404
    %v2499 = vmul.f32 %v2325, %v2408
    %v2500 = vmul.f32 %v2324, %v2412
    %v2501 = vmul.f32 %v2323, %v2416
    %v2502 = vmul.f32 %v2322, %v2420
    %v2503 = vmul.f32 %v2321, %v2424
    %v2504 = vmul.f32 %v2320, %v2428
    %v2505 = vmul.f32 %v2319, %v2432
    %v2506 = vmul.f32 %v2318, %v2436
    %v2507 = vmul.f32 %v2317, %v2440
    %v2508 = vmul.f32 %v2316, %v2444
    %v2509 = vmul.f32 %v2315, %v2448
    %v2510 = vmul.f32 %v2314, %v2452
    %v2511 = vmul.f32 %v2313, %v2456
    %v2512 = vmul.f32 %v2338, %v2460
    %v2539 = vcombine.low %v2487, %v2488
    %v2540 = vcombine.low %v2489, %v2490
    %v2541 = vcombine.low %v2491, %v2492
    %v2542 = vcombine.low %v2493, %v2494
    %v2544 = vunpack.c.l.s4 1966171168
    %v2545 = vunpack.c.0.s8 %v2544
    %v2546 = vlaneseq
    %v2547 = vshrl.u32 %v2546, 7
    %v2548 = vsub.s32 %v2545, %v2547
    %v2549 = vrot.slane %v2539, %v2548
    %v2551 = vunpack.c.l.s4 1966171168
    %v2552 = vunpack.c.0.s8 %v2551
    %v2553 = vlaneseq
    %v2554 = vshrl.u32 %v2553, 7
    %v2555 = vsub.s32 %v2552, %v2554
    %v2556 = vrot.slane %v2540, %v2555
    %v2558 = vunpack.c.l.s4 1966171168
    %v2559 = vunpack.c.0.s8 %v2558
    %v2560 = vlaneseq
    %v2561 = vshrl.u32 %v2560, 7
    %v2562 = vsub.s32 %v2559, %v2561
    %v2563 = vrot.slane %v2541, %v2562
    %v2565 = vunpack.c.l.s4 1966171168
    %v2566 = vunpack.c.0.s8 %v2565
    %v2567 = vlaneseq
    %v2568 = vshrl.u32 %v2567, 7
    %v2569 = vsub.s32 %v2566, %v2568
    %v2570 = vrot.slane %v2542, %v2569
    %v2571 = vcombine.low %v2549, %v2556
    %v2572 = vcombine.low %v2563, %v2570
    %v2574 = vunpack.c.l.s4 1966171168
    %v2575 = vunpack.c.0.s8 %v2574
    %v2576 = vlaneseq
    %v2577 = vshrl.u32 %v2576, 7
    %v2578 = vsub.s32 %v2575, %v2577
    %v2579 = vrot.slane %v2571, %v2578
    %v2581 = vunpack.c.l.s4 1966171168
    %v2582 = vunpack.c.0.s8 %v2581
    %v2583 = vlaneseq
    %v2584 = vshrl.u32 %v2583, 7
    %v2585 = vsub.s32 %v2582, %v2584
    %v2586 = vrot.slane %v2572, %v2585
    %v2587 = vcombine.low %v2579, %v2586
    %v2588 = vcombine.low %v2495, %v2496
    %v2589 = vcombine.low %v2497, %v2498
    %v2590 = vcombine.low %v2499, %v2500
    %v2591 = vcombine.low %v2501, %v2502
    %v2593 = vunpack.c.l.s4 1966171168
    %v2594 = vunpack.c.0.s8 %v2593
    %v2595 = vlaneseq
    %v2596 = vshrl.u32 %v2595, 7
    %v2597 = vsub.s32 %v2594, %v2596
    %v2598 = vrot.slane %v2588, %v2597
    %v2600 = vunpack.c.l.s4 1966171168
    %v2601 = vunpack.c.0.s8 %v2600
    %v2602 = vlaneseq
    %v2603 = vshrl.u32 %v2602, 7
    %v2604 = vsub.s32 %v2601, %v2603
    %v2605 = vrot.slane %v2589, %v2604
    %v2607 = vunpack.c.l.s4 1966171168
    %v2608 = vunpack.c.0.s8 %v2607
    %v2609 = vlaneseq
    %v2610 = vshrl.u32 %v2609, 7
    %v2611 = vsub.s32 %v2608, %v2610
    %v2612 = vrot.slane %v2590, %v2611
    %v2614 = vunpack.c.l.s4 1966171168
    %v2615 = vunpack.c.0.s8 %v2614
    %v2616 = vlaneseq
    %v2617 = vshrl.u32 %v2616, 7
    %v2618 = vsub.s32 %v2615, %v2617
    %v2619 = vrot.slane %v2591, %v2618
    %v2620 = vcombine.low %v2598, %v2605
    %v2621 = vcombine.low %v2612, %v2619
    %v2623 = vunpack.c.l.s4 1966171168
    %v2624 = vunpack.c.0.s8 %v2623
    %v2625 = vlaneseq
    %v2626 = vshrl.u32 %v2625, 7
    %v2627 = vsub.s32 %v2624, %v2626
    %v2628 = vrot.slane %v2620, %v2627
    %v2630 = vunpack.c.l.s4 1966171168
    %v2631 = vunpack.c.0.s8 %v2630
    %v2632 = vlaneseq
    %v2633 = vshrl.u32 %v2632, 7
    %v2634 = vsub.s32 %v2631, %v2633
    %v2635 = vrot.slane %v2621, %v2634
    %v2636 = vcombine.low %v2628, %v2635
    %v2637 = vcombine.low %v2503, %v2504
    %v2638 = vcombine.low %v2505, %v2506
    %v2639 = vcombine.low %v2507, %v2508
    %v2640 = vcombine.low %v2509, %v2510
    %v2642 = vunpack.c.l.s4 1966171168
    %v2643 = vunpack.c.0.s8 %v2642
    %v2644 = vlaneseq
    %v2645 = vshrl.u32 %v2644, 7
    %v2646 = vsub.s32 %v2643, %v2645
    %v2647 = vrot.slane %v2637, %v2646
    %v2649 = vunpack.c.l.s4 1966171168
    %v2650 = vunpack.c.0.s8 %v2649
    %v2651 = vlaneseq
    %v2652 = vshrl.u32 %v2651, 7
    %v2653 = vsub.s32 %v2650, %v2652
    %v2654 = vrot.slane %v2638, %v2653
    %v2656 = vunpack.c.l.s4 1966171168
    %v2657 = vunpack.c.0.s8 %v2656
    %v2658 = vlaneseq
    %v2659 = vshrl.u32 %v2658, 7
    %v2660 = vsub.s32 %v2657, %v2659
    %v2661 = vrot.slane %v2639, %v2660
    %v2663 = vunpack.c.l.s4 1966171168
    %v2664 = vunpack.c.0.s8 %v2663
    %v2665 = vlaneseq
    %v2666 = vshrl.u32 %v2665, 7
    %v2667 = vsub.s32 %v2664, %v2666
    %v2668 = vrot.slane %v2640, %v2667
    %v2669 = vcombine.low %v2647, %v2654
    %v2670 = vcombine.low %v2661, %v2668
    %v2672 = vunpack.c.l.s4 1966171168
    %v2673 = vunpack.c.0.s8 %v2672
    %v2674 = vlaneseq
    %v2675 = vshrl.u32 %v2674, 7
    %v2676 = vsub.s32 %v2673, %v2675
    %v2677 = vrot.slane %v2669, %v2676
    %v2679 = vunpack.c.l.s4 1966171168
    %v2680 = vunpack.c.0.s8 %v2679
    %v2681 = vlaneseq
    %v2682 = vshrl.u32 %v2681, 7
    %v2683 = vsub.s32 %v2680, %v2682
    %v2684 = vrot.slane %v2670, %v2683
    %v2685 = vcombine.low %v2677, %v2684
    %v2686 = vcombine.low %v2511, %v2512
    %v2688 = vunpack.c.l.s4 1966171168
    %v2689 = vunpack.c.0.s8 %v2688
    %v2690 = vlaneseq
    %v2691 = vshrl.u32 %v2690, 7
    %v2692 = vsub.s32 %v2689, %v2691
    %v2693 = vrot.slane %v2686, %v2692
    %v2695 = vunpack.c.l.s4 1966171168
    %v2696 = vunpack.c.0.s8 %v2695
    %v2697 = vlaneseq
    %v2698 = vshrl.u32 %v2697, 7
    %v2699 = vsub.s32 %v2696, %v2698
    %v2700 = vrot.slane %v2693, %v2699
    %s2705 = scalar_lea.vmem [#allocation2], 5
    %2706 = vst [vmem:[%s2705] ss:$8 sm:$0xf] %v2587
    %2707 = vst [vmem:[%s2705] ss:$8 sm:$0xf0] %v2587
    %s2708 = scalar_lea.vmem [#allocation2], 69
    %2709 = vst [vmem:[%s2708] ss:$8 sm:$0xf] %v2636
    %2710 = vst [vmem:[%s2708] ss:$8 sm:$0xf0] %v2636
    %s2711 = scalar_lea.vmem [#allocation2], 133
    %2712 = vst [vmem:[%s2711] ss:$8 sm:$0xf] %v2685
    %2713 = vst [vmem:[%s2711] ss:$8 sm:$0xf0] %v2685
    %s2714 = scalar_lea.vmem [#allocation2], 197
    %2715 = vst.msk [vmem:[%s2714] ss:$8 sm:$0x3] %vm873, %v2700
    %2716 = vst.msk [vmem:[%s2714] ss:$8 sm:$0x0] %vm873, %v2700
    %2717 = vrot.lane.b32.xlu0 %v289, 49
    %v2718 = vpop.permute.xlu0 %2717
    %2719 = vrot.lane.b32.xlu0 %v293, 49
    %v2720 = vpop.permute.xlu0 %2719
    %2721 = vrot.lane.b32.xlu0 %v297, 49
    %v2722 = vpop.permute.xlu0 %2721
    %2723 = vrot.lane.b32.xlu0 %v301, 49
    %v2724 = vpop.permute.xlu0 %2723
    %2725 = vrot.lane.b32.xlu0 %v305, 49
    %v2726 = vpop.permute.xlu0 %2725
    %2727 = vrot.lane.b32.xlu0 %v309, 49
    %v2728 = vpop.permute.xlu0 %2727
    %2729 = vrot.lane.b32.xlu0 %v313, 49
    %v2730 = vpop.permute.xlu0 %2729
    %2731 = vrot.lane.b32.xlu0 %v317, 49
    %v2732 = vpop.permute.xlu0 %2731
    %2733 = vrot.lane.b32.xlu0 %v321, 49
    %v2734 = vpop.permute.xlu0 %2733
    %2735 = vrot.lane.b32.xlu0 %v325, 49
    %v2736 = vpop.permute.xlu0 %2735
    %2737 = vrot.lane.b32.xlu0 %v329, 49
    %v2738 = vpop.permute.xlu0 %2737
    %2739 = vrot.lane.b32.xlu0 %v333, 49
    %v2740 = vpop.permute.xlu0 %2739
    %2741 = vrot.lane.b32.xlu0 %v337, 49
    %v2742 = vpop.permute.xlu0 %2741
    %2743 = vrot.lane.b32.xlu0 %v341, 49
    %v2744 = vpop.permute.xlu0 %2743
    %2745 = vrot.lane.b32.xlu0 %v345, 49
    %v2746 = vpop.permute.xlu0 %2745
    %2747 = vrot.lane.b32.xlu0 %v349, 49
    %v2748 = vpop.permute.xlu0 %2747
    %2749 = vrot.lane.b32.xlu0 %v353, 49
    %v2750 = vpop.permute.xlu0 %2749
    %2751 = vrot.lane.b32.xlu0 %v357, 49
    %v2752 = vpop.permute.xlu0 %2751
    %2753 = vrot.lane.b32.xlu0 %v361, 49
    %v2754 = vpop.permute.xlu0 %2753
    %2755 = vrot.lane.b32.xlu0 %v365, 49
    %v2756 = vpop.permute.xlu0 %2755
    %2757 = vrot.lane.b32.xlu0 %v369, 49
    %v2758 = vpop.permute.xlu0 %2757
    %2759 = vrot.lane.b32.xlu0 %v373, 49
    %v2760 = vpop.permute.xlu0 %2759
    %2761 = vrot.lane.b32.xlu0 %v377, 49
    %v2762 = vpop.permute.xlu0 %2761
    %2763 = vrot.lane.b32.xlu0 %v381, 49
    %v2764 = vpop.permute.xlu0 %2763
    %2765 = vrot.lane.b32.xlu0 %v385, 49
    %v2766 = vpop.permute.xlu0 %2765
    %2767 = vrot.lane.b32.xlu0 %v389, 49
    %v2768 = vpop.permute.xlu0 %2767
    %vm2769 = vcmp.lt.s32.totalorder %v469, 49
    %v2770 = vsel %vm2769, %v2766, %v2768
    %v2771 = vsel %vm2769, %v2764, %v2766
    %v2772 = vsel %vm2769, %v2762, %v2764
    %v2773 = vsel %vm2769, %v2760, %v2762
    %v2774 = vsel %vm2769, %v2758, %v2760
    %v2775 = vsel %vm2769, %v2756, %v2758
    %v2776 = vsel %vm2769, %v2754, %v2756
    %v2777 = vsel %vm2769, %v2752, %v2754
    %v2778 = vsel %vm2769, %v2750, %v2752
    %v2779 = vsel %vm2769, %v2748, %v2750
    %v2780 = vsel %vm2769, %v2746, %v2748
    %v2781 = vsel %vm2769, %v2744, %v2746
    %v2782 = vsel %vm2769, %v2742, %v2744
    %v2783 = vsel %vm2769, %v2740, %v2742
    %v2784 = vsel %vm2769, %v2738, %v2740
    %v2785 = vsel %vm2769, %v2736, %v2738
    %v2786 = vsel %vm2769, %v2734, %v2736
    %v2787 = vsel %vm2769, %v2732, %v2734
    %v2788 = vsel %vm2769, %v2730, %v2732
    %v2789 = vsel %vm2769, %v2728, %v2730
    %v2790 = vsel %vm2769, %v2726, %v2728
    %v2791 = vsel %vm2769, %v2724, %v2726
    %v2792 = vsel %vm2769, %v2722, %v2724
    %v2793 = vsel %vm2769, %v2720, %v2722
    %v2794 = vsel %vm2769, %v2718, %v2720
    %v2795 = vsel %vm2769, %v2768, %v2718
    %s2796 = scalar_lea.vmem %s1, 6
    %v2797 = vld [vmem:[%s2796] ss:$8 sm:$0xf]
    %v2798 = vld [vmem:[%s2796] ss:$8 sm:$0xf0]
    %v2799 = vor.u32 %v2797, %v2798
    %s2800 = scalar_lea.vmem %s1, 70
    %v2801 = vld [vmem:[%s2800] ss:$8 sm:$0xf]
    %v2802 = vld [vmem:[%s2800] ss:$8 sm:$0xf0]
    %v2803 = vor.u32 %v2801, %v2802
    %s2804 = scalar_lea.vmem %s1, 134
    %v2805 = vld [vmem:[%s2804] ss:$8 sm:$0xf]
    %v2806 = vld [vmem:[%s2804] ss:$8 sm:$0xf0]
    %v2807 = vor.u32 %v2805, %v2806
    %s2808 = scalar_lea.vmem %s1, 198
    %v2809 = vld [vmem:[%s2808] ss:$8 sm:$0x3]
    %v2814 = vlaneseq
    %v2815 = vshrl.u32 %v2814, 7
    %v2816 = vsub.s32 0, %v2815
    %v2817 = vrot.slane %v2799, %v2816
    %v2818 = vlaneseq
    %v2819 = vshrl.u32 %v2818, 7
    %v2820 = vsub.s32 1, %v2819
    %v2821 = vrot.slane %v2799, %v2820
    %v2822 = vlaneseq
    %v2823 = vshrl.u32 %v2822, 7
    %v2824 = vsub.s32 2, %v2823
    %v2825 = vrot.slane %v2799, %v2824
    %v2826 = vlaneseq
    %v2827 = vshrl.u32 %v2826, 7
    %v2828 = vsub.s32 3, %v2827
    %v2829 = vrot.slane %v2799, %v2828
    %v2830 = vlaneseq
    %v2831 = vshrl.u32 %v2830, 7
    %v2832 = vsub.s32 4, %v2831
    %v2833 = vrot.slane %v2799, %v2832
    %v2834 = vlaneseq
    %v2835 = vshrl.u32 %v2834, 7
    %v2836 = vsub.s32 5, %v2835
    %v2837 = vrot.slane %v2799, %v2836
    %v2838 = vlaneseq
    %v2839 = vshrl.u32 %v2838, 7
    %v2840 = vsub.s32 6, %v2839
    %v2841 = vrot.slane %v2799, %v2840
    %v2842 = vlaneseq
    %v2843 = vshrl.u32 %v2842, 7
    %v2844 = vsub.s32 7, %v2843
    %v2845 = vrot.slane %v2799, %v2844
    %v2846 = vlaneseq
    %v2847 = vshrl.u32 %v2846, 7
    %v2848 = vsub.s32 0, %v2847
    %v2849 = vrot.slane %v2803, %v2848
    %v2850 = vlaneseq
    %v2851 = vshrl.u32 %v2850, 7
    %v2852 = vsub.s32 1, %v2851
    %v2853 = vrot.slane %v2803, %v2852
    %v2854 = vlaneseq
    %v2855 = vshrl.u32 %v2854, 7
    %v2856 = vsub.s32 2, %v2855
    %v2857 = vrot.slane %v2803, %v2856
    %v2858 = vlaneseq
    %v2859 = vshrl.u32 %v2858, 7
    %v2860 = vsub.s32 3, %v2859
    %v2861 = vrot.slane %v2803, %v2860
    %v2862 = vlaneseq
    %v2863 = vshrl.u32 %v2862, 7
    %v2864 = vsub.s32 4, %v2863
    %v2865 = vrot.slane %v2803, %v2864
    %v2866 = vlaneseq
    %v2867 = vshrl.u32 %v2866, 7
    %v2868 = vsub.s32 5, %v2867
    %v2869 = vrot.slane %v2803, %v2868
    %v2870 = vlaneseq
    %v2871 = vshrl.u32 %v2870, 7
    %v2872 = vsub.s32 6, %v2871
    %v2873 = vrot.slane %v2803, %v2872
    %v2874 = vlaneseq
    %v2875 = vshrl.u32 %v2874, 7
    %v2876 = vsub.s32 7, %v2875
    %v2877 = vrot.slane %v2803, %v2876
    %v2878 = vlaneseq
    %v2879 = vshrl.u32 %v2878, 7
    %v2880 = vsub.s32 0, %v2879
    %v2881 = vrot.slane %v2807, %v2880
    %v2882 = vlaneseq
    %v2883 = vshrl.u32 %v2882, 7
    %v2884 = vsub.s32 1, %v2883
    %v2885 = vrot.slane %v2807, %v2884
    %v2886 = vlaneseq
    %v2887 = vshrl.u32 %v2886, 7
    %v2888 = vsub.s32 2, %v2887
    %v2889 = vrot.slane %v2807, %v2888
    %v2890 = vlaneseq
    %v2891 = vshrl.u32 %v2890, 7
    %v2892 = vsub.s32 3, %v2891
    %v2893 = vrot.slane %v2807, %v2892
    %v2894 = vlaneseq
    %v2895 = vshrl.u32 %v2894, 7
    %v2896 = vsub.s32 4, %v2895
    %v2897 = vrot.slane %v2807, %v2896
    %v2898 = vlaneseq
    %v2899 = vshrl.u32 %v2898, 7
    %v2900 = vsub.s32 5, %v2899
    %v2901 = vrot.slane %v2807, %v2900
    %v2902 = vlaneseq
    %v2903 = vshrl.u32 %v2902, 7
    %v2904 = vsub.s32 6, %v2903
    %v2905 = vrot.slane %v2807, %v2904
    %v2906 = vlaneseq
    %v2907 = vshrl.u32 %v2906, 7
    %v2908 = vsub.s32 7, %v2907
    %v2909 = vrot.slane %v2807, %v2908
    %v2910 = vlaneseq
    %v2911 = vshrl.u32 %v2910, 7
    %v2912 = vsub.s32 0, %v2911
    %v2913 = vrot.slane %v2809, %v2912
    %v2914 = vlaneseq
    %v2915 = vshrl.u32 %v2914, 7
    %v2916 = vsub.s32 1, %v2915
    %v2917 = vrot.slane %v2809, %v2916
    %v2944 = vmul.f32 %v2793, %v2817
    %v2945 = vmul.f32 %v2792, %v2821
    %v2946 = vmul.f32 %v2791, %v2825
    %v2947 = vmul.f32 %v2790, %v2829
    %v2948 = vmul.f32 %v2789, %v2833
    %v2949 = vmul.f32 %v2788, %v2837
    %v2950 = vmul.f32 %v2787, %v2841
    %v2951 = vmul.f32 %v2786, %v2845
    %v2952 = vmul.f32 %v2785, %v2849
    %v2953 = vmul.f32 %v2784, %v2853
    %v2954 = vmul.f32 %v2783, %v2857
    %v2955 = vmul.f32 %v2782, %v2861
    %v2956 = vmul.f32 %v2781, %v2865
    %v2957 = vmul.f32 %v2780, %v2869
    %v2958 = vmul.f32 %v2779, %v2873
    %v2959 = vmul.f32 %v2778, %v2877
    %v2960 = vmul.f32 %v2777, %v2881
    %v2961 = vmul.f32 %v2776, %v2885
    %v2962 = vmul.f32 %v2775, %v2889
    %v2963 = vmul.f32 %v2774, %v2893
    %v2964 = vmul.f32 %v2773, %v2897
    %v2965 = vmul.f32 %v2772, %v2901
    %v2966 = vmul.f32 %v2771, %v2905
    %v2967 = vmul.f32 %v2770, %v2909
    %v2968 = vmul.f32 %v2795, %v2913
    %v2969 = vmul.f32 %v2794, %v2917
    %v2996 = vcombine.low %v2944, %v2945
    %v2997 = vcombine.low %v2946, %v2947
    %v2998 = vcombine.low %v2948, %v2949
    %v2999 = vcombine.low %v2950, %v2951
    %v3001 = vunpack.c.l.s4 1966171168
    %v3002 = vunpack.c.0.s8 %v3001
    %v3003 = vlaneseq
    %v3004 = vshrl.u32 %v3003, 7
    %v3005 = vsub.s32 %v3002, %v3004
    %v3006 = vrot.slane %v2996, %v3005
    %v3008 = vunpack.c.l.s4 1966171168
    %v3009 = vunpack.c.0.s8 %v3008
    %v3010 = vlaneseq
    %v3011 = vshrl.u32 %v3010, 7
    %v3012 = vsub.s32 %v3009, %v3011
    %v3013 = vrot.slane %v2997, %v3012
    %v3015 = vunpack.c.l.s4 1966171168
    %v3016 = vunpack.c.0.s8 %v3015
    %v3017 = vlaneseq
    %v3018 = vshrl.u32 %v3017, 7
    %v3019 = vsub.s32 %v3016, %v3018
    %v3020 = vrot.slane %v2998, %v3019
    %v3022 = vunpack.c.l.s4 1966171168
    %v3023 = vunpack.c.0.s8 %v3022
    %v3024 = vlaneseq
    %v3025 = vshrl.u32 %v3024, 7
    %v3026 = vsub.s32 %v3023, %v3025
    %v3027 = vrot.slane %v2999, %v3026
    %v3028 = vcombine.low %v3006, %v3013
    %v3029 = vcombine.low %v3020, %v3027
    %v3031 = vunpack.c.l.s4 1966171168
    %v3032 = vunpack.c.0.s8 %v3031
    %v3033 = vlaneseq
    %v3034 = vshrl.u32 %v3033, 7
    %v3035 = vsub.s32 %v3032, %v3034
    %v3036 = vrot.slane %v3028, %v3035
    %v3038 = vunpack.c.l.s4 1966171168
    %v3039 = vunpack.c.0.s8 %v3038
    %v3040 = vlaneseq
    %v3041 = vshrl.u32 %v3040, 7
    %v3042 = vsub.s32 %v3039, %v3041
    %v3043 = vrot.slane %v3029, %v3042
    %v3044 = vcombine.low %v3036, %v3043
    %v3045 = vcombine.low %v2952, %v2953
    %v3046 = vcombine.low %v2954, %v2955
    %v3047 = vcombine.low %v2956, %v2957
    %v3048 = vcombine.low %v2958, %v2959
    %v3050 = vunpack.c.l.s4 1966171168
    %v3051 = vunpack.c.0.s8 %v3050
    %v3052 = vlaneseq
    %v3053 = vshrl.u32 %v3052, 7
    %v3054 = vsub.s32 %v3051, %v3053
    %v3055 = vrot.slane %v3045, %v3054
    %v3057 = vunpack.c.l.s4 1966171168
    %v3058 = vunpack.c.0.s8 %v3057
    %v3059 = vlaneseq
    %v3060 = vshrl.u32 %v3059, 7
    %v3061 = vsub.s32 %v3058, %v3060
    %v3062 = vrot.slane %v3046, %v3061
    %v3064 = vunpack.c.l.s4 1966171168
    %v3065 = vunpack.c.0.s8 %v3064
    %v3066 = vlaneseq
    %v3067 = vshrl.u32 %v3066, 7
    %v3068 = vsub.s32 %v3065, %v3067
    %v3069 = vrot.slane %v3047, %v3068
    %v3071 = vunpack.c.l.s4 1966171168
    %v3072 = vunpack.c.0.s8 %v3071
    %v3073 = vlaneseq
    %v3074 = vshrl.u32 %v3073, 7
    %v3075 = vsub.s32 %v3072, %v3074
    %v3076 = vrot.slane %v3048, %v3075
    %v3077 = vcombine.low %v3055, %v3062
    %v3078 = vcombine.low %v3069, %v3076
    %v3080 = vunpack.c.l.s4 1966171168
    %v3081 = vunpack.c.0.s8 %v3080
    %v3082 = vlaneseq
    %v3083 = vshrl.u32 %v3082, 7
    %v3084 = vsub.s32 %v3081, %v3083
    %v3085 = vrot.slane %v3077, %v3084
    %v3087 = vunpack.c.l.s4 1966171168
    %v3088 = vunpack.c.0.s8 %v3087
    %v3089 = vlaneseq
    %v3090 = vshrl.u32 %v3089, 7
    %v3091 = vsub.s32 %v3088, %v3090
    %v3092 = vrot.slane %v3078, %v3091
    %v3093 = vcombine.low %v3085, %v3092
    %v3094 = vcombine.low %v2960, %v2961
    %v3095 = vcombine.low %v2962, %v2963
    %v3096 = vcombine.low %v2964, %v2965
    %v3097 = vcombine.low %v2966, %v2967
    %v3099 = vunpack.c.l.s4 1966171168
    %v3100 = vunpack.c.0.s8 %v3099
    %v3101 = vlaneseq
    %v3102 = vshrl.u32 %v3101, 7
    %v3103 = vsub.s32 %v3100, %v3102
    %v3104 = vrot.slane %v3094, %v3103
    %v3106 = vunpack.c.l.s4 1966171168
    %v3107 = vunpack.c.0.s8 %v3106
    %v3108 = vlaneseq
    %v3109 = vshrl.u32 %v3108, 7
    %v3110 = vsub.s32 %v3107, %v3109
    %v3111 = vrot.slane %v3095, %v3110
    %v3113 = vunpack.c.l.s4 1966171168
    %v3114 = vunpack.c.0.s8 %v3113
    %v3115 = vlaneseq
    %v3116 = vshrl.u32 %v3115, 7
    %v3117 = vsub.s32 %v3114, %v3116
    %v3118 = vrot.slane %v3096, %v3117
    %v3120 = vunpack.c.l.s4 1966171168
    %v3121 = vunpack.c.0.s8 %v3120
    %v3122 = vlaneseq
    %v3123 = vshrl.u32 %v3122, 7
    %v3124 = vsub.s32 %v3121, %v3123
    %v3125 = vrot.slane %v3097, %v3124
    %v3126 = vcombine.low %v3104, %v3111
    %v3127 = vcombine.low %v3118, %v3125
    %v3129 = vunpack.c.l.s4 1966171168
    %v3130 = vunpack.c.0.s8 %v3129
    %v3131 = vlaneseq
    %v3132 = vshrl.u32 %v3131, 7
    %v3133 = vsub.s32 %v3130, %v3132
    %v3134 = vrot.slane %v3126, %v3133
    %v3136 = vunpack.c.l.s4 1966171168
    %v3137 = vunpack.c.0.s8 %v3136
    %v3138 = vlaneseq
    %v3139 = vshrl.u32 %v3138, 7
    %v3140 = vsub.s32 %v3137, %v3139
    %v3141 = vrot.slane %v3127, %v3140
    %v3142 = vcombine.low %v3134, %v3141
    %v3143 = vcombine.low %v2968, %v2969
    %v3145 = vunpack.c.l.s4 1966171168
    %v3146 = vunpack.c.0.s8 %v3145
    %v3147 = vlaneseq
    %v3148 = vshrl.u32 %v3147, 7
    %v3149 = vsub.s32 %v3146, %v3148
    %v3150 = vrot.slane %v3143, %v3149
    %v3152 = vunpack.c.l.s4 1966171168
    %v3153 = vunpack.c.0.s8 %v3152
    %v3154 = vlaneseq
    %v3155 = vshrl.u32 %v3154, 7
    %v3156 = vsub.s32 %v3153, %v3155
    %v3157 = vrot.slane %v3150, %v3156
    %s3162 = scalar_lea.vmem [#allocation2], 6
    %3163 = vst [vmem:[%s3162] ss:$8 sm:$0xf] %v3044
    %3164 = vst [vmem:[%s3162] ss:$8 sm:$0xf0] %v3044
    %s3165 = scalar_lea.vmem [#allocation2], 70
    %3166 = vst [vmem:[%s3165] ss:$8 sm:$0xf] %v3093
    %3167 = vst [vmem:[%s3165] ss:$8 sm:$0xf0] %v3093
    %s3168 = scalar_lea.vmem [#allocation2], 134
    %3169 = vst [vmem:[%s3168] ss:$8 sm:$0xf] %v3142
    %3170 = vst [vmem:[%s3168] ss:$8 sm:$0xf0] %v3142
    %s3171 = scalar_lea.vmem [#allocation2], 198
    %3172 = vst.msk [vmem:[%s3171] ss:$8 sm:$0x3] %vm873, %v3157
    %3173 = vst.msk [vmem:[%s3171] ss:$8 sm:$0x0] %vm873, %v3157
    %3174 = vrot.lane.b32.xlu0 %v289, 48
    %v3175 = vpop.permute.xlu0 %3174
    %3176 = vrot.lane.b32.xlu0 %v293, 48
    %v3177 = vpop.permute.xlu0 %3176
    %3178 = vrot.lane.b32.xlu0 %v297, 48
    %v3179 = vpop.permute.xlu0 %3178
    %3180 = vrot.lane.b32.xlu0 %v301, 48
    %v3181 = vpop.permute.xlu0 %3180
    %3182 = vrot.lane.b32.xlu0 %v305, 48
    %v3183 = vpop.permute.xlu0 %3182
    %3184 = vrot.lane.b32.xlu0 %v309, 48
    %v3185 = vpop.permute.xlu0 %3184
    %3186 = vrot.lane.b32.xlu0 %v313, 48
    %v3187 = vpop.permute.xlu0 %3186
    %3188 = vrot.lane.b32.xlu0 %v317, 48
    %v3189 = vpop.permute.xlu0 %3188
    %3190 = vrot.lane.b32.xlu0 %v321, 48
    %v3191 = vpop.permute.xlu0 %3190
    %3192 = vrot.lane.b32.xlu0 %v325, 48
    %v3193 = vpop.permute.xlu0 %3192
    %3194 = vrot.lane.b32.xlu0 %v329, 48
    %v3195 = vpop.permute.xlu0 %3194
    %3196 = vrot.lane.b32.xlu0 %v333, 48
    %v3197 = vpop.permute.xlu0 %3196
    %3198 = vrot.lane.b32.xlu0 %v337, 48
    %v3199 = vpop.permute.xlu0 %3198
    %3200 = vrot.lane.b32.xlu0 %v341, 48
    %v3201 = vpop.permute.xlu0 %3200
    %3202 = vrot.lane.b32.xlu0 %v345, 48
    %v3203 = vpop.permute.xlu0 %3202
    %3204 = vrot.lane.b32.xlu0 %v349, 48
    %v3205 = vpop.permute.xlu0 %3204
    %3206 = vrot.lane.b32.xlu0 %v353, 48
    %v3207 = vpop.permute.xlu0 %3206
    %3208 = vrot.lane.b32.xlu0 %v357, 48
    %v3209 = vpop.permute.xlu0 %3208
    %3210 = vrot.lane.b32.xlu0 %v361, 48
    %v3211 = vpop.permute.xlu0 %3210
    %3212 = vrot.lane.b32.xlu0 %v365, 48
    %v3213 = vpop.permute.xlu0 %3212
    %3214 = vrot.lane.b32.xlu0 %v369, 48
    %v3215 = vpop.permute.xlu0 %3214
    %3216 = vrot.lane.b32.xlu0 %v373, 48
    %v3217 = vpop.permute.xlu0 %3216
    %3218 = vrot.lane.b32.xlu0 %v377, 48
    %v3219 = vpop.permute.xlu0 %3218
    %3220 = vrot.lane.b32.xlu0 %v381, 48
    %v3221 = vpop.permute.xlu0 %3220
    %3222 = vrot.lane.b32.xlu0 %v385, 48
    %v3223 = vpop.permute.xlu0 %3222
    %3224 = vrot.lane.b32.xlu0 %v389, 48
    %v3225 = vpop.permute.xlu0 %3224
    %vm3226 = vcmp.lt.s32.totalorder %v469, 48
    %v3227 = vsel %vm3226, %v3223, %v3225
    %v3228 = vsel %vm3226, %v3221, %v3223
    %v3229 = vsel %vm3226, %v3219, %v3221
    %v3230 = vsel %vm3226, %v3217, %v3219
    %v3231 = vsel %vm3226, %v3215, %v3217
    %v3232 = vsel %vm3226, %v3213, %v3215
    %v3233 = vsel %vm3226, %v3211, %v3213
    %v3234 = vsel %vm3226, %v3209, %v3211
    %v3235 = vsel %vm3226, %v3207, %v3209
    %v3236 = vsel %vm3226, %v3205, %v3207
    %v3237 = vsel %vm3226, %v3203, %v3205
    %v3238 = vsel %vm3226, %v3201, %v3203
    %v3239 = vsel %vm3226, %v3199, %v3201
    %v3240 = vsel %vm3226, %v3197, %v3199
    %v3241 = vsel %vm3226, %v3195, %v3197
    %v3242 = vsel %vm3226, %v3193, %v3195
    %v3243 = vsel %vm3226, %v3191, %v3193
    %v3244 = vsel %vm3226, %v3189, %v3191
    %v3245 = vsel %vm3226, %v3187, %v3189
    %v3246 = vsel %vm3226, %v3185, %v3187
    %v3247 = vsel %vm3226, %v3183, %v3185
    %v3248 = vsel %vm3226, %v3181, %v3183
    %v3249 = vsel %vm3226, %v3179, %v3181
    %v3250 = vsel %vm3226, %v3177, %v3179
    %v3251 = vsel %vm3226, %v3175, %v3177
    %v3252 = vsel %vm3226, %v3225, %v3175
    %s3253 = scalar_lea.vmem %s1, 7
    %v3254 = vld [vmem:[%s3253] ss:$8 sm:$0xf]
    %v3255 = vld [vmem:[%s3253] ss:$8 sm:$0xf0]
    %v3256 = vor.u32 %v3254, %v3255
    %s3257 = scalar_lea.vmem %s1, 71
    %v3258 = vld [vmem:[%s3257] ss:$8 sm:$0xf]
    %v3259 = vld [vmem:[%s3257] ss:$8 sm:$0xf0]
    %v3260 = vor.u32 %v3258, %v3259
    %s3261 = scalar_lea.vmem %s1, 135
    %v3262 = vld [vmem:[%s3261] ss:$8 sm:$0xf]
    %v3263 = vld [vmem:[%s3261] ss:$8 sm:$0xf0]
    %v3264 = vor.u32 %v3262, %v3263
    %s3265 = scalar_lea.vmem %s1, 199
    %v3266 = vld [vmem:[%s3265] ss:$8 sm:$0x3]
    %v3271 = vlaneseq
    %v3272 = vshrl.u32 %v3271, 7
    %v3273 = vsub.s32 0, %v3272
    %v3274 = vrot.slane %v3256, %v3273
    %v3275 = vlaneseq
    %v3276 = vshrl.u32 %v3275, 7
    %v3277 = vsub.s32 1, %v3276
    %v3278 = vrot.slane %v3256, %v3277
    %v3279 = vlaneseq
    %v3280 = vshrl.u32 %v3279, 7
    %v3281 = vsub.s32 2, %v3280
    %v3282 = vrot.slane %v3256, %v3281
    %v3283 = vlaneseq
    %v3284 = vshrl.u32 %v3283, 7
    %v3285 = vsub.s32 3, %v3284
    %v3286 = vrot.slane %v3256, %v3285
    %v3287 = vlaneseq
    %v3288 = vshrl.u32 %v3287, 7
    %v3289 = vsub.s32 4, %v3288
    %v3290 = vrot.slane %v3256, %v3289
    %v3291 = vlaneseq
    %v3292 = vshrl.u32 %v3291, 7
    %v3293 = vsub.s32 5, %v3292
    %v3294 = vrot.slane %v3256, %v3293
    %v3295 = vlaneseq
    %v3296 = vshrl.u32 %v3295, 7
    %v3297 = vsub.s32 6, %v3296
    %v3298 = vrot.slane %v3256, %v3297
    %v3299 = vlaneseq
    %v3300 = vshrl.u32 %v3299, 7
    %v3301 = vsub.s32 7, %v3300
    %v3302 = vrot.slane %v3256, %v3301
    %v3303 = vlaneseq
    %v3304 = vshrl.u32 %v3303, 7
    %v3305 = vsub.s32 0, %v3304
    %v3306 = vrot.slane %v3260, %v3305
    %v3307 = vlaneseq
    %v3308 = vshrl.u32 %v3307, 7
    %v3309 = vsub.s32 1, %v3308
    %v3310 = vrot.slane %v3260, %v3309
    %v3311 = vlaneseq
    %v3312 = vshrl.u32 %v3311, 7
    %v3313 = vsub.s32 2, %v3312
    %v3314 = vrot.slane %v3260, %v3313
    %v3315 = vlaneseq
    %v3316 = vshrl.u32 %v3315, 7
    %v3317 = vsub.s32 3, %v3316
    %v3318 = vrot.slane %v3260, %v3317
    %v3319 = vlaneseq
    %v3320 = vshrl.u32 %v3319, 7
    %v3321 = vsub.s32 4, %v3320
    %v3322 = vrot.slane %v3260, %v3321
    %v3323 = vlaneseq
    %v3324 = vshrl.u32 %v3323, 7
    %v3325 = vsub.s32 5, %v3324
    %v3326 = vrot.slane %v3260, %v3325
    %v3327 = vlaneseq
    %v3328 = vshrl.u32 %v3327, 7
    %v3329 = vsub.s32 6, %v3328
    %v3330 = vrot.slane %v3260, %v3329
    %v3331 = vlaneseq
    %v3332 = vshrl.u32 %v3331, 7
    %v3333 = vsub.s32 7, %v3332
    %v3334 = vrot.slane %v3260, %v3333
    %v3335 = vlaneseq
    %v3336 = vshrl.u32 %v3335, 7
    %v3337 = vsub.s32 0, %v3336
    %v3338 = vrot.slane %v3264, %v3337
    %v3339 = vlaneseq
    %v3340 = vshrl.u32 %v3339, 7
    %v3341 = vsub.s32 1, %v3340
    %v3342 = vrot.slane %v3264, %v3341
    %v3343 = vlaneseq
    %v3344 = vshrl.u32 %v3343, 7
    %v3345 = vsub.s32 2, %v3344
    %v3346 = vrot.slane %v3264, %v3345
    %v3347 = vlaneseq
    %v3348 = vshrl.u32 %v3347, 7
    %v3349 = vsub.s32 3, %v3348
    %v3350 = vrot.slane %v3264, %v3349
    %v3351 = vlaneseq
    %v3352 = vshrl.u32 %v3351, 7
    %v3353 = vsub.s32 4, %v3352
    %v3354 = vrot.slane %v3264, %v3353
    %v3355 = vlaneseq
    %v3356 = vshrl.u32 %v3355, 7
    %v3357 = vsub.s32 5, %v3356
    %v3358 = vrot.slane %v3264, %v3357
    %v3359 = vlaneseq
    %v3360 = vshrl.u32 %v3359, 7
    %v3361 = vsub.s32 6, %v3360
    %v3362 = vrot.slane %v3264, %v3361
    %v3363 = vlaneseq
    %v3364 = vshrl.u32 %v3363, 7
    %v3365 = vsub.s32 7, %v3364
    %v3366 = vrot.slane %v3264, %v3365
    %v3367 = vlaneseq
    %v3368 = vshrl.u32 %v3367, 7
    %v3369 = vsub.s32 0, %v3368
    %v3370 = vrot.slane %v3266, %v3369
    %v3371 = vlaneseq
    %v3372 = vshrl.u32 %v3371, 7
    %v3373 = vsub.s32 1, %v3372
    %v3374 = vrot.slane %v3266, %v3373
    %v3401 = vmul.f32 %v3250, %v3274
    %v3402 = vmul.f32 %v3249, %v3278
    %v3403 = vmul.f32 %v3248, %v3282
    %v3404 = vmul.f32 %v3247, %v3286
    %v3405 = vmul.f32 %v3246, %v3290
    %v3406 = vmul.f32 %v3245, %v3294
    %v3407 = vmul.f32 %v3244, %v3298
    %v3408 = vmul.f32 %v3243, %v3302
    %v3409 = vmul.f32 %v3242, %v3306
    %v3410 = vmul.f32 %v3241, %v3310
    %v3411 = vmul.f32 %v3240, %v3314
    %v3412 = vmul.f32 %v3239, %v3318
    %v3413 = vmul.f32 %v3238, %v3322
    %v3414 = vmul.f32 %v3237, %v3326
    %v3415 = vmul.f32 %v3236, %v3330
    %v3416 = vmul.f32 %v3235, %v3334
    %v3417 = vmul.f32 %v3234, %v3338
    %v3418 = vmul.f32 %v3233, %v3342
    %v3419 = vmul.f32 %v3232, %v3346
    %v3420 = vmul.f32 %v3231, %v3350
    %v3421 = vmul.f32 %v3230, %v3354
    %v3422 = vmul.f32 %v3229, %v3358
    %v3423 = vmul.f32 %v3228, %v3362
    %v3424 = vmul.f32 %v3227, %v3366
    %v3425 = vmul.f32 %v3252, %v3370
    %v3426 = vmul.f32 %v3251, %v3374
    %v3453 = vcombine.low %v3401, %v3402
    %v3454 = vcombine.low %v3403, %v3404
    %v3455 = vcombine.low %v3405, %v3406
    %v3456 = vcombine.low %v3407, %v3408
    %v3458 = vunpack.c.l.s4 1966171168
    %v3459 = vunpack.c.0.s8 %v3458
    %v3460 = vlaneseq
    %v3461 = vshrl.u32 %v3460, 7
    %v3462 = vsub.s32 %v3459, %v3461
    %v3463 = vrot.slane %v3453, %v3462
    %v3465 = vunpack.c.l.s4 1966171168
    %v3466 = vunpack.c.0.s8 %v3465
    %v3467 = vlaneseq
    %v3468 = vshrl.u32 %v3467, 7
    %v3469 = vsub.s32 %v3466, %v3468
    %v3470 = vrot.slane %v3454, %v3469
    %v3472 = vunpack.c.l.s4 1966171168
    %v3473 = vunpack.c.0.s8 %v3472
    %v3474 = vlaneseq
    %v3475 = vshrl.u32 %v3474, 7
    %v3476 = vsub.s32 %v3473, %v3475
    %v3477 = vrot.slane %v3455, %v3476
    %v3479 = vunpack.c.l.s4 1966171168
    %v3480 = vunpack.c.0.s8 %v3479
    %v3481 = vlaneseq
    %v3482 = vshrl.u32 %v3481, 7
    %v3483 = vsub.s32 %v3480, %v3482
    %v3484 = vrot.slane %v3456, %v3483
    %v3485 = vcombine.low %v3463, %v3470
    %v3486 = vcombine.low %v3477, %v3484
    %v3488 = vunpack.c.l.s4 1966171168
    %v3489 = vunpack.c.0.s8 %v3488
    %v3490 = vlaneseq
    %v3491 = vshrl.u32 %v3490, 7
    %v3492 = vsub.s32 %v3489, %v3491
    %v3493 = vrot.slane %v3485, %v3492
    %v3495 = vunpack.c.l.s4 1966171168
    %v3496 = vunpack.c.0.s8 %v3495
    %v3497 = vlaneseq
    %v3498 = vshrl.u32 %v3497, 7
    %v3499 = vsub.s32 %v3496, %v3498
    %v3500 = vrot.slane %v3486, %v3499
    %v3501 = vcombine.low %v3493, %v3500
    %v3502 = vcombine.low %v3409, %v3410
    %v3503 = vcombine.low %v3411, %v3412
    %v3504 = vcombine.low %v3413, %v3414
    %v3505 = vcombine.low %v3415, %v3416
    %v3507 = vunpack.c.l.s4 1966171168
    %v3508 = vunpack.c.0.s8 %v3507
    %v3509 = vlaneseq
    %v3510 = vshrl.u32 %v3509, 7
    %v3511 = vsub.s32 %v3508, %v3510
    %v3512 = vrot.slane %v3502, %v3511
    %v3514 = vunpack.c.l.s4 1966171168
    %v3515 = vunpack.c.0.s8 %v3514
    %v3516 = vlaneseq
    %v3517 = vshrl.u32 %v3516, 7
    %v3518 = vsub.s32 %v3515, %v3517
    %v3519 = vrot.slane %v3503, %v3518
    %v3521 = vunpack.c.l.s4 1966171168
    %v3522 = vunpack.c.0.s8 %v3521
    %v3523 = vlaneseq
    %v3524 = vshrl.u32 %v3523, 7
    %v3525 = vsub.s32 %v3522, %v3524
    %v3526 = vrot.slane %v3504, %v3525
    %v3528 = vunpack.c.l.s4 1966171168
    %v3529 = vunpack.c.0.s8 %v3528
    %v3530 = vlaneseq
    %v3531 = vshrl.u32 %v3530, 7
    %v3532 = vsub.s32 %v3529, %v3531
    %v3533 = vrot.slane %v3505, %v3532
    %v3534 = vcombine.low %v3512, %v3519
    %v3535 = vcombine.low %v3526, %v3533
    %v3537 = vunpack.c.l.s4 1966171168
    %v3538 = vunpack.c.0.s8 %v3537
    %v3539 = vlaneseq
    %v3540 = vshrl.u32 %v3539, 7
    %v3541 = vsub.s32 %v3538, %v3540
    %v3542 = vrot.slane %v3534, %v3541
    %v3544 = vunpack.c.l.s4 1966171168
    %v3545 = vunpack.c.0.s8 %v3544
    %v3546 = vlaneseq
    %v3547 = vshrl.u32 %v3546, 7
    %v3548 = vsub.s32 %v3545, %v3547
    %v3549 = vrot.slane %v3535, %v3548
    %v3550 = vcombine.low %v3542, %v3549
    %v3551 = vcombine.low %v3417, %v3418
    %v3552 = vcombine.low %v3419, %v3420
    %v3553 = vcombine.low %v3421, %v3422
    %v3554 = vcombine.low %v3423, %v3424
    %v3556 = vunpack.c.l.s4 1966171168
    %v3557 = vunpack.c.0.s8 %v3556
    %v3558 = vlaneseq
    %v3559 = vshrl.u32 %v3558, 7
    %v3560 = vsub.s32 %v3557, %v3559
    %v3561 = vrot.slane %v3551, %v3560
    %v3563 = vunpack.c.l.s4 1966171168
    %v3564 = vunpack.c.0.s8 %v3563
    %v3565 = vlaneseq
    %v3566 = vshrl.u32 %v3565, 7
    %v3567 = vsub.s32 %v3564, %v3566
    %v3568 = vrot.slane %v3552, %v3567
    %v3570 = vunpack.c.l.s4 1966171168
    %v3571 = vunpack.c.0.s8 %v3570
    %v3572 = vlaneseq
    %v3573 = vshrl.u32 %v3572, 7
    %v3574 = vsub.s32 %v3571, %v3573
    %v3575 = vrot.slane %v3553, %v3574
    %v3577 = vunpack.c.l.s4 1966171168
    %v3578 = vunpack.c.0.s8 %v3577
    %v3579 = vlaneseq
    %v3580 = vshrl.u32 %v3579, 7
    %v3581 = vsub.s32 %v3578, %v3580
    %v3582 = vrot.slane %v3554, %v3581
    %v3583 = vcombine.low %v3561, %v3568
    %v3584 = vcombine.low %v3575, %v3582
    %v3586 = vunpack.c.l.s4 1966171168
    %v3587 = vunpack.c.0.s8 %v3586
    %v3588 = vlaneseq
    %v3589 = vshrl.u32 %v3588, 7
    %v3590 = vsub.s32 %v3587, %v3589
    %v3591 = vrot.slane %v3583, %v3590
    %v3593 = vunpack.c.l.s4 1966171168
    %v3594 = vunpack.c.0.s8 %v3593
    %v3595 = vlaneseq
    %v3596 = vshrl.u32 %v3595, 7
    %v3597 = vsub.s32 %v3594, %v3596
    %v3598 = vrot.slane %v3584, %v3597
    %v3599 = vcombine.low %v3591, %v3598
    %v3600 = vcombine.low %v3425, %v3426
    %v3602 = vunpack.c.l.s4 1966171168
    %v3603 = vunpack.c.0.s8 %v3602
    %v3604 = vlaneseq
    %v3605 = vshrl.u32 %v3604, 7
    %v3606 = vsub.s32 %v3603, %v3605
    %v3607 = vrot.slane %v3600, %v3606
    %v3609 = vunpack.c.l.s4 1966171168
    %v3610 = vunpack.c.0.s8 %v3609
    %v3611 = vlaneseq
    %v3612 = vshrl.u32 %v3611, 7
    %v3613 = vsub.s32 %v3610, %v3612
    %v3614 = vrot.slane %v3607, %v3613
    %s3619 = scalar_lea.vmem [#allocation2], 7
    %3620 = vst [vmem:[%s3619] ss:$8 sm:$0xf] %v3501
    %3621 = vst [vmem:[%s3619] ss:$8 sm:$0xf0] %v3501
    %s3622 = scalar_lea.vmem [#allocation2], 71
    %3623 = vst [vmem:[%s3622] ss:$8 sm:$0xf] %v3550
    %3624 = vst [vmem:[%s3622] ss:$8 sm:$0xf0] %v3550
    %s3625 = scalar_lea.vmem [#allocation2], 135
    %3626 = vst [vmem:[%s3625] ss:$8 sm:$0xf] %v3599
    %3627 = vst [vmem:[%s3625] ss:$8 sm:$0xf0] %v3599
    %s3628 = scalar_lea.vmem [#allocation2], 199
    %3629 = vst.msk [vmem:[%s3628] ss:$8 sm:$0x3] %vm873, %v3614
    %3630 = vst.msk [vmem:[%s3628] ss:$8 sm:$0x0] %vm873, %v3614
    %3631 = vrot.lane.b32.xlu0 %v289, 47
    %v3632 = vpop.permute.xlu0 %3631
    %3633 = vrot.lane.b32.xlu0 %v293, 47
    %v3634 = vpop.permute.xlu0 %3633
    %3635 = vrot.lane.b32.xlu0 %v297, 47
    %v3636 = vpop.permute.xlu0 %3635
    %3637 = vrot.lane.b32.xlu0 %v301, 47
    %v3638 = vpop.permute.xlu0 %3637
    %3639 = vrot.lane.b32.xlu0 %v305, 47
    %v3640 = vpop.permute.xlu0 %3639
    %3641 = vrot.lane.b32.xlu0 %v309, 47
    %v3642 = vpop.permute.xlu0 %3641
    %3643 = vrot.lane.b32.xlu0 %v313, 47
    %v3644 = vpop.permute.xlu0 %3643
    %3645 = vrot.lane.b32.xlu0 %v317, 47
    %v3646 = vpop.permute.xlu0 %3645
    %3647 = vrot.lane.b32.xlu0 %v321, 47
    %v3648 = vpop.permute.xlu0 %3647
    %3649 = vrot.lane.b32.xlu0 %v325, 47
    %v3650 = vpop.permute.xlu0 %3649
    %3651 = vrot.lane.b32.xlu0 %v329, 47
    %v3652 = vpop.permute.xlu0 %3651
    %3653 = vrot.lane.b32.xlu0 %v333, 47
    %v3654 = vpop.permute.xlu0 %3653
    %3655 = vrot.lane.b32.xlu0 %v337, 47
    %v3656 = vpop.permute.xlu0 %3655
    %3657 = vrot.lane.b32.xlu0 %v341, 47
    %v3658 = vpop.permute.xlu0 %3657
    %3659 = vrot.lane.b32.xlu0 %v345, 47
    %v3660 = vpop.permute.xlu0 %3659
    %3661 = vrot.lane.b32.xlu0 %v349, 47
    %v3662 = vpop.permute.xlu0 %3661
    %3663 = vrot.lane.b32.xlu0 %v353, 47
    %v3664 = vpop.permute.xlu0 %3663
    %3665 = vrot.lane.b32.xlu0 %v357, 47
    %v3666 = vpop.permute.xlu0 %3665
    %3667 = vrot.lane.b32.xlu0 %v361, 47
    %v3668 = vpop.permute.xlu0 %3667
    %3669 = vrot.lane.b32.xlu0 %v365, 47
    %v3670 = vpop.permute.xlu0 %3669
    %3671 = vrot.lane.b32.xlu0 %v369, 47
    %v3672 = vpop.permute.xlu0 %3671
    %3673 = vrot.lane.b32.xlu0 %v373, 47
    %v3674 = vpop.permute.xlu0 %3673
    %3675 = vrot.lane.b32.xlu0 %v377, 47
    %v3676 = vpop.permute.xlu0 %3675
    %3677 = vrot.lane.b32.xlu0 %v381, 47
    %v3678 = vpop.permute.xlu0 %3677
    %3679 = vrot.lane.b32.xlu0 %v385, 47
    %v3680 = vpop.permute.xlu0 %3679
    %3681 = vrot.lane.b32.xlu0 %v389, 47
    %v3682 = vpop.permute.xlu0 %3681
    %vm3683 = vcmp.lt.s32.totalorder %v469, 47
    %v3684 = vsel %vm3683, %v3680, %v3682
    %v3685 = vsel %vm3683, %v3678, %v3680
    %v3686 = vsel %vm3683, %v3676, %v3678
    %v3687 = vsel %vm3683, %v3674, %v3676
    %v3688 = vsel %vm3683, %v3672, %v3674
    %v3689 = vsel %vm3683, %v3670, %v3672
    %v3690 = vsel %vm3683, %v3668, %v3670
    %v3691 = vsel %vm3683, %v3666, %v3668
    %v3692 = vsel %vm3683, %v3664, %v3666
    %v3693 = vsel %vm3683, %v3662, %v3664
    %v3694 = vsel %vm3683, %v3660, %v3662
    %v3695 = vsel %vm3683, %v3658, %v3660
    %v3696 = vsel %vm3683, %v3656, %v3658
    %v3697 = vsel %vm3683, %v3654, %v3656
    %v3698 = vsel %vm3683, %v3652, %v3654
    %v3699 = vsel %vm3683, %v3650, %v3652
    %v3700 = vsel %vm3683, %v3648, %v3650
    %v3701 = vsel %vm3683, %v3646, %v3648
    %v3702 = vsel %vm3683, %v3644, %v3646
    %v3703 = vsel %vm3683, %v3642, %v3644
    %v3704 = vsel %vm3683, %v3640, %v3642
    %v3705 = vsel %vm3683, %v3638, %v3640
    %v3706 = vsel %vm3683, %v3636, %v3638
    %v3707 = vsel %vm3683, %v3634, %v3636
    %v3708 = vsel %vm3683, %v3632, %v3634
    %v3709 = vsel %vm3683, %v3682, %v3632
    %s3710 = scalar_lea.vmem %s1, 208
    %v3711 = vld [vmem:[%s3710] ss:$8 sm:$0xf]
    %v3712 = vld [vmem:[%s3710] ss:$8 sm:$0xf0]
    %v3713 = vor.u32 %v3711, %v3712
    %s3714 = scalar_lea.vmem %s1, 272
    %v3715 = vld [vmem:[%s3714] ss:$8 sm:$0xf]
    %v3716 = vld [vmem:[%s3714] ss:$8 sm:$0xf0]
    %v3717 = vor.u32 %v3715, %v3716
    %s3718 = scalar_lea.vmem %s1, 336
    %v3719 = vld [vmem:[%s3718] ss:$8 sm:$0xf]
    %v3720 = vld [vmem:[%s3718] ss:$8 sm:$0xf0]
    %v3721 = vor.u32 %v3719, %v3720
    %s3722 = scalar_lea.vmem %s1, 400
    %v3723 = vld [vmem:[%s3722] ss:$8 sm:$0x3]
    %v3728 = vlaneseq
    %v3729 = vshrl.u32 %v3728, 7
    %v3730 = vsub.s32 0, %v3729
    %v3731 = vrot.slane %v3713, %v3730
    %v3732 = vlaneseq
    %v3733 = vshrl.u32 %v3732, 7
    %v3734 = vsub.s32 1, %v3733
    %v3735 = vrot.slane %v3713, %v3734
    %v3736 = vlaneseq
    %v3737 = vshrl.u32 %v3736, 7
    %v3738 = vsub.s32 2, %v3737
    %v3739 = vrot.slane %v3713, %v3738
    %v3740 = vlaneseq
    %v3741 = vshrl.u32 %v3740, 7
    %v3742 = vsub.s32 3, %v3741
    %v3743 = vrot.slane %v3713, %v3742
    %v3744 = vlaneseq
    %v3745 = vshrl.u32 %v3744, 7
    %v3746 = vsub.s32 4, %v3745
    %v3747 = vrot.slane %v3713, %v3746
    %v3748 = vlaneseq
    %v3749 = vshrl.u32 %v3748, 7
    %v3750 = vsub.s32 5, %v3749
    %v3751 = vrot.slane %v3713, %v3750
    %v3752 = vlaneseq
    %v3753 = vshrl.u32 %v3752, 7
    %v3754 = vsub.s32 6, %v3753
    %v3755 = vrot.slane %v3713, %v3754
    %v3756 = vlaneseq
    %v3757 = vshrl.u32 %v3756, 7
    %v3758 = vsub.s32 7, %v3757
    %v3759 = vrot.slane %v3713, %v3758
    %v3760 = vlaneseq
    %v3761 = vshrl.u32 %v3760, 7
    %v3762 = vsub.s32 0, %v3761
    %v3763 = vrot.slane %v3717, %v3762
    %v3764 = vlaneseq
    %v3765 = vshrl.u32 %v3764, 7
    %v3766 = vsub.s32 1, %v3765
    %v3767 = vrot.slane %v3717, %v3766
    %v3768 = vlaneseq
    %v3769 = vshrl.u32 %v3768, 7
    %v3770 = vsub.s32 2, %v3769
    %v3771 = vrot.slane %v3717, %v3770
    %v3772 = vlaneseq
    %v3773 = vshrl.u32 %v3772, 7
    %v3774 = vsub.s32 3, %v3773
    %v3775 = vrot.slane %v3717, %v3774
    %v3776 = vlaneseq
    %v3777 = vshrl.u32 %v3776, 7
    %v3778 = vsub.s32 4, %v3777
    %v3779 = vrot.slane %v3717, %v3778
    %v3780 = vlaneseq
    %v3781 = vshrl.u32 %v3780, 7
    %v3782 = vsub.s32 5, %v3781
    %v3783 = vrot.slane %v3717, %v3782
    %v3784 = vlaneseq
    %v3785 = vshrl.u32 %v3784, 7
    %v3786 = vsub.s32 6, %v3785
    %v3787 = vrot.slane %v3717, %v3786
    %v3788 = vlaneseq
    %v3789 = vshrl.u32 %v3788, 7
    %v3790 = vsub.s32 7, %v3789
    %v3791 = vrot.slane %v3717, %v3790
    %v3792 = vlaneseq
    %v3793 = vshrl.u32 %v3792, 7
    %v3794 = vsub.s32 0, %v3793
    %v3795 = vrot.slane %v3721, %v3794
    %v3796 = vlaneseq
    %v3797 = vshrl.u32 %v3796, 7
    %v3798 = vsub.s32 1, %v3797
    %v3799 = vrot.slane %v3721, %v3798
    %v3800 = vlaneseq
    %v3801 = vshrl.u32 %v3800, 7
    %v3802 = vsub.s32 2, %v3801
    %v3803 = vrot.slane %v3721, %v3802
    %v3804 = vlaneseq
    %v3805 = vshrl.u32 %v3804, 7
    %v3806 = vsub.s32 3, %v3805
    %v3807 = vrot.slane %v3721, %v3806
    %v3808 = vlaneseq
    %v3809 = vshrl.u32 %v3808, 7
    %v3810 = vsub.s32 4, %v3809
    %v3811 = vrot.slane %v3721, %v3810
    %v3812 = vlaneseq
    %v3813 = vshrl.u32 %v3812, 7
    %v3814 = vsub.s32 5, %v3813
    %v3815 = vrot.slane %v3721, %v3814
    %v3816 = vlaneseq
    %v3817 = vshrl.u32 %v3816, 7
    %v3818 = vsub.s32 6, %v3817
    %v3819 = vrot.slane %v3721, %v3818
    %v3820 = vlaneseq
    %v3821 = vshrl.u32 %v3820, 7
    %v3822 = vsub.s32 7, %v3821
    %v3823 = vrot.slane %v3721, %v3822
    %v3824 = vlaneseq
    %v3825 = vshrl.u32 %v3824, 7
    %v3826 = vsub.s32 0, %v3825
    %v3827 = vrot.slane %v3723, %v3826
    %v3828 = vlaneseq
    %v3829 = vshrl.u32 %v3828, 7
    %v3830 = vsub.s32 1, %v3829
    %v3831 = vrot.slane %v3723, %v3830
    %v3858 = vmul.f32 %v3707, %v3731
    %v3859 = vmul.f32 %v3706, %v3735
    %v3860 = vmul.f32 %v3705, %v3739
    %v3861 = vmul.f32 %v3704, %v3743
    %v3862 = vmul.f32 %v3703, %v3747
    %v3863 = vmul.f32 %v3702, %v3751
    %v3864 = vmul.f32 %v3701, %v3755
    %v3865 = vmul.f32 %v3700, %v3759
    %v3866 = vmul.f32 %v3699, %v3763
    %v3867 = vmul.f32 %v3698, %v3767
    %v3868 = vmul.f32 %v3697, %v3771
    %v3869 = vmul.f32 %v3696, %v3775
    %v3870 = vmul.f32 %v3695, %v3779
    %v3871 = vmul.f32 %v3694, %v3783
    %v3872 = vmul.f32 %v3693, %v3787
    %v3873 = vmul.f32 %v3692, %v3791
    %v3874 = vmul.f32 %v3691, %v3795
    %v3875 = vmul.f32 %v3690, %v3799
    %v3876 = vmul.f32 %v3689, %v3803
    %v3877 = vmul.f32 %v3688, %v3807
    %v3878 = vmul.f32 %v3687, %v3811
    %v3879 = vmul.f32 %v3686, %v3815
    %v3880 = vmul.f32 %v3685, %v3819
    %v3881 = vmul.f32 %v3684, %v3823
    %v3882 = vmul.f32 %v3709, %v3827
    %v3883 = vmul.f32 %v3708, %v3831
    %v3910 = vcombine.low %v3858, %v3859
    %v3911 = vcombine.low %v3860, %v3861
    %v3912 = vcombine.low %v3862, %v3863
    %v3913 = vcombine.low %v3864, %v3865
    %v3915 = vunpack.c.l.s4 1966171168
    %v3916 = vunpack.c.0.s8 %v3915
    %v3917 = vlaneseq
    %v3918 = vshrl.u32 %v3917, 7
    %v3919 = vsub.s32 %v3916, %v3918
    %v3920 = vrot.slane %v3910, %v3919
    %v3922 = vunpack.c.l.s4 1966171168
    %v3923 = vunpack.c.0.s8 %v3922
    %v3924 = vlaneseq
    %v3925 = vshrl.u32 %v3924, 7
    %v3926 = vsub.s32 %v3923, %v3925
    %v3927 = vrot.slane %v3911, %v3926
    %v3929 = vunpack.c.l.s4 1966171168
    %v3930 = vunpack.c.0.s8 %v3929
    %v3931 = vlaneseq
    %v3932 = vshrl.u32 %v3931, 7
    %v3933 = vsub.s32 %v3930, %v3932
    %v3934 = vrot.slane %v3912, %v3933
    %v3936 = vunpack.c.l.s4 1966171168
    %v3937 = vunpack.c.0.s8 %v3936
    %v3938 = vlaneseq
    %v3939 = vshrl.u32 %v3938, 7
    %v3940 = vsub.s32 %v3937, %v3939
    %v3941 = vrot.slane %v3913, %v3940
    %v3942 = vcombine.low %v3920, %v3927
    %v3943 = vcombine.low %v3934, %v3941
    %v3945 = vunpack.c.l.s4 1966171168
    %v3946 = vunpack.c.0.s8 %v3945
    %v3947 = vlaneseq
    %v3948 = vshrl.u32 %v3947, 7
    %v3949 = vsub.s32 %v3946, %v3948
    %v3950 = vrot.slane %v3942, %v3949
    %v3952 = vunpack.c.l.s4 1966171168
    %v3953 = vunpack.c.0.s8 %v3952
    %v3954 = vlaneseq
    %v3955 = vshrl.u32 %v3954, 7
    %v3956 = vsub.s32 %v3953, %v3955
    %v3957 = vrot.slane %v3943, %v3956
    %v3958 = vcombine.low %v3950, %v3957
    %v3959 = vcombine.low %v3866, %v3867
    %v3960 = vcombine.low %v3868, %v3869
    %v3961 = vcombine.low %v3870, %v3871
    %v3962 = vcombine.low %v3872, %v3873
    %v3964 = vunpack.c.l.s4 1966171168
    %v3965 = vunpack.c.0.s8 %v3964
    %v3966 = vlaneseq
    %v3967 = vshrl.u32 %v3966, 7
    %v3968 = vsub.s32 %v3965, %v3967
    %v3969 = vrot.slane %v3959, %v3968
    %v3971 = vunpack.c.l.s4 1966171168
    %v3972 = vunpack.c.0.s8 %v3971
    %v3973 = vlaneseq
    %v3974 = vshrl.u32 %v3973, 7
    %v3975 = vsub.s32 %v3972, %v3974
    %v3976 = vrot.slane %v3960, %v3975
    %v3978 = vunpack.c.l.s4 1966171168
    %v3979 = vunpack.c.0.s8 %v3978
    %v3980 = vlaneseq
    %v3981 = vshrl.u32 %v3980, 7
    %v3982 = vsub.s32 %v3979, %v3981
    %v3983 = vrot.slane %v3961, %v3982
    %v3985 = vunpack.c.l.s4 1966171168
    %v3986 = vunpack.c.0.s8 %v3985
    %v3987 = vlaneseq
    %v3988 = vshrl.u32 %v3987, 7
    %v3989 = vsub.s32 %v3986, %v3988
    %v3990 = vrot.slane %v3962, %v3989
    %v3991 = vcombine.low %v3969, %v3976
    %v3992 = vcombine.low %v3983, %v3990
    %v3994 = vunpack.c.l.s4 1966171168
    %v3995 = vunpack.c.0.s8 %v3994
    %v3996 = vlaneseq
    %v3997 = vshrl.u32 %v3996, 7
    %v3998 = vsub.s32 %v3995, %v3997
    %v3999 = vrot.slane %v3991, %v3998
    %v4001 = vunpack.c.l.s4 1966171168
    %v4002 = vunpack.c.0.s8 %v4001
    %v4003 = vlaneseq
    %v4004 = vshrl.u32 %v4003, 7
    %v4005 = vsub.s32 %v4002, %v4004
    %v4006 = vrot.slane %v3992, %v4005
    %v4007 = vcombine.low %v3999, %v4006
    %v4008 = vcombine.low %v3874, %v3875
    %v4009 = vcombine.low %v3876, %v3877
    %v4010 = vcombine.low %v3878, %v3879
    %v4011 = vcombine.low %v3880, %v3881
    %v4013 = vunpack.c.l.s4 1966171168
    %v4014 = vunpack.c.0.s8 %v4013
    %v4015 = vlaneseq
    %v4016 = vshrl.u32 %v4015, 7
    %v4017 = vsub.s32 %v4014, %v4016
    %v4018 = vrot.slane %v4008, %v4017
    %v4020 = vunpack.c.l.s4 1966171168
    %v4021 = vunpack.c.0.s8 %v4020
    %v4022 = vlaneseq
    %v4023 = vshrl.u32 %v4022, 7
    %v4024 = vsub.s32 %v4021, %v4023
    %v4025 = vrot.slane %v4009, %v4024
    %v4027 = vunpack.c.l.s4 1966171168
    %v4028 = vunpack.c.0.s8 %v4027
    %v4029 = vlaneseq
    %v4030 = vshrl.u32 %v4029, 7
    %v4031 = vsub.s32 %v4028, %v4030
    %v4032 = vrot.slane %v4010, %v4031
    %v4034 = vunpack.c.l.s4 1966171168
    %v4035 = vunpack.c.0.s8 %v4034
    %v4036 = vlaneseq
    %v4037 = vshrl.u32 %v4036, 7
    %v4038 = vsub.s32 %v4035, %v4037
    %v4039 = vrot.slane %v4011, %v4038
    %v4040 = vcombine.low %v4018, %v4025
    %v4041 = vcombine.low %v4032, %v4039
    %v4043 = vunpack.c.l.s4 1966171168
    %v4044 = vunpack.c.0.s8 %v4043
    %v4045 = vlaneseq
    %v4046 = vshrl.u32 %v4045, 7
    %v4047 = vsub.s32 %v4044, %v4046
    %v4048 = vrot.slane %v4040, %v4047
    %v4050 = vunpack.c.l.s4 1966171168
    %v4051 = vunpack.c.0.s8 %v4050
    %v4052 = vlaneseq
    %v4053 = vshrl.u32 %v4052, 7
    %v4054 = vsub.s32 %v4051, %v4053
    %v4055 = vrot.slane %v4041, %v4054
    %v4056 = vcombine.low %v4048, %v4055
    %v4057 = vcombine.low %v3882, %v3883
    %v4059 = vunpack.c.l.s4 1966171168
    %v4060 = vunpack.c.0.s8 %v4059
    %v4061 = vlaneseq
    %v4062 = vshrl.u32 %v4061, 7
    %v4063 = vsub.s32 %v4060, %v4062
    %v4064 = vrot.slane %v4057, %v4063
    %v4066 = vunpack.c.l.s4 1966171168
    %v4067 = vunpack.c.0.s8 %v4066
    %v4068 = vlaneseq
    %v4069 = vshrl.u32 %v4068, 7
    %v4070 = vsub.s32 %v4067, %v4069
    %v4071 = vrot.slane %v4064, %v4070
    %s4076 = scalar_lea.vmem [#allocation2], 208
    %4077 = vst [vmem:[%s4076] ss:$8 sm:$0xf] %v3958
    %4078 = vst [vmem:[%s4076] ss:$8 sm:$0xf0] %v3958
    %s4079 = scalar_lea.vmem [#allocation2], 272
    %4080 = vst [vmem:[%s4079] ss:$8 sm:$0xf] %v4007
    %4081 = vst [vmem:[%s4079] ss:$8 sm:$0xf0] %v4007
    %s4082 = scalar_lea.vmem [#allocation2], 336
    %4083 = vst [vmem:[%s4082] ss:$8 sm:$0xf] %v4056
    %4084 = vst [vmem:[%s4082] ss:$8 sm:$0xf0] %v4056
    %s4085 = scalar_lea.vmem [#allocation2], 400
    %4086 = vst.msk [vmem:[%s4085] ss:$8 sm:$0x3] %vm873, %v4071
    %4087 = vst.msk [vmem:[%s4085] ss:$8 sm:$0x0] %vm873, %v4071
    %4088 = vst [vmem:[#allocation2 + $0xd0] sm:$0xfe] 0.0
    %4089 = vst [vmem:[#allocation2 + $0xd8] sm:$0xfe] 0.0
    %4090 = vst [vmem:[#allocation2 + $0xe0] sm:$0xfe] 0.0
    %4091 = vst [vmem:[#allocation2 + $0xe8] sm:$0xfe] 0.0
    %4092 = vst [vmem:[#allocation2 + $0xf0] sm:$0xfe] 0.0
    %4093 = vst [vmem:[#allocation2 + $0xf8] sm:$0xfe] 0.0
    %4094 = vst [vmem:[#allocation2 + $0x100] sm:$0xfe] 0.0
    %4095 = vst [vmem:[#allocation2 + $0x108] sm:$0xfe] 0.0
    %4096 = vst [vmem:[#allocation2 + $0x110] sm:$0xfe] 0.0
    %4097 = vst [vmem:[#allocation2 + $0x118] sm:$0xfe] 0.0
    %4098 = vst [vmem:[#allocation2 + $0x120] sm:$0xfe] 0.0
    %4099 = vst [vmem:[#allocation2 + $0x128] sm:$0xfe] 0.0
    %4100 = vst [vmem:[#allocation2 + $0x130] sm:$0xfe] 0.0
    %4101 = vst [vmem:[#allocation2 + $0x138] sm:$0xfe] 0.0
    %4102 = vst [vmem:[#allocation2 + $0x140] sm:$0xfe] 0.0
    %4103 = vst [vmem:[#allocation2 + $0x148] sm:$0xfe] 0.0
    %4104 = vst [vmem:[#allocation2 + $0x150] sm:$0xfe] 0.0
    %4105 = vst [vmem:[#allocation2 + $0x158] sm:$0xfe] 0.0
    %4106 = vst [vmem:[#allocation2 + $0x160] sm:$0xfe] 0.0
    %4107 = vst [vmem:[#allocation2 + $0x168] sm:$0xfe] 0.0
    %4108 = vst [vmem:[#allocation2 + $0x170] sm:$0xfe] 0.0
    %4109 = vst [vmem:[#allocation2 + $0x178] sm:$0xfe] 0.0
    %4110 = vst [vmem:[#allocation2 + $0x180] sm:$0xfe] 0.0
    %4111 = vst [vmem:[#allocation2 + $0x188] sm:$0xfe] 0.0
    %4112 = vst [vmem:[#allocation2 + $0x190] sm:$0xfe] 0.0
    %4113 = vst [vmem:[#allocation2 + $0x198] sm:$0xfe] 0.0
    %v4114 = vld [vmem:[%s2] sm:$0xf]
    %v4115 = vld [vmem:[%s2 + $0x4] sm:$0xf]
    %v4116 = vld [vmem:[#allocation2] sm:$0xff]
    %v4117 = vld [vmem:[#allocation2 + $0x8] sm:$0xff]
    %v4118 = vld [vmem:[#allocation2 + $0x10] sm:$0xff]
    %v4119 = vld [vmem:[#allocation2 + $0x18] sm:$0xff]
    %v4120 = vld [vmem:[#allocation2 + $0x20] sm:$0xff]
    %v4121 = vld [vmem:[#allocation2 + $0x28] sm:$0xff]
    %v4122 = vld [vmem:[#allocation2 + $0x30] sm:$0xff]
    %v4123 = vld [vmem:[#allocation2 + $0x38] sm:$0xff]
    %v4124 = vld [vmem:[#allocation2 + $0x40] sm:$0xff]
    %v4125 = vld [vmem:[#allocation2 + $0x48] sm:$0xff]
    %v4126 = vld [vmem:[#allocation2 + $0x50] sm:$0xff]
    %v4127 = vld [vmem:[#allocation2 + $0x58] sm:$0xff]
    %v4128 = vld [vmem:[#allocation2 + $0x60] sm:$0xff]
    %v4129 = vld [vmem:[#allocation2 + $0x68] sm:$0xff]
    %v4130 = vld [vmem:[#allocation2 + $0x70] sm:$0xff]
    %v4131 = vld [vmem:[#allocation2 + $0x78] sm:$0xff]
    %v4132 = vld [vmem:[#allocation2 + $0x80] sm:$0xff]
    %v4133 = vld [vmem:[#allocation2 + $0x88] sm:$0xff]
    %v4134 = vld [vmem:[#allocation2 + $0x90] sm:$0xff]
    %v4135 = vld [vmem:[#allocation2 + $0x98] sm:$0xff]
    %v4136 = vld [vmem:[#allocation2 + $0xa0] sm:$0xff]
    %v4137 = vld [vmem:[#allocation2 + $0xa8] sm:$0xff]
    %v4138 = vld [vmem:[#allocation2 + $0xb0] sm:$0xff]
    %v4139 = vld [vmem:[#allocation2 + $0xb8] sm:$0xff]
    %v4140 = vld [vmem:[#allocation2 + $0xc0] sm:$0xff]
    %v4141 = vld [vmem:[#allocation2 + $0xc8] sm:$0xff]
    %v4142 = vld [vmem:[#allocation2 + $0xd0] sm:$0xff]
    %v4143 = vld [vmem:[#allocation2 + $0xd8] sm:$0xff]
    %v4144 = vld [vmem:[#allocation2 + $0xe0] sm:$0xff]
    %v4145 = vld [vmem:[#allocation2 + $0xe8] sm:$0xff]
    %v4146 = vld [vmem:[#allocation2 + $0xf0] sm:$0xff]
    %v4147 = vld [vmem:[#allocation2 + $0xf8] sm:$0xff]
    %v4148 = vld [vmem:[#allocation2 + $0x100] sm:$0xff]
    %v4149 = vld [vmem:[#allocation2 + $0x108] sm:$0xff]
    %v4150 = vld [vmem:[#allocation2 + $0x110] sm:$0xff]
    %v4151 = vld [vmem:[#allocation2 + $0x118] sm:$0xff]
    %v4152 = vld [vmem:[#allocation2 + $0x120] sm:$0xff]
    %v4153 = vld [vmem:[#allocation2 + $0x128] sm:$0xff]
    %v4154 = vld [vmem:[#allocation2 + $0x130] sm:$0xff]
    %v4155 = vld [vmem:[#allocation2 + $0x138] sm:$0xff]
    %v4156 = vld [vmem:[#allocation2 + $0x140] sm:$0xff]
    %v4157 = vld [vmem:[#allocation2 + $0x148] sm:$0xff]
    %v4158 = vld [vmem:[#allocation2 + $0x150] sm:$0xff]
    %v4159 = vld [vmem:[#allocation2 + $0x158] sm:$0xff]
    %v4160 = vld [vmem:[#allocation2 + $0x160] sm:$0xff]
    %v4161 = vld [vmem:[#allocation2 + $0x168] sm:$0xff]
    %v4162 = vld [vmem:[#allocation2 + $0x170] sm:$0xff]
    %v4163 = vld [vmem:[#allocation2 + $0x178] sm:$0xff]
    %v4164 = vld [vmem:[#allocation2 + $0x180] sm:$0xff]
    %v4165 = vld [vmem:[#allocation2 + $0x188] sm:$0xff]
    %v4166 = vld [vmem:[#allocation2 + $0x190] sm:$0xff]
    %v4167 = vld [vmem:[#allocation2 + $0x198] sm:$0xff]
    %v4168 = vpack.c.bf16 %v4142, %v4116
    %v4169 = vpack.c.bf16 %v4143, %v4117
    %v4170 = vpack.c.bf16 %v4144, %v4118
    %v4171 = vpack.c.bf16 %v4145, %v4119
    %v4172 = vpack.c.bf16 %v4146, %v4120
    %v4173 = vpack.c.bf16 %v4147, %v4121
    %v4174 = vpack.c.bf16 %v4148, %v4122
    %v4175 = vpack.c.bf16 %v4149, %v4123
    %v4176 = vpack.c.bf16 %v4150, %v4124
    %v4177 = vpack.c.bf16 %v4151, %v4125
    %v4178 = vpack.c.bf16 %v4152, %v4126
    %v4179 = vpack.c.bf16 %v4153, %v4127
    %v4180 = vpack.c.bf16 %v4154, %v4128
    %v4181 = vpack.c.bf16 %v4155, %v4129
    %v4182 = vpack.c.bf16 %v4156, %v4130
    %v4183 = vpack.c.bf16 %v4157, %v4131
    %v4184 = vpack.c.bf16 %v4158, %v4132
    %v4185 = vpack.c.bf16 %v4159, %v4133
    %v4186 = vpack.c.bf16 %v4160, %v4134
    %v4187 = vpack.c.bf16 %v4161, %v4135
    %v4188 = vpack.c.bf16 %v4162, %v4136
    %v4189 = vpack.c.bf16 %v4163, %v4137
    %v4190 = vpack.c.bf16 %v4164, %v4138
    %v4191 = vpack.c.bf16 %v4165, %v4139
    %v4192 = vpack.c.bf16 %v4166, %v4140
    %v4193 = vpack.c.bf16 %v4167, %v4141
    %v4194 = vld [vmem:[%s3] sm:$0xff]
    %v4195 = vld [vmem:[%s3 + $0x8] sm:$0xff]
    %4197 = vset.pattern.permute.xlu0 0
    %4198 = vperm.xlu0 %4197, %v4194
    %v4199 = vpop.permute.xlu0 %4198
    %4202 = vset.pattern.permute.xlu0 0
    %4203 = vperm.xlu0 %4202, %v4195
    %v4204 = vpop.permute.xlu0 %4203
    %v4208 = vunpack.c.l.b16 %v4114
    %v4209 = vunpack.c.l.b16 %v4115
    %v4210 = vpack.c.b16 %v4209, %v4208
    %vm4211 = vcmask 130048
    %v4213 = vsel %vm4211, %v4210, 0
    %4215 = vmatprep.subr.bf16.mxu0 0
    %4216 = vmatpush1.bf16.msra.mxu0 0
    %4217 = vmatprep.subr.bf16.mxu0 0
    %4218 = vmatpush1.bf16.msra.mxu0 0
    %4219 = vmatprep.subr.bf16.mxu0 0
    %4220 = vmatpush1.bf16.msra.mxu0 0
    %4221 = vmatprep.subr.bf16.mxu0 0
    %4222 = vmatpush1.bf16.msra.mxu0 0
    %4223 = vmatprep.subr.bf16.mxu0 0
    %4224 = vmatpush1.bf16.msra.mxu0 0
    %4225 = vmatprep.subr.bf16.mxu0 0
    %4226 = vmatpush1.bf16.msra.mxu0 0
    %4227 = vmatprep.subr.bf16.mxu0 0
    %4228 = vmatpush1.bf16.msra.mxu0 0
    %4229 = vmatprep.subr.bf16.mxu0 %v4169
    %4230 = vmatpush1.bf16.msra.mxu0 %v4168
    %4231 = vmatprep.subr.bf16.mxu0 0
    %4232 = vmatpush2.bf16.msra.mxu0 0
    %4233 = vmatprep.subr.bf16.mxu0 0
    %4234 = vmatpush2.bf16.msra.mxu0 0
    %4235 = vmatprep.subr.bf16.mxu0 0
    %4236 = vmatpush2.bf16.msra.mxu0 0
    %4237 = vmatprep.subr.bf16.mxu0 0
    %4238 = vmatpush2.bf16.msra.mxu0 0
    %4239 = vmatprep.subr.bf16.mxu0 0
    %4240 = vmatpush2.bf16.msra.mxu0 0
    %4241 = vmatprep.subr.bf16.mxu0 0
    %4242 = vmatpush2.bf16.msra.mxu0 0
    %4243 = vmatprep.subr.bf16.mxu0 0
    %4244 = vmatpush2.bf16.msra.mxu0 0
    %4245 = vmatprep.subr.bf16.mxu0 0
    %4246 = vmatpush2.bf16.msra.mxu0 0
    %4247 = vmatprep.mubr.bf16.mxu0 0
    %4248 = vmatmul.mubr.bf16.gmra.mxu0 %v4213
    %v4249 = vpop.f32.mrf.mxu0
    %v4250 = vadd.f32 %v4199, %v4249
    %v4251 = vpop.f32.mrf.mxu0
    %v4252 = vadd.f32 %v4199, %v4251
    %v4253 = vpop.f32.mrf.mxu0
    %v4254 = vadd.f32 %v4204, %v4253
    %v4255 = vpop.f32.mrf.mxu0
    %v4256 = vadd.f32 %v4204, %v4255
    %4257 = vdwg.mxu0
    %4258 = vmatprep.subr.bf16.mxu0 0
    %4259 = vmatpush1.bf16.msra.mxu0 0
    %4260 = vmatprep.subr.bf16.mxu0 0
    %4261 = vmatpush1.bf16.msra.mxu0 0
    %4262 = vmatprep.subr.bf16.mxu0 0
    %4263 = vmatpush1.bf16.msra.mxu0 0
    %4264 = vmatprep.subr.bf16.mxu0 0
    %4265 = vmatpush1.bf16.msra.mxu0 0
    %4266 = vmatprep.subr.bf16.mxu0 0
    %4267 = vmatpush1.bf16.msra.mxu0 0
    %4268 = vmatprep.subr.bf16.mxu0 0
    %4269 = vmatpush1.bf16.msra.mxu0 0
    %4270 = vmatprep.subr.bf16.mxu0 0
    %4271 = vmatpush1.bf16.msra.mxu0 0
    %4272 = vmatprep.subr.bf16.mxu0 %v4171
    %4273 = vmatpush1.bf16.msra.mxu0 %v4170
    %4274 = vmatprep.subr.bf16.mxu0 0
    %4275 = vmatpush2.bf16.msra.mxu0 0
    %4276 = vmatprep.subr.bf16.mxu0 0
    %4277 = vmatpush2.bf16.msra.mxu0 0
    %4278 = vmatprep.subr.bf16.mxu0 0
    %4279 = vmatpush2.bf16.msra.mxu0 0
    %4280 = vmatprep.subr.bf16.mxu0 0
    %4281 = vmatpush2.bf16.msra.mxu0 0
    %4282 = vmatprep.subr.bf16.mxu0 0
    %4283 = vmatpush2.bf16.msra.mxu0 0
    %4284 = vmatprep.subr.bf16.mxu0 0
    %4285 = vmatpush2.bf16.msra.mxu0 0
    %4286 = vmatprep.subr.bf16.mxu0 0
    %4287 = vmatpush2.bf16.msra.mxu0 0
    %4288 = vmatprep.subr.bf16.mxu0 0
    %4289 = vmatpush2.bf16.msra.mxu0 0
    %4290 = vmatprep.mubr.bf16.mxu0 0
    %4291 = vmatmul.mubr.bf16.gmra.mxu0 %v4213
    %v4292 = vpop.f32.mrf.mxu0
    %v4293 = vadd.f32 %v4199, %v4292
    %v4294 = vpop.f32.mrf.mxu0
    %v4295 = vadd.f32 %v4199, %v4294
    %v4296 = vpop.f32.mrf.mxu0
    %v4297 = vadd.f32 %v4204, %v4296
    %v4298 = vpop.f32.mrf.mxu0
    %v4299 = vadd.f32 %v4204, %v4298
    %4300 = vdwg.mxu0
    %4301 = vmatprep.subr.bf16.mxu0 0
    %4302 = vmatpush1.bf16.msra.mxu0 0
    %4303 = vmatprep.subr.bf16.mxu0 0
    %4304 = vmatpush1.bf16.msra.mxu0 0
    %4305 = vmatprep.subr.bf16.mxu0 0
    %4306 = vmatpush1.bf16.msra.mxu0 0
    %4307 = vmatprep.subr.bf16.mxu0 0
    %4308 = vmatpush1.bf16.msra.mxu0 0
    %4309 = vmatprep.subr.bf16.mxu0 0
    %4310 = vmatpush1.bf16.msra.mxu0 0
    %4311 = vmatprep.subr.bf16.mxu0 0
    %4312 = vmatpush1.bf16.msra.mxu0 0
    %4313 = vmatprep.subr.bf16.mxu0 0
    %4314 = vmatpush1.bf16.msra.mxu0 0
    %4315 = vmatprep.subr.bf16.mxu0 %v4173
    %4316 = vmatpush1.bf16.msra.mxu0 %v4172
    %4317 = vmatprep.subr.bf16.mxu0 0
    %4318 = vmatpush2.bf16.msra.mxu0 0
    %4319 = vmatprep.subr.bf16.mxu0 0
    %4320 = vmatpush2.bf16.msra.mxu0 0
    %4321 = vmatprep.subr.bf16.mxu0 0
    %4322 = vmatpush2.bf16.msra.mxu0 0
    %4323 = vmatprep.subr.bf16.mxu0 0
    %4324 = vmatpush2.bf16.msra.mxu0 0
    %4325 = vmatprep.subr.bf16.mxu0 0
    %4326 = vmatpush2.bf16.msra.mxu0 0
    %4327 = vmatprep.subr.bf16.mxu0 0
    %4328 = vmatpush2.bf16.msra.mxu0 0
    %4329 = vmatprep.subr.bf16.mxu0 0
    %4330 = vmatpush2.bf16.msra.mxu0 0
    %4331 = vmatprep.subr.bf16.mxu0 0
    %4332 = vmatpush2.bf16.msra.mxu0 0
    %4333 = vmatprep.mubr.bf16.mxu0 0
    %4334 = vmatmul.mubr.bf16.gmra.mxu0 %v4213
    %v4335 = vpop.f32.mrf.mxu0
    %v4336 = vadd.f32 %v4199, %v4335
    %v4337 = vpop.f32.mrf.mxu0
    %v4338 = vadd.f32 %v4199, %v4337
    %v4339 = vpop.f32.mrf.mxu0
    %v4340 = vadd.f32 %v4204, %v4339
    %v4341 = vpop.f32.mrf.mxu0
    %v4342 = vadd.f32 %v4204, %v4341
    %4343 = vdwg.mxu0
    %4344 = vmatprep.subr.bf16.mxu0 0
    %4345 = vmatpush1.bf16.msra.mxu0 0
    %4346 = vmatprep.subr.bf16.mxu0 0
    %4347 = vmatpush1.bf16.msra.mxu0 0
    %4348 = vmatprep.subr.bf16.mxu0 0
    %4349 = vmatpush1.bf16.msra.mxu0 0
    %4350 = vmatprep.subr.bf16.mxu0 0
    %4351 = vmatpush1.bf16.msra.mxu0 0
    %4352 = vmatprep.subr.bf16.mxu0 0
    %4353 = vmatpush1.bf16.msra.mxu0 0
    %4354 = vmatprep.subr.bf16.mxu0 0
    %4355 = vmatpush1.bf16.msra.mxu0 0
    %4356 = vmatprep.subr.bf16.mxu0 0
    %4357 = vmatpush1.bf16.msra.mxu0 0
    %4358 = vmatprep.subr.bf16.mxu0 %v4175
    %4359 = vmatpush1.bf16.msra.mxu0 %v4174
    %4360 = vmatprep.subr.bf16.mxu0 0
    %4361 = vmatpush2.bf16.msra.mxu0 0
    %4362 = vmatprep.subr.bf16.mxu0 0
    %4363 = vmatpush2.bf16.msra.mxu0 0
    %4364 = vmatprep.subr.bf16.mxu0 0
    %4365 = vmatpush2.bf16.msra.mxu0 0
    %4366 = vmatprep.subr.bf16.mxu0 0
    %4367 = vmatpush2.bf16.msra.mxu0 0
    %4368 = vmatprep.subr.bf16.mxu0 0
    %4369 = vmatpush2.bf16.msra.mxu0 0
    %4370 = vmatprep.subr.bf16.mxu0 0
    %4371 = vmatpush2.bf16.msra.mxu0 0
    %4372 = vmatprep.subr.bf16.mxu0 0
    %4373 = vmatpush2.bf16.msra.mxu0 0
    %4374 = vmatprep.subr.bf16.mxu0 0
    %4375 = vmatpush2.bf16.msra.mxu0 0
    %4376 = vmatprep.mubr.bf16.mxu0 0
    %4377 = vmatmul.mubr.bf16.gmra.mxu0 %v4213
    %v4378 = vpop.f32.mrf.mxu0
    %v4379 = vadd.f32 %v4199, %v4378
    %v4380 = vpop.f32.mrf.mxu0
    %v4381 = vadd.f32 %v4199, %v4380
    %v4382 = vpop.f32.mrf.mxu0
    %v4383 = vadd.f32 %v4204, %v4382
    %v4384 = vpop.f32.mrf.mxu0
    %v4385 = vadd.f32 %v4204, %v4384
    %4386 = vdwg.mxu0
    %4387 = vmatprep.subr.bf16.mxu0 0
    %4388 = vmatpush1.bf16.msra.mxu0 0
    %4389 = vmatprep.subr.bf16.mxu0 0
    %4390 = vmatpush1.bf16.msra.mxu0 0
    %4391 = vmatprep.subr.bf16.mxu0 0
    %4392 = vmatpush1.bf16.msra.mxu0 0
    %4393 = vmatprep.subr.bf16.mxu0 0
    %4394 = vmatpush1.bf16.msra.mxu0 0
    %4395 = vmatprep.subr.bf16.mxu0 0
    %4396 = vmatpush1.bf16.msra.mxu0 0
    %4397 = vmatprep.subr.bf16.mxu0 0
    %4398 = vmatpush1.bf16.msra.mxu0 0
    %4399 = vmatprep.subr.bf16.mxu0 0
    %4400 = vmatpush1.bf16.msra.mxu0 0
    %4401 = vmatprep.subr.bf16.mxu0 %v4177
    %4402 = vmatpush1.bf16.msra.mxu0 %v4176
    %4403 = vmatprep.subr.bf16.mxu0 0
    %4404 = vmatpush2.bf16.msra.mxu0 0
    %4405 = vmatprep.subr.bf16.mxu0 0
    %4406 = vmatpush2.bf16.msra.mxu0 0
    %4407 = vmatprep.subr.bf16.mxu0 0
    %4408 = vmatpush2.bf16.msra.mxu0 0
    %4409 = vmatprep.subr.bf16.mxu0 0
    %4410 = vmatpush2.bf16.msra.mxu0 0
    %4411 = vmatprep.subr.bf16.mxu0 0
    %4412 = vmatpush2.bf16.msra.mxu0 0
    %4413 = vmatprep.subr.bf16.mxu0 0
    %4414 = vmatpush2.bf16.msra.mxu0 0
    %4415 = vmatprep.subr.bf16.mxu0 0
    %4416 = vmatpush2.bf16.msra.mxu0 0
    %4417 = vmatprep.subr.bf16.mxu0 0
    %4418 = vmatpush2.bf16.msra.mxu0 0
    %4419 = vmatprep.mubr.bf16.mxu0 0
    %4420 = vmatmul.mubr.bf16.gmra.mxu0 %v4213
    %v4421 = vpop.f32.mrf.mxu0
    %v4422 = vadd.f32 %v4199, %v4421
    %v4423 = vpop.f32.mrf.mxu0
    %v4424 = vadd.f32 %v4199, %v4423
    %v4425 = vpop.f32.mrf.mxu0
    %v4426 = vadd.f32 %v4204, %v4425
    %v4427 = vpop.f32.mrf.mxu0
    %v4428 = vadd.f32 %v4204, %v4427
    %4429 = vdwg.mxu0
    %4430 = vmatprep.subr.bf16.mxu0 0
    %4431 = vmatpush1.bf16.msra.mxu0 0
    %4432 = vmatprep.subr.bf16.mxu0 0
    %4433 = vmatpush1.bf16.msra.mxu0 0
    %4434 = vmatprep.subr.bf16.mxu0 0
    %4435 = vmatpush1.bf16.msra.mxu0 0
    %4436 = vmatprep.subr.bf16.mxu0 0
    %4437 = vmatpush1.bf16.msra.mxu0 0
    %4438 = vmatprep.subr.bf16.mxu0 0
    %4439 = vmatpush1.bf16.msra.mxu0 0
    %4440 = vmatprep.subr.bf16.mxu0 0
    %4441 = vmatpush1.bf16.msra.mxu0 0
    %4442 = vmatprep.subr.bf16.mxu0 0
    %4443 = vmatpush1.bf16.msra.mxu0 0
    %4444 = vmatprep.subr.bf16.mxu0 %v4179
    %4445 = vmatpush1.bf16.msra.mxu0 %v4178
    %4446 = vmatprep.subr.bf16.mxu0 0
    %4447 = vmatpush2.bf16.msra.mxu0 0
    %4448 = vmatprep.subr.bf16.mxu0 0
    %4449 = vmatpush2.bf16.msra.mxu0 0
    %4450 = vmatprep.subr.bf16.mxu0 0
    %4451 = vmatpush2.bf16.msra.mxu0 0
    %4452 = vmatprep.subr.bf16.mxu0 0
    %4453 = vmatpush2.bf16.msra.mxu0 0
    %4454 = vmatprep.subr.bf16.mxu0 0
    %4455 = vmatpush2.bf16.msra.mxu0 0
    %4456 = vmatprep.subr.bf16.mxu0 0
    %4457 = vmatpush2.bf16.msra.mxu0 0
    %4458 = vmatprep.subr.bf16.mxu0 0
    %4459 = vmatpush2.bf16.msra.mxu0 0
    %4460 = vmatprep.subr.bf16.mxu0 0
    %4461 = vmatpush2.bf16.msra.mxu0 0
    %4462 = vmatprep.mubr.bf16.mxu0 0
    %4463 = vmatmul.mubr.bf16.gmra.mxu0 %v4213
    %v4464 = vpop.f32.mrf.mxu0
    %v4465 = vadd.f32 %v4199, %v4464
    %v4466 = vpop.f32.mrf.mxu0
    %v4467 = vadd.f32 %v4199, %v4466
    %v4468 = vpop.f32.mrf.mxu0
    %v4469 = vadd.f32 %v4204, %v4468
    %v4470 = vpop.f32.mrf.mxu0
    %v4471 = vadd.f32 %v4204, %v4470
    %4472 = vdwg.mxu0
    %4473 = vmatprep.subr.bf16.mxu0 0
    %4474 = vmatpush1.bf16.msra.mxu0 0
    %4475 = vmatprep.subr.bf16.mxu0 0
    %4476 = vmatpush1.bf16.msra.mxu0 0
    %4477 = vmatprep.subr.bf16.mxu0 0
    %4478 = vmatpush1.bf16.msra.mxu0 0
    %4479 = vmatprep.subr.bf16.mxu0 0
    %4480 = vmatpush1.bf16.msra.mxu0 0
    %4481 = vmatprep.subr.bf16.mxu0 0
    %4482 = vmatpush1.bf16.msra.mxu0 0
    %4483 = vmatprep.subr.bf16.mxu0 0
    %4484 = vmatpush1.bf16.msra.mxu0 0
    %4485 = vmatprep.subr.bf16.mxu0 0
    %4486 = vmatpush1.bf16.msra.mxu0 0
    %4487 = vmatprep.subr.bf16.mxu0 %v4181
    %4488 = vmatpush1.bf16.msra.mxu0 %v4180
    %4489 = vmatprep.subr.bf16.mxu0 0
    %4490 = vmatpush2.bf16.msra.mxu0 0
    %4491 = vmatprep.subr.bf16.mxu0 0
    %4492 = vmatpush2.bf16.msra.mxu0 0
    %4493 = vmatprep.subr.bf16.mxu0 0
    %4494 = vmatpush2.bf16.msra.mxu0 0
    %4495 = vmatprep.subr.bf16.mxu0 0
    %4496 = vmatpush2.bf16.msra.mxu0 0
    %4497 = vmatprep.subr.bf16.mxu0 0
    %4498 = vmatpush2.bf16.msra.mxu0 0
    %4499 = vmatprep.subr.bf16.mxu0 0
    %4500 = vmatpush2.bf16.msra.mxu0 0
    %4501 = vmatprep.subr.bf16.mxu0 0
    %4502 = vmatpush2.bf16.msra.mxu0 0
    %4503 = vmatprep.subr.bf16.mxu0 0
    %4504 = vmatpush2.bf16.msra.mxu0 0
    %4505 = vmatprep.mubr.bf16.mxu0 0
    %4506 = vmatmul.mubr.bf16.gmra.mxu0 %v4213
    %v4507 = vpop.f32.mrf.mxu0
    %v4508 = vadd.f32 %v4199, %v4507
    %v4509 = vpop.f32.mrf.mxu0
    %v4510 = vadd.f32 %v4199, %v4509
    %v4511 = vpop.f32.mrf.mxu0
    %v4512 = vadd.f32 %v4204, %v4511
    %v4513 = vpop.f32.mrf.mxu0
    %v4514 = vadd.f32 %v4204, %v4513
    %4515 = vdwg.mxu0
    %4516 = vmatprep.subr.bf16.mxu0 0
    %4517 = vmatpush1.bf16.msra.mxu0 0
    %4518 = vmatprep.subr.bf16.mxu0 0
    %4519 = vmatpush1.bf16.msra.mxu0 0
    %4520 = vmatprep.subr.bf16.mxu0 0
    %4521 = vmatpush1.bf16.msra.mxu0 0
    %4522 = vmatprep.subr.bf16.mxu0 0
    %4523 = vmatpush1.bf16.msra.mxu0 0
    %4524 = vmatprep.subr.bf16.mxu0 0
    %4525 = vmatpush1.bf16.msra.mxu0 0
    %4526 = vmatprep.subr.bf16.mxu0 0
    %4527 = vmatpush1.bf16.msra.mxu0 0
    %4528 = vmatprep.subr.bf16.mxu0 0
    %4529 = vmatpush1.bf16.msra.mxu0 0
    %4530 = vmatprep.subr.bf16.mxu0 %v4183
    %4531 = vmatpush1.bf16.msra.mxu0 %v4182
    %4532 = vmatprep.subr.bf16.mxu0 0
    %4533 = vmatpush2.bf16.msra.mxu0 0
    %4534 = vmatprep.subr.bf16.mxu0 0
    %4535 = vmatpush2.bf16.msra.mxu0 0
    %4536 = vmatprep.subr.bf16.mxu0 0
    %4537 = vmatpush2.bf16.msra.mxu0 0
    %4538 = vmatprep.subr.bf16.mxu0 0
    %4539 = vmatpush2.bf16.msra.mxu0 0
    %4540 = vmatprep.subr.bf16.mxu0 0
    %4541 = vmatpush2.bf16.msra.mxu0 0
    %4542 = vmatprep.subr.bf16.mxu0 0
    %4543 = vmatpush2.bf16.msra.mxu0 0
    %4544 = vmatprep.subr.bf16.mxu0 0
    %4545 = vmatpush2.bf16.msra.mxu0 0
    %4546 = vmatprep.subr.bf16.mxu0 0
    %4547 = vmatpush2.bf16.msra.mxu0 0
    %4548 = vmatprep.mubr.bf16.mxu0 0
    %4549 = vmatmul.mubr.bf16.gmra.mxu0 %v4213
    %v4550 = vpop.f32.mrf.mxu0
    %v4551 = vadd.f32 %v4199, %v4550
    %v4552 = vpop.f32.mrf.mxu0
    %v4553 = vadd.f32 %v4199, %v4552
    %v4554 = vpop.f32.mrf.mxu0
    %v4555 = vadd.f32 %v4204, %v4554
    %v4556 = vpop.f32.mrf.mxu0
    %v4557 = vadd.f32 %v4204, %v4556
    %4558 = vdwg.mxu0
    %4559 = vmatprep.subr.bf16.mxu0 0
    %4560 = vmatpush1.bf16.msra.mxu0 0
    %4561 = vmatprep.subr.bf16.mxu0 0
    %4562 = vmatpush1.bf16.msra.mxu0 0
    %4563 = vmatprep.subr.bf16.mxu0 0
    %4564 = vmatpush1.bf16.msra.mxu0 0
    %4565 = vmatprep.subr.bf16.mxu0 0
    %4566 = vmatpush1.bf16.msra.mxu0 0
    %4567 = vmatprep.subr.bf16.mxu0 0
    %4568 = vmatpush1.bf16.msra.mxu0 0
    %4569 = vmatprep.subr.bf16.mxu0 0
    %4570 = vmatpush1.bf16.msra.mxu0 0
    %4571 = vmatprep.subr.bf16.mxu0 0
    %4572 = vmatpush1.bf16.msra.mxu0 0
    %4573 = vmatprep.subr.bf16.mxu0 %v4185
    %4574 = vmatpush1.bf16.msra.mxu0 %v4184
    %4575 = vmatprep.subr.bf16.mxu0 0
    %4576 = vmatpush2.bf16.msra.mxu0 0
    %4577 = vmatprep.subr.bf16.mxu0 0
    %4578 = vmatpush2.bf16.msra.mxu0 0
    %4579 = vmatprep.subr.bf16.mxu0 0
    %4580 = vmatpush2.bf16.msra.mxu0 0
    %4581 = vmatprep.subr.bf16.mxu0 0
    %4582 = vmatpush2.bf16.msra.mxu0 0
    %4583 = vmatprep.subr.bf16.mxu0 0
    %4584 = vmatpush2.bf16.msra.mxu0 0
    %4585 = vmatprep.subr.bf16.mxu0 0
    %4586 = vmatpush2.bf16.msra.mxu0 0
    %4587 = vmatprep.subr.bf16.mxu0 0
    %4588 = vmatpush2.bf16.msra.mxu0 0
    %4589 = vmatprep.subr.bf16.mxu0 0
    %4590 = vmatpush2.bf16.msra.mxu0 0
    %4591 = vmatprep.mubr.bf16.mxu0 0
    %4592 = vmatmul.mubr.bf16.gmra.mxu0 %v4213
    %v4593 = vpop.f32.mrf.mxu0
    %v4594 = vadd.f32 %v4199, %v4593
    %v4595 = vpop.f32.mrf.mxu0
    %v4596 = vadd.f32 %v4199, %v4595
    %v4597 = vpop.f32.mrf.mxu0
    %v4598 = vadd.f32 %v4204, %v4597
    %v4599 = vpop.f32.mrf.mxu0
    %v4600 = vadd.f32 %v4204, %v4599
    %4601 = vdwg.mxu0
    %4602 = vmatprep.subr.bf16.mxu0 0
    %4603 = vmatpush1.bf16.msra.mxu0 0
    %4604 = vmatprep.subr.bf16.mxu0 0
    %4605 = vmatpush1.bf16.msra.mxu0 0
    %4606 = vmatprep.subr.bf16.mxu0 0
    %4607 = vmatpush1.bf16.msra.mxu0 0
    %4608 = vmatprep.subr.bf16.mxu0 0
    %4609 = vmatpush1.bf16.msra.mxu0 0
    %4610 = vmatprep.subr.bf16.mxu0 0
    %4611 = vmatpush1.bf16.msra.mxu0 0
    %4612 = vmatprep.subr.bf16.mxu0 0
    %4613 = vmatpush1.bf16.msra.mxu0 0
    %4614 = vmatprep.subr.bf16.mxu0 0
    %4615 = vmatpush1.bf16.msra.mxu0 0
    %4616 = vmatprep.subr.bf16.mxu0 %v4187
    %4617 = vmatpush1.bf16.msra.mxu0 %v4186
    %4618 = vmatprep.subr.bf16.mxu0 0
    %4619 = vmatpush2.bf16.msra.mxu0 0
    %4620 = vmatprep.subr.bf16.mxu0 0
    %4621 = vmatpush2.bf16.msra.mxu0 0
    %4622 = vmatprep.subr.bf16.mxu0 0
    %4623 = vmatpush2.bf16.msra.mxu0 0
    %4624 = vmatprep.subr.bf16.mxu0 0
    %4625 = vmatpush2.bf16.msra.mxu0 0
    %4626 = vmatprep.subr.bf16.mxu0 0
    %4627 = vmatpush2.bf16.msra.mxu0 0
    %4628 = vmatprep.subr.bf16.mxu0 0
    %4629 = vmatpush2.bf16.msra.mxu0 0
    %4630 = vmatprep.subr.bf16.mxu0 0
    %4631 = vmatpush2.bf16.msra.mxu0 0
    %4632 = vmatprep.subr.bf16.mxu0 0
    %4633 = vmatpush2.bf16.msra.mxu0 0
    %4634 = vmatprep.mubr.bf16.mxu0 0
    %4635 = vmatmul.mubr.bf16.gmra.mxu0 %v4213
    %v4636 = vpop.f32.mrf.mxu0
    %v4637 = vadd.f32 %v4199, %v4636
    %v4638 = vpop.f32.mrf.mxu0
    %v4639 = vadd.f32 %v4199, %v4638
    %v4640 = vpop.f32.mrf.mxu0
    %v4641 = vadd.f32 %v4204, %v4640
    %v4642 = vpop.f32.mrf.mxu0
    %v4643 = vadd.f32 %v4204, %v4642
    %4644 = vdwg.mxu0
    %4645 = vmatprep.subr.bf16.mxu0 0
    %4646 = vmatpush1.bf16.msra.mxu0 0
    %4647 = vmatprep.subr.bf16.mxu0 0
    %4648 = vmatpush1.bf16.msra.mxu0 0
    %4649 = vmatprep.subr.bf16.mxu0 0
    %4650 = vmatpush1.bf16.msra.mxu0 0
    %4651 = vmatprep.subr.bf16.mxu0 0
    %4652 = vmatpush1.bf16.msra.mxu0 0
    %4653 = vmatprep.subr.bf16.mxu0 0
    %4654 = vmatpush1.bf16.msra.mxu0 0
    %4655 = vmatprep.subr.bf16.mxu0 0
    %4656 = vmatpush1.bf16.msra.mxu0 0
    %4657 = vmatprep.subr.bf16.mxu0 0
    %4658 = vmatpush1.bf16.msra.mxu0 0
    %4659 = vmatprep.subr.bf16.mxu0 %v4189
    %4660 = vmatpush1.bf16.msra.mxu0 %v4188
    %4661 = vmatprep.subr.bf16.mxu0 0
    %4662 = vmatpush2.bf16.msra.mxu0 0
    %4663 = vmatprep.subr.bf16.mxu0 0
    %4664 = vmatpush2.bf16.msra.mxu0 0
    %4665 = vmatprep.subr.bf16.mxu0 0
    %4666 = vmatpush2.bf16.msra.mxu0 0
    %4667 = vmatprep.subr.bf16.mxu0 0
    %4668 = vmatpush2.bf16.msra.mxu0 0
    %4669 = vmatprep.subr.bf16.mxu0 0
    %4670 = vmatpush2.bf16.msra.mxu0 0
    %4671 = vmatprep.subr.bf16.mxu0 0
    %4672 = vmatpush2.bf16.msra.mxu0 0
    %4673 = vmatprep.subr.bf16.mxu0 0
    %4674 = vmatpush2.bf16.msra.mxu0 0
    %4675 = vmatprep.subr.bf16.mxu0 0
    %4676 = vmatpush2.bf16.msra.mxu0 0
    %4677 = vmatprep.mubr.bf16.mxu0 0
    %4678 = vmatmul.mubr.bf16.gmra.mxu0 %v4213
    %v4679 = vpop.f32.mrf.mxu0
    %v4680 = vadd.f32 %v4199, %v4679
    %v4681 = vpop.f32.mrf.mxu0
    %v4682 = vadd.f32 %v4199, %v4681
    %v4683 = vpop.f32.mrf.mxu0
    %v4684 = vadd.f32 %v4204, %v4683
    %v4685 = vpop.f32.mrf.mxu0
    %v4686 = vadd.f32 %v4204, %v4685
    %4687 = vdwg.mxu0
    %4688 = vmatprep.subr.bf16.mxu0 0
    %4689 = vmatpush1.bf16.msra.mxu0 0
    %4690 = vmatprep.subr.bf16.mxu0 0
    %4691 = vmatpush1.bf16.msra.mxu0 0
    %4692 = vmatprep.subr.bf16.mxu0 0
    %4693 = vmatpush1.bf16.msra.mxu0 0
    %4694 = vmatprep.subr.bf16.mxu0 0
    %4695 = vmatpush1.bf16.msra.mxu0 0
    %4696 = vmatprep.subr.bf16.mxu0 0
    %4697 = vmatpush1.bf16.msra.mxu0 0
    %4698 = vmatprep.subr.bf16.mxu0 0
    %4699 = vmatpush1.bf16.msra.mxu0 0
    %4700 = vmatprep.subr.bf16.mxu0 0
    %4701 = vmatpush1.bf16.msra.mxu0 0
    %4702 = vmatprep.subr.bf16.mxu0 %v4191
    %4703 = vmatpush1.bf16.msra.mxu0 %v4190
    %4704 = vmatprep.subr.bf16.mxu0 0
    %4705 = vmatpush2.bf16.msra.mxu0 0
    %4706 = vmatprep.subr.bf16.mxu0 0
    %4707 = vmatpush2.bf16.msra.mxu0 0
    %4708 = vmatprep.subr.bf16.mxu0 0
    %4709 = vmatpush2.bf16.msra.mxu0 0
    %4710 = vmatprep.subr.bf16.mxu0 0
    %4711 = vmatpush2.bf16.msra.mxu0 0
    %4712 = vmatprep.subr.bf16.mxu0 0
    %4713 = vmatpush2.bf16.msra.mxu0 0
    %4714 = vmatprep.subr.bf16.mxu0 0
    %4715 = vmatpush2.bf16.msra.mxu0 0
    %4716 = vmatprep.subr.bf16.mxu0 0
    %4717 = vmatpush2.bf16.msra.mxu0 0
    %4718 = vmatprep.subr.bf16.mxu0 0
    %4719 = vmatpush2.bf16.msra.mxu0 0
    %4720 = vmatprep.mubr.bf16.mxu0 0
    %4721 = vmatmul.mubr.bf16.gmra.mxu0 %v4213
    %v4722 = vpop.f32.mrf.mxu0
    %v4723 = vadd.f32 %v4199, %v4722
    %v4724 = vpop.f32.mrf.mxu0
    %v4725 = vadd.f32 %v4199, %v4724
    %v4726 = vpop.f32.mrf.mxu0
    %v4727 = vadd.f32 %v4204, %v4726
    %v4728 = vpop.f32.mrf.mxu0
    %v4729 = vadd.f32 %v4204, %v4728
    %4730 = vdwg.mxu0
    %4731 = vmatprep.subr.bf16.mxu0 0
    %4732 = vmatpush1.bf16.msra.mxu0 0
    %4733 = vmatprep.subr.bf16.mxu0 0
    %4734 = vmatpush1.bf16.msra.mxu0 0
    %4735 = vmatprep.subr.bf16.mxu0 0
    %4736 = vmatpush1.bf16.msra.mxu0 0
    %4737 = vmatprep.subr.bf16.mxu0 0
    %4738 = vmatpush1.bf16.msra.mxu0 0
    %4739 = vmatprep.subr.bf16.mxu0 0
    %4740 = vmatpush1.bf16.msra.mxu0 0
    %4741 = vmatprep.subr.bf16.mxu0 0
    %4742 = vmatpush1.bf16.msra.mxu0 0
    %4743 = vmatprep.subr.bf16.mxu0 0
    %4744 = vmatpush1.bf16.msra.mxu0 0
    %4745 = vmatprep.subr.bf16.mxu0 %v4193
    %4746 = vmatpush1.bf16.msra.mxu0 %v4192
    %4747 = vmatprep.subr.bf16.mxu0 0
    %4748 = vmatpush2.bf16.msra.mxu0 0
    %4749 = vmatprep.subr.bf16.mxu0 0
    %4750 = vmatpush2.bf16.msra.mxu0 0
    %4751 = vmatprep.subr.bf16.mxu0 0
    %4752 = vmatpush2.bf16.msra.mxu0 0
    %4753 = vmatprep.subr.bf16.mxu0 0
    %4754 = vmatpush2.bf16.msra.mxu0 0
    %4755 = vmatprep.subr.bf16.mxu0 0
    %4756 = vmatpush2.bf16.msra.mxu0 0
    %4757 = vmatprep.subr.bf16.mxu0 0
    %4758 = vmatpush2.bf16.msra.mxu0 0
    %4759 = vmatprep.subr.bf16.mxu0 0
    %4760 = vmatpush2.bf16.msra.mxu0 0
    %4761 = vmatprep.subr.bf16.mxu0 0
    %4762 = vmatpush2.bf16.msra.mxu0 0
    %4763 = vmatprep.mubr.bf16.mxu0 0
    %4764 = vmatmul.mubr.bf16.gmra.mxu0 %v4213
    %v4765 = vpop.f32.mrf.mxu0
    %v4766 = vadd.f32 %v4199, %v4765
    %v4767 = vpop.f32.mrf.mxu0
    %v4768 = vadd.f32 %v4199, %v4767
    %v4769 = vpop.f32.mrf.mxu0
    %v4770 = vadd.f32 %v4204, %v4769
    %v4771 = vpop.f32.mrf.mxu0
    %v4772 = vadd.f32 %v4204, %v4771
    %4773 = vdwg.mxu0
    %v4774 = vtanh.pop %v4250
    %v4775 = vtanh.pop %v4252
    %v4776 = vtanh.pop %v4293
    %v4777 = vtanh.pop %v4295
    %v4778 = vtanh.pop %v4336
    %v4779 = vtanh.pop %v4338
    %v4780 = vtanh.pop %v4379
    %v4781 = vtanh.pop %v4381
    %v4782 = vtanh.pop %v4422
    %v4783 = vtanh.pop %v4424
    %v4784 = vtanh.pop %v4465
    %v4785 = vtanh.pop %v4467
    %v4786 = vtanh.pop %v4508
    %v4787 = vtanh.pop %v4510
    %v4788 = vtanh.pop %v4551
    %v4789 = vtanh.pop %v4553
    %v4790 = vtanh.pop %v4594
    %v4791 = vtanh.pop %v4596
    %v4792 = vtanh.pop %v4637
    %v4793 = vtanh.pop %v4639
    %v4794 = vtanh.pop %v4680
    %v4795 = vtanh.pop %v4682
    %v4796 = vtanh.pop %v4723
    %v4797 = vtanh.pop %v4725
    %v4798 = vtanh.pop %v4766
    %v4799 = vtanh.pop %v4768
    %v4800 = vtanh.pop %v4254
    %v4801 = vtanh.pop %v4256
    %v4802 = vtanh.pop %v4297
    %v4803 = vtanh.pop %v4299
    %v4804 = vtanh.pop %v4340
    %v4805 = vtanh.pop %v4342
    %v4806 = vtanh.pop %v4383
    %v4807 = vtanh.pop %v4385
    %v4808 = vtanh.pop %v4426
    %v4809 = vtanh.pop %v4428
    %v4810 = vtanh.pop %v4469
    %v4811 = vtanh.pop %v4471
    %v4812 = vtanh.pop %v4512
    %v4813 = vtanh.pop %v4514
    %v4814 = vtanh.pop %v4555
    %v4815 = vtanh.pop %v4557
    %v4816 = vtanh.pop %v4598
    %v4817 = vtanh.pop %v4600
    %v4818 = vtanh.pop %v4641
    %v4819 = vtanh.pop %v4643
    %v4820 = vtanh.pop %v4684
    %v4821 = vtanh.pop %v4686
    %v4822 = vtanh.pop %v4727
    %v4823 = vtanh.pop %v4729
    %v4824 = vtanh.pop %v4770
    %v4825 = vtanh.pop %v4772
    %4826 = vrot.lane.b32.xlu0 %v4774, 81
    %v4827 = vpop.permute.xlu0 %4826
    %4828 = vrot.lane.b32.xlu0 %v4800, 81
    %v4829 = vpop.permute.xlu0 %4828
    %4830 = vrot.lane.b32.xlu0 %v4775, 81
    %v4831 = vpop.permute.xlu0 %4830
    %4832 = vrot.lane.b32.xlu0 %v4801, 81
    %v4833 = vpop.permute.xlu0 %4832
    %4834 = vrot.lane.b32.xlu0 %v4776, 81
    %v4835 = vpop.permute.xlu0 %4834
    %4836 = vrot.lane.b32.xlu0 %v4802, 81
    %v4837 = vpop.permute.xlu0 %4836
    %4838 = vrot.lane.b32.xlu0 %v4777, 81
    %v4839 = vpop.permute.xlu0 %4838
    %4840 = vrot.lane.b32.xlu0 %v4803, 81
    %v4841 = vpop.permute.xlu0 %4840
    %4842 = vrot.lane.b32.xlu0 %v4778, 81
    %v4843 = vpop.permute.xlu0 %4842
    %4844 = vrot.lane.b32.xlu0 %v4804, 81
    %v4845 = vpop.permute.xlu0 %4844
    %4846 = vrot.lane.b32.xlu0 %v4779, 81
    %v4847 = vpop.permute.xlu0 %4846
    %4848 = vrot.lane.b32.xlu0 %v4805, 81
    %v4849 = vpop.permute.xlu0 %4848
    %4850 = vrot.lane.b32.xlu0 %v4780, 81
    %v4851 = vpop.permute.xlu0 %4850
    %4852 = vrot.lane.b32.xlu0 %v4806, 81
    %v4853 = vpop.permute.xlu0 %4852
    %4854 = vrot.lane.b32.xlu0 %v4781, 81
    %v4855 = vpop.permute.xlu0 %4854
    %4856 = vrot.lane.b32.xlu0 %v4807, 81
    %v4857 = vpop.permute.xlu0 %4856
    %4858 = vrot.lane.b32.xlu0 %v4782, 81
    %v4859 = vpop.permute.xlu0 %4858
    %4860 = vrot.lane.b32.xlu0 %v4808, 81
    %v4861 = vpop.permute.xlu0 %4860
    %4862 = vrot.lane.b32.xlu0 %v4783, 81
    %v4863 = vpop.permute.xlu0 %4862
    %4864 = vrot.lane.b32.xlu0 %v4809, 81
    %v4865 = vpop.permute.xlu0 %4864
    %4866 = vrot.lane.b32.xlu0 %v4784, 81
    %v4867 = vpop.permute.xlu0 %4866
    %4868 = vrot.lane.b32.xlu0 %v4810, 81
    %v4869 = vpop.permute.xlu0 %4868
    %4870 = vrot.lane.b32.xlu0 %v4785, 81
    %v4871 = vpop.permute.xlu0 %4870
    %4872 = vrot.lane.b32.xlu0 %v4811, 81
    %v4873 = vpop.permute.xlu0 %4872
    %4874 = vrot.lane.b32.xlu0 %v4786, 81
    %v4875 = vpop.permute.xlu0 %4874
    %4876 = vrot.lane.b32.xlu0 %v4812, 81
    %v4877 = vpop.permute.xlu0 %4876
    %4878 = vrot.lane.b32.xlu0 %v4787, 81
    %v4879 = vpop.permute.xlu0 %4878
    %4880 = vrot.lane.b32.xlu0 %v4813, 81
    %v4881 = vpop.permute.xlu0 %4880
    %4882 = vrot.lane.b32.xlu0 %v4788, 81
    %v4883 = vpop.permute.xlu0 %4882
    %4884 = vrot.lane.b32.xlu0 %v4814, 81
    %v4885 = vpop.permute.xlu0 %4884
    %4886 = vrot.lane.b32.xlu0 %v4789, 81
    %v4887 = vpop.permute.xlu0 %4886
    %4888 = vrot.lane.b32.xlu0 %v4815, 81
    %v4889 = vpop.permute.xlu0 %4888
    %4890 = vrot.lane.b32.xlu0 %v4790, 81
    %v4891 = vpop.permute.xlu0 %4890
    %4892 = vrot.lane.b32.xlu0 %v4816, 81
    %v4893 = vpop.permute.xlu0 %4892
    %4894 = vrot.lane.b32.xlu0 %v4791, 81
    %v4895 = vpop.permute.xlu0 %4894
    %4896 = vrot.lane.b32.xlu0 %v4817, 81
    %v4897 = vpop.permute.xlu0 %4896
    %4898 = vrot.lane.b32.xlu0 %v4792, 81
    %v4899 = vpop.permute.xlu0 %4898
    %4900 = vrot.lane.b32.xlu0 %v4818, 81
    %v4901 = vpop.permute.xlu0 %4900
    %4902 = vrot.lane.b32.xlu0 %v4793, 81
    %v4903 = vpop.permute.xlu0 %4902
    %4904 = vrot.lane.b32.xlu0 %v4819, 81
    %v4905 = vpop.permute.xlu0 %4904
    %4906 = vrot.lane.b32.xlu0 %v4794, 81
    %v4907 = vpop.permute.xlu0 %4906
    %4908 = vrot.lane.b32.xlu0 %v4820, 81
    %v4909 = vpop.permute.xlu0 %4908
    %4910 = vrot.lane.b32.xlu0 %v4795, 81
    %v4911 = vpop.permute.xlu0 %4910
    %4912 = vrot.lane.b32.xlu0 %v4821, 81
    %v4913 = vpop.permute.xlu0 %4912
    %4914 = vrot.lane.b32.xlu0 %v4796, 81
    %v4915 = vpop.permute.xlu0 %4914
    %4916 = vrot.lane.b32.xlu0 %v4822, 81
    %v4917 = vpop.permute.xlu0 %4916
    %4918 = vrot.lane.b32.xlu0 %v4797, 81
    %v4919 = vpop.permute.xlu0 %4918
    %4920 = vrot.lane.b32.xlu0 %v4823, 81
    %v4921 = vpop.permute.xlu0 %4920
    %4922 = vrot.lane.b32.xlu0 %v4798, 81
    %v4923 = vpop.permute.xlu0 %4922
    %4924 = vrot.lane.b32.xlu0 %v4824, 81
    %v4925 = vpop.permute.xlu0 %4924
    %4926 = vrot.lane.b32.xlu0 %v4799, 81
    %v4927 = vpop.permute.xlu0 %4926
    %4928 = vrot.lane.b32.xlu0 %v4825, 81
    %v4929 = vpop.permute.xlu0 %4928
    %v4930 = vsel %vm470, %v4923, %v4927
    %v4931 = vsel %vm470, %v4925, %v4929
    %v4932 = vsel %vm470, %v4919, %v4923
    %v4933 = vsel %vm470, %v4921, %v4925
    %v4934 = vsel %vm470, %v4915, %v4919
    %v4935 = vsel %vm470, %v4917, %v4921
    %v4936 = vsel %vm470, %v4911, %v4915
    %v4937 = vsel %vm470, %v4913, %v4917
    %v4938 = vsel %vm470, %v4907, %v4911
    %v4939 = vsel %vm470, %v4909, %v4913
    %v4940 = vsel %vm470, %v4903, %v4907
    %v4941 = vsel %vm470, %v4905, %v4909
    %v4942 = vsel %vm470, %v4899, %v4903
    %v4943 = vsel %vm470, %v4901, %v4905
    %v4944 = vsel %vm470, %v4895, %v4899
    %v4945 = vsel %vm470, %v4897, %v4901
    %v4946 = vsel %vm470, %v4891, %v4895
    %v4947 = vsel %vm470, %v4893, %v4897
    %v4948 = vsel %vm470, %v4887, %v4891
    %v4949 = vsel %vm470, %v4889, %v4893
    %v4950 = vsel %vm470, %v4883, %v4887
    %v4951 = vsel %vm470, %v4885, %v4889
    %v4952 = vsel %vm470, %v4879, %v4883
    %v4953 = vsel %vm470, %v4881, %v4885
    %v4954 = vsel %vm470, %v4875, %v4879
    %v4955 = vsel %vm470, %v4877, %v4881
    %v4956 = vsel %vm470, %v4871, %v4875
    %v4957 = vsel %vm470, %v4873, %v4877
    %v4958 = vsel %vm470, %v4867, %v4871
    %v4959 = vsel %vm470, %v4869, %v4873
    %v4960 = vsel %vm470, %v4863, %v4867
    %v4961 = vsel %vm470, %v4865, %v4869
    %v4962 = vsel %vm470, %v4859, %v4863
    %v4963 = vsel %vm470, %v4861, %v4865
    %v4964 = vsel %vm470, %v4855, %v4859
    %v4965 = vsel %vm470, %v4857, %v4861
    %v4966 = vsel %vm470, %v4851, %v4855
    %v4967 = vsel %vm470, %v4853, %v4857
    %v4968 = vsel %vm470, %v4847, %v4851
    %v4969 = vsel %vm470, %v4849, %v4853
    %v4970 = vsel %vm470, %v4843, %v4847
    %v4971 = vsel %vm470, %v4845, %v4849
    %v4972 = vsel %vm470, %v4839, %v4843
    %v4973 = vsel %vm470, %v4841, %v4845
    %v4974 = vsel %vm470, %v4835, %v4839
    %v4975 = vsel %vm470, %v4837, %v4841
    %v4976 = vsel %vm470, %v4831, %v4835
    %v4977 = vsel %vm470, %v4833, %v4837
    %v4978 = vsel %vm470, %v4827, %v4831
    %v4979 = vsel %vm470, %v4829, %v4833
    %v4980 = vsel %vm470, %v4927, %v4827
    %v4981 = vsel %vm470, %v4929, %v4829
    %v4982 = vld [vmem:[%s1] ss:$8 sm:$0xf]
    %v4983 = vld [vmem:[%s1] ss:$8 sm:$0xf0]
    %v4984 = vor.u32 %v4982, %v4983
    %v4985 = vld [vmem:[%s500] ss:$8 sm:$0xf]
    %v4986 = vld [vmem:[%s500] ss:$8 sm:$0xf0]
    %v4987 = vor.u32 %v4985, %v4986
    %v4988 = vld [vmem:[%s504] ss:$8 sm:$0xf]
    %v4989 = vld [vmem:[%s504] ss:$8 sm:$0xf0]
    %v4990 = vor.u32 %v4988, %v4989
    %v4991 = vld [vmem:[%s508] ss:$8 sm:$0x3]
    %v4996 = vlaneseq
    %v4997 = vshrl.u32 %v4996, 7
    %v4998 = vsub.s32 0, %v4997
    %v4999 = vrot.slane %v4984, %v4998
    %v5000 = vlaneseq
    %v5001 = vshrl.u32 %v5000, 7
    %v5002 = vsub.s32 1, %v5001
    %v5003 = vrot.slane %v4984, %v5002
    %v5004 = vlaneseq
    %v5005 = vshrl.u32 %v5004, 7
    %v5006 = vsub.s32 2, %v5005
    %v5007 = vrot.slane %v4984, %v5006
    %v5008 = vlaneseq
    %v5009 = vshrl.u32 %v5008, 7
    %v5010 = vsub.s32 3, %v5009
    %v5011 = vrot.slane %v4984, %v5010
    %v5012 = vlaneseq
    %v5013 = vshrl.u32 %v5012, 7
    %v5014 = vsub.s32 4, %v5013
    %v5015 = vrot.slane %v4984, %v5014
    %v5016 = vlaneseq
    %v5017 = vshrl.u32 %v5016, 7
    %v5018 = vsub.s32 5, %v5017
    %v5019 = vrot.slane %v4984, %v5018
    %v5020 = vlaneseq
    %v5021 = vshrl.u32 %v5020, 7
    %v5022 = vsub.s32 6, %v5021
    %v5023 = vrot.slane %v4984, %v5022
    %v5024 = vlaneseq
    %v5025 = vshrl.u32 %v5024, 7
    %v5026 = vsub.s32 7, %v5025
    %v5027 = vrot.slane %v4984, %v5026
    %v5028 = vlaneseq
    %v5029 = vshrl.u32 %v5028, 7
    %v5030 = vsub.s32 0, %v5029
    %v5031 = vrot.slane %v4987, %v5030
    %v5032 = vlaneseq
    %v5033 = vshrl.u32 %v5032, 7
    %v5034 = vsub.s32 1, %v5033
    %v5035 = vrot.slane %v4987, %v5034
    %v5036 = vlaneseq
    %v5037 = vshrl.u32 %v5036, 7
    %v5038 = vsub.s32 2, %v5037
    %v5039 = vrot.slane %v4987, %v5038
    %v5040 = vlaneseq
    %v5041 = vshrl.u32 %v5040, 7
    %v5042 = vsub.s32 3, %v5041
    %v5043 = vrot.slane %v4987, %v5042
    %v5044 = vlaneseq
    %v5045 = vshrl.u32 %v5044, 7
    %v5046 = vsub.s32 4, %v5045
    %v5047 = vrot.slane %v4987, %v5046
    %v5048 = vlaneseq
    %v5049 = vshrl.u32 %v5048, 7
    %v5050 = vsub.s32 5, %v5049
    %v5051 = vrot.slane %v4987, %v5050
    %v5052 = vlaneseq
    %v5053 = vshrl.u32 %v5052, 7
    %v5054 = vsub.s32 6, %v5053
    %v5055 = vrot.slane %v4987, %v5054
    %v5056 = vlaneseq
    %v5057 = vshrl.u32 %v5056, 7
    %v5058 = vsub.s32 7, %v5057
    %v5059 = vrot.slane %v4987, %v5058
    %v5060 = vlaneseq
    %v5061 = vshrl.u32 %v5060, 7
    %v5062 = vsub.s32 0, %v5061
    %v5063 = vrot.slane %v4990, %v5062
    %v5064 = vlaneseq
    %v5065 = vshrl.u32 %v5064, 7
    %v5066 = vsub.s32 1, %v5065
    %v5067 = vrot.slane %v4990, %v5066
    %v5068 = vlaneseq
    %v5069 = vshrl.u32 %v5068, 7
    %v5070 = vsub.s32 2, %v5069
    %v5071 = vrot.slane %v4990, %v5070
    %v5072 = vlaneseq
    %v5073 = vshrl.u32 %v5072, 7
    %v5074 = vsub.s32 3, %v5073
    %v5075 = vrot.slane %v4990, %v5074
    %v5076 = vlaneseq
    %v5077 = vshrl.u32 %v5076, 7
    %v5078 = vsub.s32 4, %v5077
    %v5079 = vrot.slane %v4990, %v5078
    %v5080 = vlaneseq
    %v5081 = vshrl.u32 %v5080, 7
    %v5082 = vsub.s32 5, %v5081
    %v5083 = vrot.slane %v4990, %v5082
    %v5084 = vlaneseq
    %v5085 = vshrl.u32 %v5084, 7
    %v5086 = vsub.s32 6, %v5085
    %v5087 = vrot.slane %v4990, %v5086
    %v5088 = vlaneseq
    %v5089 = vshrl.u32 %v5088, 7
    %v5090 = vsub.s32 7, %v5089
    %v5091 = vrot.slane %v4990, %v5090
    %v5092 = vlaneseq
    %v5093 = vshrl.u32 %v5092, 7
    %v5094 = vsub.s32 0, %v5093
    %v5095 = vrot.slane %v4991, %v5094
    %v5096 = vlaneseq
    %v5097 = vshrl.u32 %v5096, 7
    %v5098 = vsub.s32 1, %v5097
    %v5099 = vrot.slane %v4991, %v5098
    %v5126 = vmul.f32 %v4930, %v4999
    %v5127 = vmul.f32 %v4980, %v5003
    %v5128 = vmul.f32 %v4978, %v5007
    %v5129 = vmul.f32 %v4976, %v5011
    %v5130 = vmul.f32 %v4974, %v5015
    %v5131 = vmul.f32 %v4972, %v5019
    %v5132 = vmul.f32 %v4970, %v5023
    %v5133 = vmul.f32 %v4968, %v5027
    %v5134 = vmul.f32 %v4966, %v5031
    %v5135 = vmul.f32 %v4964, %v5035
    %v5136 = vmul.f32 %v4962, %v5039
    %v5137 = vmul.f32 %v4960, %v5043
    %v5138 = vmul.f32 %v4958, %v5047
    %v5139 = vmul.f32 %v4956, %v5051
    %v5140 = vmul.f32 %v4954, %v5055
    %v5141 = vmul.f32 %v4952, %v5059
    %v5142 = vmul.f32 %v4950, %v5063
    %v5143 = vmul.f32 %v4948, %v5067
    %v5144 = vmul.f32 %v4946, %v5071
    %v5145 = vmul.f32 %v4944, %v5075
    %v5146 = vmul.f32 %v4942, %v5079
    %v5147 = vmul.f32 %v4940, %v5083
    %v5148 = vmul.f32 %v4938, %v5087
    %v5149 = vmul.f32 %v4936, %v5091
    %v5150 = vmul.f32 %v4934, %v5095
    %v5151 = vmul.f32 %v4932, %v5099
    %v5152 = vmul.f32 %v4931, %v4999
    %v5153 = vmul.f32 %v4981, %v5003
    %v5154 = vmul.f32 %v4979, %v5007
    %v5155 = vmul.f32 %v4977, %v5011
    %v5156 = vmul.f32 %v4975, %v5015
    %v5157 = vmul.f32 %v4973, %v5019
    %v5158 = vmul.f32 %v4971, %v5023
    %v5159 = vmul.f32 %v4969, %v5027
    %v5160 = vmul.f32 %v4967, %v5031
    %v5161 = vmul.f32 %v4965, %v5035
    %v5162 = vmul.f32 %v4963, %v5039
    %v5163 = vmul.f32 %v4961, %v5043
    %v5164 = vmul.f32 %v4959, %v5047
    %v5165 = vmul.f32 %v4957, %v5051
    %v5166 = vmul.f32 %v4955, %v5055
    %v5167 = vmul.f32 %v4953, %v5059
    %v5168 = vmul.f32 %v4951, %v5063
    %v5169 = vmul.f32 %v4949, %v5067
    %v5170 = vmul.f32 %v4947, %v5071
    %v5171 = vmul.f32 %v4945, %v5075
    %v5172 = vmul.f32 %v4943, %v5079
    %v5173 = vmul.f32 %v4941, %v5083
    %v5174 = vmul.f32 %v4939, %v5087
    %v5175 = vmul.f32 %v4937, %v5091
    %v5176 = vmul.f32 %v4935, %v5095
    %v5177 = vmul.f32 %v4933, %v5099
    %v5178 = vpack.c.bf16 %v5152, %v5126
    %v5179 = vpack.c.bf16 %v5153, %v5127
    %v5180 = vpack.c.bf16 %v5154, %v5128
    %v5181 = vpack.c.bf16 %v5155, %v5129
    %v5182 = vpack.c.bf16 %v5156, %v5130
    %v5183 = vpack.c.bf16 %v5157, %v5131
    %v5184 = vpack.c.bf16 %v5158, %v5132
    %v5185 = vpack.c.bf16 %v5159, %v5133
    %v5186 = vpack.c.bf16 %v5160, %v5134
    %v5187 = vpack.c.bf16 %v5161, %v5135
    %v5188 = vpack.c.bf16 %v5162, %v5136
    %v5189 = vpack.c.bf16 %v5163, %v5137
    %v5190 = vpack.c.bf16 %v5164, %v5138
    %v5191 = vpack.c.bf16 %v5165, %v5139
    %v5192 = vpack.c.bf16 %v5166, %v5140
    %v5193 = vpack.c.bf16 %v5167, %v5141
    %v5194 = vpack.c.bf16 %v5168, %v5142
    %v5195 = vpack.c.bf16 %v5169, %v5143
    %v5196 = vpack.c.bf16 %v5170, %v5144
    %v5197 = vpack.c.bf16 %v5171, %v5145
    %v5198 = vpack.c.bf16 %v5172, %v5146
    %v5199 = vpack.c.bf16 %v5173, %v5147
    %v5200 = vpack.c.bf16 %v5174, %v5148
    %v5201 = vpack.c.bf16 %v5175, %v5149
    %v5202 = vpack.c.bf16 %v5176, %v5150
    %v5203 = vpack.c.bf16 %v5177, %v5151
    %v5230 = vunpack.c.l.b16 %v5178
    %v5231 = vunpack.c.l.b16 %v5179
    %v5232 = vunpack.c.l.b16 %v5180
    %v5233 = vunpack.c.l.b16 %v5181
    %v5234 = vunpack.c.l.b16 %v5182
    %v5235 = vunpack.c.l.b16 %v5183
    %v5236 = vunpack.c.l.b16 %v5184
    %v5237 = vunpack.c.l.b16 %v5185
    %v5238 = vunpack.c.l.b16 %v5186
    %v5239 = vunpack.c.l.b16 %v5187
    %v5240 = vunpack.c.l.b16 %v5188
    %v5241 = vunpack.c.l.b16 %v5189
    %v5242 = vunpack.c.l.b16 %v5190
    %v5243 = vunpack.c.l.b16 %v5191
    %v5244 = vunpack.c.l.b16 %v5192
    %v5245 = vunpack.c.l.b16 %v5193
    %v5246 = vunpack.c.l.b16 %v5194
    %v5247 = vunpack.c.l.b16 %v5195
    %v5248 = vunpack.c.l.b16 %v5196
    %v5249 = vunpack.c.l.b16 %v5197
    %v5250 = vunpack.c.l.b16 %v5198
    %v5251 = vunpack.c.l.b16 %v5199
    %v5252 = vunpack.c.l.b16 %v5200
    %v5253 = vunpack.c.l.b16 %v5201
    %v5254 = vunpack.c.l.b16 %v5202
    %v5255 = vunpack.c.l.b16 %v5203
    %v5256 = vunpack.c.h.b16 %v5178
    %v5257 = vunpack.c.h.b16 %v5179
    %v5258 = vunpack.c.h.b16 %v5180
    %v5259 = vunpack.c.h.b16 %v5181
    %v5260 = vunpack.c.h.b16 %v5182
    %v5261 = vunpack.c.h.b16 %v5183
    %v5262 = vunpack.c.h.b16 %v5184
    %v5263 = vunpack.c.h.b16 %v5185
    %v5264 = vunpack.c.h.b16 %v5186
    %v5265 = vunpack.c.h.b16 %v5187
    %v5266 = vunpack.c.h.b16 %v5188
    %v5267 = vunpack.c.h.b16 %v5189
    %v5268 = vunpack.c.h.b16 %v5190
    %v5269 = vunpack.c.h.b16 %v5191
    %v5270 = vunpack.c.h.b16 %v5192
    %v5271 = vunpack.c.h.b16 %v5193
    %v5272 = vunpack.c.h.b16 %v5194
    %v5273 = vunpack.c.h.b16 %v5195
    %v5274 = vunpack.c.h.b16 %v5196
    %v5275 = vunpack.c.h.b16 %v5197
    %v5276 = vunpack.c.h.b16 %v5198
    %v5277 = vunpack.c.h.b16 %v5199
    %v5278 = vunpack.c.h.b16 %v5200
    %v5279 = vunpack.c.h.b16 %v5201
    %v5280 = vunpack.c.h.b16 %v5202
    %v5281 = vunpack.c.h.b16 %v5203
    %v5282 = vpack.c.b16 %v5231, %v5230
    %v5283 = vpack.c.b16 %v5233, %v5232
    %v5284 = vpack.c.b16 %v5235, %v5234
    %v5285 = vpack.c.b16 %v5237, %v5236
    %v5286 = vpack.c.b16 %v5239, %v5238
    %v5287 = vpack.c.b16 %v5241, %v5240
    %v5288 = vpack.c.b16 %v5243, %v5242
    %v5289 = vpack.c.b16 %v5245, %v5244
    %v5290 = vpack.c.b16 %v5247, %v5246
    %v5291 = vpack.c.b16 %v5249, %v5248
    %v5292 = vpack.c.b16 %v5251, %v5250
    %v5293 = vpack.c.b16 %v5253, %v5252
    %v5294 = vpack.c.b16 %v5255, %v5254
    %v5295 = vpack.c.b16 %v5257, %v5256
    %v5296 = vpack.c.b16 %v5259, %v5258
    %v5297 = vpack.c.b16 %v5261, %v5260
    %v5298 = vpack.c.b16 %v5263, %v5262
    %v5299 = vpack.c.b16 %v5265, %v5264
    %v5300 = vpack.c.b16 %v5267, %v5266
    %v5301 = vpack.c.b16 %v5269, %v5268
    %v5302 = vpack.c.b16 %v5271, %v5270
    %v5303 = vpack.c.b16 %v5273, %v5272
    %v5304 = vpack.c.b16 %v5275, %v5274
    %v5305 = vpack.c.b16 %v5277, %v5276
    %v5306 = vpack.c.b16 %v5279, %v5278
    %v5307 = vpack.c.b16 %v5281, %v5280
    %5334 = vst [vmem:[#allocation3] sm:$0xff] %v5282
    %5335 = vst [vmem:[#allocation3 + $0x8] sm:$0xff] %v5283
    %5336 = vst [vmem:[#allocation3 + $0x10] sm:$0xff] %v5284
    %5337 = vst [vmem:[#allocation3 + $0x18] sm:$0xff] %v5285
    %5338 = vst [vmem:[#allocation3 + $0x20] sm:$0xff] %v5286
    %5339 = vst [vmem:[#allocation3 + $0x28] sm:$0xff] %v5287
    %5340 = vst [vmem:[#allocation3 + $0x30] sm:$0xff] %v5288
    %5341 = vst [vmem:[#allocation3 + $0x38] sm:$0xff] %v5289
    %5342 = vst [vmem:[#allocation3 + $0x40] sm:$0xff] %v5290
    %5343 = vst [vmem:[#allocation3 + $0x48] sm:$0xff] %v5291
    %5344 = vst [vmem:[#allocation3 + $0x50] sm:$0xff] %v5292
    %5345 = vst [vmem:[#allocation3 + $0x58] sm:$0xff] %v5293
    %5346 = vst [vmem:[#allocation3 + $0x60] sm:$0xff] %v5294
    %5347 = vst [vmem:[#allocation3 + $0x68] sm:$0xff] %v5295
    %5348 = vst [vmem:[#allocation3 + $0x70] sm:$0xff] %v5296
    %5349 = vst [vmem:[#allocation3 + $0x78] sm:$0xff] %v5297
    %5350 = vst [vmem:[#allocation3 + $0x80] sm:$0xff] %v5298
    %5351 = vst [vmem:[#allocation3 + $0x88] sm:$0xff] %v5299
    %5352 = vst [vmem:[#allocation3 + $0x90] sm:$0xff] %v5300
    %5353 = vst [vmem:[#allocation3 + $0x98] sm:$0xff] %v5301
    %5354 = vst [vmem:[#allocation3 + $0xa0] sm:$0xff] %v5302
    %5355 = vst [vmem:[#allocation3 + $0xa8] sm:$0xff] %v5303
    %5356 = vst [vmem:[#allocation3 + $0xb0] sm:$0xff] %v5304
    %5357 = vst [vmem:[#allocation3 + $0xb8] sm:$0xff] %v5305
    %5358 = vst [vmem:[#allocation3 + $0xc0] sm:$0xff] %v5306
    %5359 = vst [vmem:[#allocation3 + $0xc8] sm:$0xff] %v5307
    %5360 = vrot.lane.b32.xlu0 %v4774, 80
    %v5361 = vpop.permute.xlu0 %5360
    %5362 = vrot.lane.b32.xlu0 %v4800, 80
    %v5363 = vpop.permute.xlu0 %5362
    %5364 = vrot.lane.b32.xlu0 %v4775, 80
    %v5365 = vpop.permute.xlu0 %5364
    %5366 = vrot.lane.b32.xlu0 %v4801, 80
    %v5367 = vpop.permute.xlu0 %5366
    %5368 = vrot.lane.b32.xlu0 %v4776, 80
    %v5369 = vpop.permute.xlu0 %5368
    %5370 = vrot.lane.b32.xlu0 %v4802, 80
    %v5371 = vpop.permute.xlu0 %5370
    %5372 = vrot.lane.b32.xlu0 %v4777, 80
    %v5373 = vpop.permute.xlu0 %5372
    %5374 = vrot.lane.b32.xlu0 %v4803, 80
    %v5375 = vpop.permute.xlu0 %5374
    %5376 = vrot.lane.b32.xlu0 %v4778, 80
    %v5377 = vpop.permute.xlu0 %5376
    %5378 = vrot.lane.b32.xlu0 %v4804, 80
    %v5379 = vpop.permute.xlu0 %5378
    %5380 = vrot.lane.b32.xlu0 %v4779, 80
    %v5381 = vpop.permute.xlu0 %5380
    %5382 = vrot.lane.b32.xlu0 %v4805, 80
    %v5383 = vpop.permute.xlu0 %5382
    %5384 = vrot.lane.b32.xlu0 %v4780, 80
    %v5385 = vpop.permute.xlu0 %5384
    %5386 = vrot.lane.b32.xlu0 %v4806, 80
    %v5387 = vpop.permute.xlu0 %5386
    %5388 = vrot.lane.b32.xlu0 %v4781, 80
    %v5389 = vpop.permute.xlu0 %5388
    %5390 = vrot.lane.b32.xlu0 %v4807, 80
    %v5391 = vpop.permute.xlu0 %5390
    %5392 = vrot.lane.b32.xlu0 %v4782, 80
    %v5393 = vpop.permute.xlu0 %5392
    %5394 = vrot.lane.b32.xlu0 %v4808, 80
    %v5395 = vpop.permute.xlu0 %5394
    %5396 = vrot.lane.b32.xlu0 %v4783, 80
    %v5397 = vpop.permute.xlu0 %5396
    %5398 = vrot.lane.b32.xlu0 %v4809, 80
    %v5399 = vpop.permute.xlu0 %5398
    %5400 = vrot.lane.b32.xlu0 %v4784, 80
    %v5401 = vpop.permute.xlu0 %5400
    %5402 = vrot.lane.b32.xlu0 %v4810, 80
    %v5403 = vpop.permute.xlu0 %5402
    %5404 = vrot.lane.b32.xlu0 %v4785, 80
    %v5405 = vpop.permute.xlu0 %5404
    %5406 = vrot.lane.b32.xlu0 %v4811, 80
    %v5407 = vpop.permute.xlu0 %5406
    %5408 = vrot.lane.b32.xlu0 %v4786, 80
    %v5409 = vpop.permute.xlu0 %5408
    %5410 = vrot.lane.b32.xlu0 %v4812, 80
    %v5411 = vpop.permute.xlu0 %5410
    %5412 = vrot.lane.b32.xlu0 %v4787, 80
    %v5413 = vpop.permute.xlu0 %5412
    %5414 = vrot.lane.b32.xlu0 %v4813, 80
    %v5415 = vpop.permute.xlu0 %5414
    %5416 = vrot.lane.b32.xlu0 %v4788, 80
    %v5417 = vpop.permute.xlu0 %5416
    %5418 = vrot.lane.b32.xlu0 %v4814, 80
    %v5419 = vpop.permute.xlu0 %5418
    %5420 = vrot.lane.b32.xlu0 %v4789, 80
    %v5421 = vpop.permute.xlu0 %5420
    %5422 = vrot.lane.b32.xlu0 %v4815, 80
    %v5423 = vpop.permute.xlu0 %5422
    %5424 = vrot.lane.b32.xlu0 %v4790, 80
    %v5425 = vpop.permute.xlu0 %5424
    %5426 = vrot.lane.b32.xlu0 %v4816, 80
    %v5427 = vpop.permute.xlu0 %5426
    %5428 = vrot.lane.b32.xlu0 %v4791, 80
    %v5429 = vpop.permute.xlu0 %5428
    %5430 = vrot.lane.b32.xlu0 %v4817, 80
    %v5431 = vpop.permute.xlu0 %5430
    %5432 = vrot.lane.b32.xlu0 %v4792, 80
    %v5433 = vpop.permute.xlu0 %5432
    %5434 = vrot.lane.b32.xlu0 %v4818, 80
    %v5435 = vpop.permute.xlu0 %5434
    %5436 = vrot.lane.b32.xlu0 %v4793, 80
    %v5437 = vpop.permute.xlu0 %5436
    %5438 = vrot.lane.b32.xlu0 %v4819, 80
    %v5439 = vpop.permute.xlu0 %5438
    %5440 = vrot.lane.b32.xlu0 %v4794, 80
    %v5441 = vpop.permute.xlu0 %5440
    %5442 = vrot.lane.b32.xlu0 %v4820, 80
    %v5443 = vpop.permute.xlu0 %5442
    %5444 = vrot.lane.b32.xlu0 %v4795, 80
    %v5445 = vpop.permute.xlu0 %5444
    %5446 = vrot.lane.b32.xlu0 %v4821, 80
    %v5447 = vpop.permute.xlu0 %5446
    %5448 = vrot.lane.b32.xlu0 %v4796, 80
    %v5449 = vpop.permute.xlu0 %5448
    %5450 = vrot.lane.b32.xlu0 %v4822, 80
    %v5451 = vpop.permute.xlu0 %5450
    %5452 = vrot.lane.b32.xlu0 %v4797, 80
    %v5453 = vpop.permute.xlu0 %5452
    %5454 = vrot.lane.b32.xlu0 %v4823, 80
    %v5455 = vpop.permute.xlu0 %5454
    %5456 = vrot.lane.b32.xlu0 %v4798, 80
    %v5457 = vpop.permute.xlu0 %5456
    %5458 = vrot.lane.b32.xlu0 %v4824, 80
    %v5459 = vpop.permute.xlu0 %5458
    %5460 = vrot.lane.b32.xlu0 %v4799, 80
    %v5461 = vpop.permute.xlu0 %5460
    %5462 = vrot.lane.b32.xlu0 %v4825, 80
    %v5463 = vpop.permute.xlu0 %5462
    %v5464 = vsel %vm929, %v5457, %v5461
    %v5465 = vsel %vm929, %v5459, %v5463
    %v5466 = vsel %vm929, %v5453, %v5457
    %v5467 = vsel %vm929, %v5455, %v5459
    %v5468 = vsel %vm929, %v5449, %v5453
    %v5469 = vsel %vm929, %v5451, %v5455
    %v5470 = vsel %vm929, %v5445, %v5449
    %v5471 = vsel %vm929, %v5447, %v5451
    %v5472 = vsel %vm929, %v5441, %v5445
    %v5473 = vsel %vm929, %v5443, %v5447
    %v5474 = vsel %vm929, %v5437, %v5441
    %v5475 = vsel %vm929, %v5439, %v5443
    %v5476 = vsel %vm929, %v5433, %v5437
    %v5477 = vsel %vm929, %v5435, %v5439
    %v5478 = vsel %vm929, %v5429, %v5433
    %v5479 = vsel %vm929, %v5431, %v5435
    %v5480 = vsel %vm929, %v5425, %v5429
    %v5481 = vsel %vm929, %v5427, %v5431
    %v5482 = vsel %vm929, %v5421, %v5425
    %v5483 = vsel %vm929, %v5423, %v5427
    %v5484 = vsel %vm929, %v5417, %v5421
    %v5485 = vsel %vm929, %v5419, %v5423
    %v5486 = vsel %vm929, %v5413, %v5417
    %v5487 = vsel %vm929, %v5415, %v5419
    %v5488 = vsel %vm929, %v5409, %v5413
    %v5489 = vsel %vm929, %v5411, %v5415
    %v5490 = vsel %vm929, %v5405, %v5409
    %v5491 = vsel %vm929, %v5407, %v5411
    %v5492 = vsel %vm929, %v5401, %v5405
    %v5493 = vsel %vm929, %v5403, %v5407
    %v5494 = vsel %vm929, %v5397, %v5401
    %v5495 = vsel %vm929, %v5399, %v5403
    %v5496 = vsel %vm929, %v5393, %v5397
    %v5497 = vsel %vm929, %v5395, %v5399
    %v5498 = vsel %vm929, %v5389, %v5393
    %v5499 = vsel %vm929, %v5391, %v5395
    %v5500 = vsel %vm929, %v5385, %v5389
    %v5501 = vsel %vm929, %v5387, %v5391
    %v5502 = vsel %vm929, %v5381, %v5385
    %v5503 = vsel %vm929, %v5383, %v5387
    %v5504 = vsel %vm929, %v5377, %v5381
    %v5505 = vsel %vm929, %v5379, %v5383
    %v5506 = vsel %vm929, %v5373, %v5377
    %v5507 = vsel %vm929, %v5375, %v5379
    %v5508 = vsel %vm929, %v5369, %v5373
    %v5509 = vsel %vm929, %v5371, %v5375
    %v5510 = vsel %vm929, %v5365, %v5369
    %v5511 = vsel %vm929, %v5367, %v5371
    %v5512 = vsel %vm929, %v5361, %v5365
    %v5513 = vsel %vm929, %v5363, %v5367
    %v5514 = vsel %vm929, %v5461, %v5361
    %v5515 = vsel %vm929, %v5463, %v5363
    %v5516 = vld [vmem:[%s956] ss:$8 sm:$0xf]
    %v5517 = vld [vmem:[%s956] ss:$8 sm:$0xf0]
    %v5518 = vor.u32 %v5516, %v5517
    %v5519 = vld [vmem:[%s960] ss:$8 sm:$0xf]
    %v5520 = vld [vmem:[%s960] ss:$8 sm:$0xf0]
    %v5521 = vor.u32 %v5519, %v5520
    %v5522 = vld [vmem:[%s964] ss:$8 sm:$0xf]
    %v5523 = vld [vmem:[%s964] ss:$8 sm:$0xf0]
    %v5524 = vor.u32 %v5522, %v5523
    %v5525 = vld [vmem:[%s968] ss:$8 sm:$0x3]
    %v5530 = vlaneseq
    %v5531 = vshrl.u32 %v5530, 7
    %v5532 = vsub.s32 0, %v5531
    %v5533 = vrot.slane %v5518, %v5532
    %v5534 = vlaneseq
    %v5535 = vshrl.u32 %v5534, 7
    %v5536 = vsub.s32 1, %v5535
    %v5537 = vrot.slane %v5518, %v5536
    %v5538 = vlaneseq
    %v5539 = vshrl.u32 %v5538, 7
    %v5540 = vsub.s32 2, %v5539
    %v5541 = vrot.slane %v5518, %v5540
    %v5542 = vlaneseq
    %v5543 = vshrl.u32 %v5542, 7
    %v5544 = vsub.s32 3, %v5543
    %v5545 = vrot.slane %v5518, %v5544
    %v5546 = vlaneseq
    %v5547 = vshrl.u32 %v5546, 7
    %v5548 = vsub.s32 4, %v5547
    %v5549 = vrot.slane %v5518, %v5548
    %v5550 = vlaneseq
    %v5551 = vshrl.u32 %v5550, 7
    %v5552 = vsub.s32 5, %v5551
    %v5553 = vrot.slane %v5518, %v5552
    %v5554 = vlaneseq
    %v5555 = vshrl.u32 %v5554, 7
    %v5556 = vsub.s32 6, %v5555
    %v5557 = vrot.slane %v5518, %v5556
    %v5558 = vlaneseq
    %v5559 = vshrl.u32 %v5558, 7
    %v5560 = vsub.s32 7, %v5559
    %v5561 = vrot.slane %v5518, %v5560
    %v5562 = vlaneseq
    %v5563 = vshrl.u32 %v5562, 7
    %v5564 = vsub.s32 0, %v5563
    %v5565 = vrot.slane %v5521, %v5564
    %v5566 = vlaneseq
    %v5567 = vshrl.u32 %v5566, 7
    %v5568 = vsub.s32 1, %v5567
    %v5569 = vrot.slane %v5521, %v5568
    %v5570 = vlaneseq
    %v5571 = vshrl.u32 %v5570, 7
    %v5572 = vsub.s32 2, %v5571
    %v5573 = vrot.slane %v5521, %v5572
    %v5574 = vlaneseq
    %v5575 = vshrl.u32 %v5574, 7
    %v5576 = vsub.s32 3, %v5575
    %v5577 = vrot.slane %v5521, %v5576
    %v5578 = vlaneseq
    %v5579 = vshrl.u32 %v5578, 7
    %v5580 = vsub.s32 4, %v5579
    %v5581 = vrot.slane %v5521, %v5580
    %v5582 = vlaneseq
    %v5583 = vshrl.u32 %v5582, 7
    %v5584 = vsub.s32 5, %v5583
    %v5585 = vrot.slane %v5521, %v5584
    %v5586 = vlaneseq
    %v5587 = vshrl.u32 %v5586, 7
    %v5588 = vsub.s32 6, %v5587
    %v5589 = vrot.slane %v5521, %v5588
    %v5590 = vlaneseq
    %v5591 = vshrl.u32 %v5590, 7
    %v5592 = vsub.s32 7, %v5591
    %v5593 = vrot.slane %v5521, %v5592
    %v5594 = vlaneseq
    %v5595 = vshrl.u32 %v5594, 7
    %v5596 = vsub.s32 0, %v5595
    %v5597 = vrot.slane %v5524, %v5596
    %v5598 = vlaneseq
    %v5599 = vshrl.u32 %v5598, 7
    %v5600 = vsub.s32 1, %v5599
    %v5601 = vrot.slane %v5524, %v5600
    %v5602 = vlaneseq
    %v5603 = vshrl.u32 %v5602, 7
    %v5604 = vsub.s32 2, %v5603
    %v5605 = vrot.slane %v5524, %v5604
    %v5606 = vlaneseq
    %v5607 = vshrl.u32 %v5606, 7
    %v5608 = vsub.s32 3, %v5607
    %v5609 = vrot.slane %v5524, %v5608
    %v5610 = vlaneseq
    %v5611 = vshrl.u32 %v5610, 7
    %v5612 = vsub.s32 4, %v5611
    %v5613 = vrot.slane %v5524, %v5612
    %v5614 = vlaneseq
    %v5615 = vshrl.u32 %v5614, 7
    %v5616 = vsub.s32 5, %v5615
    %v5617 = vrot.slane %v5524, %v5616
    %v5618 = vlaneseq
    %v5619 = vshrl.u32 %v5618, 7
    %v5620 = vsub.s32 6, %v5619
    %v5621 = vrot.slane %v5524, %v5620
    %v5622 = vlaneseq
    %v5623 = vshrl.u32 %v5622, 7
    %v5624 = vsub.s32 7, %v5623
    %v5625 = vrot.slane %v5524, %v5624
    %v5626 = vlaneseq
    %v5627 = vshrl.u32 %v5626, 7
    %v5628 = vsub.s32 0, %v5627
    %v5629 = vrot.slane %v5525, %v5628
    %v5630 = vlaneseq
    %v5631 = vshrl.u32 %v5630, 7
    %v5632 = vsub.s32 1, %v5631
    %v5633 = vrot.slane %v5525, %v5632
    %v5660 = vmul.f32 %v5464, %v5533
    %v5661 = vmul.f32 %v5514, %v5537
    %v5662 = vmul.f32 %v5512, %v5541
    %v5663 = vmul.f32 %v5510, %v5545
    %v5664 = vmul.f32 %v5508, %v5549
    %v5665 = vmul.f32 %v5506, %v5553
    %v5666 = vmul.f32 %v5504, %v5557
    %v5667 = vmul.f32 %v5502, %v5561
    %v5668 = vmul.f32 %v5500, %v5565
    %v5669 = vmul.f32 %v5498, %v5569
    %v5670 = vmul.f32 %v5496, %v5573
    %v5671 = vmul.f32 %v5494, %v5577
    %v5672 = vmul.f32 %v5492, %v5581
    %v5673 = vmul.f32 %v5490, %v5585
    %v5674 = vmul.f32 %v5488, %v5589
    %v5675 = vmul.f32 %v5486, %v5593
    %v5676 = vmul.f32 %v5484, %v5597
    %v5677 = vmul.f32 %v5482, %v5601
    %v5678 = vmul.f32 %v5480, %v5605
    %v5679 = vmul.f32 %v5478, %v5609
    %v5680 = vmul.f32 %v5476, %v5613
    %v5681 = vmul.f32 %v5474, %v5617
    %v5682 = vmul.f32 %v5472, %v5621
    %v5683 = vmul.f32 %v5470, %v5625
    %v5684 = vmul.f32 %v5468, %v5629
    %v5685 = vmul.f32 %v5466, %v5633
    %v5686 = vmul.f32 %v5465, %v5533
    %v5687 = vmul.f32 %v5515, %v5537
    %v5688 = vmul.f32 %v5513, %v5541
    %v5689 = vmul.f32 %v5511, %v5545
    %v5690 = vmul.f32 %v5509, %v5549
    %v5691 = vmul.f32 %v5507, %v5553
    %v5692 = vmul.f32 %v5505, %v5557
    %v5693 = vmul.f32 %v5503, %v5561
    %v5694 = vmul.f32 %v5501, %v5565
    %v5695 = vmul.f32 %v5499, %v5569
    %v5696 = vmul.f32 %v5497, %v5573
    %v5697 = vmul.f32 %v5495, %v5577
    %v5698 = vmul.f32 %v5493, %v5581
    %v5699 = vmul.f32 %v5491, %v5585
    %v5700 = vmul.f32 %v5489, %v5589
    %v5701 = vmul.f32 %v5487, %v5593
    %v5702 = vmul.f32 %v5485, %v5597
    %v5703 = vmul.f32 %v5483, %v5601
    %v5704 = vmul.f32 %v5481, %v5605
    %v5705 = vmul.f32 %v5479, %v5609
    %v5706 = vmul.f32 %v5477, %v5613
    %v5707 = vmul.f32 %v5475, %v5617
    %v5708 = vmul.f32 %v5473, %v5621
    %v5709 = vmul.f32 %v5471, %v5625
    %v5710 = vmul.f32 %v5469, %v5629
    %v5711 = vmul.f32 %v5467, %v5633
    %v5712 = vpack.c.bf16 %v5686, %v5660
    %v5713 = vpack.c.bf16 %v5687, %v5661
    %v5714 = vpack.c.bf16 %v5688, %v5662
    %v5715 = vpack.c.bf16 %v5689, %v5663
    %v5716 = vpack.c.bf16 %v5690, %v5664
    %v5717 = vpack.c.bf16 %v5691, %v5665
    %v5718 = vpack.c.bf16 %v5692, %v5666
    %v5719 = vpack.c.bf16 %v5693, %v5667
    %v5720 = vpack.c.bf16 %v5694, %v5668
    %v5721 = vpack.c.bf16 %v5695, %v5669
    %v5722 = vpack.c.bf16 %v5696, %v5670
    %v5723 = vpack.c.bf16 %v5697, %v5671
    %v5724 = vpack.c.bf16 %v5698, %v5672
    %v5725 = vpack.c.bf16 %v5699, %v5673
    %v5726 = vpack.c.bf16 %v5700, %v5674
    %v5727 = vpack.c.bf16 %v5701, %v5675
    %v5728 = vpack.c.bf16 %v5702, %v5676
    %v5729 = vpack.c.bf16 %v5703, %v5677
    %v5730 = vpack.c.bf16 %v5704, %v5678
    %v5731 = vpack.c.bf16 %v5705, %v5679
    %v5732 = vpack.c.bf16 %v5706, %v5680
    %v5733 = vpack.c.bf16 %v5707, %v5681
    %v5734 = vpack.c.bf16 %v5708, %v5682
    %v5735 = vpack.c.bf16 %v5709, %v5683
    %v5736 = vpack.c.bf16 %v5710, %v5684
    %v5737 = vpack.c.bf16 %v5711, %v5685
    %v5764 = vunpack.c.l.b16 %v5712
    %v5765 = vunpack.c.l.b16 %v5713
    %v5766 = vunpack.c.l.b16 %v5714
    %v5767 = vunpack.c.l.b16 %v5715
    %v5768 = vunpack.c.l.b16 %v5716
    %v5769 = vunpack.c.l.b16 %v5717
    %v5770 = vunpack.c.l.b16 %v5718
    %v5771 = vunpack.c.l.b16 %v5719
    %v5772 = vunpack.c.l.b16 %v5720
    %v5773 = vunpack.c.l.b16 %v5721
    %v5774 = vunpack.c.l.b16 %v5722
    %v5775 = vunpack.c.l.b16 %v5723
    %v5776 = vunpack.c.l.b16 %v5724
    %v5777 = vunpack.c.l.b16 %v5725
    %v5778 = vunpack.c.l.b16 %v5726
    %v5779 = vunpack.c.l.b16 %v5727
    %v5780 = vunpack.c.l.b16 %v5728
    %v5781 = vunpack.c.l.b16 %v5729
    %v5782 = vunpack.c.l.b16 %v5730
    %v5783 = vunpack.c.l.b16 %v5731
    %v5784 = vunpack.c.l.b16 %v5732
    %v5785 = vunpack.c.l.b16 %v5733
    %v5786 = vunpack.c.l.b16 %v5734
    %v5787 = vunpack.c.l.b16 %v5735
    %v5788 = vunpack.c.l.b16 %v5736
    %v5789 = vunpack.c.l.b16 %v5737
    %v5790 = vunpack.c.h.b16 %v5712
    %v5791 = vunpack.c.h.b16 %v5713
    %v5792 = vunpack.c.h.b16 %v5714
    %v5793 = vunpack.c.h.b16 %v5715
    %v5794 = vunpack.c.h.b16 %v5716
    %v5795 = vunpack.c.h.b16 %v5717
    %v5796 = vunpack.c.h.b16 %v5718
    %v5797 = vunpack.c.h.b16 %v5719
    %v5798 = vunpack.c.h.b16 %v5720
    %v5799 = vunpack.c.h.b16 %v5721
    %v5800 = vunpack.c.h.b16 %v5722
    %v5801 = vunpack.c.h.b16 %v5723
    %v5802 = vunpack.c.h.b16 %v5724
    %v5803 = vunpack.c.h.b16 %v5725
    %v5804 = vunpack.c.h.b16 %v5726
    %v5805 = vunpack.c.h.b16 %v5727
    %v5806 = vunpack.c.h.b16 %v5728
    %v5807 = vunpack.c.h.b16 %v5729
    %v5808 = vunpack.c.h.b16 %v5730
    %v5809 = vunpack.c.h.b16 %v5731
    %v5810 = vunpack.c.h.b16 %v5732
    %v5811 = vunpack.c.h.b16 %v5733
    %v5812 = vunpack.c.h.b16 %v5734
    %v5813 = vunpack.c.h.b16 %v5735
    %v5814 = vunpack.c.h.b16 %v5736
    %v5815 = vunpack.c.h.b16 %v5737
    %v5816 = vpack.c.b16 %v5765, %v5764
    %v5817 = vpack.c.b16 %v5767, %v5766
    %v5818 = vpack.c.b16 %v5769, %v5768
    %v5819 = vpack.c.b16 %v5771, %v5770
    %v5820 = vpack.c.b16 %v5773, %v5772
    %v5821 = vpack.c.b16 %v5775, %v5774
    %v5822 = vpack.c.b16 %v5777, %v5776
    %v5823 = vpack.c.b16 %v5779, %v5778
    %v5824 = vpack.c.b16 %v5781, %v5780
    %v5825 = vpack.c.b16 %v5783, %v5782
    %v5826 = vpack.c.b16 %v5785, %v5784
    %v5827 = vpack.c.b16 %v5787, %v5786
    %v5828 = vpack.c.b16 %v5789, %v5788
    %v5829 = vpack.c.b16 %v5791, %v5790
    %v5830 = vpack.c.b16 %v5793, %v5792
    %v5831 = vpack.c.b16 %v5795, %v5794
    %v5832 = vpack.c.b16 %v5797, %v5796
    %v5833 = vpack.c.b16 %v5799, %v5798
    %v5834 = vpack.c.b16 %v5801, %v5800
    %v5835 = vpack.c.b16 %v5803, %v5802
    %v5836 = vpack.c.b16 %v5805, %v5804
    %v5837 = vpack.c.b16 %v5807, %v5806
    %v5838 = vpack.c.b16 %v5809, %v5808
    %v5839 = vpack.c.b16 %v5811, %v5810
    %v5840 = vpack.c.b16 %v5813, %v5812
    %v5841 = vpack.c.b16 %v5815, %v5814
    %5868 = vst [vmem:[#allocation3 + $0xd0] sm:$0xff] %v5816
    %5869 = vst [vmem:[#allocation3 + $0xd8] sm:$0xff] %v5817
    %5870 = vst [vmem:[#allocation3 + $0xe0] sm:$0xff] %v5818
    %5871 = vst [vmem:[#allocation3 + $0xe8] sm:$0xff] %v5819
    %5872 = vst [vmem:[#allocation3 + $0xf0] sm:$0xff] %v5820
    %5873 = vst [vmem:[#allocation3 + $0xf8] sm:$0xff] %v5821
    %5874 = vst [vmem:[#allocation3 + $0x100] sm:$0xff] %v5822
    %5875 = vst [vmem:[#allocation3 + $0x108] sm:$0xff] %v5823
    %5876 = vst [vmem:[#allocation3 + $0x110] sm:$0xff] %v5824
    %5877 = vst [vmem:[#allocation3 + $0x118] sm:$0xff] %v5825
    %5878 = vst [vmem:[#allocation3 + $0x120] sm:$0xff] %v5826
    %5879 = vst [vmem:[#allocation3 + $0x128] sm:$0xff] %v5827
    %5880 = vst [vmem:[#allocation3 + $0x130] sm:$0xff] %v5828
    %5881 = vst [vmem:[#allocation3 + $0x138] sm:$0xff] %v5829
    %5882 = vst [vmem:[#allocation3 + $0x140] sm:$0xff] %v5830
    %5883 = vst [vmem:[#allocation3 + $0x148] sm:$0xff] %v5831
    %5884 = vst [vmem:[#allocation3 + $0x150] sm:$0xff] %v5832
    %5885 = vst [vmem:[#allocation3 + $0x158] sm:$0xff] %v5833
    %5886 = vst [vmem:[#allocation3 + $0x160] sm:$0xff] %v5834
    %5887 = vst [vmem:[#allocation3 + $0x168] sm:$0xff] %v5835
    %5888 = vst [vmem:[#allocation3 + $0x170] sm:$0xff] %v5836
    %5889 = vst [vmem:[#allocation3 + $0x178] sm:$0xff] %v5837
    %5890 = vst [vmem:[#allocation3 + $0x180] sm:$0xff] %v5838
    %5891 = vst [vmem:[#allocation3 + $0x188] sm:$0xff] %v5839
    %5892 = vst [vmem:[#allocation3 + $0x190] sm:$0xff] %v5840
    %5893 = vst [vmem:[#allocation3 + $0x198] sm:$0xff] %v5841
    %5894 = vrot.lane.b32.xlu0 %v4774, 79
    %v5895 = vpop.permute.xlu0 %5894
    %5896 = vrot.lane.b32.xlu0 %v4800, 79
    %v5897 = vpop.permute.xlu0 %5896
    %5898 = vrot.lane.b32.xlu0 %v4775, 79
    %v5899 = vpop.permute.xlu0 %5898
    %5900 = vrot.lane.b32.xlu0 %v4801, 79
    %v5901 = vpop.permute.xlu0 %5900
    %5902 = vrot.lane.b32.xlu0 %v4776, 79
    %v5903 = vpop.permute.xlu0 %5902
    %5904 = vrot.lane.b32.xlu0 %v4802, 79
    %v5905 = vpop.permute.xlu0 %5904
    %5906 = vrot.lane.b32.xlu0 %v4777, 79
    %v5907 = vpop.permute.xlu0 %5906
    %5908 = vrot.lane.b32.xlu0 %v4803, 79
    %v5909 = vpop.permute.xlu0 %5908
    %5910 = vrot.lane.b32.xlu0 %v4778, 79
    %v5911 = vpop.permute.xlu0 %5910
    %5912 = vrot.lane.b32.xlu0 %v4804, 79
    %v5913 = vpop.permute.xlu0 %5912
    %5914 = vrot.lane.b32.xlu0 %v4779, 79
    %v5915 = vpop.permute.xlu0 %5914
    %5916 = vrot.lane.b32.xlu0 %v4805, 79
    %v5917 = vpop.permute.xlu0 %5916
    %5918 = vrot.lane.b32.xlu0 %v4780, 79
    %v5919 = vpop.permute.xlu0 %5918
    %5920 = vrot.lane.b32.xlu0 %v4806, 79
    %v5921 = vpop.permute.xlu0 %5920
    %5922 = vrot.lane.b32.xlu0 %v4781, 79
    %v5923 = vpop.permute.xlu0 %5922
    %5924 = vrot.lane.b32.xlu0 %v4807, 79
    %v5925 = vpop.permute.xlu0 %5924
    %5926 = vrot.lane.b32.xlu0 %v4782, 79
    %v5927 = vpop.permute.xlu0 %5926
    %5928 = vrot.lane.b32.xlu0 %v4808, 79
    %v5929 = vpop.permute.xlu0 %5928
    %5930 = vrot.lane.b32.xlu0 %v4783, 79
    %v5931 = vpop.permute.xlu0 %5930
    %5932 = vrot.lane.b32.xlu0 %v4809, 79
    %v5933 = vpop.permute.xlu0 %5932
    %5934 = vrot.lane.b32.xlu0 %v4784, 79
    %v5935 = vpop.permute.xlu0 %5934
    %5936 = vrot.lane.b32.xlu0 %v4810, 79
    %v5937 = vpop.permute.xlu0 %5936
    %5938 = vrot.lane.b32.xlu0 %v4785, 79
    %v5939 = vpop.permute.xlu0 %5938
    %5940 = vrot.lane.b32.xlu0 %v4811, 79
    %v5941 = vpop.permute.xlu0 %5940
    %5942 = vrot.lane.b32.xlu0 %v4786, 79
    %v5943 = vpop.permute.xlu0 %5942
    %5944 = vrot.lane.b32.xlu0 %v4812, 79
    %v5945 = vpop.permute.xlu0 %5944
    %5946 = vrot.lane.b32.xlu0 %v4787, 79
    %v5947 = vpop.permute.xlu0 %5946
    %5948 = vrot.lane.b32.xlu0 %v4813, 79
    %v5949 = vpop.permute.xlu0 %5948
    %5950 = vrot.lane.b32.xlu0 %v4788, 79
    %v5951 = vpop.permute.xlu0 %5950
    %5952 = vrot.lane.b32.xlu0 %v4814, 79
    %v5953 = vpop.permute.xlu0 %5952
    %5954 = vrot.lane.b32.xlu0 %v4789, 79
    %v5955 = vpop.permute.xlu0 %5954
    %5956 = vrot.lane.b32.xlu0 %v4815, 79
    %v5957 = vpop.permute.xlu0 %5956
    %5958 = vrot.lane.b32.xlu0 %v4790, 79
    %v5959 = vpop.permute.xlu0 %5958
    %5960 = vrot.lane.b32.xlu0 %v4816, 79
    %v5961 = vpop.permute.xlu0 %5960
    %5962 = vrot.lane.b32.xlu0 %v4791, 79
    %v5963 = vpop.permute.xlu0 %5962
    %5964 = vrot.lane.b32.xlu0 %v4817, 79
    %v5965 = vpop.permute.xlu0 %5964
    %5966 = vrot.lane.b32.xlu0 %v4792, 79
    %v5967 = vpop.permute.xlu0 %5966
    %5968 = vrot.lane.b32.xlu0 %v4818, 79
    %v5969 = vpop.permute.xlu0 %5968
    %5970 = vrot.lane.b32.xlu0 %v4793, 79
    %v5971 = vpop.permute.xlu0 %5970
    %5972 = vrot.lane.b32.xlu0 %v4819, 79
    %v5973 = vpop.permute.xlu0 %5972
    %5974 = vrot.lane.b32.xlu0 %v4794, 79
    %v5975 = vpop.permute.xlu0 %5974
    %5976 = vrot.lane.b32.xlu0 %v4820, 79
    %v5977 = vpop.permute.xlu0 %5976
    %5978 = vrot.lane.b32.xlu0 %v4795, 79
    %v5979 = vpop.permute.xlu0 %5978
    %5980 = vrot.lane.b32.xlu0 %v4821, 79
    %v5981 = vpop.permute.xlu0 %5980
    %5982 = vrot.lane.b32.xlu0 %v4796, 79
    %v5983 = vpop.permute.xlu0 %5982
    %5984 = vrot.lane.b32.xlu0 %v4822, 79
    %v5985 = vpop.permute.xlu0 %5984
    %5986 = vrot.lane.b32.xlu0 %v4797, 79
    %v5987 = vpop.permute.xlu0 %5986
    %5988 = vrot.lane.b32.xlu0 %v4823, 79
    %v5989 = vpop.permute.xlu0 %5988
    %5990 = vrot.lane.b32.xlu0 %v4798, 79
    %v5991 = vpop.permute.xlu0 %5990
    %5992 = vrot.lane.b32.xlu0 %v4824, 79
    %v5993 = vpop.permute.xlu0 %5992
    %5994 = vrot.lane.b32.xlu0 %v4799, 79
    %v5995 = vpop.permute.xlu0 %5994
    %5996 = vrot.lane.b32.xlu0 %v4825, 79
    %v5997 = vpop.permute.xlu0 %5996
    %v5998 = vsel %vm1386, %v5991, %v5995
    %v5999 = vsel %vm1386, %v5993, %v5997
    %v6000 = vsel %vm1386, %v5987, %v5991
    %v6001 = vsel %vm1386, %v5989, %v5993
    %v6002 = vsel %vm1386, %v5983, %v5987
    %v6003 = vsel %vm1386, %v5985, %v5989
    %v6004 = vsel %vm1386, %v5979, %v5983
    %v6005 = vsel %vm1386, %v5981, %v5985
    %v6006 = vsel %vm1386, %v5975, %v5979
    %v6007 = vsel %vm1386, %v5977, %v5981
    %v6008 = vsel %vm1386, %v5971, %v5975
    %v6009 = vsel %vm1386, %v5973, %v5977
    %v6010 = vsel %vm1386, %v5967, %v5971
    %v6011 = vsel %vm1386, %v5969, %v5973
    %v6012 = vsel %vm1386, %v5963, %v5967
    %v6013 = vsel %vm1386, %v5965, %v5969
    %v6014 = vsel %vm1386, %v5959, %v5963
    %v6015 = vsel %vm1386, %v5961, %v5965
    %v6016 = vsel %vm1386, %v5955, %v5959
    %v6017 = vsel %vm1386, %v5957, %v5961
    %v6018 = vsel %vm1386, %v5951, %v5955
    %v6019 = vsel %vm1386, %v5953, %v5957
    %v6020 = vsel %vm1386, %v5947, %v5951
    %v6021 = vsel %vm1386, %v5949, %v5953
    %v6022 = vsel %vm1386, %v5943, %v5947
    %v6023 = vsel %vm1386, %v5945, %v5949
    %v6024 = vsel %vm1386, %v5939, %v5943
    %v6025 = vsel %vm1386, %v5941, %v5945
    %v6026 = vsel %vm1386, %v5935, %v5939
    %v6027 = vsel %vm1386, %v5937, %v5941
    %v6028 = vsel %vm1386, %v5931, %v5935
    %v6029 = vsel %vm1386, %v5933, %v5937
    %v6030 = vsel %vm1386, %v5927, %v5931
    %v6031 = vsel %vm1386, %v5929, %v5933
    %v6032 = vsel %vm1386, %v5923, %v5927
    %v6033 = vsel %vm1386, %v5925, %v5929
    %v6034 = vsel %vm1386, %v5919, %v5923
    %v6035 = vsel %vm1386, %v5921, %v5925
    %v6036 = vsel %vm1386, %v5915, %v5919
    %v6037 = vsel %vm1386, %v5917, %v5921
    %v6038 = vsel %vm1386, %v5911, %v5915
    %v6039 = vsel %vm1386, %v5913, %v5917
    %v6040 = vsel %vm1386, %v5907, %v5911
    %v6041 = vsel %vm1386, %v5909, %v5913
    %v6042 = vsel %vm1386, %v5903, %v5907
    %v6043 = vsel %vm1386, %v5905, %v5909
    %v6044 = vsel %vm1386, %v5899, %v5903
    %v6045 = vsel %vm1386, %v5901, %v5905
    %v6046 = vsel %vm1386, %v5895, %v5899
    %v6047 = vsel %vm1386, %v5897, %v5901
    %v6048 = vsel %vm1386, %v5995, %v5895
    %v6049 = vsel %vm1386, %v5997, %v5897
    %v6050 = vld [vmem:[%s1413] ss:$8 sm:$0xf]
    %v6051 = vld [vmem:[%s1413] ss:$8 sm:$0xf0]
    %v6052 = vor.u32 %v6050, %v6051
    %v6053 = vld [vmem:[%s1417] ss:$8 sm:$0xf]
    %v6054 = vld [vmem:[%s1417] ss:$8 sm:$0xf0]
    %v6055 = vor.u32 %v6053, %v6054
    %v6056 = vld [vmem:[%s1421] ss:$8 sm:$0xf]
    %v6057 = vld [vmem:[%s1421] ss:$8 sm:$0xf0]
    %v6058 = vor.u32 %v6056, %v6057
    %v6059 = vld [vmem:[%s1425] ss:$8 sm:$0x3]
    %v6064 = vlaneseq
    %v6065 = vshrl.u32 %v6064, 7
    %v6066 = vsub.s32 0, %v6065
    %v6067 = vrot.slane %v6052, %v6066
    %v6068 = vlaneseq
    %v6069 = vshrl.u32 %v6068, 7
    %v6070 = vsub.s32 1, %v6069
    %v6071 = vrot.slane %v6052, %v6070
    %v6072 = vlaneseq
    %v6073 = vshrl.u32 %v6072, 7
    %v6074 = vsub.s32 2, %v6073
    %v6075 = vrot.slane %v6052, %v6074
    %v6076 = vlaneseq
    %v6077 = vshrl.u32 %v6076, 7
    %v6078 = vsub.s32 3, %v6077
    %v6079 = vrot.slane %v6052, %v6078
    %v6080 = vlaneseq
    %v6081 = vshrl.u32 %v6080, 7
    %v6082 = vsub.s32 4, %v6081
    %v6083 = vrot.slane %v6052, %v6082
    %v6084 = vlaneseq
    %v6085 = vshrl.u32 %v6084, 7
    %v6086 = vsub.s32 5, %v6085
    %v6087 = vrot.slane %v6052, %v6086
    %v6088 = vlaneseq
    %v6089 = vshrl.u32 %v6088, 7
    %v6090 = vsub.s32 6, %v6089
    %v6091 = vrot.slane %v6052, %v6090
    %v6092 = vlaneseq
    %v6093 = vshrl.u32 %v6092, 7
    %v6094 = vsub.s32 7, %v6093
    %v6095 = vrot.slane %v6052, %v6094
    %v6096 = vlaneseq
    %v6097 = vshrl.u32 %v6096, 7
    %v6098 = vsub.s32 0, %v6097
    %v6099 = vrot.slane %v6055, %v6098
    %v6100 = vlaneseq
    %v6101 = vshrl.u32 %v6100, 7
    %v6102 = vsub.s32 1, %v6101
    %v6103 = vrot.slane %v6055, %v6102
    %v6104 = vlaneseq
    %v6105 = vshrl.u32 %v6104, 7
    %v6106 = vsub.s32 2, %v6105
    %v6107 = vrot.slane %v6055, %v6106
    %v6108 = vlaneseq
    %v6109 = vshrl.u32 %v6108, 7
    %v6110 = vsub.s32 3, %v6109
    %v6111 = vrot.slane %v6055, %v6110
    %v6112 = vlaneseq
    %v6113 = vshrl.u32 %v6112, 7
    %v6114 = vsub.s32 4, %v6113
    %v6115 = vrot.slane %v6055, %v6114
    %v6116 = vlaneseq
    %v6117 = vshrl.u32 %v6116, 7
    %v6118 = vsub.s32 5, %v6117
    %v6119 = vrot.slane %v6055, %v6118
    %v6120 = vlaneseq
    %v6121 = vshrl.u32 %v6120, 7
    %v6122 = vsub.s32 6, %v6121
    %v6123 = vrot.slane %v6055, %v6122
    %v6124 = vlaneseq
    %v6125 = vshrl.u32 %v6124, 7
    %v6126 = vsub.s32 7, %v6125
    %v6127 = vrot.slane %v6055, %v6126
    %v6128 = vlaneseq
    %v6129 = vshrl.u32 %v6128, 7
    %v6130 = vsub.s32 0, %v6129
    %v6131 = vrot.slane %v6058, %v6130
    %v6132 = vlaneseq
    %v6133 = vshrl.u32 %v6132, 7
    %v6134 = vsub.s32 1, %v6133
    %v6135 = vrot.slane %v6058, %v6134
    %v6136 = vlaneseq
    %v6137 = vshrl.u32 %v6136, 7
    %v6138 = vsub.s32 2, %v6137
    %v6139 = vrot.slane %v6058, %v6138
    %v6140 = vlaneseq
    %v6141 = vshrl.u32 %v6140, 7
    %v6142 = vsub.s32 3, %v6141
    %v6143 = vrot.slane %v6058, %v6142
    %v6144 = vlaneseq
    %v6145 = vshrl.u32 %v6144, 7
    %v6146 = vsub.s32 4, %v6145
    %v6147 = vrot.slane %v6058, %v6146
    %v6148 = vlaneseq
    %v6149 = vshrl.u32 %v6148, 7
    %v6150 = vsub.s32 5, %v6149
    %v6151 = vrot.slane %v6058, %v6150
    %v6152 = vlaneseq
    %v6153 = vshrl.u32 %v6152, 7
    %v6154 = vsub.s32 6, %v6153
    %v6155 = vrot.slane %v6058, %v6154
    %v6156 = vlaneseq
    %v6157 = vshrl.u32 %v6156, 7
    %v6158 = vsub.s32 7, %v6157
    %v6159 = vrot.slane %v6058, %v6158
    %v6160 = vlaneseq
    %v6161 = vshrl.u32 %v6160, 7
    %v6162 = vsub.s32 0, %v6161
    %v6163 = vrot.slane %v6059, %v6162
    %v6164 = vlaneseq
    %v6165 = vshrl.u32 %v6164, 7
    %v6166 = vsub.s32 1, %v6165
    %v6167 = vrot.slane %v6059, %v6166
    %v6194 = vmul.f32 %v5998, %v6067
    %v6195 = vmul.f32 %v6048, %v6071
    %v6196 = vmul.f32 %v6046, %v6075
    %v6197 = vmul.f32 %v6044, %v6079
    %v6198 = vmul.f32 %v6042, %v6083
    %v6199 = vmul.f32 %v6040, %v6087
    %v6200 = vmul.f32 %v6038, %v6091
    %v6201 = vmul.f32 %v6036, %v6095
    %v6202 = vmul.f32 %v6034, %v6099
    %v6203 = vmul.f32 %v6032, %v6103
    %v6204 = vmul.f32 %v6030, %v6107
    %v6205 = vmul.f32 %v6028, %v6111
    %v6206 = vmul.f32 %v6026, %v6115
    %v6207 = vmul.f32 %v6024, %v6119
    %v6208 = vmul.f32 %v6022, %v6123
    %v6209 = vmul.f32 %v6020, %v6127
    %v6210 = vmul.f32 %v6018, %v6131
    %v6211 = vmul.f32 %v6016, %v6135
    %v6212 = vmul.f32 %v6014, %v6139
    %v6213 = vmul.f32 %v6012, %v6143
    %v6214 = vmul.f32 %v6010, %v6147
    %v6215 = vmul.f32 %v6008, %v6151
    %v6216 = vmul.f32 %v6006, %v6155
    %v6217 = vmul.f32 %v6004, %v6159
    %v6218 = vmul.f32 %v6002, %v6163
    %v6219 = vmul.f32 %v6000, %v6167
    %v6220 = vmul.f32 %v5999, %v6067
    %v6221 = vmul.f32 %v6049, %v6071
    %v6222 = vmul.f32 %v6047, %v6075
    %v6223 = vmul.f32 %v6045, %v6079
    %v6224 = vmul.f32 %v6043, %v6083
    %v6225 = vmul.f32 %v6041, %v6087
    %v6226 = vmul.f32 %v6039, %v6091
    %v6227 = vmul.f32 %v6037, %v6095
    %v6228 = vmul.f32 %v6035, %v6099
    %v6229 = vmul.f32 %v6033, %v6103
    %v6230 = vmul.f32 %v6031, %v6107
    %v6231 = vmul.f32 %v6029, %v6111
    %v6232 = vmul.f32 %v6027, %v6115
    %v6233 = vmul.f32 %v6025, %v6119
    %v6234 = vmul.f32 %v6023, %v6123
    %v6235 = vmul.f32 %v6021, %v6127
    %v6236 = vmul.f32 %v6019, %v6131
    %v6237 = vmul.f32 %v6017, %v6135
    %v6238 = vmul.f32 %v6015, %v6139
    %v6239 = vmul.f32 %v6013, %v6143
    %v6240 = vmul.f32 %v6011, %v6147
    %v6241 = vmul.f32 %v6009, %v6151
    %v6242 = vmul.f32 %v6007, %v6155
    %v6243 = vmul.f32 %v6005, %v6159
    %v6244 = vmul.f32 %v6003, %v6163
    %v6245 = vmul.f32 %v6001, %v6167
    %v6246 = vpack.c.bf16 %v6220, %v6194
    %v6247 = vpack.c.bf16 %v6221, %v6195
    %v6248 = vpack.c.bf16 %v6222, %v6196
    %v6249 = vpack.c.bf16 %v6223, %v6197
    %v6250 = vpack.c.bf16 %v6224, %v6198
    %v6251 = vpack.c.bf16 %v6225, %v6199
    %v6252 = vpack.c.bf16 %v6226, %v6200
    %v6253 = vpack.c.bf16 %v6227, %v6201
    %v6254 = vpack.c.bf16 %v6228, %v6202
    %v6255 = vpack.c.bf16 %v6229, %v6203
    %v6256 = vpack.c.bf16 %v6230, %v6204
    %v6257 = vpack.c.bf16 %v6231, %v6205
    %v6258 = vpack.c.bf16 %v6232, %v6206
    %v6259 = vpack.c.bf16 %v6233, %v6207
    %v6260 = vpack.c.bf16 %v6234, %v6208
    %v6261 = vpack.c.bf16 %v6235, %v6209
    %v6262 = vpack.c.bf16 %v6236, %v6210
    %v6263 = vpack.c.bf16 %v6237, %v6211
    %v6264 = vpack.c.bf16 %v6238, %v6212
    %v6265 = vpack.c.bf16 %v6239, %v6213
    %v6266 = vpack.c.bf16 %v6240, %v6214
    %v6267 = vpack.c.bf16 %v6241, %v6215
    %v6268 = vpack.c.bf16 %v6242, %v6216
    %v6269 = vpack.c.bf16 %v6243, %v6217
    %v6270 = vpack.c.bf16 %v6244, %v6218
    %v6271 = vpack.c.bf16 %v6245, %v6219
    %v6298 = vunpack.c.l.b16 %v6246
    %v6299 = vunpack.c.l.b16 %v6247
    %v6300 = vunpack.c.l.b16 %v6248
    %v6301 = vunpack.c.l.b16 %v6249
    %v6302 = vunpack.c.l.b16 %v6250
    %v6303 = vunpack.c.l.b16 %v6251
    %v6304 = vunpack.c.l.b16 %v6252
    %v6305 = vunpack.c.l.b16 %v6253
    %v6306 = vunpack.c.l.b16 %v6254
    %v6307 = vunpack.c.l.b16 %v6255
    %v6308 = vunpack.c.l.b16 %v6256
    %v6309 = vunpack.c.l.b16 %v6257
    %v6310 = vunpack.c.l.b16 %v6258
    %v6311 = vunpack.c.l.b16 %v6259
    %v6312 = vunpack.c.l.b16 %v6260
    %v6313 = vunpack.c.l.b16 %v6261
    %v6314 = vunpack.c.l.b16 %v6262
    %v6315 = vunpack.c.l.b16 %v6263
    %v6316 = vunpack.c.l.b16 %v6264
    %v6317 = vunpack.c.l.b16 %v6265
    %v6318 = vunpack.c.l.b16 %v6266
    %v6319 = vunpack.c.l.b16 %v6267
    %v6320 = vunpack.c.l.b16 %v6268
    %v6321 = vunpack.c.l.b16 %v6269
    %v6322 = vunpack.c.l.b16 %v6270
    %v6323 = vunpack.c.l.b16 %v6271
    %v6324 = vunpack.c.h.b16 %v6246
    %v6325 = vunpack.c.h.b16 %v6247
    %v6326 = vunpack.c.h.b16 %v6248
    %v6327 = vunpack.c.h.b16 %v6249
    %v6328 = vunpack.c.h.b16 %v6250
    %v6329 = vunpack.c.h.b16 %v6251
    %v6330 = vunpack.c.h.b16 %v6252
    %v6331 = vunpack.c.h.b16 %v6253
    %v6332 = vunpack.c.h.b16 %v6254
    %v6333 = vunpack.c.h.b16 %v6255
    %v6334 = vunpack.c.h.b16 %v6256
    %v6335 = vunpack.c.h.b16 %v6257
    %v6336 = vunpack.c.h.b16 %v6258
    %v6337 = vunpack.c.h.b16 %v6259
    %v6338 = vunpack.c.h.b16 %v6260
    %v6339 = vunpack.c.h.b16 %v6261
    %v6340 = vunpack.c.h.b16 %v6262
    %v6341 = vunpack.c.h.b16 %v6263
    %v6342 = vunpack.c.h.b16 %v6264
    %v6343 = vunpack.c.h.b16 %v6265
    %v6344 = vunpack.c.h.b16 %v6266
    %v6345 = vunpack.c.h.b16 %v6267
    %v6346 = vunpack.c.h.b16 %v6268
    %v6347 = vunpack.c.h.b16 %v6269
    %v6348 = vunpack.c.h.b16 %v6270
    %v6349 = vunpack.c.h.b16 %v6271
    %v6350 = vpack.c.b16 %v6299, %v6298
    %v6351 = vpack.c.b16 %v6301, %v6300
    %v6352 = vpack.c.b16 %v6303, %v6302
    %v6353 = vpack.c.b16 %v6305, %v6304
    %v6354 = vpack.c.b16 %v6307, %v6306
    %v6355 = vpack.c.b16 %v6309, %v6308
    %v6356 = vpack.c.b16 %v6311, %v6310
    %v6357 = vpack.c.b16 %v6313, %v6312
    %v6358 = vpack.c.b16 %v6315, %v6314
    %v6359 = vpack.c.b16 %v6317, %v6316
    %v6360 = vpack.c.b16 %v6319, %v6318
    %v6361 = vpack.c.b16 %v6321, %v6320
    %v6362 = vpack.c.b16 %v6323, %v6322
    %v6363 = vpack.c.b16 %v6325, %v6324
    %v6364 = vpack.c.b16 %v6327, %v6326
    %v6365 = vpack.c.b16 %v6329, %v6328
    %v6366 = vpack.c.b16 %v6331, %v6330
    %v6367 = vpack.c.b16 %v6333, %v6332
    %v6368 = vpack.c.b16 %v6335, %v6334
    %v6369 = vpack.c.b16 %v6337, %v6336
    %v6370 = vpack.c.b16 %v6339, %v6338
    %v6371 = vpack.c.b16 %v6341, %v6340
    %v6372 = vpack.c.b16 %v6343, %v6342
    %v6373 = vpack.c.b16 %v6345, %v6344
    %v6374 = vpack.c.b16 %v6347, %v6346
    %v6375 = vpack.c.b16 %v6349, %v6348
    %6402 = vst [vmem:[#allocation3 + $0x1a0] sm:$0xff] %v6350
    %6403 = vst [vmem:[#allocation3 + $0x1a8] sm:$0xff] %v6351
    %6404 = vst [vmem:[#allocation3 + $0x1b0] sm:$0xff] %v6352
    %6405 = vst [vmem:[#allocation3 + $0x1b8] sm:$0xff] %v6353
    %6406 = vst [vmem:[#allocation3 + $0x1c0] sm:$0xff] %v6354
    %6407 = vst [vmem:[#allocation3 + $0x1c8] sm:$0xff] %v6355
    %6408 = vst [vmem:[#allocation3 + $0x1d0] sm:$0xff] %v6356
    %6409 = vst [vmem:[#allocation3 + $0x1d8] sm:$0xff] %v6357
    %6410 = vst [vmem:[#allocation3 + $0x1e0] sm:$0xff] %v6358
    %6411 = vst [vmem:[#allocation3 + $0x1e8] sm:$0xff] %v6359
    %6412 = vst [vmem:[#allocation3 + $0x1f0] sm:$0xff] %v6360
    %6413 = vst [vmem:[#allocation3 + $0x1f8] sm:$0xff] %v6361
    %6414 = vst [vmem:[#allocation3 + $0x200] sm:$0xff] %v6362
    %6415 = vst [vmem:[#allocation3 + $0x208] sm:$0xff] %v6363
    %6416 = vst [vmem:[#allocation3 + $0x210] sm:$0xff] %v6364
    %6417 = vst [vmem:[#allocation3 + $0x218] sm:$0xff] %v6365
    %6418 = vst [vmem:[#allocation3 + $0x220] sm:$0xff] %v6366
    %6419 = vst [vmem:[#allocation3 + $0x228] sm:$0xff] %v6367
    %6420 = vst [vmem:[#allocation3 + $0x230] sm:$0xff] %v6368
    %6421 = vst [vmem:[#allocation3 + $0x238] sm:$0xff] %v6369
    %6422 = vst [vmem:[#allocation3 + $0x240] sm:$0xff] %v6370
    %6423 = vst [vmem:[#allocation3 + $0x248] sm:$0xff] %v6371
    %6424 = vst [vmem:[#allocation3 + $0x250] sm:$0xff] %v6372
    %6425 = vst [vmem:[#allocation3 + $0x258] sm:$0xff] %v6373
    %6426 = vst [vmem:[#allocation3 + $0x260] sm:$0xff] %v6374
    %6427 = vst [vmem:[#allocation3 + $0x268] sm:$0xff] %v6375
    %6428 = vrot.lane.b32.xlu0 %v4774, 1
    %v6429 = vpop.permute.xlu0 %6428
    %6430 = vrot.lane.b32.xlu0 %v4800, 1
    %v6431 = vpop.permute.xlu0 %6430
    %6432 = vrot.lane.b32.xlu0 %v4775, 1
    %v6433 = vpop.permute.xlu0 %6432
    %6434 = vrot.lane.b32.xlu0 %v4801, 1
    %v6435 = vpop.permute.xlu0 %6434
    %6436 = vrot.lane.b32.xlu0 %v4776, 1
    %v6437 = vpop.permute.xlu0 %6436
    %6438 = vrot.lane.b32.xlu0 %v4802, 1
    %v6439 = vpop.permute.xlu0 %6438
    %6440 = vrot.lane.b32.xlu0 %v4777, 1
    %v6441 = vpop.permute.xlu0 %6440
    %6442 = vrot.lane.b32.xlu0 %v4803, 1
    %v6443 = vpop.permute.xlu0 %6442
    %6444 = vrot.lane.b32.xlu0 %v4778, 1
    %v6445 = vpop.permute.xlu0 %6444
    %6446 = vrot.lane.b32.xlu0 %v4804, 1
    %v6447 = vpop.permute.xlu0 %6446
    %6448 = vrot.lane.b32.xlu0 %v4779, 1
    %v6449 = vpop.permute.xlu0 %6448
    %6450 = vrot.lane.b32.xlu0 %v4805, 1
    %v6451 = vpop.permute.xlu0 %6450
    %6452 = vrot.lane.b32.xlu0 %v4780, 1
    %v6453 = vpop.permute.xlu0 %6452
    %6454 = vrot.lane.b32.xlu0 %v4806, 1
    %v6455 = vpop.permute.xlu0 %6454
    %6456 = vrot.lane.b32.xlu0 %v4781, 1
    %v6457 = vpop.permute.xlu0 %6456
    %6458 = vrot.lane.b32.xlu0 %v4807, 1
    %v6459 = vpop.permute.xlu0 %6458
    %6460 = vrot.lane.b32.xlu0 %v4782, 1
    %v6461 = vpop.permute.xlu0 %6460
    %6462 = vrot.lane.b32.xlu0 %v4808, 1
    %v6463 = vpop.permute.xlu0 %6462
    %6464 = vrot.lane.b32.xlu0 %v4783, 1
    %v6465 = vpop.permute.xlu0 %6464
    %6466 = vrot.lane.b32.xlu0 %v4809, 1
    %v6467 = vpop.permute.xlu0 %6466
    %6468 = vrot.lane.b32.xlu0 %v4784, 1
    %v6469 = vpop.permute.xlu0 %6468
    %6470 = vrot.lane.b32.xlu0 %v4810, 1
    %v6471 = vpop.permute.xlu0 %6470
    %6472 = vrot.lane.b32.xlu0 %v4785, 1
    %v6473 = vpop.permute.xlu0 %6472
    %6474 = vrot.lane.b32.xlu0 %v4811, 1
    %v6475 = vpop.permute.xlu0 %6474
    %6476 = vrot.lane.b32.xlu0 %v4786, 1
    %v6477 = vpop.permute.xlu0 %6476
    %6478 = vrot.lane.b32.xlu0 %v4812, 1
    %v6479 = vpop.permute.xlu0 %6478
    %6480 = vrot.lane.b32.xlu0 %v4787, 1
    %v6481 = vpop.permute.xlu0 %6480
    %6482 = vrot.lane.b32.xlu0 %v4813, 1
    %v6483 = vpop.permute.xlu0 %6482
    %6484 = vrot.lane.b32.xlu0 %v4788, 1
    %v6485 = vpop.permute.xlu0 %6484
    %6486 = vrot.lane.b32.xlu0 %v4814, 1
    %v6487 = vpop.permute.xlu0 %6486
    %6488 = vrot.lane.b32.xlu0 %v4789, 1
    %v6489 = vpop.permute.xlu0 %6488
    %6490 = vrot.lane.b32.xlu0 %v4815, 1
    %v6491 = vpop.permute.xlu0 %6490
    %6492 = vrot.lane.b32.xlu0 %v4790, 1
    %v6493 = vpop.permute.xlu0 %6492
    %6494 = vrot.lane.b32.xlu0 %v4816, 1
    %v6495 = vpop.permute.xlu0 %6494
    %6496 = vrot.lane.b32.xlu0 %v4791, 1
    %v6497 = vpop.permute.xlu0 %6496
    %6498 = vrot.lane.b32.xlu0 %v4817, 1
    %v6499 = vpop.permute.xlu0 %6498
    %6500 = vrot.lane.b32.xlu0 %v4792, 1
    %v6501 = vpop.permute.xlu0 %6500
    %6502 = vrot.lane.b32.xlu0 %v4818, 1
    %v6503 = vpop.permute.xlu0 %6502
    %6504 = vrot.lane.b32.xlu0 %v4793, 1
    %v6505 = vpop.permute.xlu0 %6504
    %6506 = vrot.lane.b32.xlu0 %v4819, 1
    %v6507 = vpop.permute.xlu0 %6506
    %6508 = vrot.lane.b32.xlu0 %v4794, 1
    %v6509 = vpop.permute.xlu0 %6508
    %6510 = vrot.lane.b32.xlu0 %v4820, 1
    %v6511 = vpop.permute.xlu0 %6510
    %6512 = vrot.lane.b32.xlu0 %v4795, 1
    %v6513 = vpop.permute.xlu0 %6512
    %6514 = vrot.lane.b32.xlu0 %v4821, 1
    %v6515 = vpop.permute.xlu0 %6514
    %6516 = vrot.lane.b32.xlu0 %v4796, 1
    %v6517 = vpop.permute.xlu0 %6516
    %6518 = vrot.lane.b32.xlu0 %v4822, 1
    %v6519 = vpop.permute.xlu0 %6518
    %6520 = vrot.lane.b32.xlu0 %v4797, 1
    %v6521 = vpop.permute.xlu0 %6520
    %6522 = vrot.lane.b32.xlu0 %v4823, 1
    %v6523 = vpop.permute.xlu0 %6522
    %6524 = vrot.lane.b32.xlu0 %v4798, 1
    %v6525 = vpop.permute.xlu0 %6524
    %6526 = vrot.lane.b32.xlu0 %v4824, 1
    %v6527 = vpop.permute.xlu0 %6526
    %6528 = vrot.lane.b32.xlu0 %v4799, 1
    %v6529 = vpop.permute.xlu0 %6528
    %6530 = vrot.lane.b32.xlu0 %v4825, 1
    %v6531 = vpop.permute.xlu0 %6530
    %v6532 = vsel %vm1843, %v6525, %v6529
    %v6533 = vsel %vm1843, %v6527, %v6531
    %v6534 = vsel %vm1843, %v6521, %v6525
    %v6535 = vsel %vm1843, %v6523, %v6527
    %v6536 = vsel %vm1843, %v6517, %v6521
    %v6537 = vsel %vm1843, %v6519, %v6523
    %v6538 = vsel %vm1843, %v6513, %v6517
    %v6539 = vsel %vm1843, %v6515, %v6519
    %v6540 = vsel %vm1843, %v6509, %v6513
    %v6541 = vsel %vm1843, %v6511, %v6515
    %v6542 = vsel %vm1843, %v6505, %v6509
    %v6543 = vsel %vm1843, %v6507, %v6511
    %v6544 = vsel %vm1843, %v6501, %v6505
    %v6545 = vsel %vm1843, %v6503, %v6507
    %v6546 = vsel %vm1843, %v6497, %v6501
    %v6547 = vsel %vm1843, %v6499, %v6503
    %v6548 = vsel %vm1843, %v6493, %v6497
    %v6549 = vsel %vm1843, %v6495, %v6499
    %v6550 = vsel %vm1843, %v6489, %v6493
    %v6551 = vsel %vm1843, %v6491, %v6495
    %v6552 = vsel %vm1843, %v6485, %v6489
    %v6553 = vsel %vm1843, %v6487, %v6491
    %v6554 = vsel %vm1843, %v6481, %v6485
    %v6555 = vsel %vm1843, %v6483, %v6487
    %v6556 = vsel %vm1843, %v6477, %v6481
    %v6557 = vsel %vm1843, %v6479, %v6483
    %v6558 = vsel %vm1843, %v6473, %v6477
    %v6559 = vsel %vm1843, %v6475, %v6479
    %v6560 = vsel %vm1843, %v6469, %v6473
    %v6561 = vsel %vm1843, %v6471, %v6475
    %v6562 = vsel %vm1843, %v6465, %v6469
    %v6563 = vsel %vm1843, %v6467, %v6471
    %v6564 = vsel %vm1843, %v6461, %v6465
    %v6565 = vsel %vm1843, %v6463, %v6467
    %v6566 = vsel %vm1843, %v6457, %v6461
    %v6567 = vsel %vm1843, %v6459, %v6463
    %v6568 = vsel %vm1843, %v6453, %v6457
    %v6569 = vsel %vm1843, %v6455, %v6459
    %v6570 = vsel %vm1843, %v6449, %v6453
    %v6571 = vsel %vm1843, %v6451, %v6455
    %v6572 = vsel %vm1843, %v6445, %v6449
    %v6573 = vsel %vm1843, %v6447, %v6451
    %v6574 = vsel %vm1843, %v6441, %v6445
    %v6575 = vsel %vm1843, %v6443, %v6447
    %v6576 = vsel %vm1843, %v6437, %v6441
    %v6577 = vsel %vm1843, %v6439, %v6443
    %v6578 = vsel %vm1843, %v6433, %v6437
    %v6579 = vsel %vm1843, %v6435, %v6439
    %v6580 = vsel %vm1843, %v6429, %v6433
    %v6581 = vsel %vm1843, %v6431, %v6435
    %v6582 = vsel %vm1843, %v6529, %v6429
    %v6583 = vsel %vm1843, %v6531, %v6431
    %v6584 = vld [vmem:[%s1870] ss:$8 sm:$0xf]
    %v6585 = vld [vmem:[%s1870] ss:$8 sm:$0xf0]
    %v6586 = vor.u32 %v6584, %v6585
    %v6587 = vld [vmem:[%s1874] ss:$8 sm:$0xf]
    %v6588 = vld [vmem:[%s1874] ss:$8 sm:$0xf0]
    %v6589 = vor.u32 %v6587, %v6588
    %v6590 = vld [vmem:[%s1878] ss:$8 sm:$0xf]
    %v6591 = vld [vmem:[%s1878] ss:$8 sm:$0xf0]
    %v6592 = vor.u32 %v6590, %v6591
    %v6593 = vld [vmem:[%s1882] ss:$8 sm:$0x3]
    %v6598 = vlaneseq
    %v6599 = vshrl.u32 %v6598, 7
    %v6600 = vsub.s32 0, %v6599
    %v6601 = vrot.slane %v6586, %v6600
    %v6602 = vlaneseq
    %v6603 = vshrl.u32 %v6602, 7
    %v6604 = vsub.s32 1, %v6603
    %v6605 = vrot.slane %v6586, %v6604
    %v6606 = vlaneseq
    %v6607 = vshrl.u32 %v6606, 7
    %v6608 = vsub.s32 2, %v6607
    %v6609 = vrot.slane %v6586, %v6608
    %v6610 = vlaneseq
    %v6611 = vshrl.u32 %v6610, 7
    %v6612 = vsub.s32 3, %v6611
    %v6613 = vrot.slane %v6586, %v6612
    %v6614 = vlaneseq
    %v6615 = vshrl.u32 %v6614, 7
    %v6616 = vsub.s32 4, %v6615
    %v6617 = vrot.slane %v6586, %v6616
    %v6618 = vlaneseq
    %v6619 = vshrl.u32 %v6618, 7
    %v6620 = vsub.s32 5, %v6619
    %v6621 = vrot.slane %v6586, %v6620
    %v6622 = vlaneseq
    %v6623 = vshrl.u32 %v6622, 7
    %v6624 = vsub.s32 6, %v6623
    %v6625 = vrot.slane %v6586, %v6624
    %v6626 = vlaneseq
    %v6627 = vshrl.u32 %v6626, 7
    %v6628 = vsub.s32 7, %v6627
    %v6629 = vrot.slane %v6586, %v6628
    %v6630 = vlaneseq
    %v6631 = vshrl.u32 %v6630, 7
    %v6632 = vsub.s32 0, %v6631
    %v6633 = vrot.slane %v6589, %v6632
    %v6634 = vlaneseq
    %v6635 = vshrl.u32 %v6634, 7
    %v6636 = vsub.s32 1, %v6635
    %v6637 = vrot.slane %v6589, %v6636
    %v6638 = vlaneseq
    %v6639 = vshrl.u32 %v6638, 7
    %v6640 = vsub.s32 2, %v6639
    %v6641 = vrot.slane %v6589, %v6640
    %v6642 = vlaneseq
    %v6643 = vshrl.u32 %v6642, 7
    %v6644 = vsub.s32 3, %v6643
    %v6645 = vrot.slane %v6589, %v6644
    %v6646 = vlaneseq
    %v6647 = vshrl.u32 %v6646, 7
    %v6648 = vsub.s32 4, %v6647
    %v6649 = vrot.slane %v6589, %v6648
    %v6650 = vlaneseq
    %v6651 = vshrl.u32 %v6650, 7
    %v6652 = vsub.s32 5, %v6651
    %v6653 = vrot.slane %v6589, %v6652
    %v6654 = vlaneseq
    %v6655 = vshrl.u32 %v6654, 7
    %v6656 = vsub.s32 6, %v6655
    %v6657 = vrot.slane %v6589, %v6656
    %v6658 = vlaneseq
    %v6659 = vshrl.u32 %v6658, 7
    %v6660 = vsub.s32 7, %v6659
    %v6661 = vrot.slane %v6589, %v6660
    %v6662 = vlaneseq
    %v6663 = vshrl.u32 %v6662, 7
    %v6664 = vsub.s32 0, %v6663
    %v6665 = vrot.slane %v6592, %v6664
    %v6666 = vlaneseq
    %v6667 = vshrl.u32 %v6666, 7
    %v6668 = vsub.s32 1, %v6667
    %v6669 = vrot.slane %v6592, %v6668
    %v6670 = vlaneseq
    %v6671 = vshrl.u32 %v6670, 7
    %v6672 = vsub.s32 2, %v6671
    %v6673 = vrot.slane %v6592, %v6672
    %v6674 = vlaneseq
    %v6675 = vshrl.u32 %v6674, 7
    %v6676 = vsub.s32 3, %v6675
    %v6677 = vrot.slane %v6592, %v6676
    %v6678 = vlaneseq
    %v6679 = vshrl.u32 %v6678, 7
    %v6680 = vsub.s32 4, %v6679
    %v6681 = vrot.slane %v6592, %v6680
    %v6682 = vlaneseq
    %v6683 = vshrl.u32 %v6682, 7
    %v6684 = vsub.s32 5, %v6683
    %v6685 = vrot.slane %v6592, %v6684
    %v6686 = vlaneseq
    %v6687 = vshrl.u32 %v6686, 7
    %v6688 = vsub.s32 6, %v6687
    %v6689 = vrot.slane %v6592, %v6688
    %v6690 = vlaneseq
    %v6691 = vshrl.u32 %v6690, 7
    %v6692 = vsub.s32 7, %v6691
    %v6693 = vrot.slane %v6592, %v6692
    %v6694 = vlaneseq
    %v6695 = vshrl.u32 %v6694, 7
    %v6696 = vsub.s32 0, %v6695
    %v6697 = vrot.slane %v6593, %v6696
    %v6698 = vlaneseq
    %v6699 = vshrl.u32 %v6698, 7
    %v6700 = vsub.s32 1, %v6699
    %v6701 = vrot.slane %v6593, %v6700
    %v6728 = vmul.f32 %v6582, %v6601
    %v6729 = vmul.f32 %v6580, %v6605
    %v6730 = vmul.f32 %v6578, %v6609
    %v6731 = vmul.f32 %v6576, %v6613
    %v6732 = vmul.f32 %v6574, %v6617
    %v6733 = vmul.f32 %v6572, %v6621
    %v6734 = vmul.f32 %v6570, %v6625
    %v6735 = vmul.f32 %v6568, %v6629
    %v6736 = vmul.f32 %v6566, %v6633
    %v6737 = vmul.f32 %v6564, %v6637
    %v6738 = vmul.f32 %v6562, %v6641
    %v6739 = vmul.f32 %v6560, %v6645
    %v6740 = vmul.f32 %v6558, %v6649
    %v6741 = vmul.f32 %v6556, %v6653
    %v6742 = vmul.f32 %v6554, %v6657
    %v6743 = vmul.f32 %v6552, %v6661
    %v6744 = vmul.f32 %v6550, %v6665
    %v6745 = vmul.f32 %v6548, %v6669
    %v6746 = vmul.f32 %v6546, %v6673
    %v6747 = vmul.f32 %v6544, %v6677
    %v6748 = vmul.f32 %v6542, %v6681
    %v6749 = vmul.f32 %v6540, %v6685
    %v6750 = vmul.f32 %v6538, %v6689
    %v6751 = vmul.f32 %v6536, %v6693
    %v6752 = vmul.f32 %v6534, %v6697
    %v6753 = vmul.f32 %v6532, %v6701
    %v6754 = vmul.f32 %v6583, %v6601
    %v6755 = vmul.f32 %v6581, %v6605
    %v6756 = vmul.f32 %v6579, %v6609
    %v6757 = vmul.f32 %v6577, %v6613
    %v6758 = vmul.f32 %v6575, %v6617
    %v6759 = vmul.f32 %v6573, %v6621
    %v6760 = vmul.f32 %v6571, %v6625
    %v6761 = vmul.f32 %v6569, %v6629
    %v6762 = vmul.f32 %v6567, %v6633
    %v6763 = vmul.f32 %v6565, %v6637
    %v6764 = vmul.f32 %v6563, %v6641
    %v6765 = vmul.f32 %v6561, %v6645
    %v6766 = vmul.f32 %v6559, %v6649
    %v6767 = vmul.f32 %v6557, %v6653
    %v6768 = vmul.f32 %v6555, %v6657
    %v6769 = vmul.f32 %v6553, %v6661
    %v6770 = vmul.f32 %v6551, %v6665
    %v6771 = vmul.f32 %v6549, %v6669
    %v6772 = vmul.f32 %v6547, %v6673
    %v6773 = vmul.f32 %v6545, %v6677
    %v6774 = vmul.f32 %v6543, %v6681
    %v6775 = vmul.f32 %v6541, %v6685
    %v6776 = vmul.f32 %v6539, %v6689
    %v6777 = vmul.f32 %v6537, %v6693
    %v6778 = vmul.f32 %v6535, %v6697
    %v6779 = vmul.f32 %v6533, %v6701
    %v6780 = vpack.c.bf16 %v6754, %v6728
    %v6781 = vpack.c.bf16 %v6755, %v6729
    %v6782 = vpack.c.bf16 %v6756, %v6730
    %v6783 = vpack.c.bf16 %v6757, %v6731
    %v6784 = vpack.c.bf16 %v6758, %v6732
    %v6785 = vpack.c.bf16 %v6759, %v6733
    %v6786 = vpack.c.bf16 %v6760, %v6734
    %v6787 = vpack.c.bf16 %v6761, %v6735
    %v6788 = vpack.c.bf16 %v6762, %v6736
    %v6789 = vpack.c.bf16 %v6763, %v6737
    %v6790 = vpack.c.bf16 %v6764, %v6738
    %v6791 = vpack.c.bf16 %v6765, %v6739
    %v6792 = vpack.c.bf16 %v6766, %v6740
    %v6793 = vpack.c.bf16 %v6767, %v6741
    %v6794 = vpack.c.bf16 %v6768, %v6742
    %v6795 = vpack.c.bf16 %v6769, %v6743
    %v6796 = vpack.c.bf16 %v6770, %v6744
    %v6797 = vpack.c.bf16 %v6771, %v6745
    %v6798 = vpack.c.bf16 %v6772, %v6746
    %v6799 = vpack.c.bf16 %v6773, %v6747
    %v6800 = vpack.c.bf16 %v6774, %v6748
    %v6801 = vpack.c.bf16 %v6775, %v6749
    %v6802 = vpack.c.bf16 %v6776, %v6750
    %v6803 = vpack.c.bf16 %v6777, %v6751
    %v6804 = vpack.c.bf16 %v6778, %v6752
    %v6805 = vpack.c.bf16 %v6779, %v6753
    %v6832 = vunpack.c.l.b16 %v6780
    %v6833 = vunpack.c.l.b16 %v6781
    %v6834 = vunpack.c.l.b16 %v6782
    %v6835 = vunpack.c.l.b16 %v6783
    %v6836 = vunpack.c.l.b16 %v6784
    %v6837 = vunpack.c.l.b16 %v6785
    %v6838 = vunpack.c.l.b16 %v6786
    %v6839 = vunpack.c.l.b16 %v6787
    %v6840 = vunpack.c.l.b16 %v6788
    %v6841 = vunpack.c.l.b16 %v6789
    %v6842 = vunpack.c.l.b16 %v6790
    %v6843 = vunpack.c.l.b16 %v6791
    %v6844 = vunpack.c.l.b16 %v6792
    %v6845 = vunpack.c.l.b16 %v6793
    %v6846 = vunpack.c.l.b16 %v6794
    %v6847 = vunpack.c.l.b16 %v6795
    %v6848 = vunpack.c.l.b16 %v6796
    %v6849 = vunpack.c.l.b16 %v6797
    %v6850 = vunpack.c.l.b16 %v6798
    %v6851 = vunpack.c.l.b16 %v6799
    %v6852 = vunpack.c.l.b16 %v6800
    %v6853 = vunpack.c.l.b16 %v6801
    %v6854 = vunpack.c.l.b16 %v6802
    %v6855 = vunpack.c.l.b16 %v6803
    %v6856 = vunpack.c.l.b16 %v6804
    %v6857 = vunpack.c.l.b16 %v6805
    %v6858 = vunpack.c.h.b16 %v6780
    %v6859 = vunpack.c.h.b16 %v6781
    %v6860 = vunpack.c.h.b16 %v6782
    %v6861 = vunpack.c.h.b16 %v6783
    %v6862 = vunpack.c.h.b16 %v6784
    %v6863 = vunpack.c.h.b16 %v6785
    %v6864 = vunpack.c.h.b16 %v6786
    %v6865 = vunpack.c.h.b16 %v6787
    %v6866 = vunpack.c.h.b16 %v6788
    %v6867 = vunpack.c.h.b16 %v6789
    %v6868 = vunpack.c.h.b16 %v6790
    %v6869 = vunpack.c.h.b16 %v6791
    %v6870 = vunpack.c.h.b16 %v6792
    %v6871 = vunpack.c.h.b16 %v6793
    %v6872 = vunpack.c.h.b16 %v6794
    %v6873 = vunpack.c.h.b16 %v6795
    %v6874 = vunpack.c.h.b16 %v6796
    %v6875 = vunpack.c.h.b16 %v6797
    %v6876 = vunpack.c.h.b16 %v6798
    %v6877 = vunpack.c.h.b16 %v6799
    %v6878 = vunpack.c.h.b16 %v6800
    %v6879 = vunpack.c.h.b16 %v6801
    %v6880 = vunpack.c.h.b16 %v6802
    %v6881 = vunpack.c.h.b16 %v6803
    %v6882 = vunpack.c.h.b16 %v6804
    %v6883 = vunpack.c.h.b16 %v6805
    %v6884 = vpack.c.b16 %v6833, %v6832
    %v6885 = vpack.c.b16 %v6835, %v6834
    %v6886 = vpack.c.b16 %v6837, %v6836
    %v6887 = vpack.c.b16 %v6839, %v6838
    %v6888 = vpack.c.b16 %v6841, %v6840
    %v6889 = vpack.c.b16 %v6843, %v6842
    %v6890 = vpack.c.b16 %v6845, %v6844
    %v6891 = vpack.c.b16 %v6847, %v6846
    %v6892 = vpack.c.b16 %v6849, %v6848
    %v6893 = vpack.c.b16 %v6851, %v6850
    %v6894 = vpack.c.b16 %v6853, %v6852
    %v6895 = vpack.c.b16 %v6855, %v6854
    %v6896 = vpack.c.b16 %v6857, %v6856
    %v6897 = vpack.c.b16 %v6859, %v6858
    %v6898 = vpack.c.b16 %v6861, %v6860
    %v6899 = vpack.c.b16 %v6863, %v6862
    %v6900 = vpack.c.b16 %v6865, %v6864
    %v6901 = vpack.c.b16 %v6867, %v6866
    %v6902 = vpack.c.b16 %v6869, %v6868
    %v6903 = vpack.c.b16 %v6871, %v6870
    %v6904 = vpack.c.b16 %v6873, %v6872
    %v6905 = vpack.c.b16 %v6875, %v6874
    %v6906 = vpack.c.b16 %v6877, %v6876
    %v6907 = vpack.c.b16 %v6879, %v6878
    %v6908 = vpack.c.b16 %v6881, %v6880
    %v6909 = vpack.c.b16 %v6883, %v6882
    %6936 = vst [vmem:[#allocation3 + $0x270] sm:$0xff] %v6884
    %6937 = vst [vmem:[#allocation3 + $0x278] sm:$0xff] %v6885
    %6938 = vst [vmem:[#allocation3 + $0x280] sm:$0xff] %v6886
    %6939 = vst [vmem:[#allocation3 + $0x288] sm:$0xff] %v6887
    %6940 = vst [vmem:[#allocation3 + $0x290] sm:$0xff] %v6888
    %6941 = vst [vmem:[#allocation3 + $0x298] sm:$0xff] %v6889
    %6942 = vst [vmem:[#allocation3 + $0x2a0] sm:$0xff] %v6890
    %6943 = vst [vmem:[#allocation3 + $0x2a8] sm:$0xff] %v6891
    %6944 = vst [vmem:[#allocation3 + $0x2b0] sm:$0xff] %v6892
    %6945 = vst [vmem:[#allocation3 + $0x2b8] sm:$0xff] %v6893
    %6946 = vst [vmem:[#allocation3 + $0x2c0] sm:$0xff] %v6894
    %6947 = vst [vmem:[#allocation3 + $0x2c8] sm:$0xff] %v6895
    %6948 = vst [vmem:[#allocation3 + $0x2d0] sm:$0xff] %v6896
    %6949 = vst [vmem:[#allocation3 + $0x2d8] sm:$0xff] %v6897
    %6950 = vst [vmem:[#allocation3 + $0x2e0] sm:$0xff] %v6898
    %6951 = vst [vmem:[#allocation3 + $0x2e8] sm:$0xff] %v6899
    %6952 = vst [vmem:[#allocation3 + $0x2f0] sm:$0xff] %v6900
    %6953 = vst [vmem:[#allocation3 + $0x2f8] sm:$0xff] %v6901
    %6954 = vst [vmem:[#allocation3 + $0x300] sm:$0xff] %v6902
    %6955 = vst [vmem:[#allocation3 + $0x308] sm:$0xff] %v6903
    %6956 = vst [vmem:[#allocation3 + $0x310] sm:$0xff] %v6904
    %6957 = vst [vmem:[#allocation3 + $0x318] sm:$0xff] %v6905
    %6958 = vst [vmem:[#allocation3 + $0x320] sm:$0xff] %v6906
    %6959 = vst [vmem:[#allocation3 + $0x328] sm:$0xff] %v6907
    %6960 = vst [vmem:[#allocation3 + $0x330] sm:$0xff] %v6908
    %6961 = vst [vmem:[#allocation3 + $0x338] sm:$0xff] %v6909
    %v6962 = vpack.c.bf16 %v4800, %v4774
    %v6963 = vpack.c.bf16 %v4801, %v4775
    %v6964 = vpack.c.bf16 %v4802, %v4776
    %v6965 = vpack.c.bf16 %v4803, %v4777
    %v6966 = vpack.c.bf16 %v4804, %v4778
    %v6967 = vpack.c.bf16 %v4805, %v4779
    %v6968 = vpack.c.bf16 %v4806, %v4780
    %v6969 = vpack.c.bf16 %v4807, %v4781
    %v6970 = vpack.c.bf16 %v4808, %v4782
    %v6971 = vpack.c.bf16 %v4809, %v4783
    %v6972 = vpack.c.bf16 %v4810, %v4784
    %v6973 = vpack.c.bf16 %v4811, %v4785
    %v6974 = vpack.c.bf16 %v4812, %v4786
    %v6975 = vpack.c.bf16 %v4813, %v4787
    %v6976 = vpack.c.bf16 %v4814, %v4788
    %v6977 = vpack.c.bf16 %v4815, %v4789
    %v6978 = vpack.c.bf16 %v4816, %v4790
    %v6979 = vpack.c.bf16 %v4817, %v4791
    %v6980 = vpack.c.bf16 %v4818, %v4792
    %v6981 = vpack.c.bf16 %v4819, %v4793
    %v6982 = vpack.c.bf16 %v4820, %v4794
    %v6983 = vpack.c.bf16 %v4821, %v4795
    %v6984 = vpack.c.bf16 %v4822, %v4796
    %v6985 = vpack.c.bf16 %v4823, %v4797
    %v6986 = vpack.c.bf16 %v4824, %v4798
    %v6987 = vpack.c.bf16 %v4825, %v4799
    %v7014 = vunpack.c.l.b16 %v6962
    %v7015 = vunpack.c.l.b16 %v6963
    %v7016 = vunpack.c.l.b16 %v6964
    %v7017 = vunpack.c.l.b16 %v6965
    %v7018 = vunpack.c.l.b16 %v6966
    %v7019 = vunpack.c.l.b16 %v6967
    %v7020 = vunpack.c.l.b16 %v6968
    %v7021 = vunpack.c.l.b16 %v6969
    %v7022 = vunpack.c.l.b16 %v6970
    %v7023 = vunpack.c.l.b16 %v6971
    %v7024 = vunpack.c.l.b16 %v6972
    %v7025 = vunpack.c.l.b16 %v6973
    %v7026 = vunpack.c.l.b16 %v6974
    %v7027 = vunpack.c.l.b16 %v6975
    %v7028 = vunpack.c.l.b16 %v6976
    %v7029 = vunpack.c.l.b16 %v6977
    %v7030 = vunpack.c.l.b16 %v6978
    %v7031 = vunpack.c.l.b16 %v6979
    %v7032 = vunpack.c.l.b16 %v6980
    %v7033 = vunpack.c.l.b16 %v6981
    %v7034 = vunpack.c.l.b16 %v6982
    %v7035 = vunpack.c.l.b16 %v6983
    %v7036 = vunpack.c.l.b16 %v6984
    %v7037 = vunpack.c.l.b16 %v6985
    %v7038 = vunpack.c.l.b16 %v6986
    %v7039 = vunpack.c.l.b16 %v6987
    %v7040 = vunpack.c.h.b16 %v6962
    %v7041 = vunpack.c.h.b16 %v6963
    %v7042 = vunpack.c.h.b16 %v6964
    %v7043 = vunpack.c.h.b16 %v6965
    %v7044 = vunpack.c.h.b16 %v6966
    %v7045 = vunpack.c.h.b16 %v6967
    %v7046 = vunpack.c.h.b16 %v6968
    %v7047 = vunpack.c.h.b16 %v6969
    %v7048 = vunpack.c.h.b16 %v6970
    %v7049 = vunpack.c.h.b16 %v6971
    %v7050 = vunpack.c.h.b16 %v6972
    %v7051 = vunpack.c.h.b16 %v6973
    %v7052 = vunpack.c.h.b16 %v6974
    %v7053 = vunpack.c.h.b16 %v6975
    %v7054 = vunpack.c.h.b16 %v6976
    %v7055 = vunpack.c.h.b16 %v6977
    %v7056 = vunpack.c.h.b16 %v6978
    %v7057 = vunpack.c.h.b16 %v6979
    %v7058 = vunpack.c.h.b16 %v6980
    %v7059 = vunpack.c.h.b16 %v6981
    %v7060 = vunpack.c.h.b16 %v6982
    %v7061 = vunpack.c.h.b16 %v6983
    %v7062 = vunpack.c.h.b16 %v6984
    %v7063 = vunpack.c.h.b16 %v6985
    %v7064 = vunpack.c.h.b16 %v6986
    %v7065 = vunpack.c.h.b16 %v6987
    %v7066 = vpack.c.b16 %v7015, %v7014
    %v7067 = vpack.c.b16 %v7017, %v7016
    %v7068 = vpack.c.b16 %v7019, %v7018
    %v7069 = vpack.c.b16 %v7021, %v7020
    %v7070 = vpack.c.b16 %v7023, %v7022
    %v7071 = vpack.c.b16 %v7025, %v7024
    %v7072 = vpack.c.b16 %v7027, %v7026
    %v7073 = vpack.c.b16 %v7029, %v7028
    %v7074 = vpack.c.b16 %v7031, %v7030
    %v7075 = vpack.c.b16 %v7033, %v7032
    %v7076 = vpack.c.b16 %v7035, %v7034
    %v7077 = vpack.c.b16 %v7037, %v7036
    %v7078 = vpack.c.b16 %v7039, %v7038
    %v7079 = vpack.c.b16 %v7041, %v7040
    %v7080 = vpack.c.b16 %v7043, %v7042
    %v7081 = vpack.c.b16 %v7045, %v7044
    %v7082 = vpack.c.b16 %v7047, %v7046
    %v7083 = vpack.c.b16 %v7049, %v7048
    %v7084 = vpack.c.b16 %v7051, %v7050
    %v7085 = vpack.c.b16 %v7053, %v7052
    %v7086 = vpack.c.b16 %v7055, %v7054
    %v7087 = vpack.c.b16 %v7057, %v7056
    %v7088 = vpack.c.b16 %v7059, %v7058
    %v7089 = vpack.c.b16 %v7061, %v7060
    %v7090 = vpack.c.b16 %v7063, %v7062
    %v7091 = vpack.c.b16 %v7065, %v7064
    %7118 = vst [vmem:[#allocation3 + $0x340] sm:$0xff] %v7066
    %7119 = vst [vmem:[#allocation3 + $0x348] sm:$0xff] %v7067
    %7120 = vst [vmem:[#allocation3 + $0x350] sm:$0xff] %v7068
    %7121 = vst [vmem:[#allocation3 + $0x358] sm:$0xff] %v7069
    %7122 = vst [vmem:[#allocation3 + $0x360] sm:$0xff] %v7070
    %7123 = vst [vmem:[#allocation3 + $0x368] sm:$0xff] %v7071
    %7124 = vst [vmem:[#allocation3 + $0x370] sm:$0xff] %v7072
    %7125 = vst [vmem:[#allocation3 + $0x378] sm:$0xff] %v7073
    %7126 = vst [vmem:[#allocation3 + $0x380] sm:$0xff] %v7074
    %7127 = vst [vmem:[#allocation3 + $0x388] sm:$0xff] %v7075
    %7128 = vst [vmem:[#allocation3 + $0x390] sm:$0xff] %v7076
    %7129 = vst [vmem:[#allocation3 + $0x398] sm:$0xff] %v7077
    %7130 = vst [vmem:[#allocation3 + $0x3a0] sm:$0xff] %v7078
    %7131 = vst [vmem:[#allocation3 + $0x3a8] sm:$0xff] %v7079
    %7132 = vst [vmem:[#allocation3 + $0x3b0] sm:$0xff] %v7080
    %7133 = vst [vmem:[#allocation3 + $0x3b8] sm:$0xff] %v7081
    %7134 = vst [vmem:[#allocation3 + $0x3c0] sm:$0xff] %v7082
    %7135 = vst [vmem:[#allocation3 + $0x3c8] sm:$0xff] %v7083
    %7136 = vst [vmem:[#allocation3 + $0x3d0] sm:$0xff] %v7084
    %7137 = vst [vmem:[#allocation3 + $0x3d8] sm:$0xff] %v7085
    %7138 = vst [vmem:[#allocation3 + $0x3e0] sm:$0xff] %v7086
    %7139 = vst [vmem:[#allocation3 + $0x3e8] sm:$0xff] %v7087
    %7140 = vst [vmem:[#allocation3 + $0x3f0] sm:$0xff] %v7088
    %7141 = vst [vmem:[#allocation3 + $0x3f8] sm:$0xff] %v7089
    %7142 = vst [vmem:[#allocation3 + $0x400] sm:$0xff] %v7090
    %7143 = vst [vmem:[#allocation3 + $0x408] sm:$0xff] %v7091
    %7144 = vrot.lane.b32.xlu0 %v4774, 127
    %v7145 = vpop.permute.xlu0 %7144
    %7146 = vrot.lane.b32.xlu0 %v4800, 127
    %v7147 = vpop.permute.xlu0 %7146
    %7148 = vrot.lane.b32.xlu0 %v4775, 127
    %v7149 = vpop.permute.xlu0 %7148
    %7150 = vrot.lane.b32.xlu0 %v4801, 127
    %v7151 = vpop.permute.xlu0 %7150
    %7152 = vrot.lane.b32.xlu0 %v4776, 127
    %v7153 = vpop.permute.xlu0 %7152
    %7154 = vrot.lane.b32.xlu0 %v4802, 127
    %v7155 = vpop.permute.xlu0 %7154
    %7156 = vrot.lane.b32.xlu0 %v4777, 127
    %v7157 = vpop.permute.xlu0 %7156
    %7158 = vrot.lane.b32.xlu0 %v4803, 127
    %v7159 = vpop.permute.xlu0 %7158
    %7160 = vrot.lane.b32.xlu0 %v4778, 127
    %v7161 = vpop.permute.xlu0 %7160
    %7162 = vrot.lane.b32.xlu0 %v4804, 127
    %v7163 = vpop.permute.xlu0 %7162
    %7164 = vrot.lane.b32.xlu0 %v4779, 127
    %v7165 = vpop.permute.xlu0 %7164
    %7166 = vrot.lane.b32.xlu0 %v4805, 127
    %v7167 = vpop.permute.xlu0 %7166
    %7168 = vrot.lane.b32.xlu0 %v4780, 127
    %v7169 = vpop.permute.xlu0 %7168
    %7170 = vrot.lane.b32.xlu0 %v4806, 127
    %v7171 = vpop.permute.xlu0 %7170
    %7172 = vrot.lane.b32.xlu0 %v4781, 127
    %v7173 = vpop.permute.xlu0 %7172
    %7174 = vrot.lane.b32.xlu0 %v4807, 127
    %v7175 = vpop.permute.xlu0 %7174
    %7176 = vrot.lane.b32.xlu0 %v4782, 127
    %v7177 = vpop.permute.xlu0 %7176
    %7178 = vrot.lane.b32.xlu0 %v4808, 127
    %v7179 = vpop.permute.xlu0 %7178
    %7180 = vrot.lane.b32.xlu0 %v4783, 127
    %v7181 = vpop.permute.xlu0 %7180
    %7182 = vrot.lane.b32.xlu0 %v4809, 127
    %v7183 = vpop.permute.xlu0 %7182
    %7184 = vrot.lane.b32.xlu0 %v4784, 127
    %v7185 = vpop.permute.xlu0 %7184
    %7186 = vrot.lane.b32.xlu0 %v4810, 127
    %v7187 = vpop.permute.xlu0 %7186
    %7188 = vrot.lane.b32.xlu0 %v4785, 127
    %v7189 = vpop.permute.xlu0 %7188
    %7190 = vrot.lane.b32.xlu0 %v4811, 127
    %v7191 = vpop.permute.xlu0 %7190
    %7192 = vrot.lane.b32.xlu0 %v4786, 127
    %v7193 = vpop.permute.xlu0 %7192
    %7194 = vrot.lane.b32.xlu0 %v4812, 127
    %v7195 = vpop.permute.xlu0 %7194
    %7196 = vrot.lane.b32.xlu0 %v4787, 127
    %v7197 = vpop.permute.xlu0 %7196
    %7198 = vrot.lane.b32.xlu0 %v4813, 127
    %v7199 = vpop.permute.xlu0 %7198
    %7200 = vrot.lane.b32.xlu0 %v4788, 127
    %v7201 = vpop.permute.xlu0 %7200
    %7202 = vrot.lane.b32.xlu0 %v4814, 127
    %v7203 = vpop.permute.xlu0 %7202
    %7204 = vrot.lane.b32.xlu0 %v4789, 127
    %v7205 = vpop.permute.xlu0 %7204
    %7206 = vrot.lane.b32.xlu0 %v4815, 127
    %v7207 = vpop.permute.xlu0 %7206
    %7208 = vrot.lane.b32.xlu0 %v4790, 127
    %v7209 = vpop.permute.xlu0 %7208
    %7210 = vrot.lane.b32.xlu0 %v4816, 127
    %v7211 = vpop.permute.xlu0 %7210
    %7212 = vrot.lane.b32.xlu0 %v4791, 127
    %v7213 = vpop.permute.xlu0 %7212
    %7214 = vrot.lane.b32.xlu0 %v4817, 127
    %v7215 = vpop.permute.xlu0 %7214
    %7216 = vrot.lane.b32.xlu0 %v4792, 127
    %v7217 = vpop.permute.xlu0 %7216
    %7218 = vrot.lane.b32.xlu0 %v4818, 127
    %v7219 = vpop.permute.xlu0 %7218
    %7220 = vrot.lane.b32.xlu0 %v4793, 127
    %v7221 = vpop.permute.xlu0 %7220
    %7222 = vrot.lane.b32.xlu0 %v4819, 127
    %v7223 = vpop.permute.xlu0 %7222
    %7224 = vrot.lane.b32.xlu0 %v4794, 127
    %v7225 = vpop.permute.xlu0 %7224
    %7226 = vrot.lane.b32.xlu0 %v4820, 127
    %v7227 = vpop.permute.xlu0 %7226
    %7228 = vrot.lane.b32.xlu0 %v4795, 127
    %v7229 = vpop.permute.xlu0 %7228
    %7230 = vrot.lane.b32.xlu0 %v4821, 127
    %v7231 = vpop.permute.xlu0 %7230
    %7232 = vrot.lane.b32.xlu0 %v4796, 127
    %v7233 = vpop.permute.xlu0 %7232
    %7234 = vrot.lane.b32.xlu0 %v4822, 127
    %v7235 = vpop.permute.xlu0 %7234
    %7236 = vrot.lane.b32.xlu0 %v4797, 127
    %v7237 = vpop.permute.xlu0 %7236
    %7238 = vrot.lane.b32.xlu0 %v4823, 127
    %v7239 = vpop.permute.xlu0 %7238
    %7240 = vrot.lane.b32.xlu0 %v4798, 127
    %v7241 = vpop.permute.xlu0 %7240
    %7242 = vrot.lane.b32.xlu0 %v4824, 127
    %v7243 = vpop.permute.xlu0 %7242
    %7244 = vrot.lane.b32.xlu0 %v4799, 127
    %v7245 = vpop.permute.xlu0 %7244
    %7246 = vrot.lane.b32.xlu0 %v4825, 127
    %v7247 = vpop.permute.xlu0 %7246
    %v7248 = vsel %vm2312, %v7241, %v7245
    %v7249 = vsel %vm2312, %v7243, %v7247
    %v7250 = vsel %vm2312, %v7237, %v7241
    %v7251 = vsel %vm2312, %v7239, %v7243
    %v7252 = vsel %vm2312, %v7233, %v7237
    %v7253 = vsel %vm2312, %v7235, %v7239
    %v7254 = vsel %vm2312, %v7229, %v7233
    %v7255 = vsel %vm2312, %v7231, %v7235
    %v7256 = vsel %vm2312, %v7225, %v7229
    %v7257 = vsel %vm2312, %v7227, %v7231
    %v7258 = vsel %vm2312, %v7221, %v7225
    %v7259 = vsel %vm2312, %v7223, %v7227
    %v7260 = vsel %vm2312, %v7217, %v7221
    %v7261 = vsel %vm2312, %v7219, %v7223
    %v7262 = vsel %vm2312, %v7213, %v7217
    %v7263 = vsel %vm2312, %v7215, %v7219
    %v7264 = vsel %vm2312, %v7209, %v7213
    %v7265 = vsel %vm2312, %v7211, %v7215
    %v7266 = vsel %vm2312, %v7205, %v7209
    %v7267 = vsel %vm2312, %v7207, %v7211
    %v7268 = vsel %vm2312, %v7201, %v7205
    %v7269 = vsel %vm2312, %v7203, %v7207
    %v7270 = vsel %vm2312, %v7197, %v7201
    %v7271 = vsel %vm2312, %v7199, %v7203
    %v7272 = vsel %vm2312, %v7193, %v7197
    %v7273 = vsel %vm2312, %v7195, %v7199
    %v7274 = vsel %vm2312, %v7189, %v7193
    %v7275 = vsel %vm2312, %v7191, %v7195
    %v7276 = vsel %vm2312, %v7185, %v7189
    %v7277 = vsel %vm2312, %v7187, %v7191
    %v7278 = vsel %vm2312, %v7181, %v7185
    %v7279 = vsel %vm2312, %v7183, %v7187
    %v7280 = vsel %vm2312, %v7177, %v7181
    %v7281 = vsel %vm2312, %v7179, %v7183
    %v7282 = vsel %vm2312, %v7173, %v7177
    %v7283 = vsel %vm2312, %v7175, %v7179
    %v7284 = vsel %vm2312, %v7169, %v7173
    %v7285 = vsel %vm2312, %v7171, %v7175
    %v7286 = vsel %vm2312, %v7165, %v7169
    %v7287 = vsel %vm2312, %v7167, %v7171
    %v7288 = vsel %vm2312, %v7161, %v7165
    %v7289 = vsel %vm2312, %v7163, %v7167
    %v7290 = vsel %vm2312, %v7157, %v7161
    %v7291 = vsel %vm2312, %v7159, %v7163
    %v7292 = vsel %vm2312, %v7153, %v7157
    %v7293 = vsel %vm2312, %v7155, %v7159
    %v7294 = vsel %vm2312, %v7149, %v7153
    %v7295 = vsel %vm2312, %v7151, %v7155
    %v7296 = vsel %vm2312, %v7145, %v7149
    %v7297 = vsel %vm2312, %v7147, %v7151
    %v7298 = vsel %vm2312, %v7245, %v7145
    %v7299 = vsel %vm2312, %v7247, %v7147
    %v7300 = vld [vmem:[%s2339] ss:$8 sm:$0xf]
    %v7301 = vld [vmem:[%s2339] ss:$8 sm:$0xf0]
    %v7302 = vor.u32 %v7300, %v7301
    %v7303 = vld [vmem:[%s2343] ss:$8 sm:$0xf]
    %v7304 = vld [vmem:[%s2343] ss:$8 sm:$0xf0]
    %v7305 = vor.u32 %v7303, %v7304
    %v7306 = vld [vmem:[%s2347] ss:$8 sm:$0xf]
    %v7307 = vld [vmem:[%s2347] ss:$8 sm:$0xf0]
    %v7308 = vor.u32 %v7306, %v7307
    %v7309 = vld [vmem:[%s2351] ss:$8 sm:$0x3]
    %v7314 = vlaneseq
    %v7315 = vshrl.u32 %v7314, 7
    %v7316 = vsub.s32 0, %v7315
    %v7317 = vrot.slane %v7302, %v7316
    %v7318 = vlaneseq
    %v7319 = vshrl.u32 %v7318, 7
    %v7320 = vsub.s32 1, %v7319
    %v7321 = vrot.slane %v7302, %v7320
    %v7322 = vlaneseq
    %v7323 = vshrl.u32 %v7322, 7
    %v7324 = vsub.s32 2, %v7323
    %v7325 = vrot.slane %v7302, %v7324
    %v7326 = vlaneseq
    %v7327 = vshrl.u32 %v7326, 7
    %v7328 = vsub.s32 3, %v7327
    %v7329 = vrot.slane %v7302, %v7328
    %v7330 = vlaneseq
    %v7331 = vshrl.u32 %v7330, 7
    %v7332 = vsub.s32 4, %v7331
    %v7333 = vrot.slane %v7302, %v7332
    %v7334 = vlaneseq
    %v7335 = vshrl.u32 %v7334, 7
    %v7336 = vsub.s32 5, %v7335
    %v7337 = vrot.slane %v7302, %v7336
    %v7338 = vlaneseq
    %v7339 = vshrl.u32 %v7338, 7
    %v7340 = vsub.s32 6, %v7339
    %v7341 = vrot.slane %v7302, %v7340
    %v7342 = vlaneseq
    %v7343 = vshrl.u32 %v7342, 7
    %v7344 = vsub.s32 7, %v7343
    %v7345 = vrot.slane %v7302, %v7344
    %v7346 = vlaneseq
    %v7347 = vshrl.u32 %v7346, 7
    %v7348 = vsub.s32 0, %v7347
    %v7349 = vrot.slane %v7305, %v7348
    %v7350 = vlaneseq
    %v7351 = vshrl.u32 %v7350, 7
    %v7352 = vsub.s32 1, %v7351
    %v7353 = vrot.slane %v7305, %v7352
    %v7354 = vlaneseq
    %v7355 = vshrl.u32 %v7354, 7
    %v7356 = vsub.s32 2, %v7355
    %v7357 = vrot.slane %v7305, %v7356
    %v7358 = vlaneseq
    %v7359 = vshrl.u32 %v7358, 7
    %v7360 = vsub.s32 3, %v7359
    %v7361 = vrot.slane %v7305, %v7360
    %v7362 = vlaneseq
    %v7363 = vshrl.u32 %v7362, 7
    %v7364 = vsub.s32 4, %v7363
    %v7365 = vrot.slane %v7305, %v7364
    %v7366 = vlaneseq
    %v7367 = vshrl.u32 %v7366, 7
    %v7368 = vsub.s32 5, %v7367
    %v7369 = vrot.slane %v7305, %v7368
    %v7370 = vlaneseq
    %v7371 = vshrl.u32 %v7370, 7
    %v7372 = vsub.s32 6, %v7371
    %v7373 = vrot.slane %v7305, %v7372
    %v7374 = vlaneseq
    %v7375 = vshrl.u32 %v7374, 7
    %v7376 = vsub.s32 7, %v7375
    %v7377 = vrot.slane %v7305, %v7376
    %v7378 = vlaneseq
    %v7379 = vshrl.u32 %v7378, 7
    %v7380 = vsub.s32 0, %v7379
    %v7381 = vrot.slane %v7308, %v7380
    %v7382 = vlaneseq
    %v7383 = vshrl.u32 %v7382, 7
    %v7384 = vsub.s32 1, %v7383
    %v7385 = vrot.slane %v7308, %v7384
    %v7386 = vlaneseq
    %v7387 = vshrl.u32 %v7386, 7
    %v7388 = vsub.s32 2, %v7387
    %v7389 = vrot.slane %v7308, %v7388
    %v7390 = vlaneseq
    %v7391 = vshrl.u32 %v7390, 7
    %v7392 = vsub.s32 3, %v7391
    %v7393 = vrot.slane %v7308, %v7392
    %v7394 = vlaneseq
    %v7395 = vshrl.u32 %v7394, 7
    %v7396 = vsub.s32 4, %v7395
    %v7397 = vrot.slane %v7308, %v7396
    %v7398 = vlaneseq
    %v7399 = vshrl.u32 %v7398, 7
    %v7400 = vsub.s32 5, %v7399
    %v7401 = vrot.slane %v7308, %v7400
    %v7402 = vlaneseq
    %v7403 = vshrl.u32 %v7402, 7
    %v7404 = vsub.s32 6, %v7403
    %v7405 = vrot.slane %v7308, %v7404
    %v7406 = vlaneseq
    %v7407 = vshrl.u32 %v7406, 7
    %v7408 = vsub.s32 7, %v7407
    %v7409 = vrot.slane %v7308, %v7408
    %v7410 = vlaneseq
    %v7411 = vshrl.u32 %v7410, 7
    %v7412 = vsub.s32 0, %v7411
    %v7413 = vrot.slane %v7309, %v7412
    %v7414 = vlaneseq
    %v7415 = vshrl.u32 %v7414, 7
    %v7416 = vsub.s32 1, %v7415
    %v7417 = vrot.slane %v7309, %v7416
    %v7444 = vmul.f32 %v7296, %v7317
    %v7445 = vmul.f32 %v7294, %v7321
    %v7446 = vmul.f32 %v7292, %v7325
    %v7447 = vmul.f32 %v7290, %v7329
    %v7448 = vmul.f32 %v7288, %v7333
    %v7449 = vmul.f32 %v7286, %v7337
    %v7450 = vmul.f32 %v7284, %v7341
    %v7451 = vmul.f32 %v7282, %v7345
    %v7452 = vmul.f32 %v7280, %v7349
    %v7453 = vmul.f32 %v7278, %v7353
    %v7454 = vmul.f32 %v7276, %v7357
    %v7455 = vmul.f32 %v7274, %v7361
    %v7456 = vmul.f32 %v7272, %v7365
    %v7457 = vmul.f32 %v7270, %v7369
    %v7458 = vmul.f32 %v7268, %v7373
    %v7459 = vmul.f32 %v7266, %v7377
    %v7460 = vmul.f32 %v7264, %v7381
    %v7461 = vmul.f32 %v7262, %v7385
    %v7462 = vmul.f32 %v7260, %v7389
    %v7463 = vmul.f32 %v7258, %v7393
    %v7464 = vmul.f32 %v7256, %v7397
    %v7465 = vmul.f32 %v7254, %v7401
    %v7466 = vmul.f32 %v7252, %v7405
    %v7467 = vmul.f32 %v7250, %v7409
    %v7468 = vmul.f32 %v7248, %v7413
    %v7469 = vmul.f32 %v7298, %v7417
    %v7470 = vmul.f32 %v7297, %v7317
    %v7471 = vmul.f32 %v7295, %v7321
    %v7472 = vmul.f32 %v7293, %v7325
    %v7473 = vmul.f32 %v7291, %v7329
    %v7474 = vmul.f32 %v7289, %v7333
    %v7475 = vmul.f32 %v7287, %v7337
    %v7476 = vmul.f32 %v7285, %v7341
    %v7477 = vmul.f32 %v7283, %v7345
    %v7478 = vmul.f32 %v7281, %v7349
    %v7479 = vmul.f32 %v7279, %v7353
    %v7480 = vmul.f32 %v7277, %v7357
    %v7481 = vmul.f32 %v7275, %v7361
    %v7482 = vmul.f32 %v7273, %v7365
    %v7483 = vmul.f32 %v7271, %v7369
    %v7484 = vmul.f32 %v7269, %v7373
    %v7485 = vmul.f32 %v7267, %v7377
    %v7486 = vmul.f32 %v7265, %v7381
    %v7487 = vmul.f32 %v7263, %v7385
    %v7488 = vmul.f32 %v7261, %v7389
    %v7489 = vmul.f32 %v7259, %v7393
    %v7490 = vmul.f32 %v7257, %v7397
    %v7491 = vmul.f32 %v7255, %v7401
    %v7492 = vmul.f32 %v7253, %v7405
    %v7493 = vmul.f32 %v7251, %v7409
    %v7494 = vmul.f32 %v7249, %v7413
    %v7495 = vmul.f32 %v7299, %v7417
    %v7496 = vpack.c.bf16 %v7470, %v7444
    %v7497 = vpack.c.bf16 %v7471, %v7445
    %v7498 = vpack.c.bf16 %v7472, %v7446
    %v7499 = vpack.c.bf16 %v7473, %v7447
    %v7500 = vpack.c.bf16 %v7474, %v7448
    %v7501 = vpack.c.bf16 %v7475, %v7449
    %v7502 = vpack.c.bf16 %v7476, %v7450
    %v7503 = vpack.c.bf16 %v7477, %v7451
    %v7504 = vpack.c.bf16 %v7478, %v7452
    %v7505 = vpack.c.bf16 %v7479, %v7453
    %v7506 = vpack.c.bf16 %v7480, %v7454
    %v7507 = vpack.c.bf16 %v7481, %v7455
    %v7508 = vpack.c.bf16 %v7482, %v7456
    %v7509 = vpack.c.bf16 %v7483, %v7457
    %v7510 = vpack.c.bf16 %v7484, %v7458
    %v7511 = vpack.c.bf16 %v7485, %v7459
    %v7512 = vpack.c.bf16 %v7486, %v7460
    %v7513 = vpack.c.bf16 %v7487, %v7461
    %v7514 = vpack.c.bf16 %v7488, %v7462
    %v7515 = vpack.c.bf16 %v7489, %v7463
    %v7516 = vpack.c.bf16 %v7490, %v7464
    %v7517 = vpack.c.bf16 %v7491, %v7465
    %v7518 = vpack.c.bf16 %v7492, %v7466
    %v7519 = vpack.c.bf16 %v7493, %v7467
    %v7520 = vpack.c.bf16 %v7494, %v7468
    %v7521 = vpack.c.bf16 %v7495, %v7469
    %v7548 = vunpack.c.l.b16 %v7496
    %v7549 = vunpack.c.l.b16 %v7497
    %v7550 = vunpack.c.l.b16 %v7498
    %v7551 = vunpack.c.l.b16 %v7499
    %v7552 = vunpack.c.l.b16 %v7500
    %v7553 = vunpack.c.l.b16 %v7501
    %v7554 = vunpack.c.l.b16 %v7502
    %v7555 = vunpack.c.l.b16 %v7503
    %v7556 = vunpack.c.l.b16 %v7504
    %v7557 = vunpack.c.l.b16 %v7505
    %v7558 = vunpack.c.l.b16 %v7506
    %v7559 = vunpack.c.l.b16 %v7507
    %v7560 = vunpack.c.l.b16 %v7508
    %v7561 = vunpack.c.l.b16 %v7509
    %v7562 = vunpack.c.l.b16 %v7510
    %v7563 = vunpack.c.l.b16 %v7511
    %v7564 = vunpack.c.l.b16 %v7512
    %v7565 = vunpack.c.l.b16 %v7513
    %v7566 = vunpack.c.l.b16 %v7514
    %v7567 = vunpack.c.l.b16 %v7515
    %v7568 = vunpack.c.l.b16 %v7516
    %v7569 = vunpack.c.l.b16 %v7517
    %v7570 = vunpack.c.l.b16 %v7518
    %v7571 = vunpack.c.l.b16 %v7519
    %v7572 = vunpack.c.l.b16 %v7520
    %v7573 = vunpack.c.l.b16 %v7521
    %v7574 = vunpack.c.h.b16 %v7496
    %v7575 = vunpack.c.h.b16 %v7497
    %v7576 = vunpack.c.h.b16 %v7498
    %v7577 = vunpack.c.h.b16 %v7499
    %v7578 = vunpack.c.h.b16 %v7500
    %v7579 = vunpack.c.h.b16 %v7501
    %v7580 = vunpack.c.h.b16 %v7502
    %v7581 = vunpack.c.h.b16 %v7503
    %v7582 = vunpack.c.h.b16 %v7504
    %v7583 = vunpack.c.h.b16 %v7505
    %v7584 = vunpack.c.h.b16 %v7506
    %v7585 = vunpack.c.h.b16 %v7507
    %v7586 = vunpack.c.h.b16 %v7508
    %v7587 = vunpack.c.h.b16 %v7509
    %v7588 = vunpack.c.h.b16 %v7510
    %v7589 = vunpack.c.h.b16 %v7511
    %v7590 = vunpack.c.h.b16 %v7512
    %v7591 = vunpack.c.h.b16 %v7513
    %v7592 = vunpack.c.h.b16 %v7514
    %v7593 = vunpack.c.h.b16 %v7515
    %v7594 = vunpack.c.h.b16 %v7516
    %v7595 = vunpack.c.h.b16 %v7517
    %v7596 = vunpack.c.h.b16 %v7518
    %v7597 = vunpack.c.h.b16 %v7519
    %v7598 = vunpack.c.h.b16 %v7520
    %v7599 = vunpack.c.h.b16 %v7521
    %v7600 = vpack.c.b16 %v7549, %v7548
    %v7601 = vpack.c.b16 %v7551, %v7550
    %v7602 = vpack.c.b16 %v7553, %v7552
    %v7603 = vpack.c.b16 %v7555, %v7554
    %v7604 = vpack.c.b16 %v7557, %v7556
    %v7605 = vpack.c.b16 %v7559, %v7558
    %v7606 = vpack.c.b16 %v7561, %v7560
    %v7607 = vpack.c.b16 %v7563, %v7562
    %v7608 = vpack.c.b16 %v7565, %v7564
    %v7609 = vpack.c.b16 %v7567, %v7566
    %v7610 = vpack.c.b16 %v7569, %v7568
    %v7611 = vpack.c.b16 %v7571, %v7570
    %v7612 = vpack.c.b16 %v7573, %v7572
    %v7613 = vpack.c.b16 %v7575, %v7574
    %v7614 = vpack.c.b16 %v7577, %v7576
    %v7615 = vpack.c.b16 %v7579, %v7578
    %v7616 = vpack.c.b16 %v7581, %v7580
    %v7617 = vpack.c.b16 %v7583, %v7582
    %v7618 = vpack.c.b16 %v7585, %v7584
    %v7619 = vpack.c.b16 %v7587, %v7586
    %v7620 = vpack.c.b16 %v7589, %v7588
    %v7621 = vpack.c.b16 %v7591, %v7590
    %v7622 = vpack.c.b16 %v7593, %v7592
    %v7623 = vpack.c.b16 %v7595, %v7594
    %v7624 = vpack.c.b16 %v7597, %v7596
    %v7625 = vpack.c.b16 %v7599, %v7598
    %7652 = vst [vmem:[#allocation3 + $0x410] sm:$0xff] %v7600
    %7653 = vst [vmem:[#allocation3 + $0x418] sm:$0xff] %v7601
    %7654 = vst [vmem:[#allocation3 + $0x420] sm:$0xff] %v7602
    %7655 = vst [vmem:[#allocation3 + $0x428] sm:$0xff] %v7603
    %7656 = vst [vmem:[#allocation3 + $0x430] sm:$0xff] %v7604
    %7657 = vst [vmem:[#allocation3 + $0x438] sm:$0xff] %v7605
    %7658 = vst [vmem:[#allocation3 + $0x440] sm:$0xff] %v7606
    %7659 = vst [vmem:[#allocation3 + $0x448] sm:$0xff] %v7607
    %7660 = vst [vmem:[#allocation3 + $0x450] sm:$0xff] %v7608
    %7661 = vst [vmem:[#allocation3 + $0x458] sm:$0xff] %v7609
    %7662 = vst [vmem:[#allocation3 + $0x460] sm:$0xff] %v7610
    %7663 = vst [vmem:[#allocation3 + $0x468] sm:$0xff] %v7611
    %7664 = vst [vmem:[#allocation3 + $0x470] sm:$0xff] %v7612
    %7665 = vst [vmem:[#allocation3 + $0x478] sm:$0xff] %v7613
    %7666 = vst [vmem:[#allocation3 + $0x480] sm:$0xff] %v7614
    %7667 = vst [vmem:[#allocation3 + $0x488] sm:$0xff] %v7615
    %7668 = vst [vmem:[#allocation3 + $0x490] sm:$0xff] %v7616
    %7669 = vst [vmem:[#allocation3 + $0x498] sm:$0xff] %v7617
    %7670 = vst [vmem:[#allocation3 + $0x4a0] sm:$0xff] %v7618
    %7671 = vst [vmem:[#allocation3 + $0x4a8] sm:$0xff] %v7619
    %7672 = vst [vmem:[#allocation3 + $0x4b0] sm:$0xff] %v7620
    %7673 = vst [vmem:[#allocation3 + $0x4b8] sm:$0xff] %v7621
    %7674 = vst [vmem:[#allocation3 + $0x4c0] sm:$0xff] %v7622
    %7675 = vst [vmem:[#allocation3 + $0x4c8] sm:$0xff] %v7623
    %7676 = vst [vmem:[#allocation3 + $0x4d0] sm:$0xff] %v7624
    %7677 = vst [vmem:[#allocation3 + $0x4d8] sm:$0xff] %v7625
    %7678 = vrot.lane.b32.xlu0 %v4774, 49
    %v7679 = vpop.permute.xlu0 %7678
    %7680 = vrot.lane.b32.xlu0 %v4800, 49
    %v7681 = vpop.permute.xlu0 %7680
    %7682 = vrot.lane.b32.xlu0 %v4775, 49
    %v7683 = vpop.permute.xlu0 %7682
    %7684 = vrot.lane.b32.xlu0 %v4801, 49
    %v7685 = vpop.permute.xlu0 %7684
    %7686 = vrot.lane.b32.xlu0 %v4776, 49
    %v7687 = vpop.permute.xlu0 %7686
    %7688 = vrot.lane.b32.xlu0 %v4802, 49
    %v7689 = vpop.permute.xlu0 %7688
    %7690 = vrot.lane.b32.xlu0 %v4777, 49
    %v7691 = vpop.permute.xlu0 %7690
    %7692 = vrot.lane.b32.xlu0 %v4803, 49
    %v7693 = vpop.permute.xlu0 %7692
    %7694 = vrot.lane.b32.xlu0 %v4778, 49
    %v7695 = vpop.permute.xlu0 %7694
    %7696 = vrot.lane.b32.xlu0 %v4804, 49
    %v7697 = vpop.permute.xlu0 %7696
    %7698 = vrot.lane.b32.xlu0 %v4779, 49
    %v7699 = vpop.permute.xlu0 %7698
    %7700 = vrot.lane.b32.xlu0 %v4805, 49
    %v7701 = vpop.permute.xlu0 %7700
    %7702 = vrot.lane.b32.xlu0 %v4780, 49
    %v7703 = vpop.permute.xlu0 %7702
    %7704 = vrot.lane.b32.xlu0 %v4806, 49
    %v7705 = vpop.permute.xlu0 %7704
    %7706 = vrot.lane.b32.xlu0 %v4781, 49
    %v7707 = vpop.permute.xlu0 %7706
    %7708 = vrot.lane.b32.xlu0 %v4807, 49
    %v7709 = vpop.permute.xlu0 %7708
    %7710 = vrot.lane.b32.xlu0 %v4782, 49
    %v7711 = vpop.permute.xlu0 %7710
    %7712 = vrot.lane.b32.xlu0 %v4808, 49
    %v7713 = vpop.permute.xlu0 %7712
    %7714 = vrot.lane.b32.xlu0 %v4783, 49
    %v7715 = vpop.permute.xlu0 %7714
    %7716 = vrot.lane.b32.xlu0 %v4809, 49
    %v7717 = vpop.permute.xlu0 %7716
    %7718 = vrot.lane.b32.xlu0 %v4784, 49
    %v7719 = vpop.permute.xlu0 %7718
    %7720 = vrot.lane.b32.xlu0 %v4810, 49
    %v7721 = vpop.permute.xlu0 %7720
    %7722 = vrot.lane.b32.xlu0 %v4785, 49
    %v7723 = vpop.permute.xlu0 %7722
    %7724 = vrot.lane.b32.xlu0 %v4811, 49
    %v7725 = vpop.permute.xlu0 %7724
    %7726 = vrot.lane.b32.xlu0 %v4786, 49
    %v7727 = vpop.permute.xlu0 %7726
    %7728 = vrot.lane.b32.xlu0 %v4812, 49
    %v7729 = vpop.permute.xlu0 %7728
    %7730 = vrot.lane.b32.xlu0 %v4787, 49
    %v7731 = vpop.permute.xlu0 %7730
    %7732 = vrot.lane.b32.xlu0 %v4813, 49
    %v7733 = vpop.permute.xlu0 %7732
    %7734 = vrot.lane.b32.xlu0 %v4788, 49
    %v7735 = vpop.permute.xlu0 %7734
    %7736 = vrot.lane.b32.xlu0 %v4814, 49
    %v7737 = vpop.permute.xlu0 %7736
    %7738 = vrot.lane.b32.xlu0 %v4789, 49
    %v7739 = vpop.permute.xlu0 %7738
    %7740 = vrot.lane.b32.xlu0 %v4815, 49
    %v7741 = vpop.permute.xlu0 %7740
    %7742 = vrot.lane.b32.xlu0 %v4790, 49
    %v7743 = vpop.permute.xlu0 %7742
    %7744 = vrot.lane.b32.xlu0 %v4816, 49
    %v7745 = vpop.permute.xlu0 %7744
    %7746 = vrot.lane.b32.xlu0 %v4791, 49
    %v7747 = vpop.permute.xlu0 %7746
    %7748 = vrot.lane.b32.xlu0 %v4817, 49
    %v7749 = vpop.permute.xlu0 %7748
    %7750 = vrot.lane.b32.xlu0 %v4792, 49
    %v7751 = vpop.permute.xlu0 %7750
    %7752 = vrot.lane.b32.xlu0 %v4818, 49
    %v7753 = vpop.permute.xlu0 %7752
    %7754 = vrot.lane.b32.xlu0 %v4793, 49
    %v7755 = vpop.permute.xlu0 %7754
    %7756 = vrot.lane.b32.xlu0 %v4819, 49
    %v7757 = vpop.permute.xlu0 %7756
    %7758 = vrot.lane.b32.xlu0 %v4794, 49
    %v7759 = vpop.permute.xlu0 %7758
    %7760 = vrot.lane.b32.xlu0 %v4820, 49
    %v7761 = vpop.permute.xlu0 %7760
    %7762 = vrot.lane.b32.xlu0 %v4795, 49
    %v7763 = vpop.permute.xlu0 %7762
    %7764 = vrot.lane.b32.xlu0 %v4821, 49
    %v7765 = vpop.permute.xlu0 %7764
    %7766 = vrot.lane.b32.xlu0 %v4796, 49
    %v7767 = vpop.permute.xlu0 %7766
    %7768 = vrot.lane.b32.xlu0 %v4822, 49
    %v7769 = vpop.permute.xlu0 %7768
    %7770 = vrot.lane.b32.xlu0 %v4797, 49
    %v7771 = vpop.permute.xlu0 %7770
    %7772 = vrot.lane.b32.xlu0 %v4823, 49
    %v7773 = vpop.permute.xlu0 %7772
    %7774 = vrot.lane.b32.xlu0 %v4798, 49
    %v7775 = vpop.permute.xlu0 %7774
    %7776 = vrot.lane.b32.xlu0 %v4824, 49
    %v7777 = vpop.permute.xlu0 %7776
    %7778 = vrot.lane.b32.xlu0 %v4799, 49
    %v7779 = vpop.permute.xlu0 %7778
    %7780 = vrot.lane.b32.xlu0 %v4825, 49
    %v7781 = vpop.permute.xlu0 %7780
    %v7782 = vsel %vm2769, %v7775, %v7779
    %v7783 = vsel %vm2769, %v7777, %v7781
    %v7784 = vsel %vm2769, %v7771, %v7775
    %v7785 = vsel %vm2769, %v7773, %v7777
    %v7786 = vsel %vm2769, %v7767, %v7771
    %v7787 = vsel %vm2769, %v7769, %v7773
    %v7788 = vsel %vm2769, %v7763, %v7767
    %v7789 = vsel %vm2769, %v7765, %v7769
    %v7790 = vsel %vm2769, %v7759, %v7763
    %v7791 = vsel %vm2769, %v7761, %v7765
    %v7792 = vsel %vm2769, %v7755, %v7759
    %v7793 = vsel %vm2769, %v7757, %v7761
    %v7794 = vsel %vm2769, %v7751, %v7755
    %v7795 = vsel %vm2769, %v7753, %v7757
    %v7796 = vsel %vm2769, %v7747, %v7751
    %v7797 = vsel %vm2769, %v7749, %v7753
    %v7798 = vsel %vm2769, %v7743, %v7747
    %v7799 = vsel %vm2769, %v7745, %v7749
    %v7800 = vsel %vm2769, %v7739, %v7743
    %v7801 = vsel %vm2769, %v7741, %v7745
    %v7802 = vsel %vm2769, %v7735, %v7739
    %v7803 = vsel %vm2769, %v7737, %v7741
    %v7804 = vsel %vm2769, %v7731, %v7735
    %v7805 = vsel %vm2769, %v7733, %v7737
    %v7806 = vsel %vm2769, %v7727, %v7731
    %v7807 = vsel %vm2769, %v7729, %v7733
    %v7808 = vsel %vm2769, %v7723, %v7727
    %v7809 = vsel %vm2769, %v7725, %v7729
    %v7810 = vsel %vm2769, %v7719, %v7723
    %v7811 = vsel %vm2769, %v7721, %v7725
    %v7812 = vsel %vm2769, %v7715, %v7719
    %v7813 = vsel %vm2769, %v7717, %v7721
    %v7814 = vsel %vm2769, %v7711, %v7715
    %v7815 = vsel %vm2769, %v7713, %v7717
    %v7816 = vsel %vm2769, %v7707, %v7711
    %v7817 = vsel %vm2769, %v7709, %v7713
    %v7818 = vsel %vm2769, %v7703, %v7707
    %v7819 = vsel %vm2769, %v7705, %v7709
    %v7820 = vsel %vm2769, %v7699, %v7703
    %v7821 = vsel %vm2769, %v7701, %v7705
    %v7822 = vsel %vm2769, %v7695, %v7699
    %v7823 = vsel %vm2769, %v7697, %v7701
    %v7824 = vsel %vm2769, %v7691, %v7695
    %v7825 = vsel %vm2769, %v7693, %v7697
    %v7826 = vsel %vm2769, %v7687, %v7691
    %v7827 = vsel %vm2769, %v7689, %v7693
    %v7828 = vsel %vm2769, %v7683, %v7687
    %v7829 = vsel %vm2769, %v7685, %v7689
    %v7830 = vsel %vm2769, %v7679, %v7683
    %v7831 = vsel %vm2769, %v7681, %v7685
    %v7832 = vsel %vm2769, %v7779, %v7679
    %v7833 = vsel %vm2769, %v7781, %v7681
    %v7834 = vld [vmem:[%s2796] ss:$8 sm:$0xf]
    %v7835 = vld [vmem:[%s2796] ss:$8 sm:$0xf0]
    %v7836 = vor.u32 %v7834, %v7835
    %v7837 = vld [vmem:[%s2800] ss:$8 sm:$0xf]
    %v7838 = vld [vmem:[%s2800] ss:$8 sm:$0xf0]
    %v7839 = vor.u32 %v7837, %v7838
    %v7840 = vld [vmem:[%s2804] ss:$8 sm:$0xf]
    %v7841 = vld [vmem:[%s2804] ss:$8 sm:$0xf0]
    %v7842 = vor.u32 %v7840, %v7841
    %v7843 = vld [vmem:[%s2808] ss:$8 sm:$0x3]
    %v7848 = vlaneseq
    %v7849 = vshrl.u32 %v7848, 7
    %v7850 = vsub.s32 0, %v7849
    %v7851 = vrot.slane %v7836, %v7850
    %v7852 = vlaneseq
    %v7853 = vshrl.u32 %v7852, 7
    %v7854 = vsub.s32 1, %v7853
    %v7855 = vrot.slane %v7836, %v7854
    %v7856 = vlaneseq
    %v7857 = vshrl.u32 %v7856, 7
    %v7858 = vsub.s32 2, %v7857
    %v7859 = vrot.slane %v7836, %v7858
    %v7860 = vlaneseq
    %v7861 = vshrl.u32 %v7860, 7
    %v7862 = vsub.s32 3, %v7861
    %v7863 = vrot.slane %v7836, %v7862
    %v7864 = vlaneseq
    %v7865 = vshrl.u32 %v7864, 7
    %v7866 = vsub.s32 4, %v7865
    %v7867 = vrot.slane %v7836, %v7866
    %v7868 = vlaneseq
    %v7869 = vshrl.u32 %v7868, 7
    %v7870 = vsub.s32 5, %v7869
    %v7871 = vrot.slane %v7836, %v7870
    %v7872 = vlaneseq
    %v7873 = vshrl.u32 %v7872, 7
    %v7874 = vsub.s32 6, %v7873
    %v7875 = vrot.slane %v7836, %v7874
    %v7876 = vlaneseq
    %v7877 = vshrl.u32 %v7876, 7
    %v7878 = vsub.s32 7, %v7877
    %v7879 = vrot.slane %v7836, %v7878
    %v7880 = vlaneseq
    %v7881 = vshrl.u32 %v7880, 7
    %v7882 = vsub.s32 0, %v7881
    %v7883 = vrot.slane %v7839, %v7882
    %v7884 = vlaneseq
    %v7885 = vshrl.u32 %v7884, 7
    %v7886 = vsub.s32 1, %v7885
    %v7887 = vrot.slane %v7839, %v7886
    %v7888 = vlaneseq
    %v7889 = vshrl.u32 %v7888, 7
    %v7890 = vsub.s32 2, %v7889
    %v7891 = vrot.slane %v7839, %v7890
    %v7892 = vlaneseq
    %v7893 = vshrl.u32 %v7892, 7
    %v7894 = vsub.s32 3, %v7893
    %v7895 = vrot.slane %v7839, %v7894
    %v7896 = vlaneseq
    %v7897 = vshrl.u32 %v7896, 7
    %v7898 = vsub.s32 4, %v7897
    %v7899 = vrot.slane %v7839, %v7898
    %v7900 = vlaneseq
    %v7901 = vshrl.u32 %v7900, 7
    %v7902 = vsub.s32 5, %v7901
    %v7903 = vrot.slane %v7839, %v7902
    %v7904 = vlaneseq
    %v7905 = vshrl.u32 %v7904, 7
    %v7906 = vsub.s32 6, %v7905
    %v7907 = vrot.slane %v7839, %v7906
    %v7908 = vlaneseq
    %v7909 = vshrl.u32 %v7908, 7
    %v7910 = vsub.s32 7, %v7909
    %v7911 = vrot.slane %v7839, %v7910
    %v7912 = vlaneseq
    %v7913 = vshrl.u32 %v7912, 7
    %v7914 = vsub.s32 0, %v7913
    %v7915 = vrot.slane %v7842, %v7914
    %v7916 = vlaneseq
    %v7917 = vshrl.u32 %v7916, 7
    %v7918 = vsub.s32 1, %v7917
    %v7919 = vrot.slane %v7842, %v7918
    %v7920 = vlaneseq
    %v7921 = vshrl.u32 %v7920, 7
    %v7922 = vsub.s32 2, %v7921
    %v7923 = vrot.slane %v7842, %v7922
    %v7924 = vlaneseq
    %v7925 = vshrl.u32 %v7924, 7
    %v7926 = vsub.s32 3, %v7925
    %v7927 = vrot.slane %v7842, %v7926
    %v7928 = vlaneseq
    %v7929 = vshrl.u32 %v7928, 7
    %v7930 = vsub.s32 4, %v7929
    %v7931 = vrot.slane %v7842, %v7930
    %v7932 = vlaneseq
    %v7933 = vshrl.u32 %v7932, 7
    %v7934 = vsub.s32 5, %v7933
    %v7935 = vrot.slane %v7842, %v7934
    %v7936 = vlaneseq
    %v7937 = vshrl.u32 %v7936, 7
    %v7938 = vsub.s32 6, %v7937
    %v7939 = vrot.slane %v7842, %v7938
    %v7940 = vlaneseq
    %v7941 = vshrl.u32 %v7940, 7
    %v7942 = vsub.s32 7, %v7941
    %v7943 = vrot.slane %v7842, %v7942
    %v7944 = vlaneseq
    %v7945 = vshrl.u32 %v7944, 7
    %v7946 = vsub.s32 0, %v7945
    %v7947 = vrot.slane %v7843, %v7946
    %v7948 = vlaneseq
    %v7949 = vshrl.u32 %v7948, 7
    %v7950 = vsub.s32 1, %v7949
    %v7951 = vrot.slane %v7843, %v7950
    %v7978 = vmul.f32 %v7828, %v7851
    %v7979 = vmul.f32 %v7826, %v7855
    %v7980 = vmul.f32 %v7824, %v7859
    %v7981 = vmul.f32 %v7822, %v7863
    %v7982 = vmul.f32 %v7820, %v7867
    %v7983 = vmul.f32 %v7818, %v7871
    %v7984 = vmul.f32 %v7816, %v7875
    %v7985 = vmul.f32 %v7814, %v7879
    %v7986 = vmul.f32 %v7812, %v7883
    %v7987 = vmul.f32 %v7810, %v7887
    %v7988 = vmul.f32 %v7808, %v7891
    %v7989 = vmul.f32 %v7806, %v7895
    %v7990 = vmul.f32 %v7804, %v7899
    %v7991 = vmul.f32 %v7802, %v7903
    %v7992 = vmul.f32 %v7800, %v7907
    %v7993 = vmul.f32 %v7798, %v7911
    %v7994 = vmul.f32 %v7796, %v7915
    %v7995 = vmul.f32 %v7794, %v7919
    %v7996 = vmul.f32 %v7792, %v7923
    %v7997 = vmul.f32 %v7790, %v7927
    %v7998 = vmul.f32 %v7788, %v7931
    %v7999 = vmul.f32 %v7786, %v7935
    %v8000 = vmul.f32 %v7784, %v7939
    %v8001 = vmul.f32 %v7782, %v7943
    %v8002 = vmul.f32 %v7832, %v7947
    %v8003 = vmul.f32 %v7830, %v7951
    %v8004 = vmul.f32 %v7829, %v7851
    %v8005 = vmul.f32 %v7827, %v7855
    %v8006 = vmul.f32 %v7825, %v7859
    %v8007 = vmul.f32 %v7823, %v7863
    %v8008 = vmul.f32 %v7821, %v7867
    %v8009 = vmul.f32 %v7819, %v7871
    %v8010 = vmul.f32 %v7817, %v7875
    %v8011 = vmul.f32 %v7815, %v7879
    %v8012 = vmul.f32 %v7813, %v7883
    %v8013 = vmul.f32 %v7811, %v7887
    %v8014 = vmul.f32 %v7809, %v7891
    %v8015 = vmul.f32 %v7807, %v7895
    %v8016 = vmul.f32 %v7805, %v7899
    %v8017 = vmul.f32 %v7803, %v7903
    %v8018 = vmul.f32 %v7801, %v7907
    %v8019 = vmul.f32 %v7799, %v7911
    %v8020 = vmul.f32 %v7797, %v7915
    %v8021 = vmul.f32 %v7795, %v7919
    %v8022 = vmul.f32 %v7793, %v7923
    %v8023 = vmul.f32 %v7791, %v7927
    %v8024 = vmul.f32 %v7789, %v7931
    %v8025 = vmul.f32 %v7787, %v7935
    %v8026 = vmul.f32 %v7785, %v7939
    %v8027 = vmul.f32 %v7783, %v7943
    %v8028 = vmul.f32 %v7833, %v7947
    %v8029 = vmul.f32 %v7831, %v7951
    %v8030 = vpack.c.bf16 %v8004, %v7978
    %v8031 = vpack.c.bf16 %v8005, %v7979
    %v8032 = vpack.c.bf16 %v8006, %v7980
    %v8033 = vpack.c.bf16 %v8007, %v7981
    %v8034 = vpack.c.bf16 %v8008, %v7982
    %v8035 = vpack.c.bf16 %v8009, %v7983
    %v8036 = vpack.c.bf16 %v8010, %v7984
    %v8037 = vpack.c.bf16 %v8011, %v7985
    %v8038 = vpack.c.bf16 %v8012, %v7986
    %v8039 = vpack.c.bf16 %v8013, %v7987
    %v8040 = vpack.c.bf16 %v8014, %v7988
    %v8041 = vpack.c.bf16 %v8015, %v7989
    %v8042 = vpack.c.bf16 %v8016, %v7990
    %v8043 = vpack.c.bf16 %v8017, %v7991
    %v8044 = vpack.c.bf16 %v8018, %v7992
    %v8045 = vpack.c.bf16 %v8019, %v7993
    %v8046 = vpack.c.bf16 %v8020, %v7994
    %v8047 = vpack.c.bf16 %v8021, %v7995
    %v8048 = vpack.c.bf16 %v8022, %v7996
    %v8049 = vpack.c.bf16 %v8023, %v7997
    %v8050 = vpack.c.bf16 %v8024, %v7998
    %v8051 = vpack.c.bf16 %v8025, %v7999
    %v8052 = vpack.c.bf16 %v8026, %v8000
    %v8053 = vpack.c.bf16 %v8027, %v8001
    %v8054 = vpack.c.bf16 %v8028, %v8002
    %v8055 = vpack.c.bf16 %v8029, %v8003
    %v8082 = vunpack.c.l.b16 %v8030
    %v8083 = vunpack.c.l.b16 %v8031
    %v8084 = vunpack.c.l.b16 %v8032
    %v8085 = vunpack.c.l.b16 %v8033
    %v8086 = vunpack.c.l.b16 %v8034
    %v8087 = vunpack.c.l.b16 %v8035
    %v8088 = vunpack.c.l.b16 %v8036
    %v8089 = vunpack.c.l.b16 %v8037
    %v8090 = vunpack.c.l.b16 %v8038
    %v8091 = vunpack.c.l.b16 %v8039
    %v8092 = vunpack.c.l.b16 %v8040
    %v8093 = vunpack.c.l.b16 %v8041
    %v8094 = vunpack.c.l.b16 %v8042
    %v8095 = vunpack.c.l.b16 %v8043
    %v8096 = vunpack.c.l.b16 %v8044
    %v8097 = vunpack.c.l.b16 %v8045
    %v8098 = vunpack.c.l.b16 %v8046
    %v8099 = vunpack.c.l.b16 %v8047
    %v8100 = vunpack.c.l.b16 %v8048
    %v8101 = vunpack.c.l.b16 %v8049
    %v8102 = vunpack.c.l.b16 %v8050
    %v8103 = vunpack.c.l.b16 %v8051
    %v8104 = vunpack.c.l.b16 %v8052
    %v8105 = vunpack.c.l.b16 %v8053
    %v8106 = vunpack.c.l.b16 %v8054
    %v8107 = vunpack.c.l.b16 %v8055
    %v8108 = vunpack.c.h.b16 %v8030
    %v8109 = vunpack.c.h.b16 %v8031
    %v8110 = vunpack.c.h.b16 %v8032
    %v8111 = vunpack.c.h.b16 %v8033
    %v8112 = vunpack.c.h.b16 %v8034
    %v8113 = vunpack.c.h.b16 %v8035
    %v8114 = vunpack.c.h.b16 %v8036
    %v8115 = vunpack.c.h.b16 %v8037
    %v8116 = vunpack.c.h.b16 %v8038
    %v8117 = vunpack.c.h.b16 %v8039
    %v8118 = vunpack.c.h.b16 %v8040
    %v8119 = vunpack.c.h.b16 %v8041
    %v8120 = vunpack.c.h.b16 %v8042
    %v8121 = vunpack.c.h.b16 %v8043
    %v8122 = vunpack.c.h.b16 %v8044
    %v8123 = vunpack.c.h.b16 %v8045
    %v8124 = vunpack.c.h.b16 %v8046
    %v8125 = vunpack.c.h.b16 %v8047
    %v8126 = vunpack.c.h.b16 %v8048
    %v8127 = vunpack.c.h.b16 %v8049
    %v8128 = vunpack.c.h.b16 %v8050
    %v8129 = vunpack.c.h.b16 %v8051
    %v8130 = vunpack.c.h.b16 %v8052
    %v8131 = vunpack.c.h.b16 %v8053
    %v8132 = vunpack.c.h.b16 %v8054
    %v8133 = vunpack.c.h.b16 %v8055
    %v8134 = vpack.c.b16 %v8083, %v8082
    %v8135 = vpack.c.b16 %v8085, %v8084
    %v8136 = vpack.c.b16 %v8087, %v8086
    %v8137 = vpack.c.b16 %v8089, %v8088
    %v8138 = vpack.c.b16 %v8091, %v8090
    %v8139 = vpack.c.b16 %v8093, %v8092
    %v8140 = vpack.c.b16 %v8095, %v8094
    %v8141 = vpack.c.b16 %v8097, %v8096
    %v8142 = vpack.c.b16 %v8099, %v8098
    %v8143 = vpack.c.b16 %v8101, %v8100
    %v8144 = vpack.c.b16 %v8103, %v8102
    %v8145 = vpack.c.b16 %v8105, %v8104
    %v8146 = vpack.c.b16 %v8107, %v8106
    %v8147 = vpack.c.b16 %v8109, %v8108
    %v8148 = vpack.c.b16 %v8111, %v8110
    %v8149 = vpack.c.b16 %v8113, %v8112
    %v8150 = vpack.c.b16 %v8115, %v8114
    %v8151 = vpack.c.b16 %v8117, %v8116
    %v8152 = vpack.c.b16 %v8119, %v8118
    %v8153 = vpack.c.b16 %v8121, %v8120
    %v8154 = vpack.c.b16 %v8123, %v8122
    %v8155 = vpack.c.b16 %v8125, %v8124
    %v8156 = vpack.c.b16 %v8127, %v8126
    %v8157 = vpack.c.b16 %v8129, %v8128
    %v8158 = vpack.c.b16 %v8131, %v8130
    %v8159 = vpack.c.b16 %v8133, %v8132
    %8186 = vst [vmem:[#allocation3 + $0x4e0] sm:$0xff] %v8134
    %8187 = vst [vmem:[#allocation3 + $0x4e8] sm:$0xff] %v8135
    %8188 = vst [vmem:[#allocation3 + $0x4f0] sm:$0xff] %v8136
    %8189 = vst [vmem:[#allocation3 + $0x4f8] sm:$0xff] %v8137
    %8190 = vst [vmem:[#allocation3 + $0x500] sm:$0xff] %v8138
    %8191 = vst [vmem:[#allocation3 + $0x508] sm:$0xff] %v8139
    %8192 = vst [vmem:[#allocation3 + $0x510] sm:$0xff] %v8140
    %8193 = vst [vmem:[#allocation3 + $0x518] sm:$0xff] %v8141
    %8194 = vst [vmem:[#allocation3 + $0x520] sm:$0xff] %v8142
    %8195 = vst [vmem:[#allocation3 + $0x528] sm:$0xff] %v8143
    %8196 = vst [vmem:[#allocation3 + $0x530] sm:$0xff] %v8144
    %8197 = vst [vmem:[#allocation3 + $0x538] sm:$0xff] %v8145
    %8198 = vst [vmem:[#allocation3 + $0x540] sm:$0xff] %v8146
    %8199 = vst [vmem:[#allocation3 + $0x548] sm:$0xff] %v8147
    %8200 = vst [vmem:[#allocation3 + $0x550] sm:$0xff] %v8148
    %8201 = vst [vmem:[#allocation3 + $0x558] sm:$0xff] %v8149
    %8202 = vst [vmem:[#allocation3 + $0x560] sm:$0xff] %v8150
    %8203 = vst [vmem:[#allocation3 + $0x568] sm:$0xff] %v8151
    %8204 = vst [vmem:[#allocation3 + $0x570] sm:$0xff] %v8152
    %8205 = vst [vmem:[#allocation3 + $0x578] sm:$0xff] %v8153
    %8206 = vst [vmem:[#allocation3 + $0x580] sm:$0xff] %v8154
    %8207 = vst [vmem:[#allocation3 + $0x588] sm:$0xff] %v8155
    %8208 = vst [vmem:[#allocation3 + $0x590] sm:$0xff] %v8156
    %8209 = vst [vmem:[#allocation3 + $0x598] sm:$0xff] %v8157
    %8210 = vst [vmem:[#allocation3 + $0x5a0] sm:$0xff] %v8158
    %8211 = vst [vmem:[#allocation3 + $0x5a8] sm:$0xff] %v8159
    %8212 = vrot.lane.b32.xlu0 %v4774, 48
    %v8213 = vpop.permute.xlu0 %8212
    %8214 = vrot.lane.b32.xlu0 %v4800, 48
    %v8215 = vpop.permute.xlu0 %8214
    %8216 = vrot.lane.b32.xlu0 %v4775, 48
    %v8217 = vpop.permute.xlu0 %8216
    %8218 = vrot.lane.b32.xlu0 %v4801, 48
    %v8219 = vpop.permute.xlu0 %8218
    %8220 = vrot.lane.b32.xlu0 %v4776, 48
    %v8221 = vpop.permute.xlu0 %8220
    %8222 = vrot.lane.b32.xlu0 %v4802, 48
    %v8223 = vpop.permute.xlu0 %8222
    %8224 = vrot.lane.b32.xlu0 %v4777, 48
    %v8225 = vpop.permute.xlu0 %8224
    %8226 = vrot.lane.b32.xlu0 %v4803, 48
    %v8227 = vpop.permute.xlu0 %8226
    %8228 = vrot.lane.b32.xlu0 %v4778, 48
    %v8229 = vpop.permute.xlu0 %8228
    %8230 = vrot.lane.b32.xlu0 %v4804, 48
    %v8231 = vpop.permute.xlu0 %8230
    %8232 = vrot.lane.b32.xlu0 %v4779, 48
    %v8233 = vpop.permute.xlu0 %8232
    %8234 = vrot.lane.b32.xlu0 %v4805, 48
    %v8235 = vpop.permute.xlu0 %8234
    %8236 = vrot.lane.b32.xlu0 %v4780, 48
    %v8237 = vpop.permute.xlu0 %8236
    %8238 = vrot.lane.b32.xlu0 %v4806, 48
    %v8239 = vpop.permute.xlu0 %8238
    %8240 = vrot.lane.b32.xlu0 %v4781, 48
    %v8241 = vpop.permute.xlu0 %8240
    %8242 = vrot.lane.b32.xlu0 %v4807, 48
    %v8243 = vpop.permute.xlu0 %8242
    %8244 = vrot.lane.b32.xlu0 %v4782, 48
    %v8245 = vpop.permute.xlu0 %8244
    %8246 = vrot.lane.b32.xlu0 %v4808, 48
    %v8247 = vpop.permute.xlu0 %8246
    %8248 = vrot.lane.b32.xlu0 %v4783, 48
    %v8249 = vpop.permute.xlu0 %8248
    %8250 = vrot.lane.b32.xlu0 %v4809, 48
    %v8251 = vpop.permute.xlu0 %8250
    %8252 = vrot.lane.b32.xlu0 %v4784, 48
    %v8253 = vpop.permute.xlu0 %8252
    %8254 = vrot.lane.b32.xlu0 %v4810, 48
    %v8255 = vpop.permute.xlu0 %8254
    %8256 = vrot.lane.b32.xlu0 %v4785, 48
    %v8257 = vpop.permute.xlu0 %8256
    %8258 = vrot.lane.b32.xlu0 %v4811, 48
    %v8259 = vpop.permute.xlu0 %8258
    %8260 = vrot.lane.b32.xlu0 %v4786, 48
    %v8261 = vpop.permute.xlu0 %8260
    %8262 = vrot.lane.b32.xlu0 %v4812, 48
    %v8263 = vpop.permute.xlu0 %8262
    %8264 = vrot.lane.b32.xlu0 %v4787, 48
    %v8265 = vpop.permute.xlu0 %8264
    %8266 = vrot.lane.b32.xlu0 %v4813, 48
    %v8267 = vpop.permute.xlu0 %8266
    %8268 = vrot.lane.b32.xlu0 %v4788, 48
    %v8269 = vpop.permute.xlu0 %8268
    %8270 = vrot.lane.b32.xlu0 %v4814, 48
    %v8271 = vpop.permute.xlu0 %8270
    %8272 = vrot.lane.b32.xlu0 %v4789, 48
    %v8273 = vpop.permute.xlu0 %8272
    %8274 = vrot.lane.b32.xlu0 %v4815, 48
    %v8275 = vpop.permute.xlu0 %8274
    %8276 = vrot.lane.b32.xlu0 %v4790, 48
    %v8277 = vpop.permute.xlu0 %8276
    %8278 = vrot.lane.b32.xlu0 %v4816, 48
    %v8279 = vpop.permute.xlu0 %8278
    %8280 = vrot.lane.b32.xlu0 %v4791, 48
    %v8281 = vpop.permute.xlu0 %8280
    %8282 = vrot.lane.b32.xlu0 %v4817, 48
    %v8283 = vpop.permute.xlu0 %8282
    %8284 = vrot.lane.b32.xlu0 %v4792, 48
    %v8285 = vpop.permute.xlu0 %8284
    %8286 = vrot.lane.b32.xlu0 %v4818, 48
    %v8287 = vpop.permute.xlu0 %8286
    %8288 = vrot.lane.b32.xlu0 %v4793, 48
    %v8289 = vpop.permute.xlu0 %8288
    %8290 = vrot.lane.b32.xlu0 %v4819, 48
    %v8291 = vpop.permute.xlu0 %8290
    %8292 = vrot.lane.b32.xlu0 %v4794, 48
    %v8293 = vpop.permute.xlu0 %8292
    %8294 = vrot.lane.b32.xlu0 %v4820, 48
    %v8295 = vpop.permute.xlu0 %8294
    %8296 = vrot.lane.b32.xlu0 %v4795, 48
    %v8297 = vpop.permute.xlu0 %8296
    %8298 = vrot.lane.b32.xlu0 %v4821, 48
    %v8299 = vpop.permute.xlu0 %8298
    %8300 = vrot.lane.b32.xlu0 %v4796, 48
    %v8301 = vpop.permute.xlu0 %8300
    %8302 = vrot.lane.b32.xlu0 %v4822, 48
    %v8303 = vpop.permute.xlu0 %8302
    %8304 = vrot.lane.b32.xlu0 %v4797, 48
    %v8305 = vpop.permute.xlu0 %8304
    %8306 = vrot.lane.b32.xlu0 %v4823, 48
    %v8307 = vpop.permute.xlu0 %8306
    %8308 = vrot.lane.b32.xlu0 %v4798, 48
    %v8309 = vpop.permute.xlu0 %8308
    %8310 = vrot.lane.b32.xlu0 %v4824, 48
    %v8311 = vpop.permute.xlu0 %8310
    %8312 = vrot.lane.b32.xlu0 %v4799, 48
    %v8313 = vpop.permute.xlu0 %8312
    %8314 = vrot.lane.b32.xlu0 %v4825, 48
    %v8315 = vpop.permute.xlu0 %8314
    %v8316 = vsel %vm3226, %v8309, %v8313
    %v8317 = vsel %vm3226, %v8311, %v8315
    %v8318 = vsel %vm3226, %v8305, %v8309
    %v8319 = vsel %vm3226, %v8307, %v8311
    %v8320 = vsel %vm3226, %v8301, %v8305
    %v8321 = vsel %vm3226, %v8303, %v8307
    %v8322 = vsel %vm3226, %v8297, %v8301
    %v8323 = vsel %vm3226, %v8299, %v8303
    %v8324 = vsel %vm3226, %v8293, %v8297
    %v8325 = vsel %vm3226, %v8295, %v8299
    %v8326 = vsel %vm3226, %v8289, %v8293
    %v8327 = vsel %vm3226, %v8291, %v8295
    %v8328 = vsel %vm3226, %v8285, %v8289
    %v8329 = vsel %vm3226, %v8287, %v8291
    %v8330 = vsel %vm3226, %v8281, %v8285
    %v8331 = vsel %vm3226, %v8283, %v8287
    %v8332 = vsel %vm3226, %v8277, %v8281
    %v8333 = vsel %vm3226, %v8279, %v8283
    %v8334 = vsel %vm3226, %v8273, %v8277
    %v8335 = vsel %vm3226, %v8275, %v8279
    %v8336 = vsel %vm3226, %v8269, %v8273
    %v8337 = vsel %vm3226, %v8271, %v8275
    %v8338 = vsel %vm3226, %v8265, %v8269
    %v8339 = vsel %vm3226, %v8267, %v8271
    %v8340 = vsel %vm3226, %v8261, %v8265
    %v8341 = vsel %vm3226, %v8263, %v8267
    %v8342 = vsel %vm3226, %v8257, %v8261
    %v8343 = vsel %vm3226, %v8259, %v8263
    %v8344 = vsel %vm3226, %v8253, %v8257
    %v8345 = vsel %vm3226, %v8255, %v8259
    %v8346 = vsel %vm3226, %v8249, %v8253
    %v8347 = vsel %vm3226, %v8251, %v8255
    %v8348 = vsel %vm3226, %v8245, %v8249
    %v8349 = vsel %vm3226, %v8247, %v8251
    %v8350 = vsel %vm3226, %v8241, %v8245
    %v8351 = vsel %vm3226, %v8243, %v8247
    %v8352 = vsel %vm3226, %v8237, %v8241
    %v8353 = vsel %vm3226, %v8239, %v8243
    %v8354 = vsel %vm3226, %v8233, %v8237
    %v8355 = vsel %vm3226, %v8235, %v8239
    %v8356 = vsel %vm3226, %v8229, %v8233
    %v8357 = vsel %vm3226, %v8231, %v8235
    %v8358 = vsel %vm3226, %v8225, %v8229
    %v8359 = vsel %vm3226, %v8227, %v8231
    %v8360 = vsel %vm3226, %v8221, %v8225
    %v8361 = vsel %vm3226, %v8223, %v8227
    %v8362 = vsel %vm3226, %v8217, %v8221
    %v8363 = vsel %vm3226, %v8219, %v8223
    %v8364 = vsel %vm3226, %v8213, %v8217
    %v8365 = vsel %vm3226, %v8215, %v8219
    %v8366 = vsel %vm3226, %v8313, %v8213
    %v8367 = vsel %vm3226, %v8315, %v8215
    %v8368 = vld [vmem:[%s3253] ss:$8 sm:$0xf]
    %v8369 = vld [vmem:[%s3253] ss:$8 sm:$0xf0]
    %v8370 = vor.u32 %v8368, %v8369
    %v8371 = vld [vmem:[%s3257] ss:$8 sm:$0xf]
    %v8372 = vld [vmem:[%s3257] ss:$8 sm:$0xf0]
    %v8373 = vor.u32 %v8371, %v8372
    %v8374 = vld [vmem:[%s3261] ss:$8 sm:$0xf]
    %v8375 = vld [vmem:[%s3261] ss:$8 sm:$0xf0]
    %v8376 = vor.u32 %v8374, %v8375
    %v8377 = vld [vmem:[%s3265] ss:$8 sm:$0x3]
    %v8382 = vlaneseq
    %v8383 = vshrl.u32 %v8382, 7
    %v8384 = vsub.s32 0, %v8383
    %v8385 = vrot.slane %v8370, %v8384
    %v8386 = vlaneseq
    %v8387 = vshrl.u32 %v8386, 7
    %v8388 = vsub.s32 1, %v8387
    %v8389 = vrot.slane %v8370, %v8388
    %v8390 = vlaneseq
    %v8391 = vshrl.u32 %v8390, 7
    %v8392 = vsub.s32 2, %v8391
    %v8393 = vrot.slane %v8370, %v8392
    %v8394 = vlaneseq
    %v8395 = vshrl.u32 %v8394, 7
    %v8396 = vsub.s32 3, %v8395
    %v8397 = vrot.slane %v8370, %v8396
    %v8398 = vlaneseq
    %v8399 = vshrl.u32 %v8398, 7
    %v8400 = vsub.s32 4, %v8399
    %v8401 = vrot.slane %v8370, %v8400
    %v8402 = vlaneseq
    %v8403 = vshrl.u32 %v8402, 7
    %v8404 = vsub.s32 5, %v8403
    %v8405 = vrot.slane %v8370, %v8404
    %v8406 = vlaneseq
    %v8407 = vshrl.u32 %v8406, 7
    %v8408 = vsub.s32 6, %v8407
    %v8409 = vrot.slane %v8370, %v8408
    %v8410 = vlaneseq
    %v8411 = vshrl.u32 %v8410, 7
    %v8412 = vsub.s32 7, %v8411
    %v8413 = vrot.slane %v8370, %v8412
    %v8414 = vlaneseq
    %v8415 = vshrl.u32 %v8414, 7
    %v8416 = vsub.s32 0, %v8415
    %v8417 = vrot.slane %v8373, %v8416
    %v8418 = vlaneseq
    %v8419 = vshrl.u32 %v8418, 7
    %v8420 = vsub.s32 1, %v8419
    %v8421 = vrot.slane %v8373, %v8420
    %v8422 = vlaneseq
    %v8423 = vshrl.u32 %v8422, 7
    %v8424 = vsub.s32 2, %v8423
    %v8425 = vrot.slane %v8373, %v8424
    %v8426 = vlaneseq
    %v8427 = vshrl.u32 %v8426, 7
    %v8428 = vsub.s32 3, %v8427
    %v8429 = vrot.slane %v8373, %v8428
    %v8430 = vlaneseq
    %v8431 = vshrl.u32 %v8430, 7
    %v8432 = vsub.s32 4, %v8431
    %v8433 = vrot.slane %v8373, %v8432
    %v8434 = vlaneseq
    %v8435 = vshrl.u32 %v8434, 7
    %v8436 = vsub.s32 5, %v8435
    %v8437 = vrot.slane %v8373, %v8436
    %v8438 = vlaneseq
    %v8439 = vshrl.u32 %v8438, 7
    %v8440 = vsub.s32 6, %v8439
    %v8441 = vrot.slane %v8373, %v8440
    %v8442 = vlaneseq
    %v8443 = vshrl.u32 %v8442, 7
    %v8444 = vsub.s32 7, %v8443
    %v8445 = vrot.slane %v8373, %v8444
    %v8446 = vlaneseq
    %v8447 = vshrl.u32 %v8446, 7
    %v8448 = vsub.s32 0, %v8447
    %v8449 = vrot.slane %v8376, %v8448
    %v8450 = vlaneseq
    %v8451 = vshrl.u32 %v8450, 7
    %v8452 = vsub.s32 1, %v8451
    %v8453 = vrot.slane %v8376, %v8452
    %v8454 = vlaneseq
    %v8455 = vshrl.u32 %v8454, 7
    %v8456 = vsub.s32 2, %v8455
    %v8457 = vrot.slane %v8376, %v8456
    %v8458 = vlaneseq
    %v8459 = vshrl.u32 %v8458, 7
    %v8460 = vsub.s32 3, %v8459
    %v8461 = vrot.slane %v8376, %v8460
    %v8462 = vlaneseq
    %v8463 = vshrl.u32 %v8462, 7
    %v8464 = vsub.s32 4, %v8463
    %v8465 = vrot.slane %v8376, %v8464
    %v8466 = vlaneseq
    %v8467 = vshrl.u32 %v8466, 7
    %v8468 = vsub.s32 5, %v8467
    %v8469 = vrot.slane %v8376, %v8468
    %v8470 = vlaneseq
    %v8471 = vshrl.u32 %v8470, 7
    %v8472 = vsub.s32 6, %v8471
    %v8473 = vrot.slane %v8376, %v8472
    %v8474 = vlaneseq
    %v8475 = vshrl.u32 %v8474, 7
    %v8476 = vsub.s32 7, %v8475
    %v8477 = vrot.slane %v8376, %v8476
    %v8478 = vlaneseq
    %v8479 = vshrl.u32 %v8478, 7
    %v8480 = vsub.s32 0, %v8479
    %v8481 = vrot.slane %v8377, %v8480
    %v8482 = vlaneseq
    %v8483 = vshrl.u32 %v8482, 7
    %v8484 = vsub.s32 1, %v8483
    %v8485 = vrot.slane %v8377, %v8484
    %v8512 = vmul.f32 %v8362, %v8385
    %v8513 = vmul.f32 %v8360, %v8389
    %v8514 = vmul.f32 %v8358, %v8393
    %v8515 = vmul.f32 %v8356, %v8397
    %v8516 = vmul.f32 %v8354, %v8401
    %v8517 = vmul.f32 %v8352, %v8405
    %v8518 = vmul.f32 %v8350, %v8409
    %v8519 = vmul.f32 %v8348, %v8413
    %v8520 = vmul.f32 %v8346, %v8417
    %v8521 = vmul.f32 %v8344, %v8421
    %v8522 = vmul.f32 %v8342, %v8425
    %v8523 = vmul.f32 %v8340, %v8429
    %v8524 = vmul.f32 %v8338, %v8433
    %v8525 = vmul.f32 %v8336, %v8437
    %v8526 = vmul.f32 %v8334, %v8441
    %v8527 = vmul.f32 %v8332, %v8445
    %v8528 = vmul.f32 %v8330, %v8449
    %v8529 = vmul.f32 %v8328, %v8453
    %v8530 = vmul.f32 %v8326, %v8457
    %v8531 = vmul.f32 %v8324, %v8461
    %v8532 = vmul.f32 %v8322, %v8465
    %v8533 = vmul.f32 %v8320, %v8469
    %v8534 = vmul.f32 %v8318, %v8473
    %v8535 = vmul.f32 %v8316, %v8477
    %v8536 = vmul.f32 %v8366, %v8481
    %v8537 = vmul.f32 %v8364, %v8485
    %v8538 = vmul.f32 %v8363, %v8385
    %v8539 = vmul.f32 %v8361, %v8389
    %v8540 = vmul.f32 %v8359, %v8393
    %v8541 = vmul.f32 %v8357, %v8397
    %v8542 = vmul.f32 %v8355, %v8401
    %v8543 = vmul.f32 %v8353, %v8405
    %v8544 = vmul.f32 %v8351, %v8409
    %v8545 = vmul.f32 %v8349, %v8413
    %v8546 = vmul.f32 %v8347, %v8417
    %v8547 = vmul.f32 %v8345, %v8421
    %v8548 = vmul.f32 %v8343, %v8425
    %v8549 = vmul.f32 %v8341, %v8429
    %v8550 = vmul.f32 %v8339, %v8433
    %v8551 = vmul.f32 %v8337, %v8437
    %v8552 = vmul.f32 %v8335, %v8441
    %v8553 = vmul.f32 %v8333, %v8445
    %v8554 = vmul.f32 %v8331, %v8449
    %v8555 = vmul.f32 %v8329, %v8453
    %v8556 = vmul.f32 %v8327, %v8457
    %v8557 = vmul.f32 %v8325, %v8461
    %v8558 = vmul.f32 %v8323, %v8465
    %v8559 = vmul.f32 %v8321, %v8469
    %v8560 = vmul.f32 %v8319, %v8473
    %v8561 = vmul.f32 %v8317, %v8477
    %v8562 = vmul.f32 %v8367, %v8481
    %v8563 = vmul.f32 %v8365, %v8485
    %v8564 = vpack.c.bf16 %v8538, %v8512
    %v8565 = vpack.c.bf16 %v8539, %v8513
    %v8566 = vpack.c.bf16 %v8540, %v8514
    %v8567 = vpack.c.bf16 %v8541, %v8515
    %v8568 = vpack.c.bf16 %v8542, %v8516
    %v8569 = vpack.c.bf16 %v8543, %v8517
    %v8570 = vpack.c.bf16 %v8544, %v8518
    %v8571 = vpack.c.bf16 %v8545, %v8519
    %v8572 = vpack.c.bf16 %v8546, %v8520
    %v8573 = vpack.c.bf16 %v8547, %v8521
    %v8574 = vpack.c.bf16 %v8548, %v8522
    %v8575 = vpack.c.bf16 %v8549, %v8523
    %v8576 = vpack.c.bf16 %v8550, %v8524
    %v8577 = vpack.c.bf16 %v8551, %v8525
    %v8578 = vpack.c.bf16 %v8552, %v8526
    %v8579 = vpack.c.bf16 %v8553, %v8527
    %v8580 = vpack.c.bf16 %v8554, %v8528
    %v8581 = vpack.c.bf16 %v8555, %v8529
    %v8582 = vpack.c.bf16 %v8556, %v8530
    %v8583 = vpack.c.bf16 %v8557, %v8531
    %v8584 = vpack.c.bf16 %v8558, %v8532
    %v8585 = vpack.c.bf16 %v8559, %v8533
    %v8586 = vpack.c.bf16 %v8560, %v8534
    %v8587 = vpack.c.bf16 %v8561, %v8535
    %v8588 = vpack.c.bf16 %v8562, %v8536
    %v8589 = vpack.c.bf16 %v8563, %v8537
    %v8616 = vunpack.c.l.b16 %v8564
    %v8617 = vunpack.c.l.b16 %v8565
    %v8618 = vunpack.c.l.b16 %v8566
    %v8619 = vunpack.c.l.b16 %v8567
    %v8620 = vunpack.c.l.b16 %v8568
    %v8621 = vunpack.c.l.b16 %v8569
    %v8622 = vunpack.c.l.b16 %v8570
    %v8623 = vunpack.c.l.b16 %v8571
    %v8624 = vunpack.c.l.b16 %v8572
    %v8625 = vunpack.c.l.b16 %v8573
    %v8626 = vunpack.c.l.b16 %v8574
    %v8627 = vunpack.c.l.b16 %v8575
    %v8628 = vunpack.c.l.b16 %v8576
    %v8629 = vunpack.c.l.b16 %v8577
    %v8630 = vunpack.c.l.b16 %v8578
    %v8631 = vunpack.c.l.b16 %v8579
    %v8632 = vunpack.c.l.b16 %v8580
    %v8633 = vunpack.c.l.b16 %v8581
    %v8634 = vunpack.c.l.b16 %v8582
    %v8635 = vunpack.c.l.b16 %v8583
    %v8636 = vunpack.c.l.b16 %v8584
    %v8637 = vunpack.c.l.b16 %v8585
    %v8638 = vunpack.c.l.b16 %v8586
    %v8639 = vunpack.c.l.b16 %v8587
    %v8640 = vunpack.c.l.b16 %v8588
    %v8641 = vunpack.c.l.b16 %v8589
    %v8642 = vunpack.c.h.b16 %v8564
    %v8643 = vunpack.c.h.b16 %v8565
    %v8644 = vunpack.c.h.b16 %v8566
    %v8645 = vunpack.c.h.b16 %v8567
    %v8646 = vunpack.c.h.b16 %v8568
    %v8647 = vunpack.c.h.b16 %v8569
    %v8648 = vunpack.c.h.b16 %v8570
    %v8649 = vunpack.c.h.b16 %v8571
    %v8650 = vunpack.c.h.b16 %v8572
    %v8651 = vunpack.c.h.b16 %v8573
    %v8652 = vunpack.c.h.b16 %v8574
    %v8653 = vunpack.c.h.b16 %v8575
    %v8654 = vunpack.c.h.b16 %v8576
    %v8655 = vunpack.c.h.b16 %v8577
    %v8656 = vunpack.c.h.b16 %v8578
    %v8657 = vunpack.c.h.b16 %v8579
    %v8658 = vunpack.c.h.b16 %v8580
    %v8659 = vunpack.c.h.b16 %v8581
    %v8660 = vunpack.c.h.b16 %v8582
    %v8661 = vunpack.c.h.b16 %v8583
    %v8662 = vunpack.c.h.b16 %v8584
    %v8663 = vunpack.c.h.b16 %v8585
    %v8664 = vunpack.c.h.b16 %v8586
    %v8665 = vunpack.c.h.b16 %v8587
    %v8666 = vunpack.c.h.b16 %v8588
    %v8667 = vunpack.c.h.b16 %v8589
    %v8668 = vpack.c.b16 %v8617, %v8616
    %v8669 = vpack.c.b16 %v8619, %v8618
    %v8670 = vpack.c.b16 %v8621, %v8620
    %v8671 = vpack.c.b16 %v8623, %v8622
    %v8672 = vpack.c.b16 %v8625, %v8624
    %v8673 = vpack.c.b16 %v8627, %v8626
    %v8674 = vpack.c.b16 %v8629, %v8628
    %v8675 = vpack.c.b16 %v8631, %v8630
    %v8676 = vpack.c.b16 %v8633, %v8632
    %v8677 = vpack.c.b16 %v8635, %v8634
    %v8678 = vpack.c.b16 %v8637, %v8636
    %v8679 = vpack.c.b16 %v8639, %v8638
    %v8680 = vpack.c.b16 %v8641, %v8640
    %v8681 = vpack.c.b16 %v8643, %v8642
    %v8682 = vpack.c.b16 %v8645, %v8644
    %v8683 = vpack.c.b16 %v8647, %v8646
    %v8684 = vpack.c.b16 %v8649, %v8648
    %v8685 = vpack.c.b16 %v8651, %v8650
    %v8686 = vpack.c.b16 %v8653, %v8652
    %v8687 = vpack.c.b16 %v8655, %v8654
    %v8688 = vpack.c.b16 %v8657, %v8656
    %v8689 = vpack.c.b16 %v8659, %v8658
    %v8690 = vpack.c.b16 %v8661, %v8660
    %v8691 = vpack.c.b16 %v8663, %v8662
    %v8692 = vpack.c.b16 %v8665, %v8664
    %v8693 = vpack.c.b16 %v8667, %v8666
    %8720 = vst [vmem:[#allocation3 + $0x5b0] sm:$0xff] %v8668
    %8721 = vst [vmem:[#allocation3 + $0x5b8] sm:$0xff] %v8669
    %8722 = vst [vmem:[#allocation3 + $0x5c0] sm:$0xff] %v8670
    %8723 = vst [vmem:[#allocation3 + $0x5c8] sm:$0xff] %v8671
    %8724 = vst [vmem:[#allocation3 + $0x5d0] sm:$0xff] %v8672
    %8725 = vst [vmem:[#allocation3 + $0x5d8] sm:$0xff] %v8673
    %8726 = vst [vmem:[#allocation3 + $0x5e0] sm:$0xff] %v8674
    %8727 = vst [vmem:[#allocation3 + $0x5e8] sm:$0xff] %v8675
    %8728 = vst [vmem:[#allocation3 + $0x5f0] sm:$0xff] %v8676
    %8729 = vst [vmem:[#allocation3 + $0x5f8] sm:$0xff] %v8677
    %8730 = vst [vmem:[#allocation3 + $0x600] sm:$0xff] %v8678
    %8731 = vst [vmem:[#allocation3 + $0x608] sm:$0xff] %v8679
    %8732 = vst [vmem:[#allocation3 + $0x610] sm:$0xff] %v8680
    %8733 = vst [vmem:[#allocation3 + $0x618] sm:$0xff] %v8681
    %8734 = vst [vmem:[#allocation3 + $0x620] sm:$0xff] %v8682
    %8735 = vst [vmem:[#allocation3 + $0x628] sm:$0xff] %v8683
    %8736 = vst [vmem:[#allocation3 + $0x630] sm:$0xff] %v8684
    %8737 = vst [vmem:[#allocation3 + $0x638] sm:$0xff] %v8685
    %8738 = vst [vmem:[#allocation3 + $0x640] sm:$0xff] %v8686
    %8739 = vst [vmem:[#allocation3 + $0x648] sm:$0xff] %v8687
    %8740 = vst [vmem:[#allocation3 + $0x650] sm:$0xff] %v8688
    %8741 = vst [vmem:[#allocation3 + $0x658] sm:$0xff] %v8689
    %8742 = vst [vmem:[#allocation3 + $0x660] sm:$0xff] %v8690
    %8743 = vst [vmem:[#allocation3 + $0x668] sm:$0xff] %v8691
    %8744 = vst [vmem:[#allocation3 + $0x670] sm:$0xff] %v8692
    %8745 = vst [vmem:[#allocation3 + $0x678] sm:$0xff] %v8693
    %8746 = vrot.lane.b32.xlu0 %v4774, 47
    %v8747 = vpop.permute.xlu0 %8746
    %8748 = vrot.lane.b32.xlu0 %v4800, 47
    %v8749 = vpop.permute.xlu0 %8748
    %8750 = vrot.lane.b32.xlu0 %v4775, 47
    %v8751 = vpop.permute.xlu0 %8750
    %8752 = vrot.lane.b32.xlu0 %v4801, 47
    %v8753 = vpop.permute.xlu0 %8752
    %8754 = vrot.lane.b32.xlu0 %v4776, 47
    %v8755 = vpop.permute.xlu0 %8754
    %8756 = vrot.lane.b32.xlu0 %v4802, 47
    %v8757 = vpop.permute.xlu0 %8756
    %8758 = vrot.lane.b32.xlu0 %v4777, 47
    %v8759 = vpop.permute.xlu0 %8758
    %8760 = vrot.lane.b32.xlu0 %v4803, 47
    %v8761 = vpop.permute.xlu0 %8760
    %8762 = vrot.lane.b32.xlu0 %v4778, 47
    %v8763 = vpop.permute.xlu0 %8762
    %8764 = vrot.lane.b32.xlu0 %v4804, 47
    %v8765 = vpop.permute.xlu0 %8764
    %8766 = vrot.lane.b32.xlu0 %v4779, 47
    %v8767 = vpop.permute.xlu0 %8766
    %8768 = vrot.lane.b32.xlu0 %v4805, 47
    %v8769 = vpop.permute.xlu0 %8768
    %8770 = vrot.lane.b32.xlu0 %v4780, 47
    %v8771 = vpop.permute.xlu0 %8770
    %8772 = vrot.lane.b32.xlu0 %v4806, 47
    %v8773 = vpop.permute.xlu0 %8772
    %8774 = vrot.lane.b32.xlu0 %v4781, 47
    %v8775 = vpop.permute.xlu0 %8774
    %8776 = vrot.lane.b32.xlu0 %v4807, 47
    %v8777 = vpop.permute.xlu0 %8776
    %8778 = vrot.lane.b32.xlu0 %v4782, 47
    %v8779 = vpop.permute.xlu0 %8778
    %8780 = vrot.lane.b32.xlu0 %v4808, 47
    %v8781 = vpop.permute.xlu0 %8780
    %8782 = vrot.lane.b32.xlu0 %v4783, 47
    %v8783 = vpop.permute.xlu0 %8782
    %8784 = vrot.lane.b32.xlu0 %v4809, 47
    %v8785 = vpop.permute.xlu0 %8784
    %8786 = vrot.lane.b32.xlu0 %v4784, 47
    %v8787 = vpop.permute.xlu0 %8786
    %8788 = vrot.lane.b32.xlu0 %v4810, 47
    %v8789 = vpop.permute.xlu0 %8788
    %8790 = vrot.lane.b32.xlu0 %v4785, 47
    %v8791 = vpop.permute.xlu0 %8790
    %8792 = vrot.lane.b32.xlu0 %v4811, 47
    %v8793 = vpop.permute.xlu0 %8792
    %8794 = vrot.lane.b32.xlu0 %v4786, 47
    %v8795 = vpop.permute.xlu0 %8794
    %8796 = vrot.lane.b32.xlu0 %v4812, 47
    %v8797 = vpop.permute.xlu0 %8796
    %8798 = vrot.lane.b32.xlu0 %v4787, 47
    %v8799 = vpop.permute.xlu0 %8798
    %8800 = vrot.lane.b32.xlu0 %v4813, 47
    %v8801 = vpop.permute.xlu0 %8800
    %8802 = vrot.lane.b32.xlu0 %v4788, 47
    %v8803 = vpop.permute.xlu0 %8802
    %8804 = vrot.lane.b32.xlu0 %v4814, 47
    %v8805 = vpop.permute.xlu0 %8804
    %8806 = vrot.lane.b32.xlu0 %v4789, 47
    %v8807 = vpop.permute.xlu0 %8806
    %8808 = vrot.lane.b32.xlu0 %v4815, 47
    %v8809 = vpop.permute.xlu0 %8808
    %8810 = vrot.lane.b32.xlu0 %v4790, 47
    %v8811 = vpop.permute.xlu0 %8810
    %8812 = vrot.lane.b32.xlu0 %v4816, 47
    %v8813 = vpop.permute.xlu0 %8812
    %8814 = vrot.lane.b32.xlu0 %v4791, 47
    %v8815 = vpop.permute.xlu0 %8814
    %8816 = vrot.lane.b32.xlu0 %v4817, 47
    %v8817 = vpop.permute.xlu0 %8816
    %8818 = vrot.lane.b32.xlu0 %v4792, 47
    %v8819 = vpop.permute.xlu0 %8818
    %8820 = vrot.lane.b32.xlu0 %v4818, 47
    %v8821 = vpop.permute.xlu0 %8820
    %8822 = vrot.lane.b32.xlu0 %v4793, 47
    %v8823 = vpop.permute.xlu0 %8822
    %8824 = vrot.lane.b32.xlu0 %v4819, 47
    %v8825 = vpop.permute.xlu0 %8824
    %8826 = vrot.lane.b32.xlu0 %v4794, 47
    %v8827 = vpop.permute.xlu0 %8826
    %8828 = vrot.lane.b32.xlu0 %v4820, 47
    %v8829 = vpop.permute.xlu0 %8828
    %8830 = vrot.lane.b32.xlu0 %v4795, 47
    %v8831 = vpop.permute.xlu0 %8830
    %8832 = vrot.lane.b32.xlu0 %v4821, 47
    %v8833 = vpop.permute.xlu0 %8832
    %8834 = vrot.lane.b32.xlu0 %v4796, 47
    %v8835 = vpop.permute.xlu0 %8834
    %8836 = vrot.lane.b32.xlu0 %v4822, 47
    %v8837 = vpop.permute.xlu0 %8836
    %8838 = vrot.lane.b32.xlu0 %v4797, 47
    %v8839 = vpop.permute.xlu0 %8838
    %8840 = vrot.lane.b32.xlu0 %v4823, 47
    %v8841 = vpop.permute.xlu0 %8840
    %8842 = vrot.lane.b32.xlu0 %v4798, 47
    %v8843 = vpop.permute.xlu0 %8842
    %8844 = vrot.lane.b32.xlu0 %v4824, 47
    %v8845 = vpop.permute.xlu0 %8844
    %8846 = vrot.lane.b32.xlu0 %v4799, 47
    %v8847 = vpop.permute.xlu0 %8846
    %8848 = vrot.lane.b32.xlu0 %v4825, 47
    %v8849 = vpop.permute.xlu0 %8848
    %v8850 = vsel %vm3683, %v8843, %v8847
    %v8851 = vsel %vm3683, %v8845, %v8849
    %v8852 = vsel %vm3683, %v8839, %v8843
    %v8853 = vsel %vm3683, %v8841, %v8845
    %v8854 = vsel %vm3683, %v8835, %v8839
    %v8855 = vsel %vm3683, %v8837, %v8841
    %v8856 = vsel %vm3683, %v8831, %v8835
    %v8857 = vsel %vm3683, %v8833, %v8837
    %v8858 = vsel %vm3683, %v8827, %v8831
    %v8859 = vsel %vm3683, %v8829, %v8833
    %v8860 = vsel %vm3683, %v8823, %v8827
    %v8861 = vsel %vm3683, %v8825, %v8829
    %v8862 = vsel %vm3683, %v8819, %v8823
    %v8863 = vsel %vm3683, %v8821, %v8825
    %v8864 = vsel %vm3683, %v8815, %v8819
    %v8865 = vsel %vm3683, %v8817, %v8821
    %v8866 = vsel %vm3683, %v8811, %v8815
    %v8867 = vsel %vm3683, %v8813, %v8817
    %v8868 = vsel %vm3683, %v8807, %v8811
    %v8869 = vsel %vm3683, %v8809, %v8813
    %v8870 = vsel %vm3683, %v8803, %v8807
    %v8871 = vsel %vm3683, %v8805, %v8809
    %v8872 = vsel %vm3683, %v8799, %v8803
    %v8873 = vsel %vm3683, %v8801, %v8805
    %v8874 = vsel %vm3683, %v8795, %v8799
    %v8875 = vsel %vm3683, %v8797, %v8801
    %v8876 = vsel %vm3683, %v8791, %v8795
    %v8877 = vsel %vm3683, %v8793, %v8797
    %v8878 = vsel %vm3683, %v8787, %v8791
    %v8879 = vsel %vm3683, %v8789, %v8793
    %v8880 = vsel %vm3683, %v8783, %v8787
    %v8881 = vsel %vm3683, %v8785, %v8789
    %v8882 = vsel %vm3683, %v8779, %v8783
    %v8883 = vsel %vm3683, %v8781, %v8785
    %v8884 = vsel %vm3683, %v8775, %v8779
    %v8885 = vsel %vm3683, %v8777, %v8781
    %v8886 = vsel %vm3683, %v8771, %v8775
    %v8887 = vsel %vm3683, %v8773, %v8777
    %v8888 = vsel %vm3683, %v8767, %v8771
    %v8889 = vsel %vm3683, %v8769, %v8773
    %v8890 = vsel %vm3683, %v8763, %v8767
    %v8891 = vsel %vm3683, %v8765, %v8769
    %v8892 = vsel %vm3683, %v8759, %v8763
    %v8893 = vsel %vm3683, %v8761, %v8765
    %v8894 = vsel %vm3683, %v8755, %v8759
    %v8895 = vsel %vm3683, %v8757, %v8761
    %v8896 = vsel %vm3683, %v8751, %v8755
    %v8897 = vsel %vm3683, %v8753, %v8757
    %v8898 = vsel %vm3683, %v8747, %v8751
    %v8899 = vsel %vm3683, %v8749, %v8753
    %v8900 = vsel %vm3683, %v8847, %v8747
    %v8901 = vsel %vm3683, %v8849, %v8749
    %v8902 = vld [vmem:[%s3710] ss:$8 sm:$0xf]
    %v8903 = vld [vmem:[%s3710] ss:$8 sm:$0xf0]
    %v8904 = vor.u32 %v8902, %v8903
    %v8905 = vld [vmem:[%s3714] ss:$8 sm:$0xf]
    %v8906 = vld [vmem:[%s3714] ss:$8 sm:$0xf0]
    %v8907 = vor.u32 %v8905, %v8906
    %v8908 = vld [vmem:[%s3718] ss:$8 sm:$0xf]
    %v8909 = vld [vmem:[%s3718] ss:$8 sm:$0xf0]
    %v8910 = vor.u32 %v8908, %v8909
    %v8911 = vld [vmem:[%s3722] ss:$8 sm:$0x3]
    %v8916 = vlaneseq
    %v8917 = vshrl.u32 %v8916, 7
    %v8918 = vsub.s32 0, %v8917
    %v8919 = vrot.slane %v8904, %v8918
    %v8920 = vlaneseq
    %v8921 = vshrl.u32 %v8920, 7
    %v8922 = vsub.s32 1, %v8921
    %v8923 = vrot.slane %v8904, %v8922
    %v8924 = vlaneseq
    %v8925 = vshrl.u32 %v8924, 7
    %v8926 = vsub.s32 2, %v8925
    %v8927 = vrot.slane %v8904, %v8926
    %v8928 = vlaneseq
    %v8929 = vshrl.u32 %v8928, 7
    %v8930 = vsub.s32 3, %v8929
    %v8931 = vrot.slane %v8904, %v8930
    %v8932 = vlaneseq
    %v8933 = vshrl.u32 %v8932, 7
    %v8934 = vsub.s32 4, %v8933
    %v8935 = vrot.slane %v8904, %v8934
    %v8936 = vlaneseq
    %v8937 = vshrl.u32 %v8936, 7
    %v8938 = vsub.s32 5, %v8937
    %v8939 = vrot.slane %v8904, %v8938
    %v8940 = vlaneseq
    %v8941 = vshrl.u32 %v8940, 7
    %v8942 = vsub.s32 6, %v8941
    %v8943 = vrot.slane %v8904, %v8942
    %v8944 = vlaneseq
    %v8945 = vshrl.u32 %v8944, 7
    %v8946 = vsub.s32 7, %v8945
    %v8947 = vrot.slane %v8904, %v8946
    %v8948 = vlaneseq
    %v8949 = vshrl.u32 %v8948, 7
    %v8950 = vsub.s32 0, %v8949
    %v8951 = vrot.slane %v8907, %v8950
    %v8952 = vlaneseq
    %v8953 = vshrl.u32 %v8952, 7
    %v8954 = vsub.s32 1, %v8953
    %v8955 = vrot.slane %v8907, %v8954
    %v8956 = vlaneseq
    %v8957 = vshrl.u32 %v8956, 7
    %v8958 = vsub.s32 2, %v8957
    %v8959 = vrot.slane %v8907, %v8958
    %v8960 = vlaneseq
    %v8961 = vshrl.u32 %v8960, 7
    %v8962 = vsub.s32 3, %v8961
    %v8963 = vrot.slane %v8907, %v8962
    %v8964 = vlaneseq
    %v8965 = vshrl.u32 %v8964, 7
    %v8966 = vsub.s32 4, %v8965
    %v8967 = vrot.slane %v8907, %v8966
    %v8968 = vlaneseq
    %v8969 = vshrl.u32 %v8968, 7
    %v8970 = vsub.s32 5, %v8969
    %v8971 = vrot.slane %v8907, %v8970
    %v8972 = vlaneseq
    %v8973 = vshrl.u32 %v8972, 7
    %v8974 = vsub.s32 6, %v8973
    %v8975 = vrot.slane %v8907, %v8974
    %v8976 = vlaneseq
    %v8977 = vshrl.u32 %v8976, 7
    %v8978 = vsub.s32 7, %v8977
    %v8979 = vrot.slane %v8907, %v8978
    %v8980 = vlaneseq
    %v8981 = vshrl.u32 %v8980, 7
    %v8982 = vsub.s32 0, %v8981
    %v8983 = vrot.slane %v8910, %v8982
    %v8984 = vlaneseq
    %v8985 = vshrl.u32 %v8984, 7
    %v8986 = vsub.s32 1, %v8985
    %v8987 = vrot.slane %v8910, %v8986
    %v8988 = vlaneseq
    %v8989 = vshrl.u32 %v8988, 7
    %v8990 = vsub.s32 2, %v8989
    %v8991 = vrot.slane %v8910, %v8990
    %v8992 = vlaneseq
    %v8993 = vshrl.u32 %v8992, 7
    %v8994 = vsub.s32 3, %v8993
    %v8995 = vrot.slane %v8910, %v8994
    %v8996 = vlaneseq
    %v8997 = vshrl.u32 %v8996, 7
    %v8998 = vsub.s32 4, %v8997
    %v8999 = vrot.slane %v8910, %v8998
    %v9000 = vlaneseq
    %v9001 = vshrl.u32 %v9000, 7
    %v9002 = vsub.s32 5, %v9001
    %v9003 = vrot.slane %v8910, %v9002
    %v9004 = vlaneseq
    %v9005 = vshrl.u32 %v9004, 7
    %v9006 = vsub.s32 6, %v9005
    %v9007 = vrot.slane %v8910, %v9006
    %v9008 = vlaneseq
    %v9009 = vshrl.u32 %v9008, 7
    %v9010 = vsub.s32 7, %v9009
    %v9011 = vrot.slane %v8910, %v9010
    %v9012 = vlaneseq
    %v9013 = vshrl.u32 %v9012, 7
    %v9014 = vsub.s32 0, %v9013
    %v9015 = vrot.slane %v8911, %v9014
    %v9016 = vlaneseq
    %v9017 = vshrl.u32 %v9016, 7
    %v9018 = vsub.s32 1, %v9017
    %v9019 = vrot.slane %v8911, %v9018
    %v9046 = vmul.f32 %v8896, %v8919
    %v9047 = vmul.f32 %v8894, %v8923
    %v9048 = vmul.f32 %v8892, %v8927
    %v9049 = vmul.f32 %v8890, %v8931
    %v9050 = vmul.f32 %v8888, %v8935
    %v9051 = vmul.f32 %v8886, %v8939
    %v9052 = vmul.f32 %v8884, %v8943
    %v9053 = vmul.f32 %v8882, %v8947
    %v9054 = vmul.f32 %v8880, %v8951
    %v9055 = vmul.f32 %v8878, %v8955
    %v9056 = vmul.f32 %v8876, %v8959
    %v9057 = vmul.f32 %v8874, %v8963
    %v9058 = vmul.f32 %v8872, %v8967
    %v9059 = vmul.f32 %v8870, %v8971
    %v9060 = vmul.f32 %v8868, %v8975
    %v9061 = vmul.f32 %v8866, %v8979
    %v9062 = vmul.f32 %v8864, %v8983
    %v9063 = vmul.f32 %v8862, %v8987
    %v9064 = vmul.f32 %v8860, %v8991
    %v9065 = vmul.f32 %v8858, %v8995
    %v9066 = vmul.f32 %v8856, %v8999
    %v9067 = vmul.f32 %v8854, %v9003
    %v9068 = vmul.f32 %v8852, %v9007
    %v9069 = vmul.f32 %v8850, %v9011
    %v9070 = vmul.f32 %v8900, %v9015
    %v9071 = vmul.f32 %v8898, %v9019
    %v9072 = vmul.f32 %v8897, %v8919
    %v9073 = vmul.f32 %v8895, %v8923
    %v9074 = vmul.f32 %v8893, %v8927
    %v9075 = vmul.f32 %v8891, %v8931
    %v9076 = vmul.f32 %v8889, %v8935
    %v9077 = vmul.f32 %v8887, %v8939
    %v9078 = vmul.f32 %v8885, %v8943
    %v9079 = vmul.f32 %v8883, %v8947
    %v9080 = vmul.f32 %v8881, %v8951
    %v9081 = vmul.f32 %v8879, %v8955
    %v9082 = vmul.f32 %v8877, %v8959
    %v9083 = vmul.f32 %v8875, %v8963
    %v9084 = vmul.f32 %v8873, %v8967
    %v9085 = vmul.f32 %v8871, %v8971
    %v9086 = vmul.f32 %v8869, %v8975
    %v9087 = vmul.f32 %v8867, %v8979
    %v9088 = vmul.f32 %v8865, %v8983
    %v9089 = vmul.f32 %v8863, %v8987
    %v9090 = vmul.f32 %v8861, %v8991
    %v9091 = vmul.f32 %v8859, %v8995
    %v9092 = vmul.f32 %v8857, %v8999
    %v9093 = vmul.f32 %v8855, %v9003
    %v9094 = vmul.f32 %v8853, %v9007
    %v9095 = vmul.f32 %v8851, %v9011
    %v9096 = vmul.f32 %v8901, %v9015
    %v9097 = vmul.f32 %v8899, %v9019
    %v9098 = vpack.c.bf16 %v9072, %v9046
    %v9099 = vpack.c.bf16 %v9073, %v9047
    %v9100 = vpack.c.bf16 %v9074, %v9048
    %v9101 = vpack.c.bf16 %v9075, %v9049
    %v9102 = vpack.c.bf16 %v9076, %v9050
    %v9103 = vpack.c.bf16 %v9077, %v9051
    %v9104 = vpack.c.bf16 %v9078, %v9052
    %v9105 = vpack.c.bf16 %v9079, %v9053
    %v9106 = vpack.c.bf16 %v9080, %v9054
    %v9107 = vpack.c.bf16 %v9081, %v9055
    %v9108 = vpack.c.bf16 %v9082, %v9056
    %v9109 = vpack.c.bf16 %v9083, %v9057
    %v9110 = vpack.c.bf16 %v9084, %v9058
    %v9111 = vpack.c.bf16 %v9085, %v9059
    %v9112 = vpack.c.bf16 %v9086, %v9060
    %v9113 = vpack.c.bf16 %v9087, %v9061
    %v9114 = vpack.c.bf16 %v9088, %v9062
    %v9115 = vpack.c.bf16 %v9089, %v9063
    %v9116 = vpack.c.bf16 %v9090, %v9064
    %v9117 = vpack.c.bf16 %v9091, %v9065
    %v9118 = vpack.c.bf16 %v9092, %v9066
    %v9119 = vpack.c.bf16 %v9093, %v9067
    %v9120 = vpack.c.bf16 %v9094, %v9068
    %v9121 = vpack.c.bf16 %v9095, %v9069
    %v9122 = vpack.c.bf16 %v9096, %v9070
    %v9123 = vpack.c.bf16 %v9097, %v9071
    %v9150 = vunpack.c.l.b16 %v9098
    %v9151 = vunpack.c.l.b16 %v9099
    %v9152 = vunpack.c.l.b16 %v9100
    %v9153 = vunpack.c.l.b16 %v9101
    %v9154 = vunpack.c.l.b16 %v9102
    %v9155 = vunpack.c.l.b16 %v9103
    %v9156 = vunpack.c.l.b16 %v9104
    %v9157 = vunpack.c.l.b16 %v9105
    %v9158 = vunpack.c.l.b16 %v9106
    %v9159 = vunpack.c.l.b16 %v9107
    %v9160 = vunpack.c.l.b16 %v9108
    %v9161 = vunpack.c.l.b16 %v9109
    %v9162 = vunpack.c.l.b16 %v9110
    %v9163 = vunpack.c.l.b16 %v9111
    %v9164 = vunpack.c.l.b16 %v9112
    %v9165 = vunpack.c.l.b16 %v9113
    %v9166 = vunpack.c.l.b16 %v9114
    %v9167 = vunpack.c.l.b16 %v9115
    %v9168 = vunpack.c.l.b16 %v9116
    %v9169 = vunpack.c.l.b16 %v9117
    %v9170 = vunpack.c.l.b16 %v9118
    %v9171 = vunpack.c.l.b16 %v9119
    %v9172 = vunpack.c.l.b16 %v9120
    %v9173 = vunpack.c.l.b16 %v9121
    %v9174 = vunpack.c.l.b16 %v9122
    %v9175 = vunpack.c.l.b16 %v9123
    %v9176 = vunpack.c.h.b16 %v9098
    %v9177 = vunpack.c.h.b16 %v9099
    %v9178 = vunpack.c.h.b16 %v9100
    %v9179 = vunpack.c.h.b16 %v9101
    %v9180 = vunpack.c.h.b16 %v9102
    %v9181 = vunpack.c.h.b16 %v9103
    %v9182 = vunpack.c.h.b16 %v9104
    %v9183 = vunpack.c.h.b16 %v9105
    %v9184 = vunpack.c.h.b16 %v9106
    %v9185 = vunpack.c.h.b16 %v9107
    %v9186 = vunpack.c.h.b16 %v9108
    %v9187 = vunpack.c.h.b16 %v9109
    %v9188 = vunpack.c.h.b16 %v9110
    %v9189 = vunpack.c.h.b16 %v9111
    %v9190 = vunpack.c.h.b16 %v9112
    %v9191 = vunpack.c.h.b16 %v9113
    %v9192 = vunpack.c.h.b16 %v9114
    %v9193 = vunpack.c.h.b16 %v9115
    %v9194 = vunpack.c.h.b16 %v9116
    %v9195 = vunpack.c.h.b16 %v9117
    %v9196 = vunpack.c.h.b16 %v9118
    %v9197 = vunpack.c.h.b16 %v9119
    %v9198 = vunpack.c.h.b16 %v9120
    %v9199 = vunpack.c.h.b16 %v9121
    %v9200 = vunpack.c.h.b16 %v9122
    %v9201 = vunpack.c.h.b16 %v9123
    %v9202 = vpack.c.b16 %v9151, %v9150
    %v9203 = vpack.c.b16 %v9153, %v9152
    %v9204 = vpack.c.b16 %v9155, %v9154
    %v9205 = vpack.c.b16 %v9157, %v9156
    %v9206 = vpack.c.b16 %v9159, %v9158
    %v9207 = vpack.c.b16 %v9161, %v9160
    %v9208 = vpack.c.b16 %v9163, %v9162
    %v9209 = vpack.c.b16 %v9165, %v9164
    %v9210 = vpack.c.b16 %v9167, %v9166
    %v9211 = vpack.c.b16 %v9169, %v9168
    %v9212 = vpack.c.b16 %v9171, %v9170
    %v9213 = vpack.c.b16 %v9173, %v9172
    %v9214 = vpack.c.b16 %v9175, %v9174
    %v9215 = vpack.c.b16 %v9177, %v9176
    %v9216 = vpack.c.b16 %v9179, %v9178
    %v9217 = vpack.c.b16 %v9181, %v9180
    %v9218 = vpack.c.b16 %v9183, %v9182
    %v9219 = vpack.c.b16 %v9185, %v9184
    %v9220 = vpack.c.b16 %v9187, %v9186
    %v9221 = vpack.c.b16 %v9189, %v9188
    %v9222 = vpack.c.b16 %v9191, %v9190
    %v9223 = vpack.c.b16 %v9193, %v9192
    %v9224 = vpack.c.b16 %v9195, %v9194
    %v9225 = vpack.c.b16 %v9197, %v9196
    %v9226 = vpack.c.b16 %v9199, %v9198
    %v9227 = vpack.c.b16 %v9201, %v9200
    %9254 = vst [vmem:[#allocation3 + $0x680] sm:$0xff] %v9202
    %9255 = vst [vmem:[#allocation3 + $0x688] sm:$0xff] %v9203
    %9256 = vst [vmem:[#allocation3 + $0x690] sm:$0xff] %v9204
    %9257 = vst [vmem:[#allocation3 + $0x698] sm:$0xff] %v9205
    %9258 = vst [vmem:[#allocation3 + $0x6a0] sm:$0xff] %v9206
    %9259 = vst [vmem:[#allocation3 + $0x6a8] sm:$0xff] %v9207
    %9260 = vst [vmem:[#allocation3 + $0x6b0] sm:$0xff] %v9208
    %9261 = vst [vmem:[#allocation3 + $0x6b8] sm:$0xff] %v9209
    %9262 = vst [vmem:[#allocation3 + $0x6c0] sm:$0xff] %v9210
    %9263 = vst [vmem:[#allocation3 + $0x6c8] sm:$0xff] %v9211
    %9264 = vst [vmem:[#allocation3 + $0x6d0] sm:$0xff] %v9212
    %9265 = vst [vmem:[#allocation3 + $0x6d8] sm:$0xff] %v9213
    %9266 = vst [vmem:[#allocation3 + $0x6e0] sm:$0xff] %v9214
    %9267 = vst [vmem:[#allocation3 + $0x6e8] sm:$0xff] %v9215
    %9268 = vst [vmem:[#allocation3 + $0x6f0] sm:$0xff] %v9216
    %9269 = vst [vmem:[#allocation3 + $0x6f8] sm:$0xff] %v9217
    %9270 = vst [vmem:[#allocation3 + $0x700] sm:$0xff] %v9218
    %9271 = vst [vmem:[#allocation3 + $0x708] sm:$0xff] %v9219
    %9272 = vst [vmem:[#allocation3 + $0x710] sm:$0xff] %v9220
    %9273 = vst [vmem:[#allocation3 + $0x718] sm:$0xff] %v9221
    %9274 = vst [vmem:[#allocation3 + $0x720] sm:$0xff] %v9222
    %9275 = vst [vmem:[#allocation3 + $0x728] sm:$0xff] %v9223
    %9276 = vst [vmem:[#allocation3 + $0x730] sm:$0xff] %v9224
    %9277 = vst [vmem:[#allocation3 + $0x738] sm:$0xff] %v9225
    %9278 = vst [vmem:[#allocation3 + $0x740] sm:$0xff] %v9226
    %9279 = vst [vmem:[#allocation3 + $0x748] sm:$0xff] %v9227
    %v9280 = vld [vmem:[%s4] sm:$0xff]
    %v9281 = vld [vmem:[%s4 + $0x8] sm:$0xff]
    %v9282 = vld [vmem:[%s4 + $0x10] sm:$0xff]
    %v9283 = vld [vmem:[%s4 + $0x18] sm:$0xff]
    %v9284 = vld [vmem:[#allocation3] sm:$0xff]
    %v9285 = vld [vmem:[#allocation3 + $0x8] sm:$0xff]
    %v9286 = vld [vmem:[#allocation3 + $0x10] sm:$0xff]
    %v9287 = vld [vmem:[#allocation3 + $0x18] sm:$0xff]
    %v9288 = vld [vmem:[#allocation3 + $0x20] sm:$0xff]
    %v9289 = vld [vmem:[#allocation3 + $0x28] sm:$0xff]
    %v9290 = vld [vmem:[#allocation3 + $0x30] sm:$0xff]
    %v9291 = vld [vmem:[#allocation3 + $0x38] sm:$0xff]
    %v9292 = vld [vmem:[#allocation3 + $0x40] sm:$0xff]
    %v9293 = vld [vmem:[#allocation3 + $0x48] sm:$0xff]
    %v9294 = vld [vmem:[#allocation3 + $0x50] sm:$0xff]
    %v9295 = vld [vmem:[#allocation3 + $0x58] sm:$0xff]
    %v9296 = vld [vmem:[#allocation3 + $0x60] sm:$0xff]
    %v9297 = vld [vmem:[#allocation3 + $0x68] sm:$0xff]
    %v9298 = vld [vmem:[#allocation3 + $0x70] sm:$0xff]
    %v9299 = vld [vmem:[#allocation3 + $0x78] sm:$0xff]
    %v9300 = vld [vmem:[#allocation3 + $0x80] sm:$0xff]
    %v9301 = vld [vmem:[#allocation3 + $0x88] sm:$0xff]
    %v9302 = vld [vmem:[#allocation3 + $0x90] sm:$0xff]
    %v9303 = vld [vmem:[#allocation3 + $0x98] sm:$0xff]
    %v9304 = vld [vmem:[#allocation3 + $0xa0] sm:$0xff]
    %v9305 = vld [vmem:[#allocation3 + $0xa8] sm:$0xff]
    %v9306 = vld [vmem:[#allocation3 + $0xb0] sm:$0xff]
    %v9307 = vld [vmem:[#allocation3 + $0xb8] sm:$0xff]
    %v9308 = vld [vmem:[#allocation3 + $0xc0] sm:$0xff]
    %v9309 = vld [vmem:[#allocation3 + $0xc8] sm:$0xff]
    %v9310 = vld [vmem:[#allocation3 + $0xd0] sm:$0xff]
    %v9311 = vld [vmem:[#allocation3 + $0xd8] sm:$0xff]
    %v9312 = vld [vmem:[#allocation3 + $0xe0] sm:$0xff]
    %v9313 = vld [vmem:[#allocation3 + $0xe8] sm:$0xff]
    %v9314 = vld [vmem:[#allocation3 + $0xf0] sm:$0xff]
    %v9315 = vld [vmem:[#allocation3 + $0xf8] sm:$0xff]
    %v9316 = vld [vmem:[#allocation3 + $0x100] sm:$0xff]
    %v9317 = vld [vmem:[#allocation3 + $0x108] sm:$0xff]
    %v9318 = vld [vmem:[#allocation3 + $0x110] sm:$0xff]
    %v9319 = vld [vmem:[#allocation3 + $0x118] sm:$0xff]
    %v9320 = vld [vmem:[#allocation3 + $0x120] sm:$0xff]
    %v9321 = vld [vmem:[#allocation3 + $0x128] sm:$0xff]
    %v9322 = vld [vmem:[#allocation3 + $0x130] sm:$0xff]
    %v9323 = vld [vmem:[#allocation3 + $0x138] sm:$0xff]
    %v9324 = vld [vmem:[#allocation3 + $0x140] sm:$0xff]
    %v9325 = vld [vmem:[#allocation3 + $0x148] sm:$0xff]
    %v9326 = vld [vmem:[#allocation3 + $0x150] sm:$0xff]
    %v9327 = vld [vmem:[#allocation3 + $0x158] sm:$0xff]
    %v9328 = vld [vmem:[#allocation3 + $0x160] sm:$0xff]
    %v9329 = vld [vmem:[#allocation3 + $0x168] sm:$0xff]
    %v9330 = vld [vmem:[#allocation3 + $0x170] sm:$0xff]
    %v9331 = vld [vmem:[#allocation3 + $0x178] sm:$0xff]
    %v9332 = vld [vmem:[#allocation3 + $0x180] sm:$0xff]
    %v9333 = vld [vmem:[#allocation3 + $0x188] sm:$0xff]
    %v9334 = vld [vmem:[#allocation3 + $0x190] sm:$0xff]
    %v9335 = vld [vmem:[#allocation3 + $0x198] sm:$0xff]
    %v9336 = vld [vmem:[#allocation3 + $0x1a0] sm:$0xff]
    %v9337 = vld [vmem:[#allocation3 + $0x1a8] sm:$0xff]
    %v9338 = vld [vmem:[#allocation3 + $0x1b0] sm:$0xff]
    %v9339 = vld [vmem:[#allocation3 + $0x1b8] sm:$0xff]
    %v9340 = vld [vmem:[#allocation3 + $0x1c0] sm:$0xff]
    %v9341 = vld [vmem:[#allocation3 + $0x1c8] sm:$0xff]
    %v9342 = vld [vmem:[#allocation3 + $0x1d0] sm:$0xff]
    %v9343 = vld [vmem:[#allocation3 + $0x1d8] sm:$0xff]
    %v9344 = vld [vmem:[#allocation3 + $0x1e0] sm:$0xff]
    %v9345 = vld [vmem:[#allocation3 + $0x1e8] sm:$0xff]
    %v9346 = vld [vmem:[#allocation3 + $0x1f0] sm:$0xff]
    %v9347 = vld [vmem:[#allocation3 + $0x1f8] sm:$0xff]
    %v9348 = vld [vmem:[#allocation3 + $0x200] sm:$0xff]
    %v9349 = vld [vmem:[#allocation3 + $0x208] sm:$0xff]
    %v9350 = vld [vmem:[#allocation3 + $0x210] sm:$0xff]
    %v9351 = vld [vmem:[#allocation3 + $0x218] sm:$0xff]
    %v9352 = vld [vmem:[#allocation3 + $0x220] sm:$0xff]
    %v9353 = vld [vmem:[#allocation3 + $0x228] sm:$0xff]
    %v9354 = vld [vmem:[#allocation3 + $0x230] sm:$0xff]
    %v9355 = vld [vmem:[#allocation3 + $0x238] sm:$0xff]
    %v9356 = vld [vmem:[#allocation3 + $0x240] sm:$0xff]
    %v9357 = vld [vmem:[#allocation3 + $0x248] sm:$0xff]
    %v9358 = vld [vmem:[#allocation3 + $0x250] sm:$0xff]
    %v9359 = vld [vmem:[#allocation3 + $0x258] sm:$0xff]
    %v9360 = vld [vmem:[#allocation3 + $0x260] sm:$0xff]
    %v9361 = vld [vmem:[#allocation3 + $0x268] sm:$0xff]
    %v9362 = vld [vmem:[#allocation3 + $0x270] sm:$0xff]
    %v9363 = vld [vmem:[#allocation3 + $0x278] sm:$0xff]
    %v9364 = vld [vmem:[#allocation3 + $0x280] sm:$0xff]
    %v9365 = vld [vmem:[#allocation3 + $0x288] sm:$0xff]
    %v9366 = vld [vmem:[#allocation3 + $0x290] sm:$0xff]
    %v9367 = vld [vmem:[#allocation3 + $0x298] sm:$0xff]
    %v9368 = vld [vmem:[#allocation3 + $0x2a0] sm:$0xff]
    %v9369 = vld [vmem:[#allocation3 + $0x2a8] sm:$0xff]
    %v9370 = vld [vmem:[#allocation3 + $0x2b0] sm:$0xff]
    %v9371 = vld [vmem:[#allocation3 + $0x2b8] sm:$0xff]
    %v9372 = vld [vmem:[#allocation3 + $0x2c0] sm:$0xff]
    %v9373 = vld [vmem:[#allocation3 + $0x2c8] sm:$0xff]
    %v9374 = vld [vmem:[#allocation3 + $0x2d0] sm:$0xff]
    %v9375 = vld [vmem:[#allocation3 + $0x2d8] sm:$0xff]
    %v9376 = vld [vmem:[#allocation3 + $0x2e0] sm:$0xff]
    %v9377 = vld [vmem:[#allocation3 + $0x2e8] sm:$0xff]
    %v9378 = vld [vmem:[#allocation3 + $0x2f0] sm:$0xff]
    %v9379 = vld [vmem:[#allocation3 + $0x2f8] sm:$0xff]
    %v9380 = vld [vmem:[#allocation3 + $0x300] sm:$0xff]
    %v9381 = vld [vmem:[#allocation3 + $0x308] sm:$0xff]
    %v9382 = vld [vmem:[#allocation3 + $0x310] sm:$0xff]
    %v9383 = vld [vmem:[#allocation3 + $0x318] sm:$0xff]
    %v9384 = vld [vmem:[#allocation3 + $0x320] sm:$0xff]
    %v9385 = vld [vmem:[#allocation3 + $0x328] sm:$0xff]
    %v9386 = vld [vmem:[#allocation3 + $0x330] sm:$0xff]
    %v9387 = vld [vmem:[#allocation3 + $0x338] sm:$0xff]
    %v9388 = vld [vmem:[#allocation3 + $0x340] sm:$0xff]
    %v9389 = vld [vmem:[#allocation3 + $0x348] sm:$0xff]
    %v9390 = vld [vmem:[#allocation3 + $0x350] sm:$0xff]
    %v9391 = vld [vmem:[#allocation3 + $0x358] sm:$0xff]
    %v9392 = vld [vmem:[#allocation3 + $0x360] sm:$0xff]
    %v9393 = vld [vmem:[#allocation3 + $0x368] sm:$0xff]
    %v9394 = vld [vmem:[#allocation3 + $0x370] sm:$0xff]
    %v9395 = vld [vmem:[#allocation3 + $0x378] sm:$0xff]
    %v9396 = vld [vmem:[#allocation3 + $0x380] sm:$0xff]
    %v9397 = vld [vmem:[#allocation3 + $0x388] sm:$0xff]
    %v9398 = vld [vmem:[#allocation3 + $0x390] sm:$0xff]
    %v9399 = vld [vmem:[#allocation3 + $0x398] sm:$0xff]
    %v9400 = vld [vmem:[#allocation3 + $0x3a0] sm:$0xff]
    %v9401 = vld [vmem:[#allocation3 + $0x3a8] sm:$0xff]
    %v9402 = vld [vmem:[#allocation3 + $0x3b0] sm:$0xff]
    %v9403 = vld [vmem:[#allocation3 + $0x3b8] sm:$0xff]
    %v9404 = vld [vmem:[#allocation3 + $0x3c0] sm:$0xff]
    %v9405 = vld [vmem:[#allocation3 + $0x3c8] sm:$0xff]
    %v9406 = vld [vmem:[#allocation3 + $0x3d0] sm:$0xff]
    %v9407 = vld [vmem:[#allocation3 + $0x3d8] sm:$0xff]
    %v9408 = vld [vmem:[#allocation3 + $0x3e0] sm:$0xff]
    %v9409 = vld [vmem:[#allocation3 + $0x3e8] sm:$0xff]
    %v9410 = vld [vmem:[#allocation3 + $0x3f0] sm:$0xff]
    %v9411 = vld [vmem:[#allocation3 + $0x3f8] sm:$0xff]
    %v9412 = vld [vmem:[#allocation3 + $0x400] sm:$0xff]
    %v9413 = vld [vmem:[#allocation3 + $0x408] sm:$0xff]
    %v9414 = vld [vmem:[#allocation3 + $0x410] sm:$0xff]
    %v9415 = vld [vmem:[#allocation3 + $0x418] sm:$0xff]
    %v9416 = vld [vmem:[#allocation3 + $0x420] sm:$0xff]
    %v9417 = vld [vmem:[#allocation3 + $0x428] sm:$0xff]
    %v9418 = vld [vmem:[#allocation3 + $0x430] sm:$0xff]
    %v9419 = vld [vmem:[#allocation3 + $0x438] sm:$0xff]
    %v9420 = vld [vmem:[#allocation3 + $0x440] sm:$0xff]
    %v9421 = vld [vmem:[#allocation3 + $0x448] sm:$0xff]
    %v9422 = vld [vmem:[#allocation3 + $0x450] sm:$0xff]
    %v9423 = vld [vmem:[#allocation3 + $0x458] sm:$0xff]
    %v9424 = vld [vmem:[#allocation3 + $0x460] sm:$0xff]
    %v9425 = vld [vmem:[#allocation3 + $0x468] sm:$0xff]
    %v9426 = vld [vmem:[#allocation3 + $0x470] sm:$0xff]
    %v9427 = vld [vmem:[#allocation3 + $0x478] sm:$0xff]
    %v9428 = vld [vmem:[#allocation3 + $0x480] sm:$0xff]
    %v9429 = vld [vmem:[#allocation3 + $0x488] sm:$0xff]
    %v9430 = vld [vmem:[#allocation3 + $0x490] sm:$0xff]
    %v9431 = vld [vmem:[#allocation3 + $0x498] sm:$0xff]
    %v9432 = vld [vmem:[#allocation3 + $0x4a0] sm:$0xff]
    %v9433 = vld [vmem:[#allocation3 + $0x4a8] sm:$0xff]
    %v9434 = vld [vmem:[#allocation3 + $0x4b0] sm:$0xff]
    %v9435 = vld [vmem:[#allocation3 + $0x4b8] sm:$0xff]
    %v9436 = vld [vmem:[#allocation3 + $0x4c0] sm:$0xff]
    %v9437 = vld [vmem:[#allocation3 + $0x4c8] sm:$0xff]
    %v9438 = vld [vmem:[#allocation3 + $0x4d0] sm:$0xff]
    %v9439 = vld [vmem:[#allocation3 + $0x4d8] sm:$0xff]
    %v9440 = vld [vmem:[#allocation3 + $0x4e0] sm:$0xff]
    %v9441 = vld [vmem:[#allocation3 + $0x4e8] sm:$0xff]
    %v9442 = vld [vmem:[#allocation3 + $0x4f0] sm:$0xff]
    %v9443 = vld [vmem:[#allocation3 + $0x4f8] sm:$0xff]
    %v9444 = vld [vmem:[#allocation3 + $0x500] sm:$0xff]
    %v9445 = vld [vmem:[#allocation3 + $0x508] sm:$0xff]
    %v9446 = vld [vmem:[#allocation3 + $0x510] sm:$0xff]
    %v9447 = vld [vmem:[#allocation3 + $0x518] sm:$0xff]
    %v9448 = vld [vmem:[#allocation3 + $0x520] sm:$0xff]
    %v9449 = vld [vmem:[#allocation3 + $0x528] sm:$0xff]
    %v9450 = vld [vmem:[#allocation3 + $0x530] sm:$0xff]
    %v9451 = vld [vmem:[#allocation3 + $0x538] sm:$0xff]
    %v9452 = vld [vmem:[#allocation3 + $0x540] sm:$0xff]
    %v9453 = vld [vmem:[#allocation3 + $0x548] sm:$0xff]
    %v9454 = vld [vmem:[#allocation3 + $0x550] sm:$0xff]
    %v9455 = vld [vmem:[#allocation3 + $0x558] sm:$0xff]
    %v9456 = vld [vmem:[#allocation3 + $0x560] sm:$0xff]
    %v9457 = vld [vmem:[#allocation3 + $0x568] sm:$0xff]
    %v9458 = vld [vmem:[#allocation3 + $0x570] sm:$0xff]
    %v9459 = vld [vmem:[#allocation3 + $0x578] sm:$0xff]
    %v9460 = vld [vmem:[#allocation3 + $0x580] sm:$0xff]
    %v9461 = vld [vmem:[#allocation3 + $0x588] sm:$0xff]
    %v9462 = vld [vmem:[#allocation3 + $0x590] sm:$0xff]
    %v9463 = vld [vmem:[#allocation3 + $0x598] sm:$0xff]
    %v9464 = vld [vmem:[#allocation3 + $0x5a0] sm:$0xff]
    %v9465 = vld [vmem:[#allocation3 + $0x5a8] sm:$0xff]
    %v9466 = vld [vmem:[#allocation3 + $0x5b0] sm:$0xff]
    %v9467 = vld [vmem:[#allocation3 + $0x5b8] sm:$0xff]
    %v9468 = vld [vmem:[#allocation3 + $0x5c0] sm:$0xff]
    %v9469 = vld [vmem:[#allocation3 + $0x5c8] sm:$0xff]
    %v9470 = vld [vmem:[#allocation3 + $0x5d0] sm:$0xff]
    %v9471 = vld [vmem:[#allocation3 + $0x5d8] sm:$0xff]
    %v9472 = vld [vmem:[#allocation3 + $0x5e0] sm:$0xff]
    %v9473 = vld [vmem:[#allocation3 + $0x5e8] sm:$0xff]
    %v9474 = vld [vmem:[#allocation3 + $0x5f0] sm:$0xff]
    %v9475 = vld [vmem:[#allocation3 + $0x5f8] sm:$0xff]
    %v9476 = vld [vmem:[#allocation3 + $0x600] sm:$0xff]
    %v9477 = vld [vmem:[#allocation3 + $0x608] sm:$0xff]
    %v9478 = vld [vmem:[#allocation3 + $0x610] sm:$0xff]
    %v9479 = vld [vmem:[#allocation3 + $0x618] sm:$0xff]
    %v9480 = vld [vmem:[#allocation3 + $0x620] sm:$0xff]
    %v9481 = vld [vmem:[#allocation3 + $0x628] sm:$0xff]
    %v9482 = vld [vmem:[#allocation3 + $0x630] sm:$0xff]
    %v9483 = vld [vmem:[#allocation3 + $0x638] sm:$0xff]
    %v9484 = vld [vmem:[#allocation3 + $0x640] sm:$0xff]
    %v9485 = vld [vmem:[#allocation3 + $0x648] sm:$0xff]
    %v9486 = vld [vmem:[#allocation3 + $0x650] sm:$0xff]
    %v9487 = vld [vmem:[#allocation3 + $0x658] sm:$0xff]
    %v9488 = vld [vmem:[#allocation3 + $0x660] sm:$0xff]
    %v9489 = vld [vmem:[#allocation3 + $0x668] sm:$0xff]
    %v9490 = vld [vmem:[#allocation3 + $0x670] sm:$0xff]
    %v9491 = vld [vmem:[#allocation3 + $0x678] sm:$0xff]
    %v9492 = vld [vmem:[#allocation3 + $0x680] sm:$0xff]
    %v9493 = vld [vmem:[#allocation3 + $0x688] sm:$0xff]
    %v9494 = vld [vmem:[#allocation3 + $0x690] sm:$0xff]
    %v9495 = vld [vmem:[#allocation3 + $0x698] sm:$0xff]
    %v9496 = vld [vmem:[#allocation3 + $0x6a0] sm:$0xff]
    %v9497 = vld [vmem:[#allocation3 + $0x6a8] sm:$0xff]
    %v9498 = vld [vmem:[#allocation3 + $0x6b0] sm:$0xff]
    %v9499 = vld [vmem:[#allocation3 + $0x6b8] sm:$0xff]
    %v9500 = vld [vmem:[#allocation3 + $0x6c0] sm:$0xff]
    %v9501 = vld [vmem:[#allocation3 + $0x6c8] sm:$0xff]
    %v9502 = vld [vmem:[#allocation3 + $0x6d0] sm:$0xff]
    %v9503 = vld [vmem:[#allocation3 + $0x6d8] sm:$0xff]
    %v9504 = vld [vmem:[#allocation3 + $0x6e0] sm:$0xff]
    %v9505 = vld [vmem:[#allocation3 + $0x6e8] sm:$0xff]
    %v9506 = vld [vmem:[#allocation3 + $0x6f0] sm:$0xff]
    %v9507 = vld [vmem:[#allocation3 + $0x6f8] sm:$0xff]
    %v9508 = vld [vmem:[#allocation3 + $0x700] sm:$0xff]
    %v9509 = vld [vmem:[#allocation3 + $0x708] sm:$0xff]
    %v9510 = vld [vmem:[#allocation3 + $0x710] sm:$0xff]
    %v9511 = vld [vmem:[#allocation3 + $0x718] sm:$0xff]
    %v9512 = vld [vmem:[#allocation3 + $0x720] sm:$0xff]
    %v9513 = vld [vmem:[#allocation3 + $0x728] sm:$0xff]
    %v9514 = vld [vmem:[#allocation3 + $0x730] sm:$0xff]
    %v9515 = vld [vmem:[#allocation3 + $0x738] sm:$0xff]
    %v9516 = vld [vmem:[#allocation3 + $0x740] sm:$0xff]
    %v9517 = vld [vmem:[#allocation3 + $0x748] sm:$0xff]
    %v9518 = vld [vmem:[%s5] sm:$0xff]
    %v9519 = vld [vmem:[%s5 + $0x8] sm:$0xff]
    %v9520 = vld [vmem:[%s5 + $0x10] sm:$0xff]
    %v9521 = vld [vmem:[%s5 + $0x18] sm:$0xff]
    %9523 = vset.pattern.permute.xlu0 0
    %9524 = vperm.xlu0 %9523, %v9518
    %v9525 = vpop.permute.xlu0 %9524
    %9528 = vset.pattern.permute.xlu0 0
    %9529 = vperm.xlu0 %9528, %v9519
    %v9530 = vpop.permute.xlu0 %9529
    %9533 = vset.pattern.permute.xlu0 0
    %9534 = vperm.xlu0 %9533, %v9520
    %v9535 = vpop.permute.xlu0 %9534
    %9538 = vset.pattern.permute.xlu0 0
    %9539 = vperm.xlu0 %9538, %v9521
    %v9540 = vpop.permute.xlu0 %9539
    %v9546 = vunpack.c.l.b16 %v9280
    %v9547 = vunpack.c.h.b16 %v9280
    %v9548 = vunpack.c.l.b16 %v9281
    %v9549 = vunpack.c.h.b16 %v9281
    %v9550 = vunpack.c.l.b16 %v9282
    %v9551 = vunpack.c.h.b16 %v9282
    %v9552 = vunpack.c.l.b16 %v9283
    %v9553 = vunpack.c.h.b16 %v9283
    %v9554 = vpack.c.b16 %v9548, %v9546
    %v9555 = vpack.c.b16 %v9549, %v9547
    %v9556 = vpack.c.b16 %v9552, %v9550
    %v9557 = vpack.c.b16 %v9553, %v9551
    %v9794 = vunpack.c.l.b16 %v9284
    %v9795 = vunpack.c.h.b16 %v9284
    %v9796 = vunpack.c.l.b16 %v9285
    %v9797 = vunpack.c.h.b16 %v9285
    %v9798 = vunpack.c.l.b16 %v9286
    %v9799 = vunpack.c.h.b16 %v9286
    %v9800 = vunpack.c.l.b16 %v9287
    %v9801 = vunpack.c.h.b16 %v9287
    %v9802 = vunpack.c.l.b16 %v9288
    %v9803 = vunpack.c.h.b16 %v9288
    %v9804 = vunpack.c.l.b16 %v9289
    %v9805 = vunpack.c.h.b16 %v9289
    %v9806 = vunpack.c.l.b16 %v9290
    %v9807 = vunpack.c.h.b16 %v9290
    %v9808 = vunpack.c.l.b16 %v9291
    %v9809 = vunpack.c.h.b16 %v9291
    %v9810 = vunpack.c.l.b16 %v9292
    %v9811 = vunpack.c.h.b16 %v9292
    %v9812 = vunpack.c.l.b16 %v9293
    %v9813 = vunpack.c.h.b16 %v9293
    %v9814 = vunpack.c.l.b16 %v9294
    %v9815 = vunpack.c.h.b16 %v9294
    %v9816 = vunpack.c.l.b16 %v9295
    %v9817 = vunpack.c.h.b16 %v9295
    %v9818 = vunpack.c.l.b16 %v9296
    %v9819 = vunpack.c.h.b16 %v9296
    %v9820 = vunpack.c.l.b16 %v9297
    %v9821 = vunpack.c.h.b16 %v9297
    %v9822 = vunpack.c.l.b16 %v9298
    %v9823 = vunpack.c.h.b16 %v9298
    %v9824 = vunpack.c.l.b16 %v9299
    %v9825 = vunpack.c.h.b16 %v9299
    %v9826 = vunpack.c.l.b16 %v9300
    %v9827 = vunpack.c.h.b16 %v9300
    %v9828 = vunpack.c.l.b16 %v9301
    %v9829 = vunpack.c.h.b16 %v9301
    %v9830 = vunpack.c.l.b16 %v9302
    %v9831 = vunpack.c.h.b16 %v9302
    %v9832 = vunpack.c.l.b16 %v9303
    %v9833 = vunpack.c.h.b16 %v9303
    %v9834 = vunpack.c.l.b16 %v9304
    %v9835 = vunpack.c.h.b16 %v9304
    %v9836 = vunpack.c.l.b16 %v9305
    %v9837 = vunpack.c.h.b16 %v9305
    %v9838 = vunpack.c.l.b16 %v9306
    %v9839 = vunpack.c.h.b16 %v9306
    %v9840 = vunpack.c.l.b16 %v9307
    %v9841 = vunpack.c.h.b16 %v9307
    %v9842 = vunpack.c.l.b16 %v9308
    %v9843 = vunpack.c.h.b16 %v9308
    %v9844 = vunpack.c.l.b16 %v9309
    %v9845 = vunpack.c.h.b16 %v9309
    %v9846 = vunpack.c.l.b16 %v9310
    %v9847 = vunpack.c.h.b16 %v9310
    %v9848 = vunpack.c.l.b16 %v9311
    %v9849 = vunpack.c.h.b16 %v9311
    %v9850 = vunpack.c.l.b16 %v9312
    %v9851 = vunpack.c.h.b16 %v9312
    %v9852 = vunpack.c.l.b16 %v9313
    %v9853 = vunpack.c.h.b16 %v9313
    %v9854 = vunpack.c.l.b16 %v9314
    %v9855 = vunpack.c.h.b16 %v9314
    %v9856 = vunpack.c.l.b16 %v9315
    %v9857 = vunpack.c.h.b16 %v9315
    %v9858 = vunpack.c.l.b16 %v9316
    %v9859 = vunpack.c.h.b16 %v9316
    %v9860 = vunpack.c.l.b16 %v9317
    %v9861 = vunpack.c.h.b16 %v9317
    %v9862 = vunpack.c.l.b16 %v9318
    %v9863 = vunpack.c.h.b16 %v9318
    %v9864 = vunpack.c.l.b16 %v9319
    %v9865 = vunpack.c.h.b16 %v9319
    %v9866 = vunpack.c.l.b16 %v9320
    %v9867 = vunpack.c.h.b16 %v9320
    %v9868 = vunpack.c.l.b16 %v9321
    %v9869 = vunpack.c.h.b16 %v9321
    %v9870 = vunpack.c.l.b16 %v9322
    %v9871 = vunpack.c.h.b16 %v9322
    %v9872 = vunpack.c.l.b16 %v9323
    %v9873 = vunpack.c.h.b16 %v9323
    %v9874 = vunpack.c.l.b16 %v9324
    %v9875 = vunpack.c.h.b16 %v9324
    %v9876 = vunpack.c.l.b16 %v9325
    %v9877 = vunpack.c.h.b16 %v9325
    %v9878 = vunpack.c.l.b16 %v9326
    %v9879 = vunpack.c.h.b16 %v9326
    %v9880 = vunpack.c.l.b16 %v9327
    %v9881 = vunpack.c.h.b16 %v9327
    %v9882 = vunpack.c.l.b16 %v9328
    %v9883 = vunpack.c.h.b16 %v9328
    %v9884 = vunpack.c.l.b16 %v9329
    %v9885 = vunpack.c.h.b16 %v9329
    %v9886 = vunpack.c.l.b16 %v9330
    %v9887 = vunpack.c.h.b16 %v9330
    %v9888 = vunpack.c.l.b16 %v9331
    %v9889 = vunpack.c.h.b16 %v9331
    %v9890 = vunpack.c.l.b16 %v9332
    %v9891 = vunpack.c.h.b16 %v9332
    %v9892 = vunpack.c.l.b16 %v9333
    %v9893 = vunpack.c.h.b16 %v9333
    %v9894 = vunpack.c.l.b16 %v9334
    %v9895 = vunpack.c.h.b16 %v9334
    %v9896 = vunpack.c.l.b16 %v9335
    %v9897 = vunpack.c.h.b16 %v9335
    %v9898 = vunpack.c.l.b16 %v9336
    %v9899 = vunpack.c.h.b16 %v9336
    %v9900 = vunpack.c.l.b16 %v9337
    %v9901 = vunpack.c.h.b16 %v9337
    %v9902 = vunpack.c.l.b16 %v9338
    %v9903 = vunpack.c.h.b16 %v9338
    %v9904 = vunpack.c.l.b16 %v9339
    %v9905 = vunpack.c.h.b16 %v9339
    %v9906 = vunpack.c.l.b16 %v9340
    %v9907 = vunpack.c.h.b16 %v9340
    %v9908 = vunpack.c.l.b16 %v9341
    %v9909 = vunpack.c.h.b16 %v9341
    %v9910 = vunpack.c.l.b16 %v9342
    %v9911 = vunpack.c.h.b16 %v9342
    %v9912 = vunpack.c.l.b16 %v9343
    %v9913 = vunpack.c.h.b16 %v9343
    %v9914 = vunpack.c.l.b16 %v9344
    %v9915 = vunpack.c.h.b16 %v9344
    %v9916 = vunpack.c.l.b16 %v9345
    %v9917 = vunpack.c.h.b16 %v9345
    %v9918 = vunpack.c.l.b16 %v9346
    %v9919 = vunpack.c.h.b16 %v9346
    %v9920 = vunpack.c.l.b16 %v9347
    %v9921 = vunpack.c.h.b16 %v9347
    %v9922 = vunpack.c.l.b16 %v9348
    %v9923 = vunpack.c.h.b16 %v9348
    %v9924 = vunpack.c.l.b16 %v9349
    %v9925 = vunpack.c.h.b16 %v9349
    %v9926 = vunpack.c.l.b16 %v9350
    %v9927 = vunpack.c.h.b16 %v9350
    %v9928 = vunpack.c.l.b16 %v9351
    %v9929 = vunpack.c.h.b16 %v9351
    %v9930 = vunpack.c.l.b16 %v9352
    %v9931 = vunpack.c.h.b16 %v9352
    %v9932 = vunpack.c.l.b16 %v9353
    %v9933 = vunpack.c.h.b16 %v9353
    %v9934 = vunpack.c.l.b16 %v9354
    %v9935 = vunpack.c.h.b16 %v9354
    %v9936 = vunpack.c.l.b16 %v9355
    %v9937 = vunpack.c.h.b16 %v9355
    %v9938 = vunpack.c.l.b16 %v9356
    %v9939 = vunpack.c.h.b16 %v9356
    %v9940 = vunpack.c.l.b16 %v9357
    %v9941 = vunpack.c.h.b16 %v9357
    %v9942 = vunpack.c.l.b16 %v9358
    %v9943 = vunpack.c.h.b16 %v9358
    %v9944 = vunpack.c.l.b16 %v9359
    %v9945 = vunpack.c.h.b16 %v9359
    %v9946 = vunpack.c.l.b16 %v9360
    %v9947 = vunpack.c.h.b16 %v9360
    %v9948 = vunpack.c.l.b16 %v9361
    %v9949 = vunpack.c.h.b16 %v9361
    %v9950 = vunpack.c.l.b16 %v9362
    %v9951 = vunpack.c.h.b16 %v9362
    %v9952 = vunpack.c.l.b16 %v9363
    %v9953 = vunpack.c.h.b16 %v9363
    %v9954 = vunpack.c.l.b16 %v9364
    %v9955 = vunpack.c.h.b16 %v9364
    %v9956 = vunpack.c.l.b16 %v9365
    %v9957 = vunpack.c.h.b16 %v9365
    %v9958 = vunpack.c.l.b16 %v9366
    %v9959 = vunpack.c.h.b16 %v9366
    %v9960 = vunpack.c.l.b16 %v9367
    %v9961 = vunpack.c.h.b16 %v9367
    %v9962 = vunpack.c.l.b16 %v9368
    %v9963 = vunpack.c.h.b16 %v9368
    %v9964 = vunpack.c.l.b16 %v9369
    %v9965 = vunpack.c.h.b16 %v9369
    %v9966 = vunpack.c.l.b16 %v9370
    %v9967 = vunpack.c.h.b16 %v9370
    %v9968 = vunpack.c.l.b16 %v9371
    %v9969 = vunpack.c.h.b16 %v9371
    %v9970 = vunpack.c.l.b16 %v9372
    %v9971 = vunpack.c.h.b16 %v9372
    %v9972 = vunpack.c.l.b16 %v9373
    %v9973 = vunpack.c.h.b16 %v9373
    %v9974 = vunpack.c.l.b16 %v9374
    %v9975 = vunpack.c.h.b16 %v9374
    %v9976 = vunpack.c.l.b16 %v9375
    %v9977 = vunpack.c.h.b16 %v9375
    %v9978 = vunpack.c.l.b16 %v9376
    %v9979 = vunpack.c.h.b16 %v9376
    %v9980 = vunpack.c.l.b16 %v9377
    %v9981 = vunpack.c.h.b16 %v9377
    %v9982 = vunpack.c.l.b16 %v9378
    %v9983 = vunpack.c.h.b16 %v9378
    %v9984 = vunpack.c.l.b16 %v9379
    %v9985 = vunpack.c.h.b16 %v9379
    %v9986 = vunpack.c.l.b16 %v9380
    %v9987 = vunpack.c.h.b16 %v9380
    %v9988 = vunpack.c.l.b16 %v9381
    %v9989 = vunpack.c.h.b16 %v9381
    %v9990 = vunpack.c.l.b16 %v9382
    %v9991 = vunpack.c.h.b16 %v9382
    %v9992 = vunpack.c.l.b16 %v9383
    %v9993 = vunpack.c.h.b16 %v9383
    %v9994 = vunpack.c.l.b16 %v9384
    %v9995 = vunpack.c.h.b16 %v9384
    %v9996 = vunpack.c.l.b16 %v9385
    %v9997 = vunpack.c.h.b16 %v9385
    %v9998 = vunpack.c.l.b16 %v9386
    %v9999 = vunpack.c.h.b16 %v9386
    %v10000 = vunpack.c.l.b16 %v9387
    %v10001 = vunpack.c.h.b16 %v9387
    %v10002 = vunpack.c.l.b16 %v9388
    %v10003 = vunpack.c.h.b16 %v9388
    %v10004 = vunpack.c.l.b16 %v9389
    %v10005 = vunpack.c.h.b16 %v9389
    %v10006 = vunpack.c.l.b16 %v9390
    %v10007 = vunpack.c.h.b16 %v9390
    %v10008 = vunpack.c.l.b16 %v9391
    %v10009 = vunpack.c.h.b16 %v9391
    %v10010 = vunpack.c.l.b16 %v9392
    %v10011 = vunpack.c.h.b16 %v9392
    %v10012 = vunpack.c.l.b16 %v9393
    %v10013 = vunpack.c.h.b16 %v9393
    %v10014 = vunpack.c.l.b16 %v9394
    %v10015 = vunpack.c.h.b16 %v9394
    %v10016 = vunpack.c.l.b16 %v9395
    %v10017 = vunpack.c.h.b16 %v9395
    %v10018 = vunpack.c.l.b16 %v9396
    %v10019 = vunpack.c.h.b16 %v9396
    %v10020 = vunpack.c.l.b16 %v9397
    %v10021 = vunpack.c.h.b16 %v9397
    %v10022 = vunpack.c.l.b16 %v9398
    %v10023 = vunpack.c.h.b16 %v9398
    %v10024 = vunpack.c.l.b16 %v9399
    %v10025 = vunpack.c.h.b16 %v9399
    %v10026 = vunpack.c.l.b16 %v9400
    %v10027 = vunpack.c.h.b16 %v9400
    %v10028 = vunpack.c.l.b16 %v9401
    %v10029 = vunpack.c.h.b16 %v9401
    %v10030 = vunpack.c.l.b16 %v9402
    %v10031 = vunpack.c.h.b16 %v9402
    %v10032 = vunpack.c.l.b16 %v9403
    %v10033 = vunpack.c.h.b16 %v9403
    %v10034 = vunpack.c.l.b16 %v9404
    %v10035 = vunpack.c.h.b16 %v9404
    %v10036 = vunpack.c.l.b16 %v9405
    %v10037 = vunpack.c.h.b16 %v9405
    %v10038 = vunpack.c.l.b16 %v9406
    %v10039 = vunpack.c.h.b16 %v9406
    %v10040 = vunpack.c.l.b16 %v9407
    %v10041 = vunpack.c.h.b16 %v9407
    %v10042 = vunpack.c.l.b16 %v9408
    %v10043 = vunpack.c.h.b16 %v9408
    %v10044 = vunpack.c.l.b16 %v9409
    %v10045 = vunpack.c.h.b16 %v9409
    %v10046 = vunpack.c.l.b16 %v9410
    %v10047 = vunpack.c.h.b16 %v9410
    %v10048 = vunpack.c.l.b16 %v9411
    %v10049 = vunpack.c.h.b16 %v9411
    %v10050 = vunpack.c.l.b16 %v9412
    %v10051 = vunpack.c.h.b16 %v9412
    %v10052 = vunpack.c.l.b16 %v9413
    %v10053 = vunpack.c.h.b16 %v9413
    %v10054 = vunpack.c.l.b16 %v9414
    %v10055 = vunpack.c.h.b16 %v9414
    %v10056 = vunpack.c.l.b16 %v9415
    %v10057 = vunpack.c.h.b16 %v9415
    %v10058 = vunpack.c.l.b16 %v9416
    %v10059 = vunpack.c.h.b16 %v9416
    %v10060 = vunpack.c.l.b16 %v9417
    %v10061 = vunpack.c.h.b16 %v9417
    %v10062 = vunpack.c.l.b16 %v9418
    %v10063 = vunpack.c.h.b16 %v9418
    %v10064 = vunpack.c.l.b16 %v9419
    %v10065 = vunpack.c.h.b16 %v9419
    %v10066 = vunpack.c.l.b16 %v9420
    %v10067 = vunpack.c.h.b16 %v9420
    %v10068 = vunpack.c.l.b16 %v9421
    %v10069 = vunpack.c.h.b16 %v9421
    %v10070 = vunpack.c.l.b16 %v9422
    %v10071 = vunpack.c.h.b16 %v9422
    %v10072 = vunpack.c.l.b16 %v9423
    %v10073 = vunpack.c.h.b16 %v9423
    %v10074 = vunpack.c.l.b16 %v9424
    %v10075 = vunpack.c.h.b16 %v9424
    %v10076 = vunpack.c.l.b16 %v9425
    %v10077 = vunpack.c.h.b16 %v9425
    %v10078 = vunpack.c.l.b16 %v9426
    %v10079 = vunpack.c.h.b16 %v9426
    %v10080 = vunpack.c.l.b16 %v9427
    %v10081 = vunpack.c.h.b16 %v9427
    %v10082 = vunpack.c.l.b16 %v9428
    %v10083 = vunpack.c.h.b16 %v9428
    %v10084 = vunpack.c.l.b16 %v9429
    %v10085 = vunpack.c.h.b16 %v9429
    %v10086 = vunpack.c.l.b16 %v9430
    %v10087 = vunpack.c.h.b16 %v9430
    %v10088 = vunpack.c.l.b16 %v9431
    %v10089 = vunpack.c.h.b16 %v9431
    %v10090 = vunpack.c.l.b16 %v9432
    %v10091 = vunpack.c.h.b16 %v9432
    %v10092 = vunpack.c.l.b16 %v9433
    %v10093 = vunpack.c.h.b16 %v9433
    %v10094 = vunpack.c.l.b16 %v9434
    %v10095 = vunpack.c.h.b16 %v9434
    %v10096 = vunpack.c.l.b16 %v9435
    %v10097 = vunpack.c.h.b16 %v9435
    %v10098 = vunpack.c.l.b16 %v9436
    %v10099 = vunpack.c.h.b16 %v9436
    %v10100 = vunpack.c.l.b16 %v9437
    %v10101 = vunpack.c.h.b16 %v9437
    %v10102 = vunpack.c.l.b16 %v9438
    %v10103 = vunpack.c.h.b16 %v9438
    %v10104 = vunpack.c.l.b16 %v9439
    %v10105 = vunpack.c.h.b16 %v9439
    %v10106 = vunpack.c.l.b16 %v9440
    %v10107 = vunpack.c.h.b16 %v9440
    %v10108 = vunpack.c.l.b16 %v9441
    %v10109 = vunpack.c.h.b16 %v9441
    %v10110 = vunpack.c.l.b16 %v9442
    %v10111 = vunpack.c.h.b16 %v9442
    %v10112 = vunpack.c.l.b16 %v9443
    %v10113 = vunpack.c.h.b16 %v9443
    %v10114 = vunpack.c.l.b16 %v9444
    %v10115 = vunpack.c.h.b16 %v9444
    %v10116 = vunpack.c.l.b16 %v9445
    %v10117 = vunpack.c.h.b16 %v9445
    %v10118 = vunpack.c.l.b16 %v9446
    %v10119 = vunpack.c.h.b16 %v9446
    %v10120 = vunpack.c.l.b16 %v9447
    %v10121 = vunpack.c.h.b16 %v9447
    %v10122 = vunpack.c.l.b16 %v9448
    %v10123 = vunpack.c.h.b16 %v9448
    %v10124 = vunpack.c.l.b16 %v9449
    %v10125 = vunpack.c.h.b16 %v9449
    %v10126 = vunpack.c.l.b16 %v9450
    %v10127 = vunpack.c.h.b16 %v9450
    %v10128 = vunpack.c.l.b16 %v9451
    %v10129 = vunpack.c.h.b16 %v9451
    %v10130 = vunpack.c.l.b16 %v9452
    %v10131 = vunpack.c.h.b16 %v9452
    %v10132 = vunpack.c.l.b16 %v9453
    %v10133 = vunpack.c.h.b16 %v9453
    %v10134 = vunpack.c.l.b16 %v9454
    %v10135 = vunpack.c.h.b16 %v9454
    %v10136 = vunpack.c.l.b16 %v9455
    %v10137 = vunpack.c.h.b16 %v9455
    %v10138 = vunpack.c.l.b16 %v9456
    %v10139 = vunpack.c.h.b16 %v9456
    %v10140 = vunpack.c.l.b16 %v9457
    %v10141 = vunpack.c.h.b16 %v9457
    %v10142 = vunpack.c.l.b16 %v9458
    %v10143 = vunpack.c.h.b16 %v9458
    %v10144 = vunpack.c.l.b16 %v9459
    %v10145 = vunpack.c.h.b16 %v9459
    %v10146 = vunpack.c.l.b16 %v9460
    %v10147 = vunpack.c.h.b16 %v9460
    %v10148 = vunpack.c.l.b16 %v9461
    %v10149 = vunpack.c.h.b16 %v9461
    %v10150 = vunpack.c.l.b16 %v9462
    %v10151 = vunpack.c.h.b16 %v9462
    %v10152 = vunpack.c.l.b16 %v9463
    %v10153 = vunpack.c.h.b16 %v9463
    %v10154 = vunpack.c.l.b16 %v9464
    %v10155 = vunpack.c.h.b16 %v9464
    %v10156 = vunpack.c.l.b16 %v9465
    %v10157 = vunpack.c.h.b16 %v9465
    %v10158 = vunpack.c.l.b16 %v9466
    %v10159 = vunpack.c.h.b16 %v9466
    %v10160 = vunpack.c.l.b16 %v9467
    %v10161 = vunpack.c.h.b16 %v9467
    %v10162 = vunpack.c.l.b16 %v9468
    %v10163 = vunpack.c.h.b16 %v9468
    %v10164 = vunpack.c.l.b16 %v9469
    %v10165 = vunpack.c.h.b16 %v9469
    %v10166 = vunpack.c.l.b16 %v9470
    %v10167 = vunpack.c.h.b16 %v9470
    %v10168 = vunpack.c.l.b16 %v9471
    %v10169 = vunpack.c.h.b16 %v9471
    %v10170 = vunpack.c.l.b16 %v9472
    %v10171 = vunpack.c.h.b16 %v9472
    %v10172 = vunpack.c.l.b16 %v9473
    %v10173 = vunpack.c.h.b16 %v9473
    %v10174 = vunpack.c.l.b16 %v9474
    %v10175 = vunpack.c.h.b16 %v9474
    %v10176 = vunpack.c.l.b16 %v9475
    %v10177 = vunpack.c.h.b16 %v9475
    %v10178 = vunpack.c.l.b16 %v9476
    %v10179 = vunpack.c.h.b16 %v9476
    %v10180 = vunpack.c.l.b16 %v9477
    %v10181 = vunpack.c.h.b16 %v9477
    %v10182 = vunpack.c.l.b16 %v9478
    %v10183 = vunpack.c.h.b16 %v9478
    %v10184 = vunpack.c.l.b16 %v9479
    %v10185 = vunpack.c.h.b16 %v9479
    %v10186 = vunpack.c.l.b16 %v9480
    %v10187 = vunpack.c.h.b16 %v9480
    %v10188 = vunpack.c.l.b16 %v9481
    %v10189 = vunpack.c.h.b16 %v9481
    %v10190 = vunpack.c.l.b16 %v9482
    %v10191 = vunpack.c.h.b16 %v9482
    %v10192 = vunpack.c.l.b16 %v9483
    %v10193 = vunpack.c.h.b16 %v9483
    %v10194 = vunpack.c.l.b16 %v9484
    %v10195 = vunpack.c.h.b16 %v9484
    %v10196 = vunpack.c.l.b16 %v9485
    %v10197 = vunpack.c.h.b16 %v9485
    %v10198 = vunpack.c.l.b16 %v9486
    %v10199 = vunpack.c.h.b16 %v9486
    %v10200 = vunpack.c.l.b16 %v9487
    %v10201 = vunpack.c.h.b16 %v9487
    %v10202 = vunpack.c.l.b16 %v9488
    %v10203 = vunpack.c.h.b16 %v9488
    %v10204 = vunpack.c.l.b16 %v9489
    %v10205 = vunpack.c.h.b16 %v9489
    %v10206 = vunpack.c.l.b16 %v9490
    %v10207 = vunpack.c.h.b16 %v9490
    %v10208 = vunpack.c.l.b16 %v9491
    %v10209 = vunpack.c.h.b16 %v9491
    %v10210 = vunpack.c.l.b16 %v9492
    %v10211 = vunpack.c.h.b16 %v9492
    %v10212 = vunpack.c.l.b16 %v9493
    %v10213 = vunpack.c.h.b16 %v9493
    %v10214 = vunpack.c.l.b16 %v9494
    %v10215 = vunpack.c.h.b16 %v9494
    %v10216 = vunpack.c.l.b16 %v9495
    %v10217 = vunpack.c.h.b16 %v9495
    %v10218 = vunpack.c.l.b16 %v9496
    %v10219 = vunpack.c.h.b16 %v9496
    %v10220 = vunpack.c.l.b16 %v9497
    %v10221 = vunpack.c.h.b16 %v9497
    %v10222 = vunpack.c.l.b16 %v9498
    %v10223 = vunpack.c.h.b16 %v9498
    %v10224 = vunpack.c.l.b16 %v9499
    %v10225 = vunpack.c.h.b16 %v9499
    %v10226 = vunpack.c.l.b16 %v9500
    %v10227 = vunpack.c.h.b16 %v9500
    %v10228 = vunpack.c.l.b16 %v9501
    %v10229 = vunpack.c.h.b16 %v9501
    %v10230 = vunpack.c.l.b16 %v9502
    %v10231 = vunpack.c.h.b16 %v9502
    %v10232 = vunpack.c.l.b16 %v9503
    %v10233 = vunpack.c.h.b16 %v9503
    %v10234 = vunpack.c.l.b16 %v9504
    %v10235 = vunpack.c.h.b16 %v9504
    %v10236 = vunpack.c.l.b16 %v9505
    %v10237 = vunpack.c.h.b16 %v9505
    %v10238 = vunpack.c.l.b16 %v9506
    %v10239 = vunpack.c.h.b16 %v9506
    %v10240 = vunpack.c.l.b16 %v9507
    %v10241 = vunpack.c.h.b16 %v9507
    %v10242 = vunpack.c.l.b16 %v9508
    %v10243 = vunpack.c.h.b16 %v9508
    %v10244 = vunpack.c.l.b16 %v9509
    %v10245 = vunpack.c.h.b16 %v9509
    %v10246 = vunpack.c.l.b16 %v9510
    %v10247 = vunpack.c.h.b16 %v9510
    %v10248 = vunpack.c.l.b16 %v9511
    %v10249 = vunpack.c.h.b16 %v9511
    %v10250 = vunpack.c.l.b16 %v9512
    %v10251 = vunpack.c.h.b16 %v9512
    %v10252 = vunpack.c.l.b16 %v9513
    %v10253 = vunpack.c.h.b16 %v9513
    %v10254 = vunpack.c.l.b16 %v9514
    %v10255 = vunpack.c.h.b16 %v9514
    %v10256 = vunpack.c.l.b16 %v9515
    %v10257 = vunpack.c.h.b16 %v9515
    %v10258 = vunpack.c.l.b16 %v9516
    %v10259 = vunpack.c.h.b16 %v9516
    %v10260 = vunpack.c.l.b16 %v9517
    %v10261 = vunpack.c.h.b16 %v9517
    %v10262 = vpack.c.b16 %v9820, %v9794
    %v10263 = vpack.c.b16 %v9821, %v9795
    %v10264 = vpack.c.b16 %v9822, %v9796
    %v10265 = vpack.c.b16 %v9823, %v9797
    %v10266 = vpack.c.b16 %v9824, %v9798
    %v10267 = vpack.c.b16 %v9825, %v9799
    %v10268 = vpack.c.b16 %v9826, %v9800
    %v10269 = vpack.c.b16 %v9827, %v9801
    %v10270 = vpack.c.b16 %v9828, %v9802
    %v10271 = vpack.c.b16 %v9829, %v9803
    %v10272 = vpack.c.b16 %v9830, %v9804
    %v10273 = vpack.c.b16 %v9831, %v9805
    %v10274 = vpack.c.b16 %v9832, %v9806
    %v10275 = vpack.c.b16 %v9833, %v9807
    %v10276 = vpack.c.b16 %v9834, %v9808
    %v10277 = vpack.c.b16 %v9835, %v9809
    %v10278 = vpack.c.b16 %v9836, %v9810
    %v10279 = vpack.c.b16 %v9837, %v9811
    %v10280 = vpack.c.b16 %v9838, %v9812
    %v10281 = vpack.c.b16 %v9839, %v9813
    %v10282 = vpack.c.b16 %v9840, %v9814
    %v10283 = vpack.c.b16 %v9841, %v9815
    %v10284 = vpack.c.b16 %v9842, %v9816
    %v10285 = vpack.c.b16 %v9843, %v9817
    %v10286 = vpack.c.b16 %v9844, %v9818
    %v10287 = vpack.c.b16 %v9845, %v9819
    %v10288 = vpack.c.b16 %v9872, %v9846
    %v10289 = vpack.c.b16 %v9873, %v9847
    %v10290 = vpack.c.b16 %v9874, %v9848
    %v10291 = vpack.c.b16 %v9875, %v9849
    %v10292 = vpack.c.b16 %v9876, %v9850
    %v10293 = vpack.c.b16 %v9877, %v9851
    %v10294 = vpack.c.b16 %v9878, %v9852
    %v10295 = vpack.c.b16 %v9879, %v9853
    %v10296 = vpack.c.b16 %v9880, %v9854
    %v10297 = vpack.c.b16 %v9881, %v9855
    %v10298 = vpack.c.b16 %v9882, %v9856
    %v10299 = vpack.c.b16 %v9883, %v9857
    %v10300 = vpack.c.b16 %v9884, %v9858
    %v10301 = vpack.c.b16 %v9885, %v9859
    %v10302 = vpack.c.b16 %v9886, %v9860
    %v10303 = vpack.c.b16 %v9887, %v9861
    %v10304 = vpack.c.b16 %v9888, %v9862
    %v10305 = vpack.c.b16 %v9889, %v9863
    %v10306 = vpack.c.b16 %v9890, %v9864
    %v10307 = vpack.c.b16 %v9891, %v9865
    %v10308 = vpack.c.b16 %v9892, %v9866
    %v10309 = vpack.c.b16 %v9893, %v9867
    %v10310 = vpack.c.b16 %v9894, %v9868
    %v10311 = vpack.c.b16 %v9895, %v9869
    %v10312 = vpack.c.b16 %v9896, %v9870
    %v10313 = vpack.c.b16 %v9897, %v9871
    %v10314 = vpack.c.b16 %v9924, %v9898
    %v10315 = vpack.c.b16 %v9925, %v9899
    %v10316 = vpack.c.b16 %v9926, %v9900
    %v10317 = vpack.c.b16 %v9927, %v9901
    %v10318 = vpack.c.b16 %v9928, %v9902
    %v10319 = vpack.c.b16 %v9929, %v9903
    %v10320 = vpack.c.b16 %v9930, %v9904
    %v10321 = vpack.c.b16 %v9931, %v9905
    %v10322 = vpack.c.b16 %v9932, %v9906
    %v10323 = vpack.c.b16 %v9933, %v9907
    %v10324 = vpack.c.b16 %v9934, %v9908
    %v10325 = vpack.c.b16 %v9935, %v9909
    %v10326 = vpack.c.b16 %v9936, %v9910
    %v10327 = vpack.c.b16 %v9937, %v9911
    %v10328 = vpack.c.b16 %v9938, %v9912
    %v10329 = vpack.c.b16 %v9939, %v9913
    %v10330 = vpack.c.b16 %v9940, %v9914
    %v10331 = vpack.c.b16 %v9941, %v9915
    %v10332 = vpack.c.b16 %v9942, %v9916
    %v10333 = vpack.c.b16 %v9943, %v9917
    %v10334 = vpack.c.b16 %v9944, %v9918
    %v10335 = vpack.c.b16 %v9945, %v9919
    %v10336 = vpack.c.b16 %v9946, %v9920
    %v10337 = vpack.c.b16 %v9947, %v9921
    %v10338 = vpack.c.b16 %v9948, %v9922
    %v10339 = vpack.c.b16 %v9949, %v9923
    %v10340 = vpack.c.b16 %v9976, %v9950
    %v10341 = vpack.c.b16 %v9977, %v9951
    %v10342 = vpack.c.b16 %v9978, %v9952
    %v10343 = vpack.c.b16 %v9979, %v9953
    %v10344 = vpack.c.b16 %v9980, %v9954
    %v10345 = vpack.c.b16 %v9981, %v9955
    %v10346 = vpack.c.b16 %v9982, %v9956
    %v10347 = vpack.c.b16 %v9983, %v9957
    %v10348 = vpack.c.b16 %v9984, %v9958
    %v10349 = vpack.c.b16 %v9985, %v9959
    %v10350 = vpack.c.b16 %v9986, %v9960
    %v10351 = vpack.c.b16 %v9987, %v9961
    %v10352 = vpack.c.b16 %v9988, %v9962
    %v10353 = vpack.c.b16 %v9989, %v9963
    %v10354 = vpack.c.b16 %v9990, %v9964
    %v10355 = vpack.c.b16 %v9991, %v9965
    %v10356 = vpack.c.b16 %v9992, %v9966
    %v10357 = vpack.c.b16 %v9993, %v9967
    %v10358 = vpack.c.b16 %v9994, %v9968
    %v10359 = vpack.c.b16 %v9995, %v9969
    %v10360 = vpack.c.b16 %v9996, %v9970
    %v10361 = vpack.c.b16 %v9997, %v9971
    %v10362 = vpack.c.b16 %v9998, %v9972
    %v10363 = vpack.c.b16 %v9999, %v9973
    %v10364 = vpack.c.b16 %v10000, %v9974
    %v10365 = vpack.c.b16 %v10001, %v9975
    %v10366 = vpack.c.b16 %v10028, %v10002
    %v10367 = vpack.c.b16 %v10029, %v10003
    %v10368 = vpack.c.b16 %v10030, %v10004
    %v10369 = vpack.c.b16 %v10031, %v10005
    %v10370 = vpack.c.b16 %v10032, %v10006
    %v10371 = vpack.c.b16 %v10033, %v10007
    %v10372 = vpack.c.b16 %v10034, %v10008
    %v10373 = vpack.c.b16 %v10035, %v10009
    %v10374 = vpack.c.b16 %v10036, %v10010
    %v10375 = vpack.c.b16 %v10037, %v10011
    %v10376 = vpack.c.b16 %v10038, %v10012
    %v10377 = vpack.c.b16 %v10039, %v10013
    %v10378 = vpack.c.b16 %v10040, %v10014
    %v10379 = vpack.c.b16 %v10041, %v10015
    %v10380 = vpack.c.b16 %v10042, %v10016
    %v10381 = vpack.c.b16 %v10043, %v10017
    %v10382 = vpack.c.b16 %v10044, %v10018
    %v10383 = vpack.c.b16 %v10045, %v10019
    %v10384 = vpack.c.b16 %v10046, %v10020
    %v10385 = vpack.c.b16 %v10047, %v10021
    %v10386 = vpack.c.b16 %v10048, %v10022
    %v10387 = vpack.c.b16 %v10049, %v10023
    %v10388 = vpack.c.b16 %v10050, %v10024
    %v10389 = vpack.c.b16 %v10051, %v10025
    %v10390 = vpack.c.b16 %v10052, %v10026
    %v10391 = vpack.c.b16 %v10053, %v10027
    %v10392 = vpack.c.b16 %v10080, %v10054
    %v10393 = vpack.c.b16 %v10081, %v10055
    %v10394 = vpack.c.b16 %v10082, %v10056
    %v10395 = vpack.c.b16 %v10083, %v10057
    %v10396 = vpack.c.b16 %v10084, %v10058
    %v10397 = vpack.c.b16 %v10085, %v10059
    %v10398 = vpack.c.b16 %v10086, %v10060
    %v10399 = vpack.c.b16 %v10087, %v10061
    %v10400 = vpack.c.b16 %v10088, %v10062
    %v10401 = vpack.c.b16 %v10089, %v10063
    %v10402 = vpack.c.b16 %v10090, %v10064
    %v10403 = vpack.c.b16 %v10091, %v10065
    %v10404 = vpack.c.b16 %v10092, %v10066
    %v10405 = vpack.c.b16 %v10093, %v10067
    %v10406 = vpack.c.b16 %v10094, %v10068
    %v10407 = vpack.c.b16 %v10095, %v10069
    %v10408 = vpack.c.b16 %v10096, %v10070
    %v10409 = vpack.c.b16 %v10097, %v10071
    %v10410 = vpack.c.b16 %v10098, %v10072
    %v10411 = vpack.c.b16 %v10099, %v10073
    %v10412 = vpack.c.b16 %v10100, %v10074
    %v10413 = vpack.c.b16 %v10101, %v10075
    %v10414 = vpack.c.b16 %v10102, %v10076
    %v10415 = vpack.c.b16 %v10103, %v10077
    %v10416 = vpack.c.b16 %v10104, %v10078
    %v10417 = vpack.c.b16 %v10105, %v10079
    %v10418 = vpack.c.b16 %v10132, %v10106
    %v10419 = vpack.c.b16 %v10133, %v10107
    %v10420 = vpack.c.b16 %v10134, %v10108
    %v10421 = vpack.c.b16 %v10135, %v10109
    %v10422 = vpack.c.b16 %v10136, %v10110
    %v10423 = vpack.c.b16 %v10137, %v10111
    %v10424 = vpack.c.b16 %v10138, %v10112
    %v10425 = vpack.c.b16 %v10139, %v10113
    %v10426 = vpack.c.b16 %v10140, %v10114
    %v10427 = vpack.c.b16 %v10141, %v10115
    %v10428 = vpack.c.b16 %v10142, %v10116
    %v10429 = vpack.c.b16 %v10143, %v10117
    %v10430 = vpack.c.b16 %v10144, %v10118
    %v10431 = vpack.c.b16 %v10145, %v10119
    %v10432 = vpack.c.b16 %v10146, %v10120
    %v10433 = vpack.c.b16 %v10147, %v10121
    %v10434 = vpack.c.b16 %v10148, %v10122
    %v10435 = vpack.c.b16 %v10149, %v10123
    %v10436 = vpack.c.b16 %v10150, %v10124
    %v10437 = vpack.c.b16 %v10151, %v10125
    %v10438 = vpack.c.b16 %v10152, %v10126
    %v10439 = vpack.c.b16 %v10153, %v10127
    %v10440 = vpack.c.b16 %v10154, %v10128
    %v10441 = vpack.c.b16 %v10155, %v10129
    %v10442 = vpack.c.b16 %v10156, %v10130
    %v10443 = vpack.c.b16 %v10157, %v10131
    %v10444 = vpack.c.b16 %v10184, %v10158
    %v10445 = vpack.c.b16 %v10185, %v10159
    %v10446 = vpack.c.b16 %v10186, %v10160
    %v10447 = vpack.c.b16 %v10187, %v10161
    %v10448 = vpack.c.b16 %v10188, %v10162
    %v10449 = vpack.c.b16 %v10189, %v10163
    %v10450 = vpack.c.b16 %v10190, %v10164
    %v10451 = vpack.c.b16 %v10191, %v10165
    %v10452 = vpack.c.b16 %v10192, %v10166
    %v10453 = vpack.c.b16 %v10193, %v10167
    %v10454 = vpack.c.b16 %v10194, %v10168
    %v10455 = vpack.c.b16 %v10195, %v10169
    %v10456 = vpack.c.b16 %v10196, %v10170
    %v10457 = vpack.c.b16 %v10197, %v10171
    %v10458 = vpack.c.b16 %v10198, %v10172
    %v10459 = vpack.c.b16 %v10199, %v10173
    %v10460 = vpack.c.b16 %v10200, %v10174
    %v10461 = vpack.c.b16 %v10201, %v10175
    %v10462 = vpack.c.b16 %v10202, %v10176
    %v10463 = vpack.c.b16 %v10203, %v10177
    %v10464 = vpack.c.b16 %v10204, %v10178
    %v10465 = vpack.c.b16 %v10205, %v10179
    %v10466 = vpack.c.b16 %v10206, %v10180
    %v10467 = vpack.c.b16 %v10207, %v10181
    %v10468 = vpack.c.b16 %v10208, %v10182
    %v10469 = vpack.c.b16 %v10209, %v10183
    %v10470 = vpack.c.b16 %v10236, %v10210
    %v10471 = vpack.c.b16 %v10237, %v10211
    %v10472 = vpack.c.b16 %v10238, %v10212
    %v10473 = vpack.c.b16 %v10239, %v10213
    %v10474 = vpack.c.b16 %v10240, %v10214
    %v10475 = vpack.c.b16 %v10241, %v10215
    %v10476 = vpack.c.b16 %v10242, %v10216
    %v10477 = vpack.c.b16 %v10243, %v10217
    %v10478 = vpack.c.b16 %v10244, %v10218
    %v10479 = vpack.c.b16 %v10245, %v10219
    %v10480 = vpack.c.b16 %v10246, %v10220
    %v10481 = vpack.c.b16 %v10247, %v10221
    %v10482 = vpack.c.b16 %v10248, %v10222
    %v10483 = vpack.c.b16 %v10249, %v10223
    %v10484 = vpack.c.b16 %v10250, %v10224
    %v10485 = vpack.c.b16 %v10251, %v10225
    %v10486 = vpack.c.b16 %v10252, %v10226
    %v10487 = vpack.c.b16 %v10253, %v10227
    %v10488 = vpack.c.b16 %v10254, %v10228
    %v10489 = vpack.c.b16 %v10255, %v10229
    %v10490 = vpack.c.b16 %v10256, %v10230
    %v10491 = vpack.c.b16 %v10257, %v10231
    %v10492 = vpack.c.b16 %v10258, %v10232
    %v10493 = vpack.c.b16 %v10259, %v10233
    %v10494 = vpack.c.b16 %v10260, %v10234
    %v10495 = vpack.c.b16 %v10261, %v10235
    %v10731 = vsel %vm4211, %v9555, 0
    %v10734 = vsel %vm4211, %v9557, 0
    %10736 = vmatprep.subr.bf16.mxu0 %v10445
    %10737 = vmatpush1.bf16.msra.mxu0 %v10444
    %10738 = vmatprep.subr.bf16.mxu0 %v10419
    %10739 = vmatpush1.bf16.msra.mxu0 %v10418
    %10740 = vmatprep.subr.bf16.mxu0 %v10393
    %10741 = vmatpush1.bf16.msra.mxu0 %v10392
    %10742 = vmatprep.subr.bf16.mxu0 %v10367
    %10743 = vmatpush1.bf16.msra.mxu0 %v10366
    %10744 = vmatprep.subr.bf16.mxu0 %v10341
    %10745 = vmatpush1.bf16.msra.mxu0 %v10340
    %10746 = vmatprep.subr.bf16.mxu0 %v10315
    %10747 = vmatpush1.bf16.msra.mxu0 %v10314
    %10748 = vmatprep.subr.bf16.mxu0 %v10289
    %10749 = vmatpush1.bf16.msra.mxu0 %v10288
    %10750 = vmatprep.subr.bf16.mxu0 %v10263
    %10751 = vmatpush1.bf16.msra.mxu0 %v10262
    %10752 = vmatprep.subr.bf16.mxu0 0
    %10753 = vmatpush2.bf16.msra.mxu0 0
    %10754 = vmatprep.subr.bf16.mxu0 0
    %10755 = vmatpush2.bf16.msra.mxu0 0
    %10756 = vmatprep.subr.bf16.mxu0 0
    %10757 = vmatpush2.bf16.msra.mxu0 0
    %10758 = vmatprep.subr.bf16.mxu0 0
    %10759 = vmatpush2.bf16.msra.mxu0 0
    %10760 = vmatprep.subr.bf16.mxu0 0
    %10761 = vmatpush2.bf16.msra.mxu0 0
    %10762 = vmatprep.subr.bf16.mxu0 0
    %10763 = vmatpush2.bf16.msra.mxu0 0
    %10764 = vmatprep.subr.bf16.mxu0 0
    %10765 = vmatpush2.bf16.msra.mxu0 0
    %10766 = vmatprep.subr.bf16.mxu0 %v10471
    %10767 = vmatpush2.bf16.msra.mxu0 %v10470
    %10768 = vmatprep.mubr.bf16.mxu0 %v10731
    %10769 = vmatmul.mubr.bf16.gmra.mxu0 %v9554
    %v10770 = vpop.f32.mrf.mxu0
    %v10771 = vadd.f32 %v9525, %v10770
    %v10772 = vpop.f32.mrf.mxu0
    %v10773 = vadd.f32 %v9525, %v10772
    %v10774 = vpop.f32.mrf.mxu0
    %v10775 = vadd.f32 %v9530, %v10774
    %v10776 = vpop.f32.mrf.mxu0
    %v10777 = vadd.f32 %v9530, %v10776
    %10778 = vmatprep.mubr.bf16.mxu0 %v10734
    %10779 = vmatmul.mubr.bf16.gmra.mxu0 %v9556
    %v10780 = vpop.f32.mrf.mxu0
    %v10781 = vadd.f32 %v9535, %v10780
    %v10782 = vpop.f32.mrf.mxu0
    %v10783 = vadd.f32 %v9535, %v10782
    %v10784 = vpop.f32.mrf.mxu0
    %v10785 = vadd.f32 %v9540, %v10784
    %v10786 = vpop.f32.mrf.mxu0
    %v10787 = vadd.f32 %v9540, %v10786
    %10788 = vdwg.mxu0
    %10789 = vmatprep.subr.bf16.mxu0 %v10447
    %10790 = vmatpush1.bf16.msra.mxu0 %v10446
    %10791 = vmatprep.subr.bf16.mxu0 %v10421
    %10792 = vmatpush1.bf16.msra.mxu0 %v10420
    %10793 = vmatprep.subr.bf16.mxu0 %v10395
    %10794 = vmatpush1.bf16.msra.mxu0 %v10394
    %10795 = vmatprep.subr.bf16.mxu0 %v10369
    %10796 = vmatpush1.bf16.msra.mxu0 %v10368
    %10797 = vmatprep.subr.bf16.mxu0 %v10343
    %10798 = vmatpush1.bf16.msra.mxu0 %v10342
    %10799 = vmatprep.subr.bf16.mxu0 %v10317
    %10800 = vmatpush1.bf16.msra.mxu0 %v10316
    %10801 = vmatprep.subr.bf16.mxu0 %v10291
    %10802 = vmatpush1.bf16.msra.mxu0 %v10290
    %10803 = vmatprep.subr.bf16.mxu0 %v10265
    %10804 = vmatpush1.bf16.msra.mxu0 %v10264
    %10805 = vmatprep.subr.bf16.mxu0 0
    %10806 = vmatpush2.bf16.msra.mxu0 0
    %10807 = vmatprep.subr.bf16.mxu0 0
    %10808 = vmatpush2.bf16.msra.mxu0 0
    %10809 = vmatprep.subr.bf16.mxu0 0
    %10810 = vmatpush2.bf16.msra.mxu0 0
    %10811 = vmatprep.subr.bf16.mxu0 0
    %10812 = vmatpush2.bf16.msra.mxu0 0
    %10813 = vmatprep.subr.bf16.mxu0 0
    %10814 = vmatpush2.bf16.msra.mxu0 0
    %10815 = vmatprep.subr.bf16.mxu0 0
    %10816 = vmatpush2.bf16.msra.mxu0 0
    %10817 = vmatprep.subr.bf16.mxu0 0
    %10818 = vmatpush2.bf16.msra.mxu0 0
    %10819 = vmatprep.subr.bf16.mxu0 %v10473
    %10820 = vmatpush2.bf16.msra.mxu0 %v10472
    %10821 = vmatprep.mubr.bf16.mxu0 %v10731
    %10822 = vmatmul.mubr.bf16.gmra.mxu0 %v9554
    %v10823 = vpop.f32.mrf.mxu0
    %v10824 = vadd.f32 %v9525, %v10823
    %v10825 = vpop.f32.mrf.mxu0
    %v10826 = vadd.f32 %v9525, %v10825
    %v10827 = vpop.f32.mrf.mxu0
    %v10828 = vadd.f32 %v9530, %v10827
    %v10829 = vpop.f32.mrf.mxu0
    %v10830 = vadd.f32 %v9530, %v10829
    %10831 = vmatprep.mubr.bf16.mxu0 %v10734
    %10832 = vmatmul.mubr.bf16.gmra.mxu0 %v9556
    %v10833 = vpop.f32.mrf.mxu0
    %v10834 = vadd.f32 %v9535, %v10833
    %v10835 = vpop.f32.mrf.mxu0
    %v10836 = vadd.f32 %v9535, %v10835
    %v10837 = vpop.f32.mrf.mxu0
    %v10838 = vadd.f32 %v9540, %v10837
    %v10839 = vpop.f32.mrf.mxu0
    %v10840 = vadd.f32 %v9540, %v10839
    %10841 = vdwg.mxu0
    %10842 = vmatprep.subr.bf16.mxu0 %v10449
    %10843 = vmatpush1.bf16.msra.mxu0 %v10448
    %10844 = vmatprep.subr.bf16.mxu0 %v10423
    %10845 = vmatpush1.bf16.msra.mxu0 %v10422
    %10846 = vmatprep.subr.bf16.mxu0 %v10397
    %10847 = vmatpush1.bf16.msra.mxu0 %v10396
    %10848 = vmatprep.subr.bf16.mxu0 %v10371
    %10849 = vmatpush1.bf16.msra.mxu0 %v10370
    %10850 = vmatprep.subr.bf16.mxu0 %v10345
    %10851 = vmatpush1.bf16.msra.mxu0 %v10344
    %10852 = vmatprep.subr.bf16.mxu0 %v10319
    %10853 = vmatpush1.bf16.msra.mxu0 %v10318
    %10854 = vmatprep.subr.bf16.mxu0 %v10293
    %10855 = vmatpush1.bf16.msra.mxu0 %v10292
    %10856 = vmatprep.subr.bf16.mxu0 %v10267
    %10857 = vmatpush1.bf16.msra.mxu0 %v10266
    %10858 = vmatprep.subr.bf16.mxu0 0
    %10859 = vmatpush2.bf16.msra.mxu0 0
    %10860 = vmatprep.subr.bf16.mxu0 0
    %10861 = vmatpush2.bf16.msra.mxu0 0
    %10862 = vmatprep.subr.bf16.mxu0 0
    %10863 = vmatpush2.bf16.msra.mxu0 0
    %10864 = vmatprep.subr.bf16.mxu0 0
    %10865 = vmatpush2.bf16.msra.mxu0 0
    %10866 = vmatprep.subr.bf16.mxu0 0
    %10867 = vmatpush2.bf16.msra.mxu0 0
    %10868 = vmatprep.subr.bf16.mxu0 0
    %10869 = vmatpush2.bf16.msra.mxu0 0
    %10870 = vmatprep.subr.bf16.mxu0 0
    %10871 = vmatpush2.bf16.msra.mxu0 0
    %10872 = vmatprep.subr.bf16.mxu0 %v10475
    %10873 = vmatpush2.bf16.msra.mxu0 %v10474
    %10874 = vmatprep.mubr.bf16.mxu0 %v10731
    %10875 = vmatmul.mubr.bf16.gmra.mxu0 %v9554
    %v10876 = vpop.f32.mrf.mxu0
    %v10877 = vadd.f32 %v9525, %v10876
    %v10878 = vpop.f32.mrf.mxu0
    %v10879 = vadd.f32 %v9525, %v10878
    %v10880 = vpop.f32.mrf.mxu0
    %v10881 = vadd.f32 %v9530, %v10880
    %v10882 = vpop.f32.mrf.mxu0
    %v10883 = vadd.f32 %v9530, %v10882
    %10884 = vmatprep.mubr.bf16.mxu0 %v10734
    %10885 = vmatmul.mubr.bf16.gmra.mxu0 %v9556
    %v10886 = vpop.f32.mrf.mxu0
    %v10887 = vadd.f32 %v9535, %v10886
    %v10888 = vpop.f32.mrf.mxu0
    %v10889 = vadd.f32 %v9535, %v10888
    %v10890 = vpop.f32.mrf.mxu0
    %v10891 = vadd.f32 %v9540, %v10890
    %v10892 = vpop.f32.mrf.mxu0
    %v10893 = vadd.f32 %v9540, %v10892
    %10894 = vdwg.mxu0
    %10895 = vmatprep.subr.bf16.mxu0 %v10451
    %10896 = vmatpush1.bf16.msra.mxu0 %v10450
    %10897 = vmatprep.subr.bf16.mxu0 %v10425
    %10898 = vmatpush1.bf16.msra.mxu0 %v10424
    %10899 = vmatprep.subr.bf16.mxu0 %v10399
    %10900 = vmatpush1.bf16.msra.mxu0 %v10398
    %10901 = vmatprep.subr.bf16.mxu0 %v10373
    %10902 = vmatpush1.bf16.msra.mxu0 %v10372
    %10903 = vmatprep.subr.bf16.mxu0 %v10347
    %10904 = vmatpush1.bf16.msra.mxu0 %v10346
    %10905 = vmatprep.subr.bf16.mxu0 %v10321
    %10906 = vmatpush1.bf16.msra.mxu0 %v10320
    %10907 = vmatprep.subr.bf16.mxu0 %v10295
    %10908 = vmatpush1.bf16.msra.mxu0 %v10294
    %10909 = vmatprep.subr.bf16.mxu0 %v10269
    %10910 = vmatpush1.bf16.msra.mxu0 %v10268
    %10911 = vmatprep.subr.bf16.mxu0 0
    %10912 = vmatpush2.bf16.msra.mxu0 0
    %10913 = vmatprep.subr.bf16.mxu0 0
    %10914 = vmatpush2.bf16.msra.mxu0 0
    %10915 = vmatprep.subr.bf16.mxu0 0
    %10916 = vmatpush2.bf16.msra.mxu0 0
    %10917 = vmatprep.subr.bf16.mxu0 0
    %10918 = vmatpush2.bf16.msra.mxu0 0
    %10919 = vmatprep.subr.bf16.mxu0 0
    %10920 = vmatpush2.bf16.msra.mxu0 0
    %10921 = vmatprep.subr.bf16.mxu0 0
    %10922 = vmatpush2.bf16.msra.mxu0 0
    %10923 = vmatprep.subr.bf16.mxu0 0
    %10924 = vmatpush2.bf16.msra.mxu0 0
    %10925 = vmatprep.subr.bf16.mxu0 %v10477
    %10926 = vmatpush2.bf16.msra.mxu0 %v10476
    %10927 = vmatprep.mubr.bf16.mxu0 %v10731
    %10928 = vmatmul.mubr.bf16.gmra.mxu0 %v9554
    %v10929 = vpop.f32.mrf.mxu0
    %v10930 = vadd.f32 %v9525, %v10929
    %v10931 = vpop.f32.mrf.mxu0
    %v10932 = vadd.f32 %v9525, %v10931
    %v10933 = vpop.f32.mrf.mxu0
    %v10934 = vadd.f32 %v9530, %v10933
    %v10935 = vpop.f32.mrf.mxu0
    %v10936 = vadd.f32 %v9530, %v10935
    %10937 = vmatprep.mubr.bf16.mxu0 %v10734
    %10938 = vmatmul.mubr.bf16.gmra.mxu0 %v9556
    %v10939 = vpop.f32.mrf.mxu0
    %v10940 = vadd.f32 %v9535, %v10939
    %v10941 = vpop.f32.mrf.mxu0
    %v10942 = vadd.f32 %v9535, %v10941
    %v10943 = vpop.f32.mrf.mxu0
    %v10944 = vadd.f32 %v9540, %v10943
    %v10945 = vpop.f32.mrf.mxu0
    %v10946 = vadd.f32 %v9540, %v10945
    %10947 = vdwg.mxu0
    %10948 = vmatprep.subr.bf16.mxu0 %v10453
    %10949 = vmatpush1.bf16.msra.mxu0 %v10452
    %10950 = vmatprep.subr.bf16.mxu0 %v10427
    %10951 = vmatpush1.bf16.msra.mxu0 %v10426
    %10952 = vmatprep.subr.bf16.mxu0 %v10401
    %10953 = vmatpush1.bf16.msra.mxu0 %v10400
    %10954 = vmatprep.subr.bf16.mxu0 %v10375
    %10955 = vmatpush1.bf16.msra.mxu0 %v10374
    %10956 = vmatprep.subr.bf16.mxu0 %v10349
    %10957 = vmatpush1.bf16.msra.mxu0 %v10348
    %10958 = vmatprep.subr.bf16.mxu0 %v10323
    %10959 = vmatpush1.bf16.msra.mxu0 %v10322
    %10960 = vmatprep.subr.bf16.mxu0 %v10297
    %10961 = vmatpush1.bf16.msra.mxu0 %v10296
    %10962 = vmatprep.subr.bf16.mxu0 %v10271
    %10963 = vmatpush1.bf16.msra.mxu0 %v10270
    %10964 = vmatprep.subr.bf16.mxu0 0
    %10965 = vmatpush2.bf16.msra.mxu0 0
    %10966 = vmatprep.subr.bf16.mxu0 0
    %10967 = vmatpush2.bf16.msra.mxu0 0
    %10968 = vmatprep.subr.bf16.mxu0 0
    %10969 = vmatpush2.bf16.msra.mxu0 0
    %10970 = vmatprep.subr.bf16.mxu0 0
    %10971 = vmatpush2.bf16.msra.mxu0 0
    %10972 = vmatprep.subr.bf16.mxu0 0
    %10973 = vmatpush2.bf16.msra.mxu0 0
    %10974 = vmatprep.subr.bf16.mxu0 0
    %10975 = vmatpush2.bf16.msra.mxu0 0
    %10976 = vmatprep.subr.bf16.mxu0 0
    %10977 = vmatpush2.bf16.msra.mxu0 0
    %10978 = vmatprep.subr.bf16.mxu0 %v10479
    %10979 = vmatpush2.bf16.msra.mxu0 %v10478
    %10980 = vmatprep.mubr.bf16.mxu0 %v10731
    %10981 = vmatmul.mubr.bf16.gmra.mxu0 %v9554
    %v10982 = vpop.f32.mrf.mxu0
    %v10983 = vadd.f32 %v9525, %v10982
    %v10984 = vpop.f32.mrf.mxu0
    %v10985 = vadd.f32 %v9525, %v10984
    %v10986 = vpop.f32.mrf.mxu0
    %v10987 = vadd.f32 %v9530, %v10986
    %v10988 = vpop.f32.mrf.mxu0
    %v10989 = vadd.f32 %v9530, %v10988
    %10990 = vmatprep.mubr.bf16.mxu0 %v10734
    %10991 = vmatmul.mubr.bf16.gmra.mxu0 %v9556
    %v10992 = vpop.f32.mrf.mxu0
    %v10993 = vadd.f32 %v9535, %v10992
    %v10994 = vpop.f32.mrf.mxu0
    %v10995 = vadd.f32 %v9535, %v10994
    %v10996 = vpop.f32.mrf.mxu0
    %v10997 = vadd.f32 %v9540, %v10996
    %v10998 = vpop.f32.mrf.mxu0
    %v10999 = vadd.f32 %v9540, %v10998
    %11000 = vdwg.mxu0
    %11001 = vmatprep.subr.bf16.mxu0 %v10455
    %11002 = vmatpush1.bf16.msra.mxu0 %v10454
    %11003 = vmatprep.subr.bf16.mxu0 %v10429
    %11004 = vmatpush1.bf16.msra.mxu0 %v10428
    %11005 = vmatprep.subr.bf16.mxu0 %v10403
    %11006 = vmatpush1.bf16.msra.mxu0 %v10402
    %11007 = vmatprep.subr.bf16.mxu0 %v10377
    %11008 = vmatpush1.bf16.msra.mxu0 %v10376
    %11009 = vmatprep.subr.bf16.mxu0 %v10351
    %11010 = vmatpush1.bf16.msra.mxu0 %v10350
    %11011 = vmatprep.subr.bf16.mxu0 %v10325
    %11012 = vmatpush1.bf16.msra.mxu0 %v10324
    %11013 = vmatprep.subr.bf16.mxu0 %v10299
    %11014 = vmatpush1.bf16.msra.mxu0 %v10298
    %11015 = vmatprep.subr.bf16.mxu0 %v10273
    %11016 = vmatpush1.bf16.msra.mxu0 %v10272
    %11017 = vmatprep.subr.bf16.mxu0 0
    %11018 = vmatpush2.bf16.msra.mxu0 0
    %11019 = vmatprep.subr.bf16.mxu0 0
    %11020 = vmatpush2.bf16.msra.mxu0 0
    %11021 = vmatprep.subr.bf16.mxu0 0
    %11022 = vmatpush2.bf16.msra.mxu0 0
    %11023 = vmatprep.subr.bf16.mxu0 0
    %11024 = vmatpush2.bf16.msra.mxu0 0
    %11025 = vmatprep.subr.bf16.mxu0 0
    %11026 = vmatpush2.bf16.msra.mxu0 0
    %11027 = vmatprep.subr.bf16.mxu0 0
    %11028 = vmatpush2.bf16.msra.mxu0 0
    %11029 = vmatprep.subr.bf16.mxu0 0
    %11030 = vmatpush2.bf16.msra.mxu0 0
    %11031 = vmatprep.subr.bf16.mxu0 %v10481
    %11032 = vmatpush2.bf16.msra.mxu0 %v10480
    %11033 = vmatprep.mubr.bf16.mxu0 %v10731
    %11034 = vmatmul.mubr.bf16.gmra.mxu0 %v9554
    %v11035 = vpop.f32.mrf.mxu0
    %v11036 = vadd.f32 %v9525, %v11035
    %v11037 = vpop.f32.mrf.mxu0
    %v11038 = vadd.f32 %v9525, %v11037
    %v11039 = vpop.f32.mrf.mxu0
    %v11040 = vadd.f32 %v9530, %v11039
    %v11041 = vpop.f32.mrf.mxu0
    %v11042 = vadd.f32 %v9530, %v11041
    %11043 = vmatprep.mubr.bf16.mxu0 %v10734
    %11044 = vmatmul.mubr.bf16.gmra.mxu0 %v9556
    %v11045 = vpop.f32.mrf.mxu0
    %v11046 = vadd.f32 %v9535, %v11045
    %v11047 = vpop.f32.mrf.mxu0
    %v11048 = vadd.f32 %v9535, %v11047
    %v11049 = vpop.f32.mrf.mxu0
    %v11050 = vadd.f32 %v9540, %v11049
    %v11051 = vpop.f32.mrf.mxu0
    %v11052 = vadd.f32 %v9540, %v11051
    %11053 = vdwg.mxu0
    %11054 = vmatprep.subr.bf16.mxu0 %v10457
    %11055 = vmatpush1.bf16.msra.mxu0 %v10456
    %11056 = vmatprep.subr.bf16.mxu0 %v10431
    %11057 = vmatpush1.bf16.msra.mxu0 %v10430
    %11058 = vmatprep.subr.bf16.mxu0 %v10405
    %11059 = vmatpush1.bf16.msra.mxu0 %v10404
    %11060 = vmatprep.subr.bf16.mxu0 %v10379
    %11061 = vmatpush1.bf16.msra.mxu0 %v10378
    %11062 = vmatprep.subr.bf16.mxu0 %v10353
    %11063 = vmatpush1.bf16.msra.mxu0 %v10352
    %11064 = vmatprep.subr.bf16.mxu0 %v10327
    %11065 = vmatpush1.bf16.msra.mxu0 %v10326
    %11066 = vmatprep.subr.bf16.mxu0 %v10301
    %11067 = vmatpush1.bf16.msra.mxu0 %v10300
    %11068 = vmatprep.subr.bf16.mxu0 %v10275
    %11069 = vmatpush1.bf16.msra.mxu0 %v10274
    %11070 = vmatprep.subr.bf16.mxu0 0
    %11071 = vmatpush2.bf16.msra.mxu0 0
    %11072 = vmatprep.subr.bf16.mxu0 0
    %11073 = vmatpush2.bf16.msra.mxu0 0
    %11074 = vmatprep.subr.bf16.mxu0 0
    %11075 = vmatpush2.bf16.msra.mxu0 0
    %11076 = vmatprep.subr.bf16.mxu0 0
    %11077 = vmatpush2.bf16.msra.mxu0 0
    %11078 = vmatprep.subr.bf16.mxu0 0
    %11079 = vmatpush2.bf16.msra.mxu0 0
    %11080 = vmatprep.subr.bf16.mxu0 0
    %11081 = vmatpush2.bf16.msra.mxu0 0
    %11082 = vmatprep.subr.bf16.mxu0 0
    %11083 = vmatpush2.bf16.msra.mxu0 0
    %11084 = vmatprep.subr.bf16.mxu0 %v10483
    %11085 = vmatpush2.bf16.msra.mxu0 %v10482
    %11086 = vmatprep.mubr.bf16.mxu0 %v10731
    %11087 = vmatmul.mubr.bf16.gmra.mxu0 %v9554
    %v11088 = vpop.f32.mrf.mxu0
    %v11089 = vadd.f32 %v9525, %v11088
    %v11090 = vpop.f32.mrf.mxu0
    %v11091 = vadd.f32 %v9525, %v11090
    %v11092 = vpop.f32.mrf.mxu0
    %v11093 = vadd.f32 %v9530, %v11092
    %v11094 = vpop.f32.mrf.mxu0
    %v11095 = vadd.f32 %v9530, %v11094
    %11096 = vmatprep.mubr.bf16.mxu0 %v10734
    %11097 = vmatmul.mubr.bf16.gmra.mxu0 %v9556
    %v11098 = vpop.f32.mrf.mxu0
    %v11099 = vadd.f32 %v9535, %v11098
    %v11100 = vpop.f32.mrf.mxu0
    %v11101 = vadd.f32 %v9535, %v11100
    %v11102 = vpop.f32.mrf.mxu0
    %v11103 = vadd.f32 %v9540, %v11102
    %v11104 = vpop.f32.mrf.mxu0
    %v11105 = vadd.f32 %v9540, %v11104
    %11106 = vdwg.mxu0
    %11107 = vmatprep.subr.bf16.mxu0 %v10459
    %11108 = vmatpush1.bf16.msra.mxu0 %v10458
    %11109 = vmatprep.subr.bf16.mxu0 %v10433
    %11110 = vmatpush1.bf16.msra.mxu0 %v10432
    %11111 = vmatprep.subr.bf16.mxu0 %v10407
    %11112 = vmatpush1.bf16.msra.mxu0 %v10406
    %11113 = vmatprep.subr.bf16.mxu0 %v10381
    %11114 = vmatpush1.bf16.msra.mxu0 %v10380
    %11115 = vmatprep.subr.bf16.mxu0 %v10355
    %11116 = vmatpush1.bf16.msra.mxu0 %v10354
    %11117 = vmatprep.subr.bf16.mxu0 %v10329
    %11118 = vmatpush1.bf16.msra.mxu0 %v10328
    %11119 = vmatprep.subr.bf16.mxu0 %v10303
    %11120 = vmatpush1.bf16.msra.mxu0 %v10302
    %11121 = vmatprep.subr.bf16.mxu0 %v10277
    %11122 = vmatpush1.bf16.msra.mxu0 %v10276
    %11123 = vmatprep.subr.bf16.mxu0 0
    %11124 = vmatpush2.bf16.msra.mxu0 0
    %11125 = vmatprep.subr.bf16.mxu0 0
    %11126 = vmatpush2.bf16.msra.mxu0 0
    %11127 = vmatprep.subr.bf16.mxu0 0
    %11128 = vmatpush2.bf16.msra.mxu0 0
    %11129 = vmatprep.subr.bf16.mxu0 0
    %11130 = vmatpush2.bf16.msra.mxu0 0
    %11131 = vmatprep.subr.bf16.mxu0 0
    %11132 = vmatpush2.bf16.msra.mxu0 0
    %11133 = vmatprep.subr.bf16.mxu0 0
    %11134 = vmatpush2.bf16.msra.mxu0 0
    %11135 = vmatprep.subr.bf16.mxu0 0
    %11136 = vmatpush2.bf16.msra.mxu0 0
    %11137 = vmatprep.subr.bf16.mxu0 %v10485
    %11138 = vmatpush2.bf16.msra.mxu0 %v10484
    %11139 = vmatprep.mubr.bf16.mxu0 %v10731
    %11140 = vmatmul.mubr.bf16.gmra.mxu0 %v9554
    %v11141 = vpop.f32.mrf.mxu0
    %v11142 = vadd.f32 %v9525, %v11141
    %v11143 = vpop.f32.mrf.mxu0
    %v11144 = vadd.f32 %v9525, %v11143
    %v11145 = vpop.f32.mrf.mxu0
    %v11146 = vadd.f32 %v9530, %v11145
    %v11147 = vpop.f32.mrf.mxu0
    %v11148 = vadd.f32 %v9530, %v11147
    %11149 = vmatprep.mubr.bf16.mxu0 %v10734
    %11150 = vmatmul.mubr.bf16.gmra.mxu0 %v9556
    %v11151 = vpop.f32.mrf.mxu0
    %v11152 = vadd.f32 %v9535, %v11151
    %v11153 = vpop.f32.mrf.mxu0
    %v11154 = vadd.f32 %v9535, %v11153
    %v11155 = vpop.f32.mrf.mxu0
    %v11156 = vadd.f32 %v9540, %v11155
    %v11157 = vpop.f32.mrf.mxu0
    %v11158 = vadd.f32 %v9540, %v11157
    %11159 = vdwg.mxu0
    %11160 = vmatprep.subr.bf16.mxu0 %v10461
    %11161 = vmatpush1.bf16.msra.mxu0 %v10460
    %11162 = vmatprep.subr.bf16.mxu0 %v10435
    %11163 = vmatpush1.bf16.msra.mxu0 %v10434
    %11164 = vmatprep.subr.bf16.mxu0 %v10409
    %11165 = vmatpush1.bf16.msra.mxu0 %v10408
    %11166 = vmatprep.subr.bf16.mxu0 %v10383
    %11167 = vmatpush1.bf16.msra.mxu0 %v10382
    %11168 = vmatprep.subr.bf16.mxu0 %v10357
    %11169 = vmatpush1.bf16.msra.mxu0 %v10356
    %11170 = vmatprep.subr.bf16.mxu0 %v10331
    %11171 = vmatpush1.bf16.msra.mxu0 %v10330
    %11172 = vmatprep.subr.bf16.mxu0 %v10305
    %11173 = vmatpush1.bf16.msra.mxu0 %v10304
    %11174 = vmatprep.subr.bf16.mxu0 %v10279
    %11175 = vmatpush1.bf16.msra.mxu0 %v10278
    %11176 = vmatprep.subr.bf16.mxu0 0
    %11177 = vmatpush2.bf16.msra.mxu0 0
    %11178 = vmatprep.subr.bf16.mxu0 0
    %11179 = vmatpush2.bf16.msra.mxu0 0
    %11180 = vmatprep.subr.bf16.mxu0 0
    %11181 = vmatpush2.bf16.msra.mxu0 0
    %11182 = vmatprep.subr.bf16.mxu0 0
    %11183 = vmatpush2.bf16.msra.mxu0 0
    %11184 = vmatprep.subr.bf16.mxu0 0
    %11185 = vmatpush2.bf16.msra.mxu0 0
    %11186 = vmatprep.subr.bf16.mxu0 0
    %11187 = vmatpush2.bf16.msra.mxu0 0
    %11188 = vmatprep.subr.bf16.mxu0 0
    %11189 = vmatpush2.bf16.msra.mxu0 0
    %11190 = vmatprep.subr.bf16.mxu0 %v10487
    %11191 = vmatpush2.bf16.msra.mxu0 %v10486
    %11192 = vmatprep.mubr.bf16.mxu0 %v10731
    %11193 = vmatmul.mubr.bf16.gmra.mxu0 %v9554
    %v11194 = vpop.f32.mrf.mxu0
    %v11195 = vadd.f32 %v9525, %v11194
    %v11196 = vpop.f32.mrf.mxu0
    %v11197 = vadd.f32 %v9525, %v11196
    %v11198 = vpop.f32.mrf.mxu0
    %v11199 = vadd.f32 %v9530, %v11198
    %v11200 = vpop.f32.mrf.mxu0
    %v11201 = vadd.f32 %v9530, %v11200
    %11202 = vmatprep.mubr.bf16.mxu0 %v10734
    %11203 = vmatmul.mubr.bf16.gmra.mxu0 %v9556
    %v11204 = vpop.f32.mrf.mxu0
    %v11205 = vadd.f32 %v9535, %v11204
    %v11206 = vpop.f32.mrf.mxu0
    %v11207 = vadd.f32 %v9535, %v11206
    %v11208 = vpop.f32.mrf.mxu0
    %v11209 = vadd.f32 %v9540, %v11208
    %v11210 = vpop.f32.mrf.mxu0
    %v11211 = vadd.f32 %v9540, %v11210
    %11212 = vdwg.mxu0
    %11213 = vmatprep.subr.bf16.mxu0 %v10463
    %11214 = vmatpush1.bf16.msra.mxu0 %v10462
    %11215 = vmatprep.subr.bf16.mxu0 %v10437
    %11216 = vmatpush1.bf16.msra.mxu0 %v10436
    %11217 = vmatprep.subr.bf16.mxu0 %v10411
    %11218 = vmatpush1.bf16.msra.mxu0 %v10410
    %11219 = vmatprep.subr.bf16.mxu0 %v10385
    %11220 = vmatpush1.bf16.msra.mxu0 %v10384
    %11221 = vmatprep.subr.bf16.mxu0 %v10359
    %11222 = vmatpush1.bf16.msra.mxu0 %v10358
    %11223 = vmatprep.subr.bf16.mxu0 %v10333
    %11224 = vmatpush1.bf16.msra.mxu0 %v10332
    %11225 = vmatprep.subr.bf16.mxu0 %v10307
    %11226 = vmatpush1.bf16.msra.mxu0 %v10306
    %11227 = vmatprep.subr.bf16.mxu0 %v10281
    %11228 = vmatpush1.bf16.msra.mxu0 %v10280
    %11229 = vmatprep.subr.bf16.mxu0 0
    %11230 = vmatpush2.bf16.msra.mxu0 0
    %11231 = vmatprep.subr.bf16.mxu0 0
    %11232 = vmatpush2.bf16.msra.mxu0 0
    %11233 = vmatprep.subr.bf16.mxu0 0
    %11234 = vmatpush2.bf16.msra.mxu0 0
    %11235 = vmatprep.subr.bf16.mxu0 0
    %11236 = vmatpush2.bf16.msra.mxu0 0
    %11237 = vmatprep.subr.bf16.mxu0 0
    %11238 = vmatpush2.bf16.msra.mxu0 0
    %11239 = vmatprep.subr.bf16.mxu0 0
    %11240 = vmatpush2.bf16.msra.mxu0 0
    %11241 = vmatprep.subr.bf16.mxu0 0
    %11242 = vmatpush2.bf16.msra.mxu0 0
    %11243 = vmatprep.subr.bf16.mxu0 %v10489
    %11244 = vmatpush2.bf16.msra.mxu0 %v10488
    %11245 = vmatprep.mubr.bf16.mxu0 %v10731
    %11246 = vmatmul.mubr.bf16.gmra.mxu0 %v9554
    %v11247 = vpop.f32.mrf.mxu0
    %v11248 = vadd.f32 %v9525, %v11247
    %v11249 = vpop.f32.mrf.mxu0
    %v11250 = vadd.f32 %v9525, %v11249
    %v11251 = vpop.f32.mrf.mxu0
    %v11252 = vadd.f32 %v9530, %v11251
    %v11253 = vpop.f32.mrf.mxu0
    %v11254 = vadd.f32 %v9530, %v11253
    %11255 = vmatprep.mubr.bf16.mxu0 %v10734
    %11256 = vmatmul.mubr.bf16.gmra.mxu0 %v9556
    %v11257 = vpop.f32.mrf.mxu0
    %v11258 = vadd.f32 %v9535, %v11257
    %v11259 = vpop.f32.mrf.mxu0
    %v11260 = vadd.f32 %v9535, %v11259
    %v11261 = vpop.f32.mrf.mxu0
    %v11262 = vadd.f32 %v9540, %v11261
    %v11263 = vpop.f32.mrf.mxu0
    %v11264 = vadd.f32 %v9540, %v11263
    %11265 = vdwg.mxu0
    %11266 = vmatprep.subr.bf16.mxu0 %v10465
    %11267 = vmatpush1.bf16.msra.mxu0 %v10464
    %11268 = vmatprep.subr.bf16.mxu0 %v10439
    %11269 = vmatpush1.bf16.msra.mxu0 %v10438
    %11270 = vmatprep.subr.bf16.mxu0 %v10413
    %11271 = vmatpush1.bf16.msra.mxu0 %v10412
    %11272 = vmatprep.subr.bf16.mxu0 %v10387
    %11273 = vmatpush1.bf16.msra.mxu0 %v10386
    %11274 = vmatprep.subr.bf16.mxu0 %v10361
    %11275 = vmatpush1.bf16.msra.mxu0 %v10360
    %11276 = vmatprep.subr.bf16.mxu0 %v10335
    %11277 = vmatpush1.bf16.msra.mxu0 %v10334
    %11278 = vmatprep.subr.bf16.mxu0 %v10309
    %11279 = vmatpush1.bf16.msra.mxu0 %v10308
    %11280 = vmatprep.subr.bf16.mxu0 %v10283
    %11281 = vmatpush1.bf16.msra.mxu0 %v10282
    %11282 = vmatprep.subr.bf16.mxu0 0
    %11283 = vmatpush2.bf16.msra.mxu0 0
    %11284 = vmatprep.subr.bf16.mxu0 0
    %11285 = vmatpush2.bf16.msra.mxu0 0
    %11286 = vmatprep.subr.bf16.mxu0 0
    %11287 = vmatpush2.bf16.msra.mxu0 0
    %11288 = vmatprep.subr.bf16.mxu0 0
    %11289 = vmatpush2.bf16.msra.mxu0 0
    %11290 = vmatprep.subr.bf16.mxu0 0
    %11291 = vmatpush2.bf16.msra.mxu0 0
    %11292 = vmatprep.subr.bf16.mxu0 0
    %11293 = vmatpush2.bf16.msra.mxu0 0
    %11294 = vmatprep.subr.bf16.mxu0 0
    %11295 = vmatpush2.bf16.msra.mxu0 0
    %11296 = vmatprep.subr.bf16.mxu0 %v10491
    %11297 = vmatpush2.bf16.msra.mxu0 %v10490
    %11298 = vmatprep.mubr.bf16.mxu0 %v10731
    %11299 = vmatmul.mubr.bf16.gmra.mxu0 %v9554
    %v11300 = vpop.f32.mrf.mxu0
    %v11301 = vadd.f32 %v9525, %v11300
    %v11302 = vpop.f32.mrf.mxu0
    %v11303 = vadd.f32 %v9525, %v11302
    %v11304 = vpop.f32.mrf.mxu0
    %v11305 = vadd.f32 %v9530, %v11304
    %v11306 = vpop.f32.mrf.mxu0
    %v11307 = vadd.f32 %v9530, %v11306
    %11308 = vmatprep.mubr.bf16.mxu0 %v10734
    %11309 = vmatmul.mubr.bf16.gmra.mxu0 %v9556
    %v11310 = vpop.f32.mrf.mxu0
    %v11311 = vadd.f32 %v9535, %v11310
    %v11312 = vpop.f32.mrf.mxu0
    %v11313 = vadd.f32 %v9535, %v11312
    %v11314 = vpop.f32.mrf.mxu0
    %v11315 = vadd.f32 %v9540, %v11314
    %v11316 = vpop.f32.mrf.mxu0
    %v11317 = vadd.f32 %v9540, %v11316
    %11318 = vdwg.mxu0
    %11319 = vmatprep.subr.bf16.mxu0 %v10467
    %11320 = vmatpush1.bf16.msra.mxu0 %v10466
    %11321 = vmatprep.subr.bf16.mxu0 %v10441
    %11322 = vmatpush1.bf16.msra.mxu0 %v10440
    %11323 = vmatprep.subr.bf16.mxu0 %v10415
    %11324 = vmatpush1.bf16.msra.mxu0 %v10414
    %11325 = vmatprep.subr.bf16.mxu0 %v10389
    %11326 = vmatpush1.bf16.msra.mxu0 %v10388
    %11327 = vmatprep.subr.bf16.mxu0 %v10363
    %11328 = vmatpush1.bf16.msra.mxu0 %v10362
    %11329 = vmatprep.subr.bf16.mxu0 %v10337
    %11330 = vmatpush1.bf16.msra.mxu0 %v10336
    %11331 = vmatprep.subr.bf16.mxu0 %v10311
    %11332 = vmatpush1.bf16.msra.mxu0 %v10310
    %11333 = vmatprep.subr.bf16.mxu0 %v10285
    %11334 = vmatpush1.bf16.msra.mxu0 %v10284
    %11335 = vmatprep.subr.bf16.mxu0 0
    %11336 = vmatpush2.bf16.msra.mxu0 0
    %11337 = vmatprep.subr.bf16.mxu0 0
    %11338 = vmatpush2.bf16.msra.mxu0 0
    %11339 = vmatprep.subr.bf16.mxu0 0
    %11340 = vmatpush2.bf16.msra.mxu0 0
    %11341 = vmatprep.subr.bf16.mxu0 0
    %11342 = vmatpush2.bf16.msra.mxu0 0
    %11343 = vmatprep.subr.bf16.mxu0 0
    %11344 = vmatpush2.bf16.msra.mxu0 0
    %11345 = vmatprep.subr.bf16.mxu0 0
    %11346 = vmatpush2.bf16.msra.mxu0 0
    %11347 = vmatprep.subr.bf16.mxu0 0
    %11348 = vmatpush2.bf16.msra.mxu0 0
    %11349 = vmatprep.subr.bf16.mxu0 %v10493
    %11350 = vmatpush2.bf16.msra.mxu0 %v10492
    %11351 = vmatprep.mubr.bf16.mxu0 %v10731
    %11352 = vmatmul.mubr.bf16.gmra.mxu0 %v9554
    %v11353 = vpop.f32.mrf.mxu0
    %v11354 = vadd.f32 %v9525, %v11353
    %v11355 = vpop.f32.mrf.mxu0
    %v11356 = vadd.f32 %v9525, %v11355
    %v11357 = vpop.f32.mrf.mxu0
    %v11358 = vadd.f32 %v9530, %v11357
    %v11359 = vpop.f32.mrf.mxu0
    %v11360 = vadd.f32 %v9530, %v11359
    %11361 = vmatprep.mubr.bf16.mxu0 %v10734
    %11362 = vmatmul.mubr.bf16.gmra.mxu0 %v9556
    %v11363 = vpop.f32.mrf.mxu0
    %v11364 = vadd.f32 %v9535, %v11363
    %v11365 = vpop.f32.mrf.mxu0
    %v11366 = vadd.f32 %v9535, %v11365
    %v11367 = vpop.f32.mrf.mxu0
    %v11368 = vadd.f32 %v9540, %v11367
    %v11369 = vpop.f32.mrf.mxu0
    %v11370 = vadd.f32 %v9540, %v11369
    %11371 = vdwg.mxu0
    %11372 = vmatprep.subr.bf16.mxu0 %v10469
    %11373 = vmatpush1.bf16.msra.mxu0 %v10468
    %11374 = vmatprep.subr.bf16.mxu0 %v10443
    %11375 = vmatpush1.bf16.msra.mxu0 %v10442
    %11376 = vmatprep.subr.bf16.mxu0 %v10417
    %11377 = vmatpush1.bf16.msra.mxu0 %v10416
    %11378 = vmatprep.subr.bf16.mxu0 %v10391
    %11379 = vmatpush1.bf16.msra.mxu0 %v10390
    %11380 = vmatprep.subr.bf16.mxu0 %v10365
    %11381 = vmatpush1.bf16.msra.mxu0 %v10364
    %11382 = vmatprep.subr.bf16.mxu0 %v10339
    %11383 = vmatpush1.bf16.msra.mxu0 %v10338
    %11384 = vmatprep.subr.bf16.mxu0 %v10313
    %11385 = vmatpush1.bf16.msra.mxu0 %v10312
    %11386 = vmatprep.subr.bf16.mxu0 %v10287
    %11387 = vmatpush1.bf16.msra.mxu0 %v10286
    %11388 = vmatprep.subr.bf16.mxu0 0
    %11389 = vmatpush2.bf16.msra.mxu0 0
    %11390 = vmatprep.subr.bf16.mxu0 0
    %11391 = vmatpush2.bf16.msra.mxu0 0
    %11392 = vmatprep.subr.bf16.mxu0 0
    %11393 = vmatpush2.bf16.msra.mxu0 0
    %11394 = vmatprep.subr.bf16.mxu0 0
    %11395 = vmatpush2.bf16.msra.mxu0 0
    %11396 = vmatprep.subr.bf16.mxu0 0
    %11397 = vmatpush2.bf16.msra.mxu0 0
    %11398 = vmatprep.subr.bf16.mxu0 0
    %11399 = vmatpush2.bf16.msra.mxu0 0
    %11400 = vmatprep.subr.bf16.mxu0 0
    %11401 = vmatpush2.bf16.msra.mxu0 0
    %11402 = vmatprep.subr.bf16.mxu0 %v10495
    %11403 = vmatpush2.bf16.msra.mxu0 %v10494
    %11404 = vmatprep.mubr.bf16.mxu0 %v10731
    %11405 = vmatmul.mubr.bf16.gmra.mxu0 %v9554
    %v11406 = vpop.f32.mrf.mxu0
    %v11407 = vadd.f32 %v9525, %v11406
    %v11408 = vpop.f32.mrf.mxu0
    %v11409 = vadd.f32 %v9525, %v11408
    %v11410 = vpop.f32.mrf.mxu0
    %v11411 = vadd.f32 %v9530, %v11410
    %v11412 = vpop.f32.mrf.mxu0
    %v11413 = vadd.f32 %v9530, %v11412
    %11414 = vmatprep.mubr.bf16.mxu0 %v10734
    %11415 = vmatmul.mubr.bf16.gmra.mxu0 %v9556
    %v11416 = vpop.f32.mrf.mxu0
    %v11417 = vadd.f32 %v9535, %v11416
    %v11418 = vpop.f32.mrf.mxu0
    %v11419 = vadd.f32 %v9535, %v11418
    %v11420 = vpop.f32.mrf.mxu0
    %v11421 = vadd.f32 %v9540, %v11420
    %v11422 = vpop.f32.mrf.mxu0
    %v11423 = vadd.f32 %v9540, %v11422
    %11424 = vdwg.mxu0
    %v11425 = vtanh.pop %v10771
    %v11426 = vtanh.pop %v10773
    %v11427 = vtanh.pop %v10824
    %v11428 = vtanh.pop %v10826
    %v11429 = vtanh.pop %v10877
    %v11430 = vtanh.pop %v10879
    %v11431 = vtanh.pop %v10930
    %v11432 = vtanh.pop %v10932
    %v11433 = vtanh.pop %v10983
    %v11434 = vtanh.pop %v10985
    %v11435 = vtanh.pop %v11036
    %v11436 = vtanh.pop %v11038
    %v11437 = vtanh.pop %v11089
    %v11438 = vtanh.pop %v11091
    %v11439 = vtanh.pop %v11142
    %v11440 = vtanh.pop %v11144
    %v11441 = vtanh.pop %v11195
    %v11442 = vtanh.pop %v11197
    %v11443 = vtanh.pop %v11248
    %v11444 = vtanh.pop %v11250
    %v11445 = vtanh.pop %v11301
    %v11446 = vtanh.pop %v11303
    %v11447 = vtanh.pop %v11354
    %v11448 = vtanh.pop %v11356
    %v11449 = vtanh.pop %v11407
    %v11450 = vtanh.pop %v11409
    %v11451 = vtanh.pop %v10775
    %v11452 = vtanh.pop %v10777
    %v11453 = vtanh.pop %v10828
    %v11454 = vtanh.pop %v10830
    %v11455 = vtanh.pop %v10881
    %v11456 = vtanh.pop %v10883
    %v11457 = vtanh.pop %v10934
    %v11458 = vtanh.pop %v10936
    %v11459 = vtanh.pop %v10987
    %v11460 = vtanh.pop %v10989
    %v11461 = vtanh.pop %v11040
    %v11462 = vtanh.pop %v11042
    %v11463 = vtanh.pop %v11093
    %v11464 = vtanh.pop %v11095
    %v11465 = vtanh.pop %v11146
    %v11466 = vtanh.pop %v11148
    %v11467 = vtanh.pop %v11199
    %v11468 = vtanh.pop %v11201
    %v11469 = vtanh.pop %v11252
    %v11470 = vtanh.pop %v11254
    %v11471 = vtanh.pop %v11305
    %v11472 = vtanh.pop %v11307
    %v11473 = vtanh.pop %v11358
    %v11474 = vtanh.pop %v11360
    %v11475 = vtanh.pop %v11411
    %v11476 = vtanh.pop %v11413
    %v11477 = vtanh.pop %v10781
    %v11478 = vtanh.pop %v10783
    %v11479 = vtanh.pop %v10834
    %v11480 = vtanh.pop %v10836
    %v11481 = vtanh.pop %v10887
    %v11482 = vtanh.pop %v10889
    %v11483 = vtanh.pop %v10940
    %v11484 = vtanh.pop %v10942
    %v11485 = vtanh.pop %v10993
    %v11486 = vtanh.pop %v10995
    %v11487 = vtanh.pop %v11046
    %v11488 = vtanh.pop %v11048
    %v11489 = vtanh.pop %v11099
    %v11490 = vtanh.pop %v11101
    %v11491 = vtanh.pop %v11152
    %v11492 = vtanh.pop %v11154
    %v11493 = vtanh.pop %v11205
    %v11494 = vtanh.pop %v11207
    %v11495 = vtanh.pop %v11258
    %v11496 = vtanh.pop %v11260
    %v11497 = vtanh.pop %v11311
    %v11498 = vtanh.pop %v11313
    %v11499 = vtanh.pop %v11364
    %v11500 = vtanh.pop %v11366
    %v11501 = vtanh.pop %v11417
    %v11502 = vtanh.pop %v11419
    %v11503 = vtanh.pop %v10785
    %v11504 = vtanh.pop %v10787
    %v11505 = vtanh.pop %v10838
    %v11506 = vtanh.pop %v10840
    %v11507 = vtanh.pop %v10891
    %v11508 = vtanh.pop %v10893
    %v11509 = vtanh.pop %v10944
    %v11510 = vtanh.pop %v10946
    %v11511 = vtanh.pop %v10997
    %v11512 = vtanh.pop %v10999
    %v11513 = vtanh.pop %v11050
    %v11514 = vtanh.pop %v11052
    %v11515 = vtanh.pop %v11103
    %v11516 = vtanh.pop %v11105
    %v11517 = vtanh.pop %v11156
    %v11518 = vtanh.pop %v11158
    %v11519 = vtanh.pop %v11209
    %v11520 = vtanh.pop %v11211
    %v11521 = vtanh.pop %v11262
    %v11522 = vtanh.pop %v11264
    %v11523 = vtanh.pop %v11315
    %v11524 = vtanh.pop %v11317
    %v11525 = vtanh.pop %v11368
    %v11526 = vtanh.pop %v11370
    %v11527 = vtanh.pop %v11421
    %v11528 = vtanh.pop %v11423
    %s11529 = smul.u32 4, 4
    %s11530 = smul.u32 %s11529, 4
    %s11531 = smul.u32 %s11530, 13
    %s11532 = sshll.u32 %s11531, 4
    %11533 = dma.done [#allocation5], %s11532
    %v11534 = vld [vmem:[#allocation4] sm:$0xff]
    %v11535 = vld [vmem:[#allocation4 + $0x8] sm:$0xff]
    %v11536 = vld [vmem:[#allocation4 + $0x10] sm:$0xff]
    %v11537 = vld [vmem:[#allocation4 + $0x18] sm:$0xff]
    %v11538 = vld [vmem:[#allocation4 + $0x20] sm:$0xff]
    %v11539 = vld [vmem:[#allocation4 + $0x28] sm:$0xff]
    %v11540 = vld [vmem:[#allocation4 + $0x30] sm:$0xf]
    %v11541 = vld [vmem:[#allocation4 + $0x34] sm:$0xff]
    %v11542 = vld [vmem:[#allocation4 + $0x3c] sm:$0xff]
    %v11543 = vld [vmem:[#allocation4 + $0x44] sm:$0xff]
    %v11544 = vld [vmem:[#allocation4 + $0x4c] sm:$0xff]
    %v11545 = vld [vmem:[#allocation4 + $0x54] sm:$0xff]
    %v11546 = vld [vmem:[#allocation4 + $0x5c] sm:$0xff]
    %v11547 = vld [vmem:[#allocation4 + $0x64] sm:$0xf]
    %v11548 = vld [vmem:[#allocation4 + $0x68] sm:$0xff]
    %v11549 = vld [vmem:[#allocation4 + $0x70] sm:$0xff]
    %v11550 = vld [vmem:[#allocation4 + $0x78] sm:$0xff]
    %v11551 = vld [vmem:[#allocation4 + $0x80] sm:$0xff]
    %v11552 = vld [vmem:[#allocation4 + $0x88] sm:$0xff]
    %v11553 = vld [vmem:[#allocation4 + $0x90] sm:$0xff]
    %v11554 = vld [vmem:[#allocation4 + $0x98] sm:$0xf]
    %v11555 = vld [vmem:[#allocation4 + $0x9c] sm:$0xff]
    %v11556 = vld [vmem:[#allocation4 + $0xa4] sm:$0xff]
    %v11557 = vld [vmem:[#allocation4 + $0xac] sm:$0xff]
    %v11558 = vld [vmem:[#allocation4 + $0xb4] sm:$0xff]
    %v11559 = vld [vmem:[#allocation4 + $0xbc] sm:$0xff]
    %v11560 = vld [vmem:[#allocation4 + $0xc4] sm:$0xff]
    %v11561 = vld [vmem:[#allocation4 + $0xcc] sm:$0xf]
    %v11562 = vunpack.c.l.bf16 %v11534
    %v11563 = vunpack.c.h.bf16 %v11534
    %v11564 = vunpack.c.l.bf16 %v11535
    %v11565 = vunpack.c.h.bf16 %v11535
    %v11566 = vunpack.c.l.bf16 %v11536
    %v11567 = vunpack.c.h.bf16 %v11536
    %v11568 = vunpack.c.l.bf16 %v11537
    %v11569 = vunpack.c.h.bf16 %v11537
    %v11570 = vunpack.c.l.bf16 %v11538
    %v11571 = vunpack.c.h.bf16 %v11538
    %v11572 = vunpack.c.l.bf16 %v11539
    %v11573 = vunpack.c.h.bf16 %v11539
    %v11574 = vunpack.c.l.bf16 %v11540
    %v11575 = vunpack.c.l.bf16 %v11541
    %v11576 = vunpack.c.h.bf16 %v11541
    %v11577 = vunpack.c.l.bf16 %v11542
    %v11578 = vunpack.c.h.bf16 %v11542
    %v11579 = vunpack.c.l.bf16 %v11543
    %v11580 = vunpack.c.h.bf16 %v11543
    %v11581 = vunpack.c.l.bf16 %v11544
    %v11582 = vunpack.c.h.bf16 %v11544
    %v11583 = vunpack.c.l.bf16 %v11545
    %v11584 = vunpack.c.h.bf16 %v11545
    %v11585 = vunpack.c.l.bf16 %v11546
    %v11586 = vunpack.c.h.bf16 %v11546
    %v11587 = vunpack.c.l.bf16 %v11547
    %v11588 = vunpack.c.l.bf16 %v11548
    %v11589 = vunpack.c.h.bf16 %v11548
    %v11590 = vunpack.c.l.bf16 %v11549
    %v11591 = vunpack.c.h.bf16 %v11549
    %v11592 = vunpack.c.l.bf16 %v11550
    %v11593 = vunpack.c.h.bf16 %v11550
    %v11594 = vunpack.c.l.bf16 %v11551
    %v11595 = vunpack.c.h.bf16 %v11551
    %v11596 = vunpack.c.l.bf16 %v11552
    %v11597 = vunpack.c.h.bf16 %v11552
    %v11598 = vunpack.c.l.bf16 %v11553
    %v11599 = vunpack.c.h.bf16 %v11553
    %v11600 = vunpack.c.l.bf16 %v11554
    %v11601 = vunpack.c.l.bf16 %v11555
    %v11602 = vunpack.c.h.bf16 %v11555
    %v11603 = vunpack.c.l.bf16 %v11556
    %v11604 = vunpack.c.h.bf16 %v11556
    %v11605 = vunpack.c.l.bf16 %v11557
    %v11606 = vunpack.c.h.bf16 %v11557
    %v11607 = vunpack.c.l.bf16 %v11558
    %v11608 = vunpack.c.h.bf16 %v11558
    %v11609 = vunpack.c.l.bf16 %v11559
    %v11610 = vunpack.c.h.bf16 %v11559
    %v11611 = vunpack.c.l.bf16 %v11560
    %v11612 = vunpack.c.h.bf16 %v11560
    %v11613 = vunpack.c.l.bf16 %v11561
    %v11614 = vmul.f32 %v11562, %v11425
    %v11615 = vmul.f32 %v11563, %v11426
    %v11616 = vmul.f32 %v11564, %v11427
    %v11617 = vmul.f32 %v11565, %v11428
    %v11618 = vmul.f32 %v11566, %v11429
    %v11619 = vmul.f32 %v11567, %v11430
    %v11620 = vmul.f32 %v11568, %v11431
    %v11621 = vmul.f32 %v11569, %v11432
    %v11622 = vmul.f32 %v11570, %v11433
    %v11623 = vmul.f32 %v11571, %v11434
    %v11624 = vmul.f32 %v11572, %v11435
    %v11625 = vmul.f32 %v11573, %v11436
    %v11626 = vmul.f32 %v11574, %v11437
    %v11627 = vmul.f32 %v11575, %v11451
    %v11628 = vmul.f32 %v11576, %v11452
    %v11629 = vmul.f32 %v11577, %v11453
    %v11630 = vmul.f32 %v11578, %v11454
    %v11631 = vmul.f32 %v11579, %v11455
    %v11632 = vmul.f32 %v11580, %v11456
    %v11633 = vmul.f32 %v11581, %v11457
    %v11634 = vmul.f32 %v11582, %v11458
    %v11635 = vmul.f32 %v11583, %v11459
    %v11636 = vmul.f32 %v11584, %v11460
    %v11637 = vmul.f32 %v11585, %v11461
    %v11638 = vmul.f32 %v11586, %v11462
    %v11639 = vmul.f32 %v11587, %v11463
    %v11640 = vmul.f32 %v11588, %v11477
    %v11641 = vmul.f32 %v11589, %v11478
    %v11642 = vmul.f32 %v11590, %v11479
    %v11643 = vmul.f32 %v11591, %v11480
    %v11644 = vmul.f32 %v11592, %v11481
    %v11645 = vmul.f32 %v11593, %v11482
    %v11646 = vmul.f32 %v11594, %v11483
    %v11647 = vmul.f32 %v11595, %v11484
    %v11648 = vmul.f32 %v11596, %v11485
    %v11649 = vmul.f32 %v11597, %v11486
    %v11650 = vmul.f32 %v11598, %v11487
    %v11651 = vmul.f32 %v11599, %v11488
    %v11652 = vmul.f32 %v11600, %v11489
    %v11653 = vmul.f32 %v11601, %v11503
    %v11654 = vmul.f32 %v11602, %v11504
    %v11655 = vmul.f32 %v11603, %v11505
    %v11656 = vmul.f32 %v11604, %v11506
    %v11657 = vmul.f32 %v11605, %v11507
    %v11658 = vmul.f32 %v11606, %v11508
    %v11659 = vmul.f32 %v11607, %v11509
    %v11660 = vmul.f32 %v11608, %v11510
    %v11661 = vmul.f32 %v11609, %v11511
    %v11662 = vmul.f32 %v11610, %v11512
    %v11663 = vmul.f32 %v11611, %v11513
    %v11664 = vmul.f32 %v11612, %v11514
    %v11665 = vmul.f32 %v11613, %v11515
    %v11666 = vadd.f32 %v11614, %v11615
    %v11667 = vadd.f32 %v11666, %v11616
    %v11668 = vadd.f32 %v11667, %v11617
    %v11669 = vadd.f32 %v11668, %v11618
    %v11670 = vadd.f32 %v11669, %v11619
    %v11671 = vadd.f32 %v11670, %v11620
    %v11672 = vadd.f32 %v11671, %v11621
    %v11673 = vadd.f32 %v11672, %v11622
    %v11674 = vadd.f32 %v11673, %v11623
    %v11675 = vadd.f32 %v11674, %v11624
    %v11676 = vadd.f32 %v11675, %v11625
    %v11677 = vadd.f32 %v11676, %v11626
    %11678 = vadd.xlane.f32.xlu0 %v11677
    %v11679 = vpop.xlane.xlu0 %11678
    %v11680 = vadd.f32 %v11627, %v11628
    %v11681 = vadd.f32 %v11680, %v11629
    %v11682 = vadd.f32 %v11681, %v11630
    %v11683 = vadd.f32 %v11682, %v11631
    %v11684 = vadd.f32 %v11683, %v11632
    %v11685 = vadd.f32 %v11684, %v11633
    %v11686 = vadd.f32 %v11685, %v11634
    %v11687 = vadd.f32 %v11686, %v11635
    %v11688 = vadd.f32 %v11687, %v11636
    %v11689 = vadd.f32 %v11688, %v11637
    %v11690 = vadd.f32 %v11689, %v11638
    %v11691 = vadd.f32 %v11690, %v11639
    %11692 = vadd.xlane.f32.xlu0 %v11691
    %v11693 = vpop.xlane.xlu0 %11692
    %v11694 = vadd.f32 %v11640, %v11641
    %v11695 = vadd.f32 %v11694, %v11642
    %v11696 = vadd.f32 %v11695, %v11643
    %v11697 = vadd.f32 %v11696, %v11644
    %v11698 = vadd.f32 %v11697, %v11645
    %v11699 = vadd.f32 %v11698, %v11646
    %v11700 = vadd.f32 %v11699, %v11647
    %v11701 = vadd.f32 %v11700, %v11648
    %v11702 = vadd.f32 %v11701, %v11649
    %v11703 = vadd.f32 %v11702, %v11650
    %v11704 = vadd.f32 %v11703, %v11651
    %v11705 = vadd.f32 %v11704, %v11652
    %11706 = vadd.xlane.f32.xlu0 %v11705
    %v11707 = vpop.xlane.xlu0 %11706
    %v11708 = vadd.f32 %v11653, %v11654
    %v11709 = vadd.f32 %v11708, %v11655
    %v11710 = vadd.f32 %v11709, %v11656
    %v11711 = vadd.f32 %v11710, %v11657
    %v11712 = vadd.f32 %v11711, %v11658
    %v11713 = vadd.f32 %v11712, %v11659
    %v11714 = vadd.f32 %v11713, %v11660
    %v11715 = vadd.f32 %v11714, %v11661
    %v11716 = vadd.f32 %v11715, %v11662
    %v11717 = vadd.f32 %v11716, %v11663
    %v11718 = vadd.f32 %v11717, %v11664
    %v11719 = vadd.f32 %v11718, %v11665
    %11720 = vadd.xlane.f32.xlu0 %v11719
    %v11721 = vpop.xlane.xlu0 %11720
    %s11722 = scalar_lea.vmem [#allocation4], 208
    %v11723 = vld [vmem:[%s11722] sm:$0xff]
    %v11724 = vld [vmem:[%s11722 + $0x8] sm:$0xff]
    %v11725 = vld [vmem:[%s11722 + $0x10] sm:$0xff]
    %v11726 = vld [vmem:[%s11722 + $0x18] sm:$0xff]
    %v11727 = vld [vmem:[%s11722 + $0x20] sm:$0xff]
    %v11728 = vld [vmem:[%s11722 + $0x28] sm:$0xff]
    %v11729 = vld [vmem:[%s11722 + $0x30] sm:$0xf]
    %v11730 = vld [vmem:[%s11722 + $0x34] sm:$0xff]
    %v11731 = vld [vmem:[%s11722 + $0x3c] sm:$0xff]
    %v11732 = vld [vmem:[%s11722 + $0x44] sm:$0xff]
    %v11733 = vld [vmem:[%s11722 + $0x4c] sm:$0xff]
    %v11734 = vld [vmem:[%s11722 + $0x54] sm:$0xff]
    %v11735 = vld [vmem:[%s11722 + $0x5c] sm:$0xff]
    %v11736 = vld [vmem:[%s11722 + $0x64] sm:$0xf]
    %v11737 = vld [vmem:[%s11722 + $0x68] sm:$0xff]
    %v11738 = vld [vmem:[%s11722 + $0x70] sm:$0xff]
    %v11739 = vld [vmem:[%s11722 + $0x78] sm:$0xff]
    %v11740 = vld [vmem:[%s11722 + $0x80] sm:$0xff]
    %v11741 = vld [vmem:[%s11722 + $0x88] sm:$0xff]
    %v11742 = vld [vmem:[%s11722 + $0x90] sm:$0xff]
    %v11743 = vld [vmem:[%s11722 + $0x98] sm:$0xf]
    %v11744 = vld [vmem:[%s11722 + $0x9c] sm:$0xff]
    %v11745 = vld [vmem:[%s11722 + $0xa4] sm:$0xff]
    %v11746 = vld [vmem:[%s11722 + $0xac] sm:$0xff]
    %v11747 = vld [vmem:[%s11722 + $0xb4] sm:$0xff]
    %v11748 = vld [vmem:[%s11722 + $0xbc] sm:$0xff]
    %v11749 = vld [vmem:[%s11722 + $0xc4] sm:$0xff]
    %v11750 = vld [vmem:[%s11722 + $0xcc] sm:$0xf]
    %v11751 = vunpack.c.l.bf16 %v11723
    %v11752 = vunpack.c.h.bf16 %v11723
    %v11753 = vunpack.c.l.bf16 %v11724
    %v11754 = vunpack.c.h.bf16 %v11724
    %v11755 = vunpack.c.l.bf16 %v11725
    %v11756 = vunpack.c.h.bf16 %v11725
    %v11757 = vunpack.c.l.bf16 %v11726
    %v11758 = vunpack.c.h.bf16 %v11726
    %v11759 = vunpack.c.l.bf16 %v11727
    %v11760 = vunpack.c.h.bf16 %v11727
    %v11761 = vunpack.c.l.bf16 %v11728
    %v11762 = vunpack.c.h.bf16 %v11728
    %v11763 = vunpack.c.l.bf16 %v11729
    %v11764 = vunpack.c.l.bf16 %v11730
    %v11765 = vunpack.c.h.bf16 %v11730
    %v11766 = vunpack.c.l.bf16 %v11731
    %v11767 = vunpack.c.h.bf16 %v11731
    %v11768 = vunpack.c.l.bf16 %v11732
    %v11769 = vunpack.c.h.bf16 %v11732
    %v11770 = vunpack.c.l.bf16 %v11733
    %v11771 = vunpack.c.h.bf16 %v11733
    %v11772 = vunpack.c.l.bf16 %v11734
    %v11773 = vunpack.c.h.bf16 %v11734
    %v11774 = vunpack.c.l.bf16 %v11735
    %v11775 = vunpack.c.h.bf16 %v11735
    %v11776 = vunpack.c.l.bf16 %v11736
    %v11777 = vunpack.c.l.bf16 %v11737
    %v11778 = vunpack.c.h.bf16 %v11737
    %v11779 = vunpack.c.l.bf16 %v11738
    %v11780 = vunpack.c.h.bf16 %v11738
    %v11781 = vunpack.c.l.bf16 %v11739
    %v11782 = vunpack.c.h.bf16 %v11739
    %v11783 = vunpack.c.l.bf16 %v11740
    %v11784 = vunpack.c.h.bf16 %v11740
    %v11785 = vunpack.c.l.bf16 %v11741
    %v11786 = vunpack.c.h.bf16 %v11741
    %v11787 = vunpack.c.l.bf16 %v11742
    %v11788 = vunpack.c.h.bf16 %v11742
    %v11789 = vunpack.c.l.bf16 %v11743
    %v11790 = vunpack.c.l.bf16 %v11744
    %v11791 = vunpack.c.h.bf16 %v11744
    %v11792 = vunpack.c.l.bf16 %v11745
    %v11793 = vunpack.c.h.bf16 %v11745
    %v11794 = vunpack.c.l.bf16 %v11746
    %v11795 = vunpack.c.h.bf16 %v11746
    %v11796 = vunpack.c.l.bf16 %v11747
    %v11797 = vunpack.c.h.bf16 %v11747
    %v11798 = vunpack.c.l.bf16 %v11748
    %v11799 = vunpack.c.h.bf16 %v11748
    %v11800 = vunpack.c.l.bf16 %v11749
    %v11801 = vunpack.c.h.bf16 %v11749
    %v11802 = vunpack.c.l.bf16 %v11750
    %v11803 = vmul.f32 %v11751, %v11425
    %v11804 = vmul.f32 %v11752, %v11426
    %v11805 = vmul.f32 %v11753, %v11427
    %v11806 = vmul.f32 %v11754, %v11428
    %v11807 = vmul.f32 %v11755, %v11429
    %v11808 = vmul.f32 %v11756, %v11430
    %v11809 = vmul.f32 %v11757, %v11431
    %v11810 = vmul.f32 %v11758, %v11432
    %v11811 = vmul.f32 %v11759, %v11433
    %v11812 = vmul.f32 %v11760, %v11434
    %v11813 = vmul.f32 %v11761, %v11435
    %v11814 = vmul.f32 %v11762, %v11436
    %v11815 = vmul.f32 %v11763, %v11437
    %v11816 = vmul.f32 %v11764, %v11451
    %v11817 = vmul.f32 %v11765, %v11452
    %v11818 = vmul.f32 %v11766, %v11453
    %v11819 = vmul.f32 %v11767, %v11454
    %v11820 = vmul.f32 %v11768, %v11455
    %v11821 = vmul.f32 %v11769, %v11456
    %v11822 = vmul.f32 %v11770, %v11457
    %v11823 = vmul.f32 %v11771, %v11458
    %v11824 = vmul.f32 %v11772, %v11459
    %v11825 = vmul.f32 %v11773, %v11460
    %v11826 = vmul.f32 %v11774, %v11461
    %v11827 = vmul.f32 %v11775, %v11462
    %v11828 = vmul.f32 %v11776, %v11463
    %v11829 = vmul.f32 %v11777, %v11477
    %v11830 = vmul.f32 %v11778, %v11478
    %v11831 = vmul.f32 %v11779, %v11479
    %v11832 = vmul.f32 %v11780, %v11480
    %v11833 = vmul.f32 %v11781, %v11481
    %v11834 = vmul.f32 %v11782, %v11482
    %v11835 = vmul.f32 %v11783, %v11483
    %v11836 = vmul.f32 %v11784, %v11484
    %v11837 = vmul.f32 %v11785, %v11485
    %v11838 = vmul.f32 %v11786, %v11486
    %v11839 = vmul.f32 %v11787, %v11487
    %v11840 = vmul.f32 %v11788, %v11488
    %v11841 = vmul.f32 %v11789, %v11489
    %v11842 = vmul.f32 %v11790, %v11503
    %v11843 = vmul.f32 %v11791, %v11504
    %v11844 = vmul.f32 %v11792, %v11505
    %v11845 = vmul.f32 %v11793, %v11506
    %v11846 = vmul.f32 %v11794, %v11507
    %v11847 = vmul.f32 %v11795, %v11508
    %v11848 = vmul.f32 %v11796, %v11509
    %v11849 = vmul.f32 %v11797, %v11510
    %v11850 = vmul.f32 %v11798, %v11511
    %v11851 = vmul.f32 %v11799, %v11512
    %v11852 = vmul.f32 %v11800, %v11513
    %v11853 = vmul.f32 %v11801, %v11514
    %v11854 = vmul.f32 %v11802, %v11515
    %v11855 = vadd.f32 %v11803, %v11804
    %v11856 = vadd.f32 %v11855, %v11805
    %v11857 = vadd.f32 %v11856, %v11806
    %v11858 = vadd.f32 %v11857, %v11807
    %v11859 = vadd.f32 %v11858, %v11808
    %v11860 = vadd.f32 %v11859, %v11809
    %v11861 = vadd.f32 %v11860, %v11810
    %v11862 = vadd.f32 %v11861, %v11811
    %v11863 = vadd.f32 %v11862, %v11812
    %v11864 = vadd.f32 %v11863, %v11813
    %v11865 = vadd.f32 %v11864, %v11814
    %v11866 = vadd.f32 %v11865, %v11815
    %11867 = vadd.xlane.f32.xlu0 %v11866
    %v11868 = vpop.xlane.xlu0 %11867
    %v11869 = vadd.f32 %v11816, %v11817
    %v11870 = vadd.f32 %v11869, %v11818
    %v11871 = vadd.f32 %v11870, %v11819
    %v11872 = vadd.f32 %v11871, %v11820
    %v11873 = vadd.f32 %v11872, %v11821
    %v11874 = vadd.f32 %v11873, %v11822
    %v11875 = vadd.f32 %v11874, %v11823
    %v11876 = vadd.f32 %v11875, %v11824
    %v11877 = vadd.f32 %v11876, %v11825
    %v11878 = vadd.f32 %v11877, %v11826
    %v11879 = vadd.f32 %v11878, %v11827
    %v11880 = vadd.f32 %v11879, %v11828
    %11881 = vadd.xlane.f32.xlu0 %v11880
    %v11882 = vpop.xlane.xlu0 %11881
    %v11883 = vadd.f32 %v11829, %v11830
    %v11884 = vadd.f32 %v11883, %v11831
    %v11885 = vadd.f32 %v11884, %v11832
    %v11886 = vadd.f32 %v11885, %v11833
    %v11887 = vadd.f32 %v11886, %v11834
    %v11888 = vadd.f32 %v11887, %v11835
    %v11889 = vadd.f32 %v11888, %v11836
    %v11890 = vadd.f32 %v11889, %v11837
    %v11891 = vadd.f32 %v11890, %v11838
    %v11892 = vadd.f32 %v11891, %v11839
    %v11893 = vadd.f32 %v11892, %v11840
    %v11894 = vadd.f32 %v11893, %v11841
    %11895 = vadd.xlane.f32.xlu0 %v11894
    %v11896 = vpop.xlane.xlu0 %11895
    %v11897 = vadd.f32 %v11842, %v11843
    %v11898 = vadd.f32 %v11897, %v11844
    %v11899 = vadd.f32 %v11898, %v11845
    %v11900 = vadd.f32 %v11899, %v11846
    %v11901 = vadd.f32 %v11900, %v11847
    %v11902 = vadd.f32 %v11901, %v11848
    %v11903 = vadd.f32 %v11902, %v11849
    %v11904 = vadd.f32 %v11903, %v11850
    %v11905 = vadd.f32 %v11904, %v11851
    %v11906 = vadd.f32 %v11905, %v11852
    %v11907 = vadd.f32 %v11906, %v11853
    %v11908 = vadd.f32 %v11907, %v11854
    %11909 = vadd.xlane.f32.xlu0 %v11908
    %v11910 = vpop.xlane.xlu0 %11909
    %s11911 = scalar_lea.vmem [#allocation4], 416
    %v11912 = vld [vmem:[%s11911] sm:$0xff]
    %v11913 = vld [vmem:[%s11911 + $0x8] sm:$0xff]
    %v11914 = vld [vmem:[%s11911 + $0x10] sm:$0xff]
    %v11915 = vld [vmem:[%s11911 + $0x18] sm:$0xff]
    %v11916 = vld [vmem:[%s11911 + $0x20] sm:$0xff]
    %v11917 = vld [vmem:[%s11911 + $0x28] sm:$0xff]
    %v11918 = vld [vmem:[%s11911 + $0x30] sm:$0xf]
    %v11919 = vld [vmem:[%s11911 + $0x34] sm:$0xff]
    %v11920 = vld [vmem:[%s11911 + $0x3c] sm:$0xff]
    %v11921 = vld [vmem:[%s11911 + $0x44] sm:$0xff]
    %v11922 = vld [vmem:[%s11911 + $0x4c] sm:$0xff]
    %v11923 = vld [vmem:[%s11911 + $0x54] sm:$0xff]
    %v11924 = vld [vmem:[%s11911 + $0x5c] sm:$0xff]
    %v11925 = vld [vmem:[%s11911 + $0x64] sm:$0xf]
    %v11926 = vld [vmem:[%s11911 + $0x68] sm:$0xff]
    %v11927 = vld [vmem:[%s11911 + $0x70] sm:$0xff]
    %v11928 = vld [vmem:[%s11911 + $0x78] sm:$0xff]
    %v11929 = vld [vmem:[%s11911 + $0x80] sm:$0xff]
    %v11930 = vld [vmem:[%s11911 + $0x88] sm:$0xff]
    %v11931 = vld [vmem:[%s11911 + $0x90] sm:$0xff]
    %v11932 = vld [vmem:[%s11911 + $0x98] sm:$0xf]
    %v11933 = vld [vmem:[%s11911 + $0x9c] sm:$0xff]
    %v11934 = vld [vmem:[%s11911 + $0xa4] sm:$0xff]
    %v11935 = vld [vmem:[%s11911 + $0xac] sm:$0xff]
    %v11936 = vld [vmem:[%s11911 + $0xb4] sm:$0xff]
    %v11937 = vld [vmem:[%s11911 + $0xbc] sm:$0xff]
    %v11938 = vld [vmem:[%s11911 + $0xc4] sm:$0xff]
    %v11939 = vld [vmem:[%s11911 + $0xcc] sm:$0xf]
    %v11940 = vunpack.c.l.bf16 %v11912
    %v11941 = vunpack.c.h.bf16 %v11912
    %v11942 = vunpack.c.l.bf16 %v11913
    %v11943 = vunpack.c.h.bf16 %v11913
    %v11944 = vunpack.c.l.bf16 %v11914
    %v11945 = vunpack.c.h.bf16 %v11914
    %v11946 = vunpack.c.l.bf16 %v11915
    %v11947 = vunpack.c.h.bf16 %v11915
    %v11948 = vunpack.c.l.bf16 %v11916
    %v11949 = vunpack.c.h.bf16 %v11916
    %v11950 = vunpack.c.l.bf16 %v11917
    %v11951 = vunpack.c.h.bf16 %v11917
    %v11952 = vunpack.c.l.bf16 %v11918
    %v11953 = vunpack.c.l.bf16 %v11919
    %v11954 = vunpack.c.h.bf16 %v11919
    %v11955 = vunpack.c.l.bf16 %v11920
    %v11956 = vunpack.c.h.bf16 %v11920
    %v11957 = vunpack.c.l.bf16 %v11921
    %v11958 = vunpack.c.h.bf16 %v11921
    %v11959 = vunpack.c.l.bf16 %v11922
    %v11960 = vunpack.c.h.bf16 %v11922
    %v11961 = vunpack.c.l.bf16 %v11923
    %v11962 = vunpack.c.h.bf16 %v11923
    %v11963 = vunpack.c.l.bf16 %v11924
    %v11964 = vunpack.c.h.bf16 %v11924
    %v11965 = vunpack.c.l.bf16 %v11925
    %v11966 = vunpack.c.l.bf16 %v11926
    %v11967 = vunpack.c.h.bf16 %v11926
    %v11968 = vunpack.c.l.bf16 %v11927
    %v11969 = vunpack.c.h.bf16 %v11927
    %v11970 = vunpack.c.l.bf16 %v11928
    %v11971 = vunpack.c.h.bf16 %v11928
    %v11972 = vunpack.c.l.bf16 %v11929
    %v11973 = vunpack.c.h.bf16 %v11929
    %v11974 = vunpack.c.l.bf16 %v11930
    %v11975 = vunpack.c.h.bf16 %v11930
    %v11976 = vunpack.c.l.bf16 %v11931
    %v11977 = vunpack.c.h.bf16 %v11931
    %v11978 = vunpack.c.l.bf16 %v11932
    %v11979 = vunpack.c.l.bf16 %v11933
    %v11980 = vunpack.c.h.bf16 %v11933
    %v11981 = vunpack.c.l.bf16 %v11934
    %v11982 = vunpack.c.h.bf16 %v11934
    %v11983 = vunpack.c.l.bf16 %v11935
    %v11984 = vunpack.c.h.bf16 %v11935
    %v11985 = vunpack.c.l.bf16 %v11936
    %v11986 = vunpack.c.h.bf16 %v11936
    %v11987 = vunpack.c.l.bf16 %v11937
    %v11988 = vunpack.c.h.bf16 %v11937
    %v11989 = vunpack.c.l.bf16 %v11938
    %v11990 = vunpack.c.h.bf16 %v11938
    %v11991 = vunpack.c.l.bf16 %v11939
    %v11992 = vmul.f32 %v11940, %v11425
    %v11993 = vmul.f32 %v11941, %v11426
    %v11994 = vmul.f32 %v11942, %v11427
    %v11995 = vmul.f32 %v11943, %v11428
    %v11996 = vmul.f32 %v11944, %v11429
    %v11997 = vmul.f32 %v11945, %v11430
    %v11998 = vmul.f32 %v11946, %v11431
    %v11999 = vmul.f32 %v11947, %v11432
    %v12000 = vmul.f32 %v11948, %v11433
    %v12001 = vmul.f32 %v11949, %v11434
    %v12002 = vmul.f32 %v11950, %v11435
    %v12003 = vmul.f32 %v11951, %v11436
    %v12004 = vmul.f32 %v11952, %v11437
    %v12005 = vmul.f32 %v11953, %v11451
    %v12006 = vmul.f32 %v11954, %v11452
    %v12007 = vmul.f32 %v11955, %v11453
    %v12008 = vmul.f32 %v11956, %v11454
    %v12009 = vmul.f32 %v11957, %v11455
    %v12010 = vmul.f32 %v11958, %v11456
    %v12011 = vmul.f32 %v11959, %v11457
    %v12012 = vmul.f32 %v11960, %v11458
    %v12013 = vmul.f32 %v11961, %v11459
    %v12014 = vmul.f32 %v11962, %v11460
    %v12015 = vmul.f32 %v11963, %v11461
    %v12016 = vmul.f32 %v11964, %v11462
    %v12017 = vmul.f32 %v11965, %v11463
    %v12018 = vmul.f32 %v11966, %v11477
    %v12019 = vmul.f32 %v11967, %v11478
    %v12020 = vmul.f32 %v11968, %v11479
    %v12021 = vmul.f32 %v11969, %v11480
    %v12022 = vmul.f32 %v11970, %v11481
    %v12023 = vmul.f32 %v11971, %v11482
    %v12024 = vmul.f32 %v11972, %v11483
    %v12025 = vmul.f32 %v11973, %v11484
    %v12026 = vmul.f32 %v11974, %v11485
    %v12027 = vmul.f32 %v11975, %v11486
    %v12028 = vmul.f32 %v11976, %v11487
    %v12029 = vmul.f32 %v11977, %v11488
    %v12030 = vmul.f32 %v11978, %v11489
    %v12031 = vmul.f32 %v11979, %v11503
    %v12032 = vmul.f32 %v11980, %v11504
    %v12033 = vmul.f32 %v11981, %v11505
    %v12034 = vmul.f32 %v11982, %v11506
    %v12035 = vmul.f32 %v11983, %v11507
    %v12036 = vmul.f32 %v11984, %v11508
    %v12037 = vmul.f32 %v11985, %v11509
    %v12038 = vmul.f32 %v11986, %v11510
    %v12039 = vmul.f32 %v11987, %v11511
    %v12040 = vmul.f32 %v11988, %v11512
    %v12041 = vmul.f32 %v11989, %v11513
    %v12042 = vmul.f32 %v11990, %v11514
    %v12043 = vmul.f32 %v11991, %v11515
    %v12044 = vadd.f32 %v11992, %v11993
    %v12045 = vadd.f32 %v12044, %v11994
    %v12046 = vadd.f32 %v12045, %v11995
    %v12047 = vadd.f32 %v12046, %v11996
    %v12048 = vadd.f32 %v12047, %v11997
    %v12049 = vadd.f32 %v12048, %v11998
    %v12050 = vadd.f32 %v12049, %v11999
    %v12051 = vadd.f32 %v12050, %v12000
    %v12052 = vadd.f32 %v12051, %v12001
    %v12053 = vadd.f32 %v12052, %v12002
    %v12054 = vadd.f32 %v12053, %v12003
    %v12055 = vadd.f32 %v12054, %v12004
    %12056 = vadd.xlane.f32.xlu0 %v12055
    %v12057 = vpop.xlane.xlu0 %12056
    %v12058 = vadd.f32 %v12005, %v12006
    %v12059 = vadd.f32 %v12058, %v12007
    %v12060 = vadd.f32 %v12059, %v12008
    %v12061 = vadd.f32 %v12060, %v12009
    %v12062 = vadd.f32 %v12061, %v12010
    %v12063 = vadd.f32 %v12062, %v12011
    %v12064 = vadd.f32 %v12063, %v12012
    %v12065 = vadd.f32 %v12064, %v12013
    %v12066 = vadd.f32 %v12065, %v12014
    %v12067 = vadd.f32 %v12066, %v12015
    %v12068 = vadd.f32 %v12067, %v12016
    %v12069 = vadd.f32 %v12068, %v12017
    %12070 = vadd.xlane.f32.xlu0 %v12069
    %v12071 = vpop.xlane.xlu0 %12070
    %v12072 = vadd.f32 %v12018, %v12019
    %v12073 = vadd.f32 %v12072, %v12020
    %v12074 = vadd.f32 %v12073, %v12021
    %v12075 = vadd.f32 %v12074, %v12022
    %v12076 = vadd.f32 %v12075, %v12023
    %v12077 = vadd.f32 %v12076, %v12024
    %v12078 = vadd.f32 %v12077, %v12025
    %v12079 = vadd.f32 %v12078, %v12026
    %v12080 = vadd.f32 %v12079, %v12027
    %v12081 = vadd.f32 %v12080, %v12028
    %v12082 = vadd.f32 %v12081, %v12029
    %v12083 = vadd.f32 %v12082, %v12030
    %12084 = vadd.xlane.f32.xlu0 %v12083
    %v12085 = vpop.xlane.xlu0 %12084
    %v12086 = vadd.f32 %v12031, %v12032
    %v12087 = vadd.f32 %v12086, %v12033
    %v12088 = vadd.f32 %v12087, %v12034
    %v12089 = vadd.f32 %v12088, %v12035
    %v12090 = vadd.f32 %v12089, %v12036
    %v12091 = vadd.f32 %v12090, %v12037
    %v12092 = vadd.f32 %v12091, %v12038
    %v12093 = vadd.f32 %v12092, %v12039
    %v12094 = vadd.f32 %v12093, %v12040
    %v12095 = vadd.f32 %v12094, %v12041
    %v12096 = vadd.f32 %v12095, %v12042
    %v12097 = vadd.f32 %v12096, %v12043
    %12098 = vadd.xlane.f32.xlu0 %v12097
    %v12099 = vpop.xlane.xlu0 %12098
    %s12100 = scalar_lea.vmem [#allocation4], 624
    %v12101 = vld [vmem:[%s12100] sm:$0xff]
    %v12102 = vld [vmem:[%s12100 + $0x8] sm:$0xff]
    %v12103 = vld [vmem:[%s12100 + $0x10] sm:$0xff]
    %v12104 = vld [vmem:[%s12100 + $0x18] sm:$0xff]
    %v12105 = vld [vmem:[%s12100 + $0x20] sm:$0xff]
    %v12106 = vld [vmem:[%s12100 + $0x28] sm:$0xff]
    %v12107 = vld [vmem:[%s12100 + $0x30] sm:$0xf]
    %v12108 = vld [vmem:[%s12100 + $0x34] sm:$0xff]
    %v12109 = vld [vmem:[%s12100 + $0x3c] sm:$0xff]
    %v12110 = vld [vmem:[%s12100 + $0x44] sm:$0xff]
    %v12111 = vld [vmem:[%s12100 + $0x4c] sm:$0xff]
    %v12112 = vld [vmem:[%s12100 + $0x54] sm:$0xff]
    %v12113 = vld [vmem:[%s12100 + $0x5c] sm:$0xff]
    %v12114 = vld [vmem:[%s12100 + $0x64] sm:$0xf]
    %v12115 = vld [vmem:[%s12100 + $0x68] sm:$0xff]
    %v12116 = vld [vmem:[%s12100 + $0x70] sm:$0xff]
    %v12117 = vld [vmem:[%s12100 + $0x78] sm:$0xff]
    %v12118 = vld [vmem:[%s12100 + $0x80] sm:$0xff]
    %v12119 = vld [vmem:[%s12100 + $0x88] sm:$0xff]
    %v12120 = vld [vmem:[%s12100 + $0x90] sm:$0xff]
    %v12121 = vld [vmem:[%s12100 + $0x98] sm:$0xf]
    %v12122 = vld [vmem:[%s12100 + $0x9c] sm:$0xff]
    %v12123 = vld [vmem:[%s12100 + $0xa4] sm:$0xff]
    %v12124 = vld [vmem:[%s12100 + $0xac] sm:$0xff]
    %v12125 = vld [vmem:[%s12100 + $0xb4] sm:$0xff]
    %v12126 = vld [vmem:[%s12100 + $0xbc] sm:$0xff]
    %v12127 = vld [vmem:[%s12100 + $0xc4] sm:$0xff]
    %v12128 = vld [vmem:[%s12100 + $0xcc] sm:$0xf]
    %v12129 = vunpack.c.l.bf16 %v12101
    %v12130 = vunpack.c.h.bf16 %v12101
    %v12131 = vunpack.c.l.bf16 %v12102
    %v12132 = vunpack.c.h.bf16 %v12102
    %v12133 = vunpack.c.l.bf16 %v12103
    %v12134 = vunpack.c.h.bf16 %v12103
    %v12135 = vunpack.c.l.bf16 %v12104
    %v12136 = vunpack.c.h.bf16 %v12104
    %v12137 = vunpack.c.l.bf16 %v12105
    %v12138 = vunpack.c.h.bf16 %v12105
    %v12139 = vunpack.c.l.bf16 %v12106
    %v12140 = vunpack.c.h.bf16 %v12106
    %v12141 = vunpack.c.l.bf16 %v12107
    %v12142 = vunpack.c.l.bf16 %v12108
    %v12143 = vunpack.c.h.bf16 %v12108
    %v12144 = vunpack.c.l.bf16 %v12109
    %v12145 = vunpack.c.h.bf16 %v12109
    %v12146 = vunpack.c.l.bf16 %v12110
    %v12147 = vunpack.c.h.bf16 %v12110
    %v12148 = vunpack.c.l.bf16 %v12111
    %v12149 = vunpack.c.h.bf16 %v12111
    %v12150 = vunpack.c.l.bf16 %v12112
    %v12151 = vunpack.c.h.bf16 %v12112
    %v12152 = vunpack.c.l.bf16 %v12113
    %v12153 = vunpack.c.h.bf16 %v12113
    %v12154 = vunpack.c.l.bf16 %v12114
    %v12155 = vunpack.c.l.bf16 %v12115
    %v12156 = vunpack.c.h.bf16 %v12115
    %v12157 = vunpack.c.l.bf16 %v12116
    %v12158 = vunpack.c.h.bf16 %v12116
    %v12159 = vunpack.c.l.bf16 %v12117
    %v12160 = vunpack.c.h.bf16 %v12117
    %v12161 = vunpack.c.l.bf16 %v12118
    %v12162 = vunpack.c.h.bf16 %v12118
    %v12163 = vunpack.c.l.bf16 %v12119
    %v12164 = vunpack.c.h.bf16 %v12119
    %v12165 = vunpack.c.l.bf16 %v12120
    %v12166 = vunpack.c.h.bf16 %v12120
    %v12167 = vunpack.c.l.bf16 %v12121
    %v12168 = vunpack.c.l.bf16 %v12122
    %v12169 = vunpack.c.h.bf16 %v12122
    %v12170 = vunpack.c.l.bf16 %v12123
    %v12171 = vunpack.c.h.bf16 %v12123
    %v12172 = vunpack.c.l.bf16 %v12124
    %v12173 = vunpack.c.h.bf16 %v12124
    %v12174 = vunpack.c.l.bf16 %v12125
    %v12175 = vunpack.c.h.bf16 %v12125
    %v12176 = vunpack.c.l.bf16 %v12126
    %v12177 = vunpack.c.h.bf16 %v12126
    %v12178 = vunpack.c.l.bf16 %v12127
    %v12179 = vunpack.c.h.bf16 %v12127
    %v12180 = vunpack.c.l.bf16 %v12128
    %v12181 = vmul.f32 %v12129, %v11425
    %v12182 = vmul.f32 %v12130, %v11426
    %v12183 = vmul.f32 %v12131, %v11427
    %v12184 = vmul.f32 %v12132, %v11428
    %v12185 = vmul.f32 %v12133, %v11429
    %v12186 = vmul.f32 %v12134, %v11430
    %v12187 = vmul.f32 %v12135, %v11431
    %v12188 = vmul.f32 %v12136, %v11432
    %v12189 = vmul.f32 %v12137, %v11433
    %v12190 = vmul.f32 %v12138, %v11434
    %v12191 = vmul.f32 %v12139, %v11435
    %v12192 = vmul.f32 %v12140, %v11436
    %v12193 = vmul.f32 %v12141, %v11437
    %v12194 = vmul.f32 %v12142, %v11451
    %v12195 = vmul.f32 %v12143, %v11452
    %v12196 = vmul.f32 %v12144, %v11453
    %v12197 = vmul.f32 %v12145, %v11454
    %v12198 = vmul.f32 %v12146, %v11455
    %v12199 = vmul.f32 %v12147, %v11456
    %v12200 = vmul.f32 %v12148, %v11457
    %v12201 = vmul.f32 %v12149, %v11458
    %v12202 = vmul.f32 %v12150, %v11459
    %v12203 = vmul.f32 %v12151, %v11460
    %v12204 = vmul.f32 %v12152, %v11461
    %v12205 = vmul.f32 %v12153, %v11462
    %v12206 = vmul.f32 %v12154, %v11463
    %v12207 = vmul.f32 %v12155, %v11477
    %v12208 = vmul.f32 %v12156, %v11478
    %v12209 = vmul.f32 %v12157, %v11479
    %v12210 = vmul.f32 %v12158, %v11480
    %v12211 = vmul.f32 %v12159, %v11481
    %v12212 = vmul.f32 %v12160, %v11482
    %v12213 = vmul.f32 %v12161, %v11483
    %v12214 = vmul.f32 %v12162, %v11484
    %v12215 = vmul.f32 %v12163, %v11485
    %v12216 = vmul.f32 %v12164, %v11486
    %v12217 = vmul.f32 %v12165, %v11487
    %v12218 = vmul.f32 %v12166, %v11488
    %v12219 = vmul.f32 %v12167, %v11489
    %v12220 = vmul.f32 %v12168, %v11503
    %v12221 = vmul.f32 %v12169, %v11504
    %v12222 = vmul.f32 %v12170, %v11505
    %v12223 = vmul.f32 %v12171, %v11506
    %v12224 = vmul.f32 %v12172, %v11507
    %v12225 = vmul.f32 %v12173, %v11508
    %v12226 = vmul.f32 %v12174, %v11509
    %v12227 = vmul.f32 %v12175, %v11510
    %v12228 = vmul.f32 %v12176, %v11511
    %v12229 = vmul.f32 %v12177, %v11512
    %v12230 = vmul.f32 %v12178, %v11513
    %v12231 = vmul.f32 %v12179, %v11514
    %v12232 = vmul.f32 %v12180, %v11515
    %v12233 = vadd.f32 %v12181, %v12182
    %v12234 = vadd.f32 %v12233, %v12183
    %v12235 = vadd.f32 %v12234, %v12184
    %v12236 = vadd.f32 %v12235, %v12185
    %v12237 = vadd.f32 %v12236, %v12186
    %v12238 = vadd.f32 %v12237, %v12187
    %v12239 = vadd.f32 %v12238, %v12188
    %v12240 = vadd.f32 %v12239, %v12189
    %v12241 = vadd.f32 %v12240, %v12190
    %v12242 = vadd.f32 %v12241, %v12191
    %v12243 = vadd.f32 %v12242, %v12192
    %v12244 = vadd.f32 %v12243, %v12193
    %12245 = vadd.xlane.f32.xlu0 %v12244
    %v12246 = vpop.xlane.xlu0 %12245
    %v12247 = vadd.f32 %v12194, %v12195
    %v12248 = vadd.f32 %v12247, %v12196
    %v12249 = vadd.f32 %v12248, %v12197
    %v12250 = vadd.f32 %v12249, %v12198
    %v12251 = vadd.f32 %v12250, %v12199
    %v12252 = vadd.f32 %v12251, %v12200
    %v12253 = vadd.f32 %v12252, %v12201
    %v12254 = vadd.f32 %v12253, %v12202
    %v12255 = vadd.f32 %v12254, %v12203
    %v12256 = vadd.f32 %v12255, %v12204
    %v12257 = vadd.f32 %v12256, %v12205
    %v12258 = vadd.f32 %v12257, %v12206
    %12259 = vadd.xlane.f32.xlu0 %v12258
    %v12260 = vpop.xlane.xlu0 %12259
    %v12261 = vadd.f32 %v12207, %v12208
    %v12262 = vadd.f32 %v12261, %v12209
    %v12263 = vadd.f32 %v12262, %v12210
    %v12264 = vadd.f32 %v12263, %v12211
    %v12265 = vadd.f32 %v12264, %v12212
    %v12266 = vadd.f32 %v12265, %v12213
    %v12267 = vadd.f32 %v12266, %v12214
    %v12268 = vadd.f32 %v12267, %v12215
    %v12269 = vadd.f32 %v12268, %v12216
    %v12270 = vadd.f32 %v12269, %v12217
    %v12271 = vadd.f32 %v12270, %v12218
    %v12272 = vadd.f32 %v12271, %v12219
    %12273 = vadd.xlane.f32.xlu0 %v12272
    %v12274 = vpop.xlane.xlu0 %12273
    %v12275 = vadd.f32 %v12220, %v12221
    %v12276 = vadd.f32 %v12275, %v12222
    %v12277 = vadd.f32 %v12276, %v12223
    %v12278 = vadd.f32 %v12277, %v12224
    %v12279 = vadd.f32 %v12278, %v12225
    %v12280 = vadd.f32 %v12279, %v12226
    %v12281 = vadd.f32 %v12280, %v12227
    %v12282 = vadd.f32 %v12281, %v12228
    %v12283 = vadd.f32 %v12282, %v12229
    %v12284 = vadd.f32 %v12283, %v12230
    %v12285 = vadd.f32 %v12284, %v12231
    %v12286 = vadd.f32 %v12285, %v12232
    %12287 = vadd.xlane.f32.xlu0 %v12286
    %v12288 = vpop.xlane.xlu0 %12287
    %vm12289 = vcmask 7168
    %v12290 = vsel %vm12289, %v11679, %v11868
    %v12291 = vsel %vm12289, %v11693, %v11882
    %v12292 = vsel %vm12289, %v11707, %v11896
    %v12293 = vsel %vm12289, %v11721, %v11910
    %vm12294 = vcmask 15360
    %v12295 = vsel %vm12294, %v12290, %v12057
    %v12296 = vsel %vm12294, %v12291, %v12071
    %v12297 = vsel %vm12294, %v12292, %v12085
    %v12298 = vsel %vm12294, %v12293, %v12099
    %vm12299 = vcmask 23552
    %v12300 = vsel %vm12299, %v12295, %v12246
    %v12301 = vsel %vm12299, %v12296, %v12260
    %v12302 = vsel %vm12299, %v12297, %v12274
    %v12303 = vsel %vm12299, %v12298, %v12288
    %vm12304 = vcmask 31744
    %v12305 = vsel %vm12304, %v12300, 0.0
    %v12306 = vsel %vm12304, %v12301, 0.0
    %v12307 = vadd.f32 %v12305, %v12306
    %v12308 = vsel %vm12304, %v12302, 0.0
    %v12309 = vadd.f32 %v12307, %v12308
    %v12310 = vsel %vm12304, %v12303, 0.0
    %v12311 = vadd.f32 %v12309, %v12310
    %v12312 = vrot.slane %v12311, 4
    %v12313 = vadd.f32 %v12311, %v12312
    %v12314 = vrot.slane %v12313, 2
    %v12315 = vadd.f32 %v12313, %v12314
    %v12316 = vrot.slane %v12315, 1
    %v12317 = vadd.f32 %v12315, %v12316
    %v12318 = vmul.f32 %v11562, %v11438
    %v12319 = vmul.f32 %v11563, %v11439
    %v12320 = vmul.f32 %v11564, %v11440
    %v12321 = vmul.f32 %v11565, %v11441
    %v12322 = vmul.f32 %v11566, %v11442
    %v12323 = vmul.f32 %v11567, %v11443
    %v12324 = vmul.f32 %v11568, %v11444
    %v12325 = vmul.f32 %v11569, %v11445
    %v12326 = vmul.f32 %v11570, %v11446
    %v12327 = vmul.f32 %v11571, %v11447
    %v12328 = vmul.f32 %v11572, %v11448
    %v12329 = vmul.f32 %v11573, %v11449
    %v12330 = vmul.f32 %v11574, %v11450
    %v12331 = vmul.f32 %v11575, %v11464
    %v12332 = vmul.f32 %v11576, %v11465
    %v12333 = vmul.f32 %v11577, %v11466
    %v12334 = vmul.f32 %v11578, %v11467
    %v12335 = vmul.f32 %v11579, %v11468
    %v12336 = vmul.f32 %v11580, %v11469
    %v12337 = vmul.f32 %v11581, %v11470
    %v12338 = vmul.f32 %v11582, %v11471
    %v12339 = vmul.f32 %v11583, %v11472
    %v12340 = vmul.f32 %v11584, %v11473
    %v12341 = vmul.f32 %v11585, %v11474
    %v12342 = vmul.f32 %v11586, %v11475
    %v12343 = vmul.f32 %v11587, %v11476
    %v12344 = vmul.f32 %v11588, %v11490
    %v12345 = vmul.f32 %v11589, %v11491
    %v12346 = vmul.f32 %v11590, %v11492
    %v12347 = vmul.f32 %v11591, %v11493
    %v12348 = vmul.f32 %v11592, %v11494
    %v12349 = vmul.f32 %v11593, %v11495
    %v12350 = vmul.f32 %v11594, %v11496
    %v12351 = vmul.f32 %v11595, %v11497
    %v12352 = vmul.f32 %v11596, %v11498
    %v12353 = vmul.f32 %v11597, %v11499
    %v12354 = vmul.f32 %v11598, %v11500
    %v12355 = vmul.f32 %v11599, %v11501
    %v12356 = vmul.f32 %v11600, %v11502
    %v12357 = vmul.f32 %v11601, %v11516
    %v12358 = vmul.f32 %v11602, %v11517
    %v12359 = vmul.f32 %v11603, %v11518
    %v12360 = vmul.f32 %v11604, %v11519
    %v12361 = vmul.f32 %v11605, %v11520
    %v12362 = vmul.f32 %v11606, %v11521
    %v12363 = vmul.f32 %v11607, %v11522
    %v12364 = vmul.f32 %v11608, %v11523
    %v12365 = vmul.f32 %v11609, %v11524
    %v12366 = vmul.f32 %v11610, %v11525
    %v12367 = vmul.f32 %v11611, %v11526
    %v12368 = vmul.f32 %v11612, %v11527
    %v12369 = vmul.f32 %v11613, %v11528
    %v12370 = vadd.f32 %v12318, %v12319
    %v12371 = vadd.f32 %v12370, %v12320
    %v12372 = vadd.f32 %v12371, %v12321
    %v12373 = vadd.f32 %v12372, %v12322
    %v12374 = vadd.f32 %v12373, %v12323
    %v12375 = vadd.f32 %v12374, %v12324
    %v12376 = vadd.f32 %v12375, %v12325
    %v12377 = vadd.f32 %v12376, %v12326
    %v12378 = vadd.f32 %v12377, %v12327
    %v12379 = vadd.f32 %v12378, %v12328
    %v12380 = vadd.f32 %v12379, %v12329
    %v12381 = vadd.f32 %v12380, %v12330
    %12382 = vadd.xlane.f32.xlu0 %v12381
    %v12383 = vpop.xlane.xlu0 %12382
    %v12384 = vadd.f32 %v12331, %v12332
    %v12385 = vadd.f32 %v12384, %v12333
    %v12386 = vadd.f32 %v12385, %v12334
    %v12387 = vadd.f32 %v12386, %v12335
    %v12388 = vadd.f32 %v12387, %v12336
    %v12389 = vadd.f32 %v12388, %v12337
    %v12390 = vadd.f32 %v12389, %v12338
    %v12391 = vadd.f32 %v12390, %v12339
    %v12392 = vadd.f32 %v12391, %v12340
    %v12393 = vadd.f32 %v12392, %v12341
    %v12394 = vadd.f32 %v12393, %v12342
    %v12395 = vadd.f32 %v12394, %v12343
    %12396 = vadd.xlane.f32.xlu0 %v12395
    %v12397 = vpop.xlane.xlu0 %12396
    %v12398 = vadd.f32 %v12344, %v12345
    %v12399 = vadd.f32 %v12398, %v12346
    %v12400 = vadd.f32 %v12399, %v12347
    %v12401 = vadd.f32 %v12400, %v12348
    %v12402 = vadd.f32 %v12401, %v12349
    %v12403 = vadd.f32 %v12402, %v12350
    %v12404 = vadd.f32 %v12403, %v12351
    %v12405 = vadd.f32 %v12404, %v12352
    %v12406 = vadd.f32 %v12405, %v12353
    %v12407 = vadd.f32 %v12406, %v12354
    %v12408 = vadd.f32 %v12407, %v12355
    %v12409 = vadd.f32 %v12408, %v12356
    %12410 = vadd.xlane.f32.xlu0 %v12409
    %v12411 = vpop.xlane.xlu0 %12410
    %v12412 = vadd.f32 %v12357, %v12358
    %v12413 = vadd.f32 %v12412, %v12359
    %v12414 = vadd.f32 %v12413, %v12360
    %v12415 = vadd.f32 %v12414, %v12361
    %v12416 = vadd.f32 %v12415, %v12362
    %v12417 = vadd.f32 %v12416, %v12363
    %v12418 = vadd.f32 %v12417, %v12364
    %v12419 = vadd.f32 %v12418, %v12365
    %v12420 = vadd.f32 %v12419, %v12366
    %v12421 = vadd.f32 %v12420, %v12367
    %v12422 = vadd.f32 %v12421, %v12368
    %v12423 = vadd.f32 %v12422, %v12369
    %12424 = vadd.xlane.f32.xlu0 %v12423
    %v12425 = vpop.xlane.xlu0 %12424
    %v12426 = vmul.f32 %v11751, %v11438
    %v12427 = vmul.f32 %v11752, %v11439
    %v12428 = vmul.f32 %v11753, %v11440
    %v12429 = vmul.f32 %v11754, %v11441
    %v12430 = vmul.f32 %v11755, %v11442
    %v12431 = vmul.f32 %v11756, %v11443
    %v12432 = vmul.f32 %v11757, %v11444
    %v12433 = vmul.f32 %v11758, %v11445
    %v12434 = vmul.f32 %v11759, %v11446
    %v12435 = vmul.f32 %v11760, %v11447
    %v12436 = vmul.f32 %v11761, %v11448
    %v12437 = vmul.f32 %v11762, %v11449
    %v12438 = vmul.f32 %v11763, %v11450
    %v12439 = vmul.f32 %v11764, %v11464
    %v12440 = vmul.f32 %v11765, %v11465
    %v12441 = vmul.f32 %v11766, %v11466
    %v12442 = vmul.f32 %v11767, %v11467
    %v12443 = vmul.f32 %v11768, %v11468
    %v12444 = vmul.f32 %v11769, %v11469
    %v12445 = vmul.f32 %v11770, %v11470
    %v12446 = vmul.f32 %v11771, %v11471
    %v12447 = vmul.f32 %v11772, %v11472
    %v12448 = vmul.f32 %v11773, %v11473
    %v12449 = vmul.f32 %v11774, %v11474
    %v12450 = vmul.f32 %v11775, %v11475
    %v12451 = vmul.f32 %v11776, %v11476
    %v12452 = vmul.f32 %v11777, %v11490
    %v12453 = vmul.f32 %v11778, %v11491
    %v12454 = vmul.f32 %v11779, %v11492
    %v12455 = vmul.f32 %v11780, %v11493
    %v12456 = vmul.f32 %v11781, %v11494
    %v12457 = vmul.f32 %v11782, %v11495
    %v12458 = vmul.f32 %v11783, %v11496
    %v12459 = vmul.f32 %v11784, %v11497
    %v12460 = vmul.f32 %v11785, %v11498
    %v12461 = vmul.f32 %v11786, %v11499
    %v12462 = vmul.f32 %v11787, %v11500
    %v12463 = vmul.f32 %v11788, %v11501
    %v12464 = vmul.f32 %v11789, %v11502
    %v12465 = vmul.f32 %v11790, %v11516
    %v12466 = vmul.f32 %v11791, %v11517
    %v12467 = vmul.f32 %v11792, %v11518
    %v12468 = vmul.f32 %v11793, %v11519
    %v12469 = vmul.f32 %v11794, %v11520
    %v12470 = vmul.f32 %v11795, %v11521
    %v12471 = vmul.f32 %v11796, %v11522
    %v12472 = vmul.f32 %v11797, %v11523
    %v12473 = vmul.f32 %v11798, %v11524
    %v12474 = vmul.f32 %v11799, %v11525
    %v12475 = vmul.f32 %v11800, %v11526
    %v12476 = vmul.f32 %v11801, %v11527
    %v12477 = vmul.f32 %v11802, %v11528
    %v12478 = vadd.f32 %v12426, %v12427
    %v12479 = vadd.f32 %v12478, %v12428
    %v12480 = vadd.f32 %v12479, %v12429
    %v12481 = vadd.f32 %v12480, %v12430
    %v12482 = vadd.f32 %v12481, %v12431
    %v12483 = vadd.f32 %v12482, %v12432
    %v12484 = vadd.f32 %v12483, %v12433
    %v12485 = vadd.f32 %v12484, %v12434
    %v12486 = vadd.f32 %v12485, %v12435
    %v12487 = vadd.f32 %v12486, %v12436
    %v12488 = vadd.f32 %v12487, %v12437
    %v12489 = vadd.f32 %v12488, %v12438
    %12490 = vadd.xlane.f32.xlu0 %v12489
    %v12491 = vpop.xlane.xlu0 %12490
    %v12492 = vadd.f32 %v12439, %v12440
    %v12493 = vadd.f32 %v12492, %v12441
    %v12494 = vadd.f32 %v12493, %v12442
    %v12495 = vadd.f32 %v12494, %v12443
    %v12496 = vadd.f32 %v12495, %v12444
    %v12497 = vadd.f32 %v12496, %v12445
    %v12498 = vadd.f32 %v12497, %v12446
    %v12499 = vadd.f32 %v12498, %v12447
    %v12500 = vadd.f32 %v12499, %v12448
    %v12501 = vadd.f32 %v12500, %v12449
    %v12502 = vadd.f32 %v12501, %v12450
    %v12503 = vadd.f32 %v12502, %v12451
    %12504 = vadd.xlane.f32.xlu0 %v12503
    %v12505 = vpop.xlane.xlu0 %12504
    %v12506 = vadd.f32 %v12452, %v12453
    %v12507 = vadd.f32 %v12506, %v12454
    %v12508 = vadd.f32 %v12507, %v12455
    %v12509 = vadd.f32 %v12508, %v12456
    %v12510 = vadd.f32 %v12509, %v12457
    %v12511 = vadd.f32 %v12510, %v12458
    %v12512 = vadd.f32 %v12511, %v12459
    %v12513 = vadd.f32 %v12512, %v12460
    %v12514 = vadd.f32 %v12513, %v12461
    %v12515 = vadd.f32 %v12514, %v12462
    %v12516 = vadd.f32 %v12515, %v12463
    %v12517 = vadd.f32 %v12516, %v12464
    %12518 = vadd.xlane.f32.xlu0 %v12517
    %v12519 = vpop.xlane.xlu0 %12518
    %v12520 = vadd.f32 %v12465, %v12466
    %v12521 = vadd.f32 %v12520, %v12467
    %v12522 = vadd.f32 %v12521, %v12468
    %v12523 = vadd.f32 %v12522, %v12469
    %v12524 = vadd.f32 %v12523, %v12470
    %v12525 = vadd.f32 %v12524, %v12471
    %v12526 = vadd.f32 %v12525, %v12472
    %v12527 = vadd.f32 %v12526, %v12473
    %v12528 = vadd.f32 %v12527, %v12474
    %v12529 = vadd.f32 %v12528, %v12475
    %v12530 = vadd.f32 %v12529, %v12476
    %v12531 = vadd.f32 %v12530, %v12477
    %12532 = vadd.xlane.f32.xlu0 %v12531
    %v12533 = vpop.xlane.xlu0 %12532
    %v12534 = vmul.f32 %v11940, %v11438
    %v12535 = vmul.f32 %v11941, %v11439
    %v12536 = vmul.f32 %v11942, %v11440
    %v12537 = vmul.f32 %v11943, %v11441
    %v12538 = vmul.f32 %v11944, %v11442
    %v12539 = vmul.f32 %v11945, %v11443
    %v12540 = vmul.f32 %v11946, %v11444
    %v12541 = vmul.f32 %v11947, %v11445
    %v12542 = vmul.f32 %v11948, %v11446
    %v12543 = vmul.f32 %v11949, %v11447
    %v12544 = vmul.f32 %v11950, %v11448
    %v12545 = vmul.f32 %v11951, %v11449
    %v12546 = vmul.f32 %v11952, %v11450
    %v12547 = vmul.f32 %v11953, %v11464
    %v12548 = vmul.f32 %v11954, %v11465
    %v12549 = vmul.f32 %v11955, %v11466
    %v12550 = vmul.f32 %v11956, %v11467
    %v12551 = vmul.f32 %v11957, %v11468
    %v12552 = vmul.f32 %v11958, %v11469
    %v12553 = vmul.f32 %v11959, %v11470
    %v12554 = vmul.f32 %v11960, %v11471
    %v12555 = vmul.f32 %v11961, %v11472
    %v12556 = vmul.f32 %v11962, %v11473
    %v12557 = vmul.f32 %v11963, %v11474
    %v12558 = vmul.f32 %v11964, %v11475
    %v12559 = vmul.f32 %v11965, %v11476
    %v12560 = vmul.f32 %v11966, %v11490
    %v12561 = vmul.f32 %v11967, %v11491
    %v12562 = vmul.f32 %v11968, %v11492
    %v12563 = vmul.f32 %v11969, %v11493
    %v12564 = vmul.f32 %v11970, %v11494
    %v12565 = vmul.f32 %v11971, %v11495
    %v12566 = vmul.f32 %v11972, %v11496
    %v12567 = vmul.f32 %v11973, %v11497
    %v12568 = vmul.f32 %v11974, %v11498
    %v12569 = vmul.f32 %v11975, %v11499
    %v12570 = vmul.f32 %v11976, %v11500
    %v12571 = vmul.f32 %v11977, %v11501
    %v12572 = vmul.f32 %v11978, %v11502
    %v12573 = vmul.f32 %v11979, %v11516
    %v12574 = vmul.f32 %v11980, %v11517
    %v12575 = vmul.f32 %v11981, %v11518
    %v12576 = vmul.f32 %v11982, %v11519
    %v12577 = vmul.f32 %v11983, %v11520
    %v12578 = vmul.f32 %v11984, %v11521
    %v12579 = vmul.f32 %v11985, %v11522
    %v12580 = vmul.f32 %v11986, %v11523
    %v12581 = vmul.f32 %v11987, %v11524
    %v12582 = vmul.f32 %v11988, %v11525
    %v12583 = vmul.f32 %v11989, %v11526
    %v12584 = vmul.f32 %v11990, %v11527
    %v12585 = vmul.f32 %v11991, %v11528
    %v12586 = vadd.f32 %v12534, %v12535
    %v12587 = vadd.f32 %v12586, %v12536
    %v12588 = vadd.f32 %v12587, %v12537
    %v12589 = vadd.f32 %v12588, %v12538
    %v12590 = vadd.f32 %v12589, %v12539
    %v12591 = vadd.f32 %v12590, %v12540
    %v12592 = vadd.f32 %v12591, %v12541
    %v12593 = vadd.f32 %v12592, %v12542
    %v12594 = vadd.f32 %v12593, %v12543
    %v12595 = vadd.f32 %v12594, %v12544
    %v12596 = vadd.f32 %v12595, %v12545
    %v12597 = vadd.f32 %v12596, %v12546
    %12598 = vadd.xlane.f32.xlu0 %v12597
    %v12599 = vpop.xlane.xlu0 %12598
    %v12600 = vadd.f32 %v12547, %v12548
    %v12601 = vadd.f32 %v12600, %v12549
    %v12602 = vadd.f32 %v12601, %v12550
    %v12603 = vadd.f32 %v12602, %v12551
    %v12604 = vadd.f32 %v12603, %v12552
    %v12605 = vadd.f32 %v12604, %v12553
    %v12606 = vadd.f32 %v12605, %v12554
    %v12607 = vadd.f32 %v12606, %v12555
    %v12608 = vadd.f32 %v12607, %v12556
    %v12609 = vadd.f32 %v12608, %v12557
    %v12610 = vadd.f32 %v12609, %v12558
    %v12611 = vadd.f32 %v12610, %v12559
    %12612 = vadd.xlane.f32.xlu0 %v12611
    %v12613 = vpop.xlane.xlu0 %12612
    %v12614 = vadd.f32 %v12560, %v12561
    %v12615 = vadd.f32 %v12614, %v12562
    %v12616 = vadd.f32 %v12615, %v12563
    %v12617 = vadd.f32 %v12616, %v12564
    %v12618 = vadd.f32 %v12617, %v12565
    %v12619 = vadd.f32 %v12618, %v12566
    %v12620 = vadd.f32 %v12619, %v12567
    %v12621 = vadd.f32 %v12620, %v12568
    %v12622 = vadd.f32 %v12621, %v12569
    %v12623 = vadd.f32 %v12622, %v12570
    %v12624 = vadd.f32 %v12623, %v12571
    %v12625 = vadd.f32 %v12624, %v12572
    %12626 = vadd.xlane.f32.xlu0 %v12625
    %v12627 = vpop.xlane.xlu0 %12626
    %v12628 = vadd.f32 %v12573, %v12574
    %v12629 = vadd.f32 %v12628, %v12575
    %v12630 = vadd.f32 %v12629, %v12576
    %v12631 = vadd.f32 %v12630, %v12577
    %v12632 = vadd.f32 %v12631, %v12578
    %v12633 = vadd.f32 %v12632, %v12579
    %v12634 = vadd.f32 %v12633, %v12580
    %v12635 = vadd.f32 %v12634, %v12581
    %v12636 = vadd.f32 %v12635, %v12582
    %v12637 = vadd.f32 %v12636, %v12583
    %v12638 = vadd.f32 %v12637, %v12584
    %v12639 = vadd.f32 %v12638, %v12585
    %12640 = vadd.xlane.f32.xlu0 %v12639
    %v12641 = vpop.xlane.xlu0 %12640
    %v12642 = vmul.f32 %v12129, %v11438
    %v12643 = vmul.f32 %v12130, %v11439
    %v12644 = vmul.f32 %v12131, %v11440
    %v12645 = vmul.f32 %v12132, %v11441
    %v12646 = vmul.f32 %v12133, %v11442
    %v12647 = vmul.f32 %v12134, %v11443
    %v12648 = vmul.f32 %v12135, %v11444
    %v12649 = vmul.f32 %v12136, %v11445
    %v12650 = vmul.f32 %v12137, %v11446
    %v12651 = vmul.f32 %v12138, %v11447
    %v12652 = vmul.f32 %v12139, %v11448
    %v12653 = vmul.f32 %v12140, %v11449
    %v12654 = vmul.f32 %v12141, %v11450
    %v12655 = vmul.f32 %v12142, %v11464
    %v12656 = vmul.f32 %v12143, %v11465
    %v12657 = vmul.f32 %v12144, %v11466
    %v12658 = vmul.f32 %v12145, %v11467
    %v12659 = vmul.f32 %v12146, %v11468
    %v12660 = vmul.f32 %v12147, %v11469
    %v12661 = vmul.f32 %v12148, %v11470
    %v12662 = vmul.f32 %v12149, %v11471
    %v12663 = vmul.f32 %v12150, %v11472
    %v12664 = vmul.f32 %v12151, %v11473
    %v12665 = vmul.f32 %v12152, %v11474
    %v12666 = vmul.f32 %v12153, %v11475
    %v12667 = vmul.f32 %v12154, %v11476
    %v12668 = vmul.f32 %v12155, %v11490
    %v12669 = vmul.f32 %v12156, %v11491
    %v12670 = vmul.f32 %v12157, %v11492
    %v12671 = vmul.f32 %v12158, %v11493
    %v12672 = vmul.f32 %v12159, %v11494
    %v12673 = vmul.f32 %v12160, %v11495
    %v12674 = vmul.f32 %v12161, %v11496
    %v12675 = vmul.f32 %v12162, %v11497
    %v12676 = vmul.f32 %v12163, %v11498
    %v12677 = vmul.f32 %v12164, %v11499
    %v12678 = vmul.f32 %v12165, %v11500
    %v12679 = vmul.f32 %v12166, %v11501
    %v12680 = vmul.f32 %v12167, %v11502
    %v12681 = vmul.f32 %v12168, %v11516
    %v12682 = vmul.f32 %v12169, %v11517
    %v12683 = vmul.f32 %v12170, %v11518
    %v12684 = vmul.f32 %v12171, %v11519
    %v12685 = vmul.f32 %v12172, %v11520
    %v12686 = vmul.f32 %v12173, %v11521
    %v12687 = vmul.f32 %v12174, %v11522
    %v12688 = vmul.f32 %v12175, %v11523
    %v12689 = vmul.f32 %v12176, %v11524
    %v12690 = vmul.f32 %v12177, %v11525
    %v12691 = vmul.f32 %v12178, %v11526
    %v12692 = vmul.f32 %v12179, %v11527
    %v12693 = vmul.f32 %v12180, %v11528
    %v12694 = vadd.f32 %v12642, %v12643
    %v12695 = vadd.f32 %v12694, %v12644
    %v12696 = vadd.f32 %v12695, %v12645
    %v12697 = vadd.f32 %v12696, %v12646
    %v12698 = vadd.f32 %v12697, %v12647
    %v12699 = vadd.f32 %v12698, %v12648
    %v12700 = vadd.f32 %v12699, %v12649
    %v12701 = vadd.f32 %v12700, %v12650
    %v12702 = vadd.f32 %v12701, %v12651
    %v12703 = vadd.f32 %v12702, %v12652
    %v12704 = vadd.f32 %v12703, %v12653
    %v12705 = vadd.f32 %v12704, %v12654
    %12706 = vadd.xlane.f32.xlu0 %v12705
    %v12707 = vpop.xlane.xlu0 %12706
    %v12708 = vadd.f32 %v12655, %v12656
    %v12709 = vadd.f32 %v12708, %v12657
    %v12710 = vadd.f32 %v12709, %v12658
    %v12711 = vadd.f32 %v12710, %v12659
    %v12712 = vadd.f32 %v12711, %v12660
    %v12713 = vadd.f32 %v12712, %v12661
    %v12714 = vadd.f32 %v12713, %v12662
    %v12715 = vadd.f32 %v12714, %v12663
    %v12716 = vadd.f32 %v12715, %v12664
    %v12717 = vadd.f32 %v12716, %v12665
    %v12718 = vadd.f32 %v12717, %v12666
    %v12719 = vadd.f32 %v12718, %v12667
    %12720 = vadd.xlane.f32.xlu0 %v12719
    %v12721 = vpop.xlane.xlu0 %12720
    %v12722 = vadd.f32 %v12668, %v12669
    %v12723 = vadd.f32 %v12722, %v12670
    %v12724 = vadd.f32 %v12723, %v12671
    %v12725 = vadd.f32 %v12724, %v12672
    %v12726 = vadd.f32 %v12725, %v12673
    %v12727 = vadd.f32 %v12726, %v12674
    %v12728 = vadd.f32 %v12727, %v12675
    %v12729 = vadd.f32 %v12728, %v12676
    %v12730 = vadd.f32 %v12729, %v12677
    %v12731 = vadd.f32 %v12730, %v12678
    %v12732 = vadd.f32 %v12731, %v12679
    %v12733 = vadd.f32 %v12732, %v12680
    %12734 = vadd.xlane.f32.xlu0 %v12733
    %v12735 = vpop.xlane.xlu0 %12734
    %v12736 = vadd.f32 %v12681, %v12682
    %v12737 = vadd.f32 %v12736, %v12683
    %v12738 = vadd.f32 %v12737, %v12684
    %v12739 = vadd.f32 %v12738, %v12685
    %v12740 = vadd.f32 %v12739, %v12686
    %v12741 = vadd.f32 %v12740, %v12687
    %v12742 = vadd.f32 %v12741, %v12688
    %v12743 = vadd.f32 %v12742, %v12689
    %v12744 = vadd.f32 %v12743, %v12690
    %v12745 = vadd.f32 %v12744, %v12691
    %v12746 = vadd.f32 %v12745, %v12692
    %v12747 = vadd.f32 %v12746, %v12693
    %12748 = vadd.xlane.f32.xlu0 %v12747
    %v12749 = vpop.xlane.xlu0 %12748
    %v12750 = vsel %vm12289, %v12383, %v12491
    %v12751 = vsel %vm12289, %v12397, %v12505
    %v12752 = vsel %vm12289, %v12411, %v12519
    %v12753 = vsel %vm12289, %v12425, %v12533
    %v12754 = vsel %vm12294, %v12750, %v12599
    %v12755 = vsel %vm12294, %v12751, %v12613
    %v12756 = vsel %vm12294, %v12752, %v12627
    %v12757 = vsel %vm12294, %v12753, %v12641
    %v12758 = vsel %vm12299, %v12754, %v12707
    %v12759 = vsel %vm12299, %v12755, %v12721
    %v12760 = vsel %vm12299, %v12756, %v12735
    %v12761 = vsel %vm12299, %v12757, %v12749
    %v12762 = vsel %vm12304, %v12758, 0.0
    %v12763 = vsel %vm12304, %v12759, 0.0
    %v12764 = vadd.f32 %v12762, %v12763
    %v12765 = vsel %vm12304, %v12760, 0.0
    %v12766 = vadd.f32 %v12764, %v12765
    %v12767 = vsel %vm12304, %v12761, 0.0
    %v12768 = vadd.f32 %v12766, %v12767
    %v12769 = vrot.slane %v12768, 4
    %v12770 = vadd.f32 %v12768, %v12769
    %v12771 = vrot.slane %v12770, 2
    %v12772 = vadd.f32 %v12770, %v12771
    %v12773 = vrot.slane %v12772, 1
    %v12774 = vadd.f32 %v12772, %v12773
    %vm12775 = vcmask 1040384
    %v12776 = vsel %vm12775, %v12317, %v12774
    %v12777 = vld [vmem:[%s7] sm:$0x1]
    %v12779 = vlaneseq
    %v12780 = vshrl.u32 %v12779, 7
    %v12781 = vsub.s32 0, %v12780
    %v12782 = vrot.slane %v12777, %v12781
    %v12784 = vadd.f32 %v12776, %v12782
    %vm12785 = vcmask 25600
    %v12786 = vsel %vm12785, %v12784, -inf
    %12787 = vmax.xlane.f32.xlu0 %v12786
    %v12788 = vpop.xlane.xlu0 %12787
    %v12789 = vsub.f32 %v12784, %v12788
    %v12790 = vmul.f32 %v12789, 1.442695
    %v12791 = vpow.pop %v12790
    %v12792 = vsel %vm12785, %v12791, 0.0
    %12793 = vadd.xlane.f32.xlu0 %v12792
    %v12794 = vpop.xlane.xlu0 %12793
    %v12795 = vrcp.pop %v12794
    %v12796 = vmul.f32 %v12791, %v12795
    %12797 = vst.msk [vmem:[#allocation6] sm:$0x3] %vm12785, %v12796
    // Predicated region
    $region64: #{test_model_forward.1} parent=1 // pred_check
      _
    $region65: #{test_model_forward.1} parent=1 // pred_check_branch
      %12799 = sbr.rel (0) target = $region67
    $region66: #{test_model_forward.1} parent=1 // pred_region
      %s12801 = ssub.s32 32, 32
      %12802 = vsyncadd [#allocation7], %s12801
      %s12804 = sshll.u32 [#allocation6], 4
      %s12805 = int_to_ptr.vmem [resolvable:$true] %s12804
      %12807 = dma.vmem_to_hbm [thread:$0]  %s12805, 32, %s8, [#allocation7]
    $region67: #{test_model_forward.1} parent=1 // pred_fallthru
      _
    // Predicated region
    $region68: #{test_model_forward.1} parent=1 // pred_check
      _
    $region69: #{test_model_forward.1} parent=1 // pred_check_branch
      %12809 = sbr.rel (0) target = $region71
    $region70: #{test_model_forward.1} parent=1 // pred_region
      %12810 = dma.done [#allocation7], 32
    $region71: #{test_model_forward.1} parent=1 // pred_fallthru
      _
    %12811 = vsyncpa [#allocation7], 1
  %12812 = vsyncmov [#allocation5]
  %s12813 = vpop.sfrf %12812
  %p12814 = scmp.eq.s32.totalorder %s12813, 0
  %p12815 = pneg %p12814
  %12817 = shalt.err (%p12815)

</llo_original>
